<compile_context>
chip_gen: v7x
topology: tpu7x:2x2x1
jax: 0.10.0
libtpu: 0.0.40
codegen_flags: <defaults>
</compile_context>

<pallas_src>
import functools

import jax
import jax.numpy as jnp
import numpy as np
from jax.experimental import pallas as pl
from jax.experimental.pallas import tpu as pltpu


def _unet_up_kernel(x1_ref, x2_ref, scat_ref, w_up_ref, b_up_ref,
                    w1_ref, b1_ref, w2_ref, b2_ref, o_ref,
                    cat_ref, y1_ref, *, H2, W2, Cin, C1, C, Cout, H, W):
    """Fused: sub-pixel ConvTranspose2d(4,2,1) -> pad/concat -> (3x3 conv + ReLU) x2."""
    f32 = jnp.float32

    # ---- Stage A: transposed conv as 4 sub-pixel 2x2 convs, each one im2col matmul ----
    # out[2m+ph, 2n+pw, co] = sum_{dh,dw,ci} x2p[m+ph+dh, n+pw+dw, ci] * wT[ci,co,3-ph-2dh,3-pw-2dw]
    u_list = []
    for ph in range(2):
        for pw in range(2):
            parts = [x2_ref[0, ph + dh:ph + dh + H2, pw + dw:pw + dw + W2, :]
                     .reshape(H2 * W2, Cin)
                     for dh in range(2) for dw in range(2)]
            patch = jnp.concatenate(parts, axis=1)                      # (H2*W2, 4*Cin) bf16
            u = jnp.dot(patch, w_up_ref[ph * 2 + pw],
                        preferred_element_type=f32) + b_up_ref[...]     # (H2*W2, Cout) f32
            u_list.append(u.astype(cat_ref.dtype))
    u_all = jnp.concatenate(u_list, axis=0)                             # (4*H2*W2, Cout) bf16
    # Interleave the 4 phases into row order h*W+w with a constant 0/1 matrix
    # (exactly one nonzero per row -> exact; runs on the MXU, no strided relayout).
    up_flat = jnp.dot(scat_ref[...], u_all,
                      preferred_element_type=f32)                       # (H*W, Cout) f32

    # ---- cat([outputs1, outputs2], channel) + 3x3-conv halo, built in VMEM scratch ----
    cat_ref[...] = jnp.zeros(cat_ref.shape, cat_ref.dtype)
    cat_ref[1:H + 1, 1:W + 1, :C1] = x1_ref[0]
    cat_ref[1:H + 1, 1:W + 1, C1:] = up_flat.reshape(H, W, Cout).astype(cat_ref.dtype)

    def conv3x3_relu(src_ref, c_src, w_ref, b_ref):
        # single im2col matmul: (H*W, 9*c_src) @ (9*c_src, Cout), f32 accumulate
        parts = [src_ref[kh:kh + H, kw:kw + W, :].reshape(H * W, c_src)
                 for kh in range(3) for kw in range(3)]
        patch = jnp.concatenate(parts, axis=1)
        y = jnp.dot(patch, w_ref[...], preferred_element_type=f32) + b_ref[...]
        return jnp.maximum(y, 0.0)                                      # (H*W, Cout) f32

    # ---- conv1 + ReLU (kept resident in VMEM) ----
    y1 = conv3x3_relu(cat_ref, C, w1_ref, b1_ref)
    y1_ref[...] = jnp.zeros(y1_ref.shape, y1_ref.dtype)
    y1_ref[1:H + 1, 1:W + 1, :] = y1.reshape(H, W, Cout).astype(y1_ref.dtype)

    # ---- conv2 + ReLU; transpose so the store is lane-dense (last dim = H*W) ----
    y2 = conv3x3_relu(y1_ref, Cout, w2_ref, b2_ref)                     # (H*W, Cout)
    o_ref[...] = jnp.transpose(y2)[None].astype(o_ref.dtype)            # (1, Cout, H*W)


def _phase_scatter_matrix(H2, W2):
    """0/1 matrix mapping phase-major deconv rows to interleaved h*W+w rows."""
    H, W = 2 * H2, 2 * W2
    S = np.zeros((H * W, 4 * H2 * W2), np.float32)
    for ph in range(2):
        for pw in range(2):
            base = (ph * 2 + pw) * H2 * W2
            for m in range(H2):
                for n in range(W2):
                    S[(2 * m + ph) * W + (2 * n + pw), base + m * W2 + n] = 1.0
    return S


def init_unet_up_params(key, in_size, out_size):
    """Deterministic kaiming-normal-ish init matching the PyTorch shapes."""
    ks = jax.random.split(key, 6)
    # ConvTranspose2d(in_size, out_size, 4, 2, 1): weight (in, out, 4, 4)
    fan_t = out_size * 4 * 4
    w_up = jax.random.normal(ks[0], (in_size, out_size, 4, 4), jnp.float32) * (2.0 / fan_t) ** 0.5
    b_up = 0.01 * jax.random.normal(ks[1], (out_size,), jnp.float32)
    # conv1: Conv2d(in_size, out_size, 3, 1, 1): weight (out, in, 3, 3)
    fan1 = in_size * 9
    w1 = jax.random.normal(ks[2], (out_size, in_size, 3, 3), jnp.float32) * (2.0 / fan1) ** 0.5
    b1 = 0.01 * jax.random.normal(ks[3], (out_size,), jnp.float32)
    # conv2: Conv2d(out_size, out_size, 3, 1, 1)
    fan2 = out_size * 9
    w2 = jax.random.normal(ks[4], (out_size, out_size, 3, 3), jnp.float32) * (2.0 / fan2) ** 0.5
    b2 = 0.01 * jax.random.normal(ks[5], (out_size,), jnp.float32)
    return dict(w_up=w_up, b_up=b_up, w1=w1, b1=b1, w2=w2, b2=b2)


def unet_up_forward(params, inputs1_nchw, inputs2_nchw):
    f32, bf16 = jnp.float32, jnp.bfloat16
    x1 = jnp.transpose(inputs1_nchw, (0, 2, 3, 1))        # NCHW -> NHWC
    x2 = jnp.transpose(inputs2_nchw, (0, 2, 3, 1))
    N, H2, W2, Cin = x2.shape
    C1 = x1.shape[-1]
    Cout = params["b_up"].shape[0]
    C = C1 + Cout                                         # channels into conv1 (= in_size)
    H, W = 2 * H2, 2 * W2                                 # ConvTranspose2d(4,2,1) output size

    # F.pad(inputs1, [offset//2]*4)   (offset assumed even, non-negative as in the module's use)
    p = (H - x1.shape[1]) // 2
    if p > 0:
        x1 = jnp.pad(x1, ((0, 0), (p, p), (p, p), (0, 0)))
    x1 = x1.astype(bf16)

    # 1-pixel halo for the sub-pixel (phase) decomposition of the transposed conv
    x2p = jnp.pad(x2, ((0, 0), (1, 1), (1, 1), (0, 0))).astype(bf16)

    # ---- matmul-ready weights, prepared once outside the kernel ----
    w_up = params["w_up"]                                 # (Cin, Cout, 4, 4) torch layout
    phase_mats = []
    for ph in range(2):
        for pw in range(2):
            taps = [w_up[:, :, 3 - ph - 2 * dh, 3 - pw - 2 * dw]
                    for dh in range(2) for dw in range(2)]            # 4 x (Cin, Cout)
            phase_mats.append(jnp.stack(taps, axis=0).reshape(4 * Cin, Cout))
    w_up_mat = jnp.stack(phase_mats, axis=0).astype(bf16)             # (4, 4*Cin, Cout)
    w1_mat = jnp.transpose(params["w1"], (2, 3, 1, 0)).reshape(9 * C, Cout).astype(bf16)
    w2_mat = jnp.transpose(params["w2"], (2, 3, 1, 0)).reshape(9 * Cout, Cout).astype(bf16)
    b_up = params["b_up"].reshape(1, Cout).astype(f32)
    b1 = params["b1"].reshape(1, Cout).astype(f32)
    b2 = params["b2"].reshape(1, Cout).astype(f32)
    scat = jnp.asarray(_phase_scatter_matrix(H2, W2), bf16)           # (H*W, 4*H2*W2)

    kernel = functools.partial(_unet_up_kernel, H2=H2, W2=W2, Cin=Cin,
                               C1=C1, C=C, Cout=Cout, H=H, W=W)
    out = pl.pallas_call(
        kernel,
        out_shape=jax.ShapeDtypeStruct((N, Cout, H * W), f32),
        grid_spec=pltpu.PrefetchScalarGridSpec(
            num_scalar_prefetch=0,
            grid=(N,),
            in_specs=[
                pl.BlockSpec((1, H, W, C1), lambda n: (n, 0, 0, 0)),             # skip conn.
                pl.BlockSpec((1, H2 + 2, W2 + 2, Cin), lambda n: (n, 0, 0, 0)),  # low-res + halo
                pl.BlockSpec((H * W, 4 * H2 * W2), lambda n: (0, 0)),            # phase scatter
                pl.BlockSpec((4, 4 * Cin, Cout), lambda n: (0, 0, 0)),           # deconv phase W
                pl.BlockSpec((1, Cout), lambda n: (0, 0)),                       # deconv bias
                pl.BlockSpec((9 * C, Cout), lambda n: (0, 0)),                   # conv1 W (im2col)
                pl.BlockSpec((1, Cout), lambda n: (0, 0)),                       # conv1 bias
                pl.BlockSpec((9 * Cout, Cout), lambda n: (0, 0)),                # conv2 W (im2col)
                pl.BlockSpec((1, Cout), lambda n: (0, 0)),                       # conv2 bias
            ],
            out_specs=pl.BlockSpec((1, Cout, H * W), lambda n: (n, 0, 0)),
            scratch_shapes=[
                pltpu.VMEM((H + 2, W + 2, C), bf16),       # padded concat image
                pltpu.VMEM((H + 2, W + 2, Cout), bf16),    # padded conv1 output
            ],
        ),
        compiler_params=pltpu.CompilerParams(
            dimension_semantics=("parallel",)),            # batch sharded over v7x megacore
    )(x1, x2p, scat, w_up_mat, b_up, w1_mat, b1, w2_mat, b2)

    # (N, Cout, H*W) -> NCHW; this reshape is layout-free.
    return out.reshape(N, Cout, H, W)


if __name__ == "__main__":
    in_size, out_size = 8, 4
    key = jax.random.PRNGKey(0)
    kp, k1, k2 = jax.random.split(key, 3)
    params = init_unet_up_params(kp, in_size, out_size)

    # inputs1: skip connection, NCHW (2, in_size - out_size, 16, 16)
    # inputs2: lower-resolution features, NCHW (2, in_size, 8, 8)
    inputs1 = jax.random.normal(k1, (2, in_size - out_size, 16, 16), jnp.float32)
    inputs2 = jax.random.normal(k2, (2, in_size, 8, 8), jnp.float32)

    out = unet_up_forward(params, inputs1, inputs2)
    out = jax.block_until_ready(out)
    assert out.shape == (2, out_size, 16, 16), out.shape
    assert bool(jnp.all(jnp.isfinite(out)))
    print("KERNEL_OK")
</pallas_src>

<mosaic_0001>
module attributes {stable_mosaic.version = 11 : i64} {
  func.func @_unet_up_kernel(%arg0: i32, %arg1: memref<1x16x16x4xbf16, #tpu.memory_space<vmem>>, %arg2: memref<1x10x10x8xbf16, #tpu.memory_space<vmem>>, %arg3: memref<256x256xbf16, #tpu.memory_space<vmem>>, %arg4: memref<4x32x4xbf16, #tpu.memory_space<vmem>>, %arg5: memref<1x4xf32, #tpu.memory_space<vmem>>, %arg6: memref<72x4xbf16, #tpu.memory_space<vmem>>, %arg7: memref<1x4xf32, #tpu.memory_space<vmem>>, %arg8: memref<36x4xbf16, #tpu.memory_space<vmem>>, %arg9: memref<1x4xf32, #tpu.memory_space<vmem>>, %arg10: memref<1x4x256xf32, #tpu.memory_space<vmem>>, %arg11: memref<18x18x8xbf16, #tpu.memory_space<vmem>>, %arg12: memref<18x18x4xbf16, #tpu.memory_space<vmem>>) attributes {dimension_semantics = [#tpu.dimension_semantics<parallel>], iteration_bounds = array<i64: 2>, scalar_prefetch = 0 : i64, scratch_operands = 2 : i64, tpu.core_type = #tpu.core_type<tc>, window_params = [{transform_indices = @transform_0, window_bounds = array<i64: 1, 16, 16, 4>}, {transform_indices = @transform_1, window_bounds = array<i64: 1, 10, 10, 8>}, {pipeline_mode = #tpu.pipeline_mode<synchronous>, transform_indices = @transform_2, window_bounds = array<i64: 256, 256>}, {pipeline_mode = #tpu.pipeline_mode<synchronous>, transform_indices = @transform_3, window_bounds = array<i64: 4, 32, 4>}, {pipeline_mode = #tpu.pipeline_mode<synchronous>, transform_indices = @transform_4, window_bounds = array<i64: 1, 4>}, {pipeline_mode = #tpu.pipeline_mode<synchronous>, transform_indices = @transform_5, window_bounds = array<i64: 72, 4>}, {pipeline_mode = #tpu.pipeline_mode<synchronous>, transform_indices = @transform_6, window_bounds = array<i64: 1, 4>}, {pipeline_mode = #tpu.pipeline_mode<synchronous>, transform_indices = @transform_7, window_bounds = array<i64: 36, 4>}, {pipeline_mode = #tpu.pipeline_mode<synchronous>, transform_indices = @transform_8, window_bounds = array<i64: 1, 4>}, {transform_indices = @transform_9, window_bounds = array<i64: 1, 4, 256>}]} {
    %c0 = arith.constant 0 : index
    %c0_0 = arith.constant 0 : index
    %c0_1 = arith.constant 0 : index
    %c0_2 = arith.constant 0 : index
    %0 = vector.load %arg2[%c0, %c0_0, %c0_1, %c0_2] : memref<1x10x10x8xbf16, #tpu.memory_space<vmem>>, vector<1x8x8x8xbf16>
    %1 = vector.shape_cast %0 : vector<1x8x8x8xbf16> to vector<8x8x8xbf16>
    %2 = vector.shape_cast %1 : vector<8x8x8xbf16> to vector<64x8xbf16>
    %c0_3 = arith.constant 0 : index
    %c0_4 = arith.constant 0 : index
    %c1 = arith.constant 1 : index
    %c0_5 = arith.constant 0 : index
    %3 = vector.load %arg2[%c0_3, %c0_4, %c1, %c0_5] : memref<1x10x10x8xbf16, #tpu.memory_space<vmem>>, vector<1x8x8x8xbf16>
    %4 = vector.shape_cast %3 : vector<1x8x8x8xbf16> to vector<8x8x8xbf16>
    %5 = vector.shape_cast %4 : vector<8x8x8xbf16> to vector<64x8xbf16>
    %c0_6 = arith.constant 0 : index
    %c1_7 = arith.constant 1 : index
    %c0_8 = arith.constant 0 : index
    %c0_9 = arith.constant 0 : index
    %6 = vector.load %arg2[%c0_6, %c1_7, %c0_8, %c0_9] : memref<1x10x10x8xbf16, #tpu.memory_space<vmem>>, vector<1x8x8x8xbf16>
    %7 = vector.shape_cast %6 : vector<1x8x8x8xbf16> to vector<8x8x8xbf16>
    %8 = vector.shape_cast %7 : vector<8x8x8xbf16> to vector<64x8xbf16>
    %c0_10 = arith.constant 0 : index
    %c1_11 = arith.constant 1 : index
    %c1_12 = arith.constant 1 : index
    %c0_13 = arith.constant 0 : index
    %9 = vector.load %arg2[%c0_10, %c1_11, %c1_12, %c0_13] : memref<1x10x10x8xbf16, #tpu.memory_space<vmem>>, vector<1x8x8x8xbf16>
    %10 = vector.shape_cast %9 : vector<1x8x8x8xbf16> to vector<8x8x8xbf16>
    %11 = vector.shape_cast %10 : vector<8x8x8xbf16> to vector<64x8xbf16>
    %12 = tpu.concatenate %2, %5, %8, %11 in 1 : vector<64x8xbf16>, vector<64x8xbf16>, vector<64x8xbf16>, vector<64x8xbf16> -> vector<64x32xbf16>
    %c0_14 = arith.constant 0 : index
    %c0_15 = arith.constant 0 : index
    %c0_16 = arith.constant 0 : index
    %13 = vector.load %arg4[%c0_14, %c0_15, %c0_16] : memref<4x32x4xbf16, #tpu.memory_space<vmem>>, vector<1x32x4xbf16>
    %14 = vector.shape_cast %13 : vector<1x32x4xbf16> to vector<32x4xbf16>
    %cst = arith.constant dense<0.000000e+00> : vector<64x4xf32>
    %15 = tpu.matmul %12, %14, %cst {dimension_numbers = #tpu.dot_dimension_numbers<[1], [0], [0], [1], [0, 0, 1, 1], [], []>} : vector<64x32xbf16>, vector<32x4xbf16>, vector<64x4xf32> -> vector<64x4xf32>
    %c0_17 = arith.constant 0 : index
    %c0_18 = arith.constant 0 : index
    %16 = vector.load %arg5[%c0_17, %c0_18] : memref<1x4xf32, #tpu.memory_space<vmem>>, vector<1x4xf32>
    %17 = vector.broadcast %16 : vector<1x4xf32> to vector<64x4xf32>
    %18 = arith.addf %15, %17 : vector<64x4xf32>
    %19 = arith.truncf %18 : vector<64x4xf32> to vector<64x4xbf16>
    %c0_19 = arith.constant 0 : index
    %c0_20 = arith.constant 0 : index
    %c1_21 = arith.constant 1 : index
    %c0_22 = arith.constant 0 : index
    %20 = vector.load %arg2[%c0_19, %c0_20, %c1_21, %c0_22] : memref<1x10x10x8xbf16, #tpu.memory_space<vmem>>, vector<1x8x8x8xbf16>
    %21 = vector.shape_cast %20 : vector<1x8x8x8xbf16> to vector<8x8x8xbf16>
    %22 = vector.shape_cast %21 : vector<8x8x8xbf16> to vector<64x8xbf16>
    %c0_23 = arith.constant 0 : index
    %c0_24 = arith.constant 0 : index
    %c2 = arith.constant 2 : index
    %c0_25 = arith.constant 0 : index
    %23 = vector.load %arg2[%c0_23, %c0_24, %c2, %c0_25] : memref<1x10x10x8xbf16, #tpu.memory_space<vmem>>, vector<1x8x8x8xbf16>
    %24 = vector.shape_cast %23 : vector<1x8x8x8xbf16> to vector<8x8x8xbf16>
    %25 = vector.shape_cast %24 : vector<8x8x8xbf16> to vector<64x8xbf16>
    %c0_26 = arith.constant 0 : index
    %c1_27 = arith.constant 1 : index
    %c1_28 = arith.constant 1 : index
    %c0_29 = arith.constant 0 : index
    %26 = vector.load %arg2[%c0_26, %c1_27, %c1_28, %c0_29] : memref<1x10x10x8xbf16, #tpu.memory_space<vmem>>, vector<1x8x8x8xbf16>
    %27 = vector.shape_cast %26 : vector<1x8x8x8xbf16> to vector<8x8x8xbf16>
    %28 = vector.shape_cast %27 : vector<8x8x8xbf16> to vector<64x8xbf16>
    %c0_30 = arith.constant 0 : index
    %c1_31 = arith.constant 1 : index
    %c2_32 = arith.constant 2 : index
    %c0_33 = arith.constant 0 : index
    %29 = vector.load %arg2[%c0_30, %c1_31, %c2_32, %c0_33] : memref<1x10x10x8xbf16, #tpu.memory_space<vmem>>, vector<1x8x8x8xbf16>
    %30 = vector.shape_cast %29 : vector<1x8x8x8xbf16> to vector<8x8x8xbf16>
    %31 = vector.shape_cast %30 : vector<8x8x8xbf16> to vector<64x8xbf16>
    %32 = tpu.concatenate %22, %25, %28, %31 in 1 : vector<64x8xbf16>, vector<64x8xbf16>, vector<64x8xbf16>, vector<64x8xbf16> -> vector<64x32xbf16>
    %c1_34 = arith.constant 1 : index
    %c0_35 = arith.constant 0 : index
    %c0_36 = arith.constant 0 : index
    %33 = vector.load %arg4[%c1_34, %c0_35, %c0_36] : memref<4x32x4xbf16, #tpu.memory_space<vmem>>, vector<1x32x4xbf16>
    %34 = vector.shape_cast %33 : vector<1x32x4xbf16> to vector<32x4xbf16>
    %cst_37 = arith.constant dense<0.000000e+00> : vector<64x4xf32>
    %35 = tpu.matmul %32, %34, %cst_37 {dimension_numbers = #tpu.dot_dimension_numbers<[1], [0], [0], [1], [0, 0, 1, 1], [], []>} : vector<64x32xbf16>, vector<32x4xbf16>, vector<64x4xf32> -> vector<64x4xf32>
    %c0_38 = arith.constant 0 : index
    %c0_39 = arith.constant 0 : index
    %36 = vector.load %arg5[%c0_38, %c0_39] : memref<1x4xf32, #tpu.memory_space<vmem>>, vector<1x4xf32>
    %37 = vector.broadcast %36 : vector<1x4xf32> to vector<64x4xf32>
    %38 = arith.addf %35, %37 : vector<64x4xf32>
    %39 = arith.truncf %38 : vector<64x4xf32> to vector<64x4xbf16>
    %c0_40 = arith.constant 0 : index
    %c1_41 = arith.constant 1 : index
    %c0_42 = arith.constant 0 : index
    %c0_43 = arith.constant 0 : index
    %40 = vector.load %arg2[%c0_40, %c1_41, %c0_42, %c0_43] : memref<1x10x10x8xbf16, #tpu.memory_space<vmem>>, vector<1x8x8x8xbf16>
    %41 = vector.shape_cast %40 : vector<1x8x8x8xbf16> to vector<8x8x8xbf16>
    %42 = vector.shape_cast %41 : vector<8x8x8xbf16> to vector<64x8xbf16>
    %c0_44 = arith.constant 0 : index
    %c1_45 = arith.constant 1 : index
    %c1_46 = arith.constant 1 : index
    %c0_47 = arith.constant 0 : index
    %43 = vector.load %arg2[%c0_44, %c1_45, %c1_46, %c0_47] : memref<1x10x10x8xbf16, #tpu.memory_space<vmem>>, vector<1x8x8x8xbf16>
    %44 = vector.shape_cast %43 : vector<1x8x8x8xbf16> to vector<8x8x8xbf16>
    %45 = vector.shape_cast %44 : vector<8x8x8xbf16> to vector<64x8xbf16>
    %c0_48 = arith.constant 0 : index
    %c2_49 = arith.constant 2 : index
    %c0_50 = arith.constant 0 : index
    %c0_51 = arith.constant 0 : index
    %46 = vector.load %arg2[%c0_48, %c2_49, %c0_50, %c0_51] : memref<1x10x10x8xbf16, #tpu.memory_space<vmem>>, vector<1x8x8x8xbf16>
    %47 = vector.shape_cast %46 : vector<1x8x8x8xbf16> to vector<8x8x8xbf16>
    %48 = vector.shape_cast %47 : vector<8x8x8xbf16> to vector<64x8xbf16>
    %c0_52 = arith.constant 0 : index
    %c2_53 = arith.constant 2 : index
    %c1_54 = arith.constant 1 : index
    %c0_55 = arith.constant 0 : index
    %49 = vector.load %arg2[%c0_52, %c2_53, %c1_54, %c0_55] : memref<1x10x10x8xbf16, #tpu.memory_space<vmem>>, vector<1x8x8x8xbf16>
    %50 = vector.shape_cast %49 : vector<1x8x8x8xbf16> to vector<8x8x8xbf16>
    %51 = vector.shape_cast %50 : vector<8x8x8xbf16> to vector<64x8xbf16>
    %52 = tpu.concatenate %42, %45, %48, %51 in 1 : vector<64x8xbf16>, vector<64x8xbf16>, vector<64x8xbf16>, vector<64x8xbf16> -> vector<64x32xbf16>
    %c2_56 = arith.constant 2 : index
    %c0_57 = arith.constant 0 : index
    %c0_58 = arith.constant 0 : index
    %53 = vector.load %arg4[%c2_56, %c0_57, %c0_58] : memref<4x32x4xbf16, #tpu.memory_space<vmem>>, vector<1x32x4xbf16>
    %54 = vector.shape_cast %53 : vector<1x32x4xbf16> to vector<32x4xbf16>
    %cst_59 = arith.constant dense<0.000000e+00> : vector<64x4xf32>
    %55 = tpu.matmul %52, %54, %cst_59 {dimension_numbers = #tpu.dot_dimension_numbers<[1], [0], [0], [1], [0, 0, 1, 1], [], []>} : vector<64x32xbf16>, vector<32x4xbf16>, vector<64x4xf32> -> vector<64x4xf32>
    %c0_60 = arith.constant 0 : index
    %c0_61 = arith.constant 0 : index
    %56 = vector.load %arg5[%c0_60, %c0_61] : memref<1x4xf32, #tpu.memory_space<vmem>>, vector<1x4xf32>
    %57 = vector.broadcast %56 : vector<1x4xf32> to vector<64x4xf32>
    %58 = arith.addf %55, %57 : vector<64x4xf32>
    %59 = arith.truncf %58 : vector<64x4xf32> to vector<64x4xbf16>
    %c0_62 = arith.constant 0 : index
    %c1_63 = arith.constant 1 : index
    %c1_64 = arith.constant 1 : index
    %c0_65 = arith.constant 0 : index
    %60 = vector.load %arg2[%c0_62, %c1_63, %c1_64, %c0_65] : memref<1x10x10x8xbf16, #tpu.memory_space<vmem>>, vector<1x8x8x8xbf16>
    %61 = vector.shape_cast %60 : vector<1x8x8x8xbf16> to vector<8x8x8xbf16>
    %62 = vector.shape_cast %61 : vector<8x8x8xbf16> to vector<64x8xbf16>
    %c0_66 = arith.constant 0 : index
    %c1_67 = arith.constant 1 : index
    %c2_68 = arith.constant 2 : index
    %c0_69 = arith.constant 0 : index
    %63 = vector.load %arg2[%c0_66, %c1_67, %c2_68, %c0_69] : memref<1x10x10x8xbf16, #tpu.memory_space<vmem>>, vector<1x8x8x8xbf16>
    %64 = vector.shape_cast %63 : vector<1x8x8x8xbf16> to vector<8x8x8xbf16>
    %65 = vector.shape_cast %64 : vector<8x8x8xbf16> to vector<64x8xbf16>
    %c0_70 = arith.constant 0 : index
    %c2_71 = arith.constant 2 : index
    %c1_72 = arith.constant 1 : index
    %c0_73 = arith.constant 0 : index
    %66 = vector.load %arg2[%c0_70, %c2_71, %c1_72, %c0_73] : memref<1x10x10x8xbf16, #tpu.memory_space<vmem>>, vector<1x8x8x8xbf16>
    %67 = vector.shape_cast %66 : vector<1x8x8x8xbf16> to vector<8x8x8xbf16>
    %68 = vector.shape_cast %67 : vector<8x8x8xbf16> to vector<64x8xbf16>
    %c0_74 = arith.constant 0 : index
    %c2_75 = arith.constant 2 : index
    %c2_76 = arith.constant 2 : index
    %c0_77 = arith.constant 0 : index
    %69 = vector.load %arg2[%c0_74, %c2_75, %c2_76, %c0_77] : memref<1x10x10x8xbf16, #tpu.memory_space<vmem>>, vector<1x8x8x8xbf16>
    %70 = vector.shape_cast %69 : vector<1x8x8x8xbf16> to vector<8x8x8xbf16>
    %71 = vector.shape_cast %70 : vector<8x8x8xbf16> to vector<64x8xbf16>
    %72 = tpu.concatenate %62, %65, %68, %71 in 1 : vector<64x8xbf16>, vector<64x8xbf16>, vector<64x8xbf16>, vector<64x8xbf16> -> vector<64x32xbf16>
    %c3 = arith.constant 3 : index
    %c0_78 = arith.constant 0 : index
    %c0_79 = arith.constant 0 : index
    %73 = vector.load %arg4[%c3, %c0_78, %c0_79] : memref<4x32x4xbf16, #tpu.memory_space<vmem>>, vector<1x32x4xbf16>
    %74 = vector.shape_cast %73 : vector<1x32x4xbf16> to vector<32x4xbf16>
    %cst_80 = arith.constant dense<0.000000e+00> : vector<64x4xf32>
    %75 = tpu.matmul %72, %74, %cst_80 {dimension_numbers = #tpu.dot_dimension_numbers<[1], [0], [0], [1], [0, 0, 1, 1], [], []>} : vector<64x32xbf16>, vector<32x4xbf16>, vector<64x4xf32> -> vector<64x4xf32>
    %c0_81 = arith.constant 0 : index
    %c0_82 = arith.constant 0 : index
    %76 = vector.load %arg5[%c0_81, %c0_82] : memref<1x4xf32, #tpu.memory_space<vmem>>, vector<1x4xf32>
    %77 = vector.broadcast %76 : vector<1x4xf32> to vector<64x4xf32>
    %78 = arith.addf %75, %77 : vector<64x4xf32>
    %79 = arith.truncf %78 : vector<64x4xf32> to vector<64x4xbf16>
    %80 = tpu.concatenate %19, %39, %59, %79 in 0 : vector<64x4xbf16>, vector<64x4xbf16>, vector<64x4xbf16>, vector<64x4xbf16> -> vector<256x4xbf16>
    %c0_83 = arith.constant 0 : index
    %c0_84 = arith.constant 0 : index
    %81 = vector.load %arg3[%c0_83, %c0_84] : memref<256x256xbf16, #tpu.memory_space<vmem>>, vector<256x256xbf16>
    %cst_85 = arith.constant dense<0.000000e+00> : vector<256x4xf32>
    %82 = tpu.matmul %81, %80, %cst_85 {dimension_numbers = #tpu.dot_dimension_numbers<[1], [0], [0], [1], [0, 0, 1, 1], [], []>} : vector<256x256xbf16>, vector<256x4xbf16>, vector<256x4xf32> -> vector<256x4xf32>
    %cst_86 = arith.constant 0.000000e+00 : bf16
    %83 = vector.broadcast %cst_86 : bf16 to vector<18x18x8xbf16>
    %c0_87 = arith.constant 0 : index
    %c0_88 = arith.constant 0 : index
    %c0_89 = arith.constant 0 : index
    %84 = vector.load %arg11[%c0_87, %c0_88, %c0_89] : memref<18x18x8xbf16, #tpu.memory_space<vmem>>, vector<18x18x8xbf16>
    tpu.vector_store %arg11[%c0_87, %c0_88, %c0_89], %83 {strides = array<i32>} : memref<18x18x8xbf16, #tpu.memory_space<vmem>>, vector<18x18x8xbf16>,
    %c0_90 = arith.constant 0 : index
    %c0_91 = arith.constant 0 : index
    %c0_92 = arith.constant 0 : index
    %c0_93 = arith.constant 0 : index
    %85 = vector.load %arg1[%c0_90, %c0_91, %c0_92, %c0_93] : memref<1x16x16x4xbf16, #tpu.memory_space<vmem>>, vector<1x16x16x4xbf16>
    %86 = vector.shape_cast %85 : vector<1x16x16x4xbf16> to vector<16x16x4xbf16>
    %c1_94 = arith.constant 1 : index
    %c1_95 = arith.constant 1 : index
    %c0_96 = arith.constant 0 : index
    %87 = vector.load %arg11[%c1_94, %c1_95, %c0_96] : memref<18x18x8xbf16, #tpu.memory_space<vmem>>, vector<16x16x4xbf16>
    tpu.vector_store %arg11[%c1_94, %c1_95, %c0_96], %86 {strides = array<i32>} : memref<18x18x8xbf16, #tpu.memory_space<vmem>>, vector<16x16x4xbf16>,
    %88 = vector.shape_cast %82 : vector<256x4xf32> to vector<16x16x4xf32>
    %89 = arith.truncf %88 : vector<16x16x4xf32> to vector<16x16x4xbf16>
    %c1_97 = arith.constant 1 : index
    %c1_98 = arith.constant 1 : index
    %c4 = arith.constant 4 : index
    %90 = vector.load %arg11[%c1_97, %c1_98, %c4] : memref<18x18x8xbf16, #tpu.memory_space<vmem>>, vector<16x16x4xbf16>
    tpu.vector_store %arg11[%c1_97, %c1_98, %c4], %89 {strides = array<i32>} : memref<18x18x8xbf16, #tpu.memory_space<vmem>>, vector<16x16x4xbf16>,
    %c0_99 = arith.constant 0 : index
    %c0_100 = arith.constant 0 : index
    %c0_101 = arith.constant 0 : index
    %91 = vector.load %arg11[%c0_99, %c0_100, %c0_101] : memref<18x18x8xbf16, #tpu.memory_space<vmem>>, vector<16x16x8xbf16>
    %92 = vector.shape_cast %91 : vector<16x16x8xbf16> to vector<256x8xbf16>
    %c0_102 = arith.constant 0 : index
    %c1_103 = arith.constant 1 : index
    %c0_104 = arith.constant 0 : index
    %93 = vector.load %arg11[%c0_102, %c1_103, %c0_104] : memref<18x18x8xbf16, #tpu.memory_space<vmem>>, vector<16x16x8xbf16>
    %94 = vector.shape_cast %93 : vector<16x16x8xbf16> to vector<256x8xbf16>
    %c0_105 = arith.constant 0 : index
    %c2_106 = arith.constant 2 : index
    %c0_107 = arith.constant 0 : index
    %95 = vector.load %arg11[%c0_105, %c2_106, %c0_107] : memref<18x18x8xbf16, #tpu.memory_space<vmem>>, vector<16x16x8xbf16>
    %96 = vector.shape_cast %95 : vector<16x16x8xbf16> to vector<256x8xbf16>
    %c1_108 = arith.constant 1 : index
    %c0_109 = arith.constant 0 : index
    %c0_110 = arith.constant 0 : index
    %97 = vector.load %arg11[%c1_108, %c0_109, %c0_110] : memref<18x18x8xbf16, #tpu.memory_space<vmem>>, vector<16x16x8xbf16>
    %98 = vector.shape_cast %97 : vector<16x16x8xbf16> to vector<256x8xbf16>
    %c1_111 = arith.constant 1 : index
    %c1_112 = arith.constant 1 : index
    %c0_113 = arith.constant 0 : index
    %99 = vector.load %arg11[%c1_111, %c1_112, %c0_113] : memref<18x18x8xbf16, #tpu.memory_space<vmem>>, vector<16x16x8xbf16>
    %100 = vector.shape_cast %99 : vector<16x16x8xbf16> to vector<256x8xbf16>
    %c1_114 = arith.constant 1 : index
    %c2_115 = arith.constant 2 : index
    %c0_116 = arith.constant 0 : index
    %101 = vector.load %arg11[%c1_114, %c2_115, %c0_116] : memref<18x18x8xbf16, #tpu.memory_space<vmem>>, vector<16x16x8xbf16>
    %102 = vector.shape_cast %101 : vector<16x16x8xbf16> to vector<256x8xbf16>
    %c2_117 = arith.constant 2 : index
    %c0_118 = arith.constant 0 : index
    %c0_119 = arith.constant 0 : index
    %103 = vector.load %arg11[%c2_117, %c0_118, %c0_119] : memref<18x18x8xbf16, #tpu.memory_space<vmem>>, vector<16x16x8xbf16>
    %104 = vector.shape_cast %103 : vector<16x16x8xbf16> to vector<256x8xbf16>
    %c2_120 = arith.constant 2 : index
    %c1_121 = arith.constant 1 : index
    %c0_122 = arith.constant 0 : index
    %105 = vector.load %arg11[%c2_120, %c1_121, %c0_122] : memref<18x18x8xbf16, #tpu.memory_space<vmem>>, vector<16x16x8xbf16>
    %106 = vector.shape_cast %105 : vector<16x16x8xbf16> to vector<256x8xbf16>
    %c2_123 = arith.constant 2 : index
    %c2_124 = arith.constant 2 : index
    %c0_125 = arith.constant 0 : index
    %107 = vector.load %arg11[%c2_123, %c2_124, %c0_125] : memref<18x18x8xbf16, #tpu.memory_space<vmem>>, vector<16x16x8xbf16>
    %108 = vector.shape_cast %107 : vector<16x16x8xbf16> to vector<256x8xbf16>
    %109 = tpu.concatenate %92, %94, %96, %98, %100, %102, %104, %106, %108 in 1 : vector<256x8xbf16>, vector<256x8xbf16>, vector<256x8xbf16>, vector<256x8xbf16>, vector<256x8xbf16>, vector<256x8xbf16>, vector<256x8xbf16>, vector<256x8xbf16>, vector<256x8xbf16> -> vector<256x72xbf16>
    %c0_126 = arith.constant 0 : index
    %c0_127 = arith.constant 0 : index
    %110 = vector.load %arg6[%c0_126, %c0_127] : memref<72x4xbf16, #tpu.memory_space<vmem>>, vector<72x4xbf16>
    %cst_128 = arith.constant dense<0.000000e+00> : vector<256x4xf32>
    %111 = tpu.matmul %109, %110, %cst_128 {dimension_numbers = #tpu.dot_dimension_numbers<[1], [0], [0], [1], [0, 0, 1, 1], [], []>} : vector<256x72xbf16>, vector<72x4xbf16>, vector<256x4xf32> -> vector<256x4xf32>
    %c0_129 = arith.constant 0 : index
    %c0_130 = arith.constant 0 : index
    %112 = vector.load %arg7[%c0_129, %c0_130] : memref<1x4xf32, #tpu.memory_space<vmem>>, vector<1x4xf32>
    %113 = vector.broadcast %112 : vector<1x4xf32> to vector<256x4xf32>
    %114 = arith.addf %111, %113 : vector<256x4xf32>
    %cst_131 = arith.constant 0.000000e+00 : f32
    %115 = vector.broadcast %cst_131 : f32 to vector<256x4xf32>
    %116 = arith.maximumf %114, %115 : vector<256x4xf32>
    %cst_132 = arith.constant 0.000000e+00 : bf16
    %117 = vector.broadcast %cst_132 : bf16 to vector<18x18x4xbf16>
    %c0_133 = arith.constant 0 : index
    %c0_134 = arith.constant 0 : index
    %c0_135 = arith.constant 0 : index
    %118 = vector.load %arg12[%c0_133, %c0_134, %c0_135] : memref<18x18x4xbf16, #tpu.memory_space<vmem>>, vector<18x18x4xbf16>
    tpu.vector_store %arg12[%c0_133, %c0_134, %c0_135], %117 {strides = array<i32>} : memref<18x18x4xbf16, #tpu.memory_space<vmem>>, vector<18x18x4xbf16>,
    %119 = vector.shape_cast %116 : vector<256x4xf32> to vector<16x16x4xf32>
    %120 = arith.truncf %119 : vector<16x16x4xf32> to vector<16x16x4xbf16>
    %c1_136 = arith.constant 1 : index
    %c1_137 = arith.constant 1 : index
    %c0_138 = arith.constant 0 : index
    %121 = vector.load %arg12[%c1_136, %c1_137, %c0_138] : memref<18x18x4xbf16, #tpu.memory_space<vmem>>, vector<16x16x4xbf16>
    tpu.vector_store %arg12[%c1_136, %c1_137, %c0_138], %120 {strides = array<i32>} : memref<18x18x4xbf16, #tpu.memory_space<vmem>>, vector<16x16x4xbf16>,
    %c0_139 = arith.constant 0 : index
    %c0_140 = arith.constant 0 : index
    %c0_141 = arith.constant 0 : index
    %122 = vector.load %arg12[%c0_139, %c0_140, %c0_141] : memref<18x18x4xbf16, #tpu.memory_space<vmem>>, vector<16x16x4xbf16>
    %123 = vector.shape_cast %122 : vector<16x16x4xbf16> to vector<256x4xbf16>
    %c0_142 = arith.constant 0 : index
    %c1_143 = arith.constant 1 : index
    %c0_144 = arith.constant 0 : index
    %124 = vector.load %arg12[%c0_142, %c1_143, %c0_144] : memref<18x18x4xbf16, #tpu.memory_space<vmem>>, vector<16x16x4xbf16>
    %125 = vector.shape_cast %124 : vector<16x16x4xbf16> to vector<256x4xbf16>
    %c0_145 = arith.constant 0 : index
    %c2_146 = arith.constant 2 : index
    %c0_147 = arith.constant 0 : index
    %126 = vector.load %arg12[%c0_145, %c2_146, %c0_147] : memref<18x18x4xbf16, #tpu.memory_space<vmem>>, vector<16x16x4xbf16>
    %127 = vector.shape_cast %126 : vector<16x16x4xbf16> to vector<256x4xbf16>
    %c1_148 = arith.constant 1 : index
    %c0_149 = arith.constant 0 : index
    %c0_150 = arith.constant 0 : index
    %128 = vector.load %arg12[%c1_148, %c0_149, %c0_150] : memref<18x18x4xbf16, #tpu.memory_space<vmem>>, vector<16x16x4xbf16>
    %129 = vector.shape_cast %128 : vector<16x16x4xbf16> to vector<256x4xbf16>
    %c1_151 = arith.constant 1 : index
    %c1_152 = arith.constant 1 : index
    %c0_153 = arith.constant 0 : index
    %130 = vector.load %arg12[%c1_151, %c1_152, %c0_153] : memref<18x18x4xbf16, #tpu.memory_space<vmem>>, vector<16x16x4xbf16>
    %131 = vector.shape_cast %130 : vector<16x16x4xbf16> to vector<256x4xbf16>
    %c1_154 = arith.constant 1 : index
    %c2_155 = arith.constant 2 : index
    %c0_156 = arith.constant 0 : index
    %132 = vector.load %arg12[%c1_154, %c2_155, %c0_156] : memref<18x18x4xbf16, #tpu.memory_space<vmem>>, vector<16x16x4xbf16>
    %133 = vector.shape_cast %132 : vector<16x16x4xbf16> to vector<256x4xbf16>
    %c2_157 = arith.constant 2 : index
    %c0_158 = arith.constant 0 : index
    %c0_159 = arith.constant 0 : index
    %134 = vector.load %arg12[%c2_157, %c0_158, %c0_159] : memref<18x18x4xbf16, #tpu.memory_space<vmem>>, vector<16x16x4xbf16>
    %135 = vector.shape_cast %134 : vector<16x16x4xbf16> to vector<256x4xbf16>
    %c2_160 = arith.constant 2 : index
    %c1_161 = arith.constant 1 : index
    %c0_162 = arith.constant 0 : index
    %136 = vector.load %arg12[%c2_160, %c1_161, %c0_162] : memref<18x18x4xbf16, #tpu.memory_space<vmem>>, vector<16x16x4xbf16>
    %137 = vector.shape_cast %136 : vector<16x16x4xbf16> to vector<256x4xbf16>
    %c2_163 = arith.constant 2 : index
    %c2_164 = arith.constant 2 : index
    %c0_165 = arith.constant 0 : index
    %138 = vector.load %arg12[%c2_163, %c2_164, %c0_165] : memref<18x18x4xbf16, #tpu.memory_space<vmem>>, vector<16x16x4xbf16>
    %139 = vector.shape_cast %138 : vector<16x16x4xbf16> to vector<256x4xbf16>
    %140 = tpu.concatenate %123, %125, %127, %129, %131, %133, %135, %137, %139 in 1 : vector<256x4xbf16>, vector<256x4xbf16>, vector<256x4xbf16>, vector<256x4xbf16>, vector<256x4xbf16>, vector<256x4xbf16>, vector<256x4xbf16>, vector<256x4xbf16>, vector<256x4xbf16> -> vector<256x36xbf16>
    %c0_166 = arith.constant 0 : index
    %c0_167 = arith.constant 0 : index
    %141 = vector.load %arg8[%c0_166, %c0_167] : memref<36x4xbf16, #tpu.memory_space<vmem>>, vector<36x4xbf16>
    %cst_168 = arith.constant dense<0.000000e+00> : vector<256x4xf32>
    %142 = tpu.matmul %140, %141, %cst_168 {dimension_numbers = #tpu.dot_dimension_numbers<[1], [0], [0], [1], [0, 0, 1, 1], [], []>} : vector<256x36xbf16>, vector<36x4xbf16>, vector<256x4xf32> -> vector<256x4xf32>
    %c0_169 = arith.constant 0 : index
    %c0_170 = arith.constant 0 : index
    %143 = vector.load %arg9[%c0_169, %c0_170] : memref<1x4xf32, #tpu.memory_space<vmem>>, vector<1x4xf32>
    %144 = vector.broadcast %143 : vector<1x4xf32> to vector<256x4xf32>
    %145 = arith.addf %142, %144 : vector<256x4xf32>
    %cst_171 = arith.constant 0.000000e+00 : f32
    %146 = vector.broadcast %cst_171 : f32 to vector<256x4xf32>
    %147 = arith.maximumf %145, %146 : vector<256x4xf32>
    %148 = tpu.transpose %147, [1, 0] : vector<256x4xf32> -> vector<4x256xf32>
    %149 = vector.shape_cast %148 : vector<4x256xf32> to vector<1x4x256xf32>
    %c0_172 = arith.constant 0 : index
    %c0_173 = arith.constant 0 : index
    %c0_174 = arith.constant 0 : index
    %150 = vector.load %arg10[%c0_172, %c0_173, %c0_174] : memref<1x4x256xf32, #tpu.memory_space<vmem>>, vector<1x4x256xf32>
    tpu.vector_store %arg10[%c0_172, %c0_173, %c0_174], %149 {strides = array<i32>} : memref<1x4x256xf32, #tpu.memory_space<vmem>>, vector<1x4x256xf32>,
    return
  }
  func.func @transform_0(%arg0: i32) -> (i32, i32, i32, i32) {
    %c0_i32 = arith.constant 0 : i32
    %c0_i32_0 = arith.constant 0 : i32
    %c0_i32_1 = arith.constant 0 : i32
    %c0_i32_2 = arith.constant 0 : i32
    return %arg0, %c0_i32, %c0_i32_0, %c0_i32_1 : i32, i32, i32, i32
  }
  func.func @transform_1(%arg0: i32) -> (i32, i32, i32, i32) {
    %c0_i32 = arith.constant 0 : i32
    %c0_i32_0 = arith.constant 0 : i32
    %c0_i32_1 = arith.constant 0 : i32
    %c0_i32_2 = arith.constant 0 : i32
    return %arg0, %c0_i32, %c0_i32_0, %c0_i32_1 : i32, i32, i32, i32
  }
  func.func @transform_2(%arg0: i32) -> (i32, i32) {
    %c0_i32 = arith.constant 0 : i32
    %c0_i32_0 = arith.constant 0 : i32
    %c0_i32_1 = arith.constant 0 : i32
    return %c0_i32, %c0_i32_0 : i32, i32
  }
  func.func @transform_3(%arg0: i32) -> (i32, i32, i32) {
    %c0_i32 = arith.constant 0 : i32
    %c0_i32_0 = arith.constant 0 : i32
    %c0_i32_1 = arith.constant 0 : i32
    %c0_i32_2 = arith.constant 0 : i32
    return %c0_i32, %c0_i32_0, %c0_i32_1 : i32, i32, i32
  }
  func.func @transform_4(%arg0: i32) -> (i32, i32) {
    %c0_i32 = arith.constant 0 : i32
    %c0_i32_0 = arith.constant 0 : i32
    %c0_i32_1 = arith.constant 0 : i32
    return %c0_i32, %c0_i32_0 : i32, i32
  }
  func.func @transform_5(%arg0: i32) -> (i32, i32) {
    %c0_i32 = arith.constant 0 : i32
    %c0_i32_0 = arith.constant 0 : i32
    %c0_i32_1 = arith.constant 0 : i32
    return %c0_i32, %c0_i32_0 : i32, i32
  }
  func.func @transform_6(%arg0: i32) -> (i32, i32) {
    %c0_i32 = arith.constant 0 : i32
    %c0_i32_0 = arith.constant 0 : i32
    %c0_i32_1 = arith.constant 0 : i32
    return %c0_i32, %c0_i32_0 : i32, i32
  }
  func.func @transform_7(%arg0: i32) -> (i32, i32) {
    %c0_i32 = arith.constant 0 : i32
    %c0_i32_0 = arith.constant 0 : i32
    %c0_i32_1 = arith.constant 0 : i32
    return %c0_i32, %c0_i32_0 : i32, i32
  }
  func.func @transform_8(%arg0: i32) -> (i32, i32) {
    %c0_i32 = arith.constant 0 : i32
    %c0_i32_0 = arith.constant 0 : i32
    %c0_i32_1 = arith.constant 0 : i32
    return %c0_i32, %c0_i32_0 : i32, i32
  }
  func.func @transform_9(%arg0: i32) -> (i32, i32, i32) {
    %c0_i32 = arith.constant 0 : i32
    %c0_i32_0 = arith.constant 0 : i32
    %c0_i32_1 = arith.constant 0 : i32
    return %arg0, %c0_i32, %c0_i32_0 : i32, i32, i32
  }
}

</mosaic_0001>

<llo_original>
// kernel: tpu_custom_call.1
$region0: #{tpu_custom_call.1}
  #allocation0 [shape = 'u32[]', space=smem, size = 0x4, offset = 0x4, fixed_abs, tag = 'smem constant byte address 0x4 - core index']
  #allocation1 [shape = 'u32[144,128]{1,0:T(1,128)}', space=vmem, size = 0x12000, scoped, tag = 'internal scratch']
  #allocation2 [shape = 'bf16[18,18,8]{2,1,0:T(8,128)(2,1)}', space=vmem, size = 0x1b000, scoped, tag = 'scratch operand']
  #allocation3 [shape = 'bf16[18,18,4]{2,1,0:T(8,128)(2,1)}', space=vmem, size = 0x1b000, scoped, tag = 'scratch operand']
  %s0 = inlined_call_operand.vmem [shape: bf16[2,16,16,4], index: 0, kind: input, shape index: {}]
  %s1 = inlined_call_operand.vmem [shape: bf16[2,10,10,8], index: 1, kind: input, shape index: {}]
  %s2 = inlined_call_operand.vmem [shape: bf16[256,256], index: 2, kind: input, shape index: {}]
  %s3 = inlined_call_operand.vmem [shape: bf16[4,32,4], index: 3, kind: input, shape index: {}]
  %s4 = inlined_call_operand.vmem [shape: f32[1,4], index: 4, kind: input, shape index: {}]
  %s5 = inlined_call_operand.vmem [shape: bf16[72,4], index: 5, kind: input, shape index: {}]
  %s6 = inlined_call_operand.vmem [shape: f32[1,4], index: 6, kind: input, shape index: {}]
  %s7 = inlined_call_operand.vmem [shape: bf16[36,4], index: 7, kind: input, shape index: {}]
  %s8 = inlined_call_operand.vmem [shape: f32[1,4], index: 8, kind: input, shape index: {}]
  %s9 = inlined_call_operand.hbm [shape: f32[2,4,256], index: 9, kind: output, shape index: {}]
  %s10 = sld [smem:[#allocation0]]
  $region69: #{tpu_custom_call.1} parent=0
    _
  %s12 = ssub.s32 1, %s10
  %s13 = scalar_select 0, %s12, %s10
  $region1: #{tpu_custom_call.1} parent=0
    #allocation4 [shape = 'u8[8192]{0}', space=vmem, size = 0x2000, scoped, tag = 'output window, operand 0']
    #allocation5 [shape = 's32[2]{0}', space=sflag, size = 0x8, scoped, tag = 'scoped memory for tpu_custom_call.1']
    %14 = vsyncpa [#allocation5], 0
    %s15 = scalar_lea.sflag [#allocation5], 1
    %16 = vsyncpa %s15, 0
    loop: start=0, step=1, limit=4
    $region2: #{tpu_custom_call.1} parent=1 // loop_pre_header
      _
    $region3: #{tpu_custom_call.1} parent=1 // loop_header
      %s18 = sphi 0, %s22
      %p19 = scmp.ge.s32.totalorder %s18, 4
      %s28 = sphi 0, %s30
      %s31 = sphi 0, %s28
      %s32 = sphi 0, %s31
      %s48 = sphi 0, %s32
      %s54 = sphi 0, %s56
      %s57 = sphi 0, %s54
      %s58 = sphi 0, %s57
      %s74 = sphi 0, %s58
      %s78 = sphi 0, %s78
      %s80 = sphi 0, %s78
      %s81 = sphi 0, %s80
      %s95 = sphi 0, %s81
      %s99 = sphi 0, %s99
      %s101 = sphi 0, %s99
      %s102 = sphi 0, %s101
      %s116 = sphi 0, %s102
      %s120 = sphi 0, %s120
      %s122 = sphi 0, %s120
      %s123 = sphi 0, %s122
      %s137 = sphi 0, %s123
      %s141 = sphi 0, %s141
      %s143 = sphi 0, %s141
      %s144 = sphi 0, %s143
      %s158 = sphi 0, %s144
      %s162 = sphi 0, %s162
      %s164 = sphi 0, %s162
      %s165 = sphi 0, %s164
      %s179 = sphi 0, %s165
      %s183 = sphi 0, %s183
      %s185 = sphi 0, %s183
      %s186 = sphi 0, %s185
      %s200 = sphi 0, %s186
      %s204 = sphi 0, %s204
      %s206 = sphi 0, %s204
      %s207 = sphi 0, %s206
      %s221 = sphi 0, %s207
      %s227 = sphi 0, %s229
      %s230 = sphi 0, %s227
      %s231 = sphi 0, %s230
      %s247 = sphi 0, %s231
    $region4: #{tpu_custom_call.1} parent=1 // loop_header_branch
      %21 = sbr.rel (%p19) target = $region8
    $region5: #{tpu_custom_call.1} parent=1 // loop_body
      %s23 = ssub.s32 %s18, 1
      %s24 = ssub.s32 %s18, 2
      %s25 = sadd.s32 %s18, 1
      %s26 = ssub.s32 %s18, %s25
      %p27 = scmp.eq.s32.totalorder %s26, 0
      %s29 = sadd.s32 %s28, 1
      %s30 = scalar_select %p27, %s28, %s29
      %p33 = pneg %p27
      %p34 = scmp.eq.s32.totalorder %s18, 1
      %p35 = por %p33, %p34
      %p36 = scmp.ne.s32.totalorder %s28, %s31
      %p37 = scmp.eq.s32.totalorder %s18, 0
      %p38 = por %p36, %p37
      %p39 = scmp.ne.s32.totalorder %s28, %s31
      %p40 = scmp.eq.s32.totalorder %s23, 1
      %p41 = por %p39, %p40
      %p42 = scmp.ne.s32.totalorder %s31, %s32
      %p43 = scmp.eq.s32.totalorder %s23, 0
      %p44 = por %p42, %p43
      %p45 = scmp.ne.s32.totalorder %s31, %s32
      %p46 = scmp.eq.s32.totalorder %s24, 1
      %p47 = por %p45, %p46
      %p49 = scmp.ne.s32.totalorder %s32, %s48
      %p50 = scmp.eq.s32.totalorder %s24, 0
      %p51 = por %p49, %p50
      %s52 = ssub.s32 %s18, %s25
      %p53 = scmp.eq.s32.totalorder %s52, 0
      %s55 = sadd.s32 %s54, 1
      %s56 = scalar_select %p53, %s54, %s55
      %p59 = pneg %p53
      %p60 = scmp.eq.s32.totalorder %s18, 1
      %p61 = por %p59, %p60
      %p62 = scmp.ne.s32.totalorder %s54, %s57
      %p63 = scmp.eq.s32.totalorder %s18, 0
      %p64 = por %p62, %p63
      %p65 = scmp.ne.s32.totalorder %s54, %s57
      %p66 = scmp.eq.s32.totalorder %s23, 1
      %p67 = por %p65, %p66
      %p68 = scmp.ne.s32.totalorder %s57, %s58
      %p69 = scmp.eq.s32.totalorder %s23, 0
      %p70 = por %p68, %p69
      %p71 = scmp.ne.s32.totalorder %s57, %s58
      %p72 = scmp.eq.s32.totalorder %s24, 1
      %p73 = por %p71, %p72
      %p75 = scmp.ne.s32.totalorder %s58, %s74
      %p76 = scmp.eq.s32.totalorder %s24, 0
      %p77 = por %p75, %p76
      %s79 = sadd.s32 %s78, 1
      %p82 = scmp.eq.s32.totalorder %s18, 1
      %p83 = scmp.ne.s32.totalorder %s78, %s80
      %p84 = scmp.eq.s32.totalorder %s18, 0
      %p85 = por %p83, %p84
      %p86 = scmp.ne.s32.totalorder %s78, %s80
      %p87 = scmp.eq.s32.totalorder %s23, 1
      %p88 = por %p86, %p87
      %p89 = scmp.ne.s32.totalorder %s80, %s81
      %p90 = scmp.eq.s32.totalorder %s23, 0
      %p91 = por %p89, %p90
      %p92 = scmp.ne.s32.totalorder %s80, %s81
      %p93 = scmp.eq.s32.totalorder %s24, 1
      %p94 = por %p92, %p93
      %p96 = scmp.ne.s32.totalorder %s81, %s95
      %p97 = scmp.eq.s32.totalorder %s24, 0
      %p98 = por %p96, %p97
      %s100 = sadd.s32 %s99, 1
      %p103 = scmp.eq.s32.totalorder %s18, 1
      %p104 = scmp.ne.s32.totalorder %s99, %s101
      %p105 = scmp.eq.s32.totalorder %s18, 0
      %p106 = por %p104, %p105
      %p107 = scmp.ne.s32.totalorder %s99, %s101
      %p108 = scmp.eq.s32.totalorder %s23, 1
      %p109 = por %p107, %p108
      %p110 = scmp.ne.s32.totalorder %s101, %s102
      %p111 = scmp.eq.s32.totalorder %s23, 0
      %p112 = por %p110, %p111
      %p113 = scmp.ne.s32.totalorder %s101, %s102
      %p114 = scmp.eq.s32.totalorder %s24, 1
      %p115 = por %p113, %p114
      %p117 = scmp.ne.s32.totalorder %s102, %s116
      %p118 = scmp.eq.s32.totalorder %s24, 0
      %p119 = por %p117, %p118
      %s121 = sadd.s32 %s120, 1
      %p124 = scmp.eq.s32.totalorder %s18, 1
      %p125 = scmp.ne.s32.totalorder %s120, %s122
      %p126 = scmp.eq.s32.totalorder %s18, 0
      %p127 = por %p125, %p126
      %p128 = scmp.ne.s32.totalorder %s120, %s122
      %p129 = scmp.eq.s32.totalorder %s23, 1
      %p130 = por %p128, %p129
      %p131 = scmp.ne.s32.totalorder %s122, %s123
      %p132 = scmp.eq.s32.totalorder %s23, 0
      %p133 = por %p131, %p132
      %p134 = scmp.ne.s32.totalorder %s122, %s123
      %p135 = scmp.eq.s32.totalorder %s24, 1
      %p136 = por %p134, %p135
      %p138 = scmp.ne.s32.totalorder %s123, %s137
      %p139 = scmp.eq.s32.totalorder %s24, 0
      %p140 = por %p138, %p139
      %s142 = sadd.s32 %s141, 1
      %p145 = scmp.eq.s32.totalorder %s18, 1
      %p146 = scmp.ne.s32.totalorder %s141, %s143
      %p147 = scmp.eq.s32.totalorder %s18, 0
      %p148 = por %p146, %p147
      %p149 = scmp.ne.s32.totalorder %s141, %s143
      %p150 = scmp.eq.s32.totalorder %s23, 1
      %p151 = por %p149, %p150
      %p152 = scmp.ne.s32.totalorder %s143, %s144
      %p153 = scmp.eq.s32.totalorder %s23, 0
      %p154 = por %p152, %p153
      %p155 = scmp.ne.s32.totalorder %s143, %s144
      %p156 = scmp.eq.s32.totalorder %s24, 1
      %p157 = por %p155, %p156
      %p159 = scmp.ne.s32.totalorder %s144, %s158
      %p160 = scmp.eq.s32.totalorder %s24, 0
      %p161 = por %p159, %p160
      %s163 = sadd.s32 %s162, 1
      %p166 = scmp.eq.s32.totalorder %s18, 1
      %p167 = scmp.ne.s32.totalorder %s162, %s164
      %p168 = scmp.eq.s32.totalorder %s18, 0
      %p169 = por %p167, %p168
      %p170 = scmp.ne.s32.totalorder %s162, %s164
      %p171 = scmp.eq.s32.totalorder %s23, 1
      %p172 = por %p170, %p171
      %p173 = scmp.ne.s32.totalorder %s164, %s165
      %p174 = scmp.eq.s32.totalorder %s23, 0
      %p175 = por %p173, %p174
      %p176 = scmp.ne.s32.totalorder %s164, %s165
      %p177 = scmp.eq.s32.totalorder %s24, 1
      %p178 = por %p176, %p177
      %p180 = scmp.ne.s32.totalorder %s165, %s179
      %p181 = scmp.eq.s32.totalorder %s24, 0
      %p182 = por %p180, %p181
      %s184 = sadd.s32 %s183, 1
      %p187 = scmp.eq.s32.totalorder %s18, 1
      %p188 = scmp.ne.s32.totalorder %s183, %s185
      %p189 = scmp.eq.s32.totalorder %s18, 0
      %p190 = por %p188, %p189
      %p191 = scmp.ne.s32.totalorder %s183, %s185
      %p192 = scmp.eq.s32.totalorder %s23, 1
      %p193 = por %p191, %p192
      %p194 = scmp.ne.s32.totalorder %s185, %s186
      %p195 = scmp.eq.s32.totalorder %s23, 0
      %p196 = por %p194, %p195
      %p197 = scmp.ne.s32.totalorder %s185, %s186
      %p198 = scmp.eq.s32.totalorder %s24, 1
      %p199 = por %p197, %p198
      %p201 = scmp.ne.s32.totalorder %s186, %s200
      %p202 = scmp.eq.s32.totalorder %s24, 0
      %p203 = por %p201, %p202
      %s205 = sadd.s32 %s204, 1
      %p208 = scmp.eq.s32.totalorder %s18, 1
      %p209 = scmp.ne.s32.totalorder %s204, %s206
      %p210 = scmp.eq.s32.totalorder %s18, 0
      %p211 = por %p209, %p210
      %p212 = scmp.ne.s32.totalorder %s204, %s206
      %p213 = scmp.eq.s32.totalorder %s23, 1
      %p214 = por %p212, %p213
      %p215 = scmp.ne.s32.totalorder %s206, %s207
      %p216 = scmp.eq.s32.totalorder %s23, 0
      %p217 = por %p215, %p216
      %p218 = scmp.ne.s32.totalorder %s206, %s207
      %p219 = scmp.eq.s32.totalorder %s24, 1
      %p220 = por %p218, %p219
      %p222 = scmp.ne.s32.totalorder %s207, %s221
      %p223 = scmp.eq.s32.totalorder %s24, 0
      %p224 = por %p222, %p223
      %s225 = ssub.s32 %s18, %s25
      %p226 = scmp.eq.s32.totalorder %s225, 0
      %s228 = sadd.s32 %s227, 1
      %s229 = scalar_select %p226, %s227, %s228
      %p232 = pneg %p226
      %p233 = scmp.eq.s32.totalorder %s18, 1
      %p234 = por %p232, %p233
      %p235 = scmp.ne.s32.totalorder %s227, %s230
      %p236 = scmp.eq.s32.totalorder %s18, 0
      %p237 = por %p235, %p236
      %p238 = scmp.ne.s32.totalorder %s227, %s230
      %p239 = scmp.eq.s32.totalorder %s23, 1
      %p240 = por %p238, %p239
      %p241 = scmp.ne.s32.totalorder %s230, %s231
      %p242 = scmp.eq.s32.totalorder %s23, 0
      %p243 = por %p241, %p242
      %p244 = scmp.ne.s32.totalorder %s230, %s231
      %p245 = scmp.eq.s32.totalorder %s24, 1
      %p246 = por %p244, %p245
      %p248 = scmp.ne.s32.totalorder %s231, %s247
      %p249 = scmp.eq.s32.totalorder %s24, 0
      %p250 = por %p248, %p249
      %p251 = scmp.le.s32.totalorder 1, %s18
      %p252 = scmp.lt.s32.totalorder %s18, 3
      %p253 = pnand %p251, %p252
      %p254 = pneg %p253
      // Predicated region
      $region9: #{tpu_custom_call.1} parent=5 // pred_check
        _
      $region10: #{tpu_custom_call.1} parent=5 // pred_check_branch
        %256 = sbr.rel (%p253) target = $region12
      $region11: #{tpu_custom_call.1} parent=5 // pred_region
        %s257 = ssub.s32 %s18, 1
        // Predicated region
        $region13: #{tpu_custom_call.1} parent=11 // pred_check
          %p258 = pneg %p91
        $region14: #{tpu_custom_call.1} parent=11 // pred_check_branch
          %260 = sbr.rel (%p258) target = $region16
        $region15: #{tpu_custom_call.1} parent=11 // pred_region
          _
        $region16: #{tpu_custom_call.1} parent=11 // pred_fallthru
          _
        // Predicated region
        $region17: #{tpu_custom_call.1} parent=11 // pred_check
          %p261 = pneg %p112
        $region18: #{tpu_custom_call.1} parent=11 // pred_check_branch
          %263 = sbr.rel (%p261) target = $region20
        $region19: #{tpu_custom_call.1} parent=11 // pred_region
          _
        $region20: #{tpu_custom_call.1} parent=11 // pred_fallthru
          _
        // Predicated region
        $region21: #{tpu_custom_call.1} parent=11 // pred_check
          %p264 = pneg %p133
        $region22: #{tpu_custom_call.1} parent=11 // pred_check_branch
          %266 = sbr.rel (%p264) target = $region24
        $region23: #{tpu_custom_call.1} parent=11 // pred_region
          _
        $region24: #{tpu_custom_call.1} parent=11 // pred_fallthru
          _
        // Predicated region
        $region25: #{tpu_custom_call.1} parent=11 // pred_check
          %p267 = pneg %p154
        $region26: #{tpu_custom_call.1} parent=11 // pred_check_branch
          %269 = sbr.rel (%p267) target = $region28
        $region27: #{tpu_custom_call.1} parent=11 // pred_region
          _
        $region28: #{tpu_custom_call.1} parent=11 // pred_fallthru
          _
        // Predicated region
        $region29: #{tpu_custom_call.1} parent=11 // pred_check
          %p270 = pneg %p175
        $region30: #{tpu_custom_call.1} parent=11 // pred_check_branch
          %272 = sbr.rel (%p270) target = $region32
        $region31: #{tpu_custom_call.1} parent=11 // pred_region
          _
        $region32: #{tpu_custom_call.1} parent=11 // pred_fallthru
          _
        // Predicated region
        $region33: #{tpu_custom_call.1} parent=11 // pred_check
          %p273 = pneg %p196
        $region34: #{tpu_custom_call.1} parent=11 // pred_check_branch
          %275 = sbr.rel (%p273) target = $region36
        $region35: #{tpu_custom_call.1} parent=11 // pred_region
          _
        $region36: #{tpu_custom_call.1} parent=11 // pred_fallthru
          _
        // Predicated region
        $region37: #{tpu_custom_call.1} parent=11 // pred_check
          %p276 = pneg %p217
        $region38: #{tpu_custom_call.1} parent=11 // pred_check_branch
          %278 = sbr.rel (%p276) target = $region40
        $region39: #{tpu_custom_call.1} parent=11 // pred_region
          _
        $region40: #{tpu_custom_call.1} parent=11 // pred_fallthru
          _
      $region12: #{tpu_custom_call.1} parent=5 // pred_fallthru
        _
      %p279 = scmp.lt.s32.totalorder %s18, 2
      // Predicated region
      $region41: #{tpu_custom_call.1} parent=5 // pred_check
        %p280 = pneg %p279
      $region42: #{tpu_custom_call.1} parent=5 // pred_check_branch
        %282 = sbr.rel (%p280) target = $region44
      $region43: #{tpu_custom_call.1} parent=5 // pred_region
        // Predicated region
        $region45: #{tpu_custom_call.1} parent=43 // pred_check
          %p283 = pneg %p38
        $region46: #{tpu_custom_call.1} parent=43 // pred_check_branch
          %285 = sbr.rel (%p283) target = $region48
        $region47: #{tpu_custom_call.1} parent=43 // pred_region
          %p286 = scmp.lt.s32.totalorder %s18, 1
          %s287 = scalar_select %p286, %s18, 1
          %s288 = smul.addr %s287, 32
          %s289 = smul.addr %s288, 4
          %s290 = scalar_lea.vmem %s0, %s289
        $region48: #{tpu_custom_call.1} parent=43 // pred_fallthru
          _
        // Predicated region
        $region49: #{tpu_custom_call.1} parent=43 // pred_check
          %p291 = pneg %p64
        $region50: #{tpu_custom_call.1} parent=43 // pred_check_branch
          %293 = sbr.rel (%p291) target = $region52
        $region51: #{tpu_custom_call.1} parent=43 // pred_region
          %p294 = scmp.lt.s32.totalorder %s18, 1
          %s295 = scalar_select %p294, %s18, 1
          %s296 = smul.addr %s295, 20
          %s297 = smul.addr %s296, 4
          %s298 = scalar_lea.vmem %s1, %s297
        $region52: #{tpu_custom_call.1} parent=43 // pred_fallthru
          _
      $region44: #{tpu_custom_call.1} parent=5 // pred_fallthru
        _
      %p299 = scmp.le.s32.totalorder 1, %s18
      %p300 = scmp.lt.s32.totalorder %s18, 3
      %p301 = pnand %p299, %p300
      %p302 = pneg %p301
      // Predicated region
      $region53: #{tpu_custom_call.1} parent=5 // pred_check
        _
      $region54: #{tpu_custom_call.1} parent=5 // pred_check_branch
        %304 = sbr.rel (%p301) target = $region56
      $region55: #{tpu_custom_call.1} parent=5 // pred_region
        %s305 = ssub.s32 %s18, 1
        %p306 = scmp.lt.s32.totalorder %s23, 1
        %s307 = scalar_select %p306, %s23, 1
        %s308 = smul.addr %s307, 32
        %s309 = smul.addr %s308, 4
        %s310 = scalar_lea.vmem %s0, %s309
        %p311 = pneg %p44
        %p312 = pneg %p41
        %p313 = scmp.lt.s32.totalorder %s23, 1
        %s314 = scalar_select %p313, %s23, 1
        %s315 = smul.addr %s314, 20
        %s316 = smul.addr %s315, 4
        %s317 = scalar_lea.vmem %s1, %s316
        %p318 = pneg %p70
        %p319 = pneg %p67
        %p320 = pneg %p91
        %p321 = pneg %p88
        %p322 = pneg %p112
        %p323 = pneg %p109
        %p324 = pneg %p133
        %p325 = pneg %p130
        %p326 = pneg %p154
        %p327 = pneg %p151
        %p328 = pneg %p175
        %p329 = pneg %p172
        %p330 = pneg %p196
        %p331 = pneg %p193
        %p332 = pneg %p217
        %p333 = pneg %p214
        %p334 = pneg %p243
        %p335 = pneg %p240
        %s336 = sand.u32 %s230, 1
        %s337 = scalar_lea.sflag [#allocation5], %s336
        %s338 = sand.u32 %s230, 1
        %s339 = smul.addr %s338, 8
        %s340 = scalar_lea.vmem [#allocation4], %s339
        %p341 = scmp.lt.s32.totalorder %s23, 1
        %s342 = scalar_select %p341, %s23, 1
        %s343 = smul.addr %s342, 32
        %s344 = smul.addr %s343, 4
        %s345 = scalar_lea.vmem %s0, %s344
        %p346 = scmp.lt.s32.totalorder %s23, 1
        %s347 = scalar_select %p346, %s23, 1
        %s348 = smul.addr %s347, 20
        %s349 = smul.addr %s348, 4
        %s350 = scalar_lea.vmem %s1, %s349
        %v352 = vld [vmem:[%s350] sm:$0xf]
        %v353 = vld [vmem:[%s350 + $0x8] sm:$0xf]
        %v354 = vld [vmem:[%s350 + $0x10] sm:$0xf]
        %v355 = vld [vmem:[%s350 + $0x18] sm:$0xf]
        %v356 = vld [vmem:[%s350 + $0x20] sm:$0xf]
        %v357 = vld [vmem:[%s350 + $0x28] sm:$0xf]
        %v358 = vld [vmem:[%s350 + $0x30] sm:$0xf]
        %v359 = vld [vmem:[%s350 + $0x38] sm:$0xf]
        %v360 = vld [vmem:[%s350 + $0x4] sm:$0x1]
        %v361 = vld [vmem:[%s350 + $0xc] sm:$0x1]
        %v362 = vld [vmem:[%s350 + $0x14] sm:$0x1]
        %v363 = vld [vmem:[%s350 + $0x1c] sm:$0x1]
        %v364 = vld [vmem:[%s350 + $0x24] sm:$0x1]
        %v365 = vld [vmem:[%s350 + $0x2c] sm:$0x1]
        %v366 = vld [vmem:[%s350 + $0x34] sm:$0x1]
        %v367 = vld [vmem:[%s350 + $0x3c] sm:$0x1]
        %vm368 = vsmask.f32 3328
        %vm369 = vsmask.f32 7440
        %vm370 = vmor %vm368, %vm369
        %v372 = vshrl.u32 %v352, 16
        %v374 = vrot.slane %v372, 4
        %v375 = vshll.u32 %v352, 16
        %v377 = vrot.slane %v375, 5
        %v378 = vor.u32 %v374, %v377
        %v379 = vrot.slane %v378, 4
        %v381 = vshll.u32 %v360, 16
        %v383 = vrot.slane %v381, 5
        %v384 = vsel %vm370, %v379, %v383
        %v386 = vshrl.u32 %v353, 16
        %v388 = vrot.slane %v386, 4
        %v389 = vshll.u32 %v353, 16
        %v391 = vrot.slane %v389, 5
        %v392 = vor.u32 %v388, %v391
        %v393 = vrot.slane %v392, 4
        %v395 = vshll.u32 %v361, 16
        %v397 = vrot.slane %v395, 5
        %v398 = vsel %vm370, %v393, %v397
        %v400 = vshrl.u32 %v354, 16
        %v402 = vrot.slane %v400, 4
        %v403 = vshll.u32 %v354, 16
        %v405 = vrot.slane %v403, 5
        %v406 = vor.u32 %v402, %v405
        %v407 = vrot.slane %v406, 4
        %v409 = vshll.u32 %v362, 16
        %v411 = vrot.slane %v409, 5
        %v412 = vsel %vm370, %v407, %v411
        %v414 = vshrl.u32 %v355, 16
        %v416 = vrot.slane %v414, 4
        %v417 = vshll.u32 %v355, 16
        %v419 = vrot.slane %v417, 5
        %v420 = vor.u32 %v416, %v419
        %v421 = vrot.slane %v420, 4
        %v423 = vshll.u32 %v363, 16
        %v425 = vrot.slane %v423, 5
        %v426 = vsel %vm370, %v421, %v425
        %v428 = vshrl.u32 %v356, 16
        %v430 = vrot.slane %v428, 4
        %v431 = vshll.u32 %v356, 16
        %v433 = vrot.slane %v431, 5
        %v434 = vor.u32 %v430, %v433
        %v435 = vrot.slane %v434, 4
        %v437 = vshll.u32 %v364, 16
        %v439 = vrot.slane %v437, 5
        %v440 = vsel %vm370, %v435, %v439
        %v442 = vshrl.u32 %v357, 16
        %v444 = vrot.slane %v442, 4
        %v445 = vshll.u32 %v357, 16
        %v447 = vrot.slane %v445, 5
        %v448 = vor.u32 %v444, %v447
        %v449 = vrot.slane %v448, 4
        %v451 = vshll.u32 %v365, 16
        %v453 = vrot.slane %v451, 5
        %v454 = vsel %vm370, %v449, %v453
        %v456 = vshrl.u32 %v358, 16
        %v458 = vrot.slane %v456, 4
        %v459 = vshll.u32 %v358, 16
        %v461 = vrot.slane %v459, 5
        %v462 = vor.u32 %v458, %v461
        %v463 = vrot.slane %v462, 4
        %v465 = vshll.u32 %v366, 16
        %v467 = vrot.slane %v465, 5
        %v468 = vsel %vm370, %v463, %v467
        %v470 = vshrl.u32 %v359, 16
        %v472 = vrot.slane %v470, 4
        %v473 = vshll.u32 %v359, 16
        %v475 = vrot.slane %v473, 5
        %v476 = vor.u32 %v472, %v475
        %v477 = vrot.slane %v476, 4
        %v479 = vshll.u32 %v367, 16
        %v481 = vrot.slane %v479, 5
        %v482 = vsel %vm370, %v477, %v481
        %s483 = scalar_lea.vmem %s350, 8
        %v484 = vld [vmem:[%s483] sm:$0xf]
        %v485 = vld [vmem:[%s483 + $0x8] sm:$0xf]
        %v486 = vld [vmem:[%s483 + $0x10] sm:$0xf]
        %v487 = vld [vmem:[%s483 + $0x18] sm:$0xf]
        %v488 = vld [vmem:[%s483 + $0x20] sm:$0xf]
        %v489 = vld [vmem:[%s483 + $0x28] sm:$0xf]
        %v490 = vld [vmem:[%s483 + $0x30] sm:$0xf]
        %v491 = vld [vmem:[%s483 + $0x38] sm:$0xf]
        %v492 = vld [vmem:[%s483 + $0x4] sm:$0x1]
        %v493 = vld [vmem:[%s483 + $0xc] sm:$0x1]
        %v494 = vld [vmem:[%s483 + $0x14] sm:$0x1]
        %v495 = vld [vmem:[%s483 + $0x1c] sm:$0x1]
        %v496 = vld [vmem:[%s483 + $0x24] sm:$0x1]
        %v497 = vld [vmem:[%s483 + $0x2c] sm:$0x1]
        %v498 = vld [vmem:[%s483 + $0x34] sm:$0x1]
        %v499 = vld [vmem:[%s483 + $0x3c] sm:$0x1]
        %v501 = vshrl.u32 %v484, 16
        %v503 = vrot.slane %v501, 4
        %v504 = vshll.u32 %v484, 16
        %v506 = vrot.slane %v504, 5
        %v507 = vor.u32 %v503, %v506
        %v508 = vrot.slane %v507, 4
        %v510 = vshll.u32 %v492, 16
        %v512 = vrot.slane %v510, 5
        %v513 = vsel %vm370, %v508, %v512
        %v515 = vshrl.u32 %v485, 16
        %v517 = vrot.slane %v515, 4
        %v518 = vshll.u32 %v485, 16
        %v520 = vrot.slane %v518, 5
        %v521 = vor.u32 %v517, %v520
        %v522 = vrot.slane %v521, 4
        %v524 = vshll.u32 %v493, 16
        %v526 = vrot.slane %v524, 5
        %v527 = vsel %vm370, %v522, %v526
        %v529 = vshrl.u32 %v486, 16
        %v531 = vrot.slane %v529, 4
        %v532 = vshll.u32 %v486, 16
        %v534 = vrot.slane %v532, 5
        %v535 = vor.u32 %v531, %v534
        %v536 = vrot.slane %v535, 4
        %v538 = vshll.u32 %v494, 16
        %v540 = vrot.slane %v538, 5
        %v541 = vsel %vm370, %v536, %v540
        %v543 = vshrl.u32 %v487, 16
        %v545 = vrot.slane %v543, 4
        %v546 = vshll.u32 %v487, 16
        %v548 = vrot.slane %v546, 5
        %v549 = vor.u32 %v545, %v548
        %v550 = vrot.slane %v549, 4
        %v552 = vshll.u32 %v495, 16
        %v554 = vrot.slane %v552, 5
        %v555 = vsel %vm370, %v550, %v554
        %v557 = vshrl.u32 %v488, 16
        %v559 = vrot.slane %v557, 4
        %v560 = vshll.u32 %v488, 16
        %v562 = vrot.slane %v560, 5
        %v563 = vor.u32 %v559, %v562
        %v564 = vrot.slane %v563, 4
        %v566 = vshll.u32 %v496, 16
        %v568 = vrot.slane %v566, 5
        %v569 = vsel %vm370, %v564, %v568
        %v571 = vshrl.u32 %v489, 16
        %v573 = vrot.slane %v571, 4
        %v574 = vshll.u32 %v489, 16
        %v576 = vrot.slane %v574, 5
        %v577 = vor.u32 %v573, %v576
        %v578 = vrot.slane %v577, 4
        %v580 = vshll.u32 %v497, 16
        %v582 = vrot.slane %v580, 5
        %v583 = vsel %vm370, %v578, %v582
        %v585 = vshrl.u32 %v490, 16
        %v587 = vrot.slane %v585, 4
        %v588 = vshll.u32 %v490, 16
        %v590 = vrot.slane %v588, 5
        %v591 = vor.u32 %v587, %v590
        %v592 = vrot.slane %v591, 4
        %v594 = vshll.u32 %v498, 16
        %v596 = vrot.slane %v594, 5
        %v597 = vsel %vm370, %v592, %v596
        %v599 = vshrl.u32 %v491, 16
        %v601 = vrot.slane %v599, 4
        %v602 = vshll.u32 %v491, 16
        %v604 = vrot.slane %v602, 5
        %v605 = vor.u32 %v601, %v604
        %v606 = vrot.slane %v605, 4
        %v608 = vshll.u32 %v499, 16
        %v610 = vrot.slane %v608, 5
        %v611 = vsel %vm370, %v606, %v610
        %v620 = vunpack.c.l.b16 %v352
        %v621 = vunpack.c.l.b16 %v353
        %v622 = vunpack.c.l.b16 %v354
        %v623 = vunpack.c.l.b16 %v355
        %v624 = vunpack.c.l.b16 %v356
        %v625 = vunpack.c.l.b16 %v357
        %v626 = vunpack.c.l.b16 %v358
        %v627 = vunpack.c.l.b16 %v359
        %v628 = vpack.c.b16 %v621, %v620
        %v629 = vpack.c.b16 %v623, %v622
        %v630 = vpack.c.b16 %v625, %v624
        %v631 = vpack.c.b16 %v627, %v626
        %v632 = vunpack.c.l.b16 %v384
        %v633 = vunpack.c.l.b16 %v398
        %v634 = vunpack.c.l.b16 %v412
        %v635 = vunpack.c.l.b16 %v426
        %v636 = vunpack.c.l.b16 %v440
        %v637 = vunpack.c.l.b16 %v454
        %v638 = vunpack.c.l.b16 %v468
        %v639 = vunpack.c.l.b16 %v482
        %v640 = vpack.c.b16 %v633, %v632
        %v641 = vpack.c.b16 %v635, %v634
        %v642 = vpack.c.b16 %v637, %v636
        %v643 = vpack.c.b16 %v639, %v638
        %644 = vrot.lane.b32.xlu0 %v640, 8
        %v645 = vpop.permute.xlu0 %644
        %646 = vrot.lane.b32.xlu0 %v641, 8
        %v647 = vpop.permute.xlu0 %646
        %648 = vrot.lane.b32.xlu0 %v642, 8
        %v649 = vpop.permute.xlu0 %648
        %650 = vrot.lane.b32.xlu0 %v643, 8
        %v651 = vpop.permute.xlu0 %650
        %v660 = vunpack.c.l.b16 %v484
        %v661 = vunpack.c.l.b16 %v485
        %v662 = vunpack.c.l.b16 %v486
        %v663 = vunpack.c.l.b16 %v487
        %v664 = vunpack.c.l.b16 %v488
        %v665 = vunpack.c.l.b16 %v489
        %v666 = vunpack.c.l.b16 %v490
        %v667 = vunpack.c.l.b16 %v491
        %v668 = vpack.c.b16 %v661, %v660
        %v669 = vpack.c.b16 %v663, %v662
        %v670 = vpack.c.b16 %v665, %v664
        %v671 = vpack.c.b16 %v667, %v666
        %672 = vrot.lane.b32.xlu0 %v668, 16
        %v673 = vpop.permute.xlu0 %672
        %674 = vrot.lane.b32.xlu0 %v669, 16
        %v675 = vpop.permute.xlu0 %674
        %676 = vrot.lane.b32.xlu0 %v670, 16
        %v677 = vpop.permute.xlu0 %676
        %678 = vrot.lane.b32.xlu0 %v671, 16
        %v679 = vpop.permute.xlu0 %678
        %v680 = vunpack.c.l.b16 %v513
        %v681 = vunpack.c.l.b16 %v527
        %v682 = vunpack.c.l.b16 %v541
        %v683 = vunpack.c.l.b16 %v555
        %v684 = vunpack.c.l.b16 %v569
        %v685 = vunpack.c.l.b16 %v583
        %v686 = vunpack.c.l.b16 %v597
        %v687 = vunpack.c.l.b16 %v611
        %v688 = vpack.c.b16 %v681, %v680
        %v689 = vpack.c.b16 %v683, %v682
        %v690 = vpack.c.b16 %v685, %v684
        %v691 = vpack.c.b16 %v687, %v686
        %692 = vrot.lane.b32.xlu0 %v688, 24
        %v693 = vpop.permute.xlu0 %692
        %694 = vrot.lane.b32.xlu0 %v689, 24
        %v695 = vpop.permute.xlu0 %694
        %696 = vrot.lane.b32.xlu0 %v690, 24
        %v697 = vpop.permute.xlu0 %696
        %698 = vrot.lane.b32.xlu0 %v691, 24
        %v699 = vpop.permute.xlu0 %698
        %vm700 = vcmask 64512
        %v703 = vsel %vm700, %v628, %v645
        %v706 = vsel %vm700, %v629, %v647
        %v709 = vsel %vm700, %v630, %v649
        %v712 = vsel %vm700, %v631, %v651
        %vm713 = vcmask 130048
        %v715 = vsel %vm713, %v703, %v673
        %v717 = vsel %vm713, %v706, %v675
        %v719 = vsel %vm713, %v709, %v677
        %v721 = vsel %vm713, %v712, %v679
        %vm722 = vcmask 195584
        %v724 = vsel %vm722, %v715, %v693
        %v726 = vsel %vm722, %v717, %v695
        %v728 = vsel %vm722, %v719, %v697
        %v730 = vsel %vm722, %v721, %v699
        %v731 = vld [vmem:[%s3] sm:$0xf]
        %v732 = vld [vmem:[%s3 + $0x4] sm:$0xf]
        %v733 = vld [vmem:[%s3 + $0x8] sm:$0xf]
        %v734 = vld [vmem:[%s3 + $0xc] sm:$0xf]
        %v735 = vld [vmem:[%s4] sm:$0x1]
        %v737 = vlaneseq
        %v738 = vshrl.u32 %v737, 7
        %v739 = vsub.s32 0, %v738
        %v740 = vrot.slane %v735, %v739
        %v746 = vunpack.c.l.b16 %v731
        %v747 = vunpack.c.l.b16 %v732
        %v748 = vunpack.c.l.b16 %v733
        %v749 = vunpack.c.l.b16 %v734
        %v750 = vpack.c.b16 %v747, %v746
        %v751 = vpack.c.b16 %v749, %v748
        %vm754 = vcmask 261120
        %v755 = vsel %vm754, %v724, 0
        %v757 = vsel %vm754, %v726, 0
        %v759 = vsel %vm754, %v728, 0
        %v761 = vsel %vm754, %v730, 0
        %763 = vmatprep.subr.bf16.mxu0 0
        %764 = vmatpush1.bf16.msra.mxu0 %v750
        %765 = vmatprep.subr.bf16.mxu0 0
        %766 = vmatpush1.bf16.msra.mxu0 %v751
        %767 = vmatprep.subr.bf16.mxu0 0
        %768 = vmatpush1.bf16.msra.mxu0 0
        %769 = vmatprep.subr.bf16.mxu0 0
        %770 = vmatpush1.bf16.msra.mxu0 0
        %771 = vmatprep.subr.bf16.mxu0 0
        %772 = vmatpush1.bf16.msra.mxu0 0
        %773 = vmatprep.subr.bf16.mxu0 0
        %774 = vmatpush1.bf16.msra.mxu0 0
        %775 = vmatprep.subr.bf16.mxu0 0
        %776 = vmatpush1.bf16.msra.mxu0 0
        %777 = vmatprep.subr.bf16.mxu0 0
        %778 = vmatpush1.bf16.msra.mxu0 0
        %779 = vmatprep.subr.bf16.mxu0 0
        %780 = vmatpush1.bf16.msra.mxu0 0
        %781 = vmatprep.subr.bf16.mxu0 0
        %782 = vmatpush1.bf16.msra.mxu0 0
        %783 = vmatprep.subr.bf16.mxu0 0
        %784 = vmatpush1.bf16.msra.mxu0 0
        %785 = vmatprep.subr.bf16.mxu0 0
        %786 = vmatpush1.bf16.msra.mxu0 0
        %787 = vmatprep.subr.bf16.mxu0 0
        %788 = vmatpush1.bf16.msra.mxu0 0
        %789 = vmatprep.subr.bf16.mxu0 0
        %790 = vmatpush1.bf16.msra.mxu0 0
        %791 = vmatprep.subr.bf16.mxu0 0
        %792 = vmatpush1.bf16.msra.mxu0 0
        %793 = vmatprep.subr.bf16.mxu0 0
        %794 = vmatpush1.bf16.msra.mxu0 0
        %795 = vmatprep.mubr.bf16.mxu0 0
        %796 = vmatmul.mubr.bf16.gmra.mrb[0].mxu0 %v755
        %v797 = vpop.f32.mrb[0].mxu0
        %v798 = vadd.f32 %v740, %v797
        %v799 = vpop.f32.mrb[0].mxu0
        %v800 = vpop.f32.mrb[0].mxu0
        %v801 = vadd.f32 %v740, %v800
        %v802 = vpop.f32.mrb[0].mxu0
        %803 = vmatprep.mubr.bf16.mxu0 0
        %804 = vmatmul.mubr.bf16.gmra.mrb[0].mxu0 %v757
        %v805 = vpop.f32.mrb[0].mxu0
        %v806 = vadd.f32 %v740, %v805
        %v807 = vpop.f32.mrb[0].mxu0
        %v808 = vpop.f32.mrb[0].mxu0
        %v809 = vadd.f32 %v740, %v808
        %v810 = vpop.f32.mrb[0].mxu0
        %811 = vmatprep.mubr.bf16.mxu0 0
        %812 = vmatmul.mubr.bf16.gmra.mrb[0].mxu0 %v759
        %v813 = vpop.f32.mrb[0].mxu0
        %v814 = vadd.f32 %v740, %v813
        %v815 = vpop.f32.mrb[0].mxu0
        %v816 = vpop.f32.mrb[0].mxu0
        %v817 = vadd.f32 %v740, %v816
        %v818 = vpop.f32.mrb[0].mxu0
        %819 = vmatprep.mubr.bf16.mxu0 0
        %820 = vmatmul.mubr.bf16.gmra.mrb[0].mxu0 %v761
        %v821 = vpop.f32.mrb[0].mxu0
        %v822 = vadd.f32 %v740, %v821
        %v823 = vpop.f32.mrb[0].mxu0
        %v824 = vpop.f32.mrb[0].mxu0
        %v825 = vadd.f32 %v740, %v824
        %v826 = vpop.f32.mrb[0].mxu0
        %827 = vdwg.mxu0
        %v828 = vpack.c.bf16 %v801, %v798
        %v829 = vpack.c.bf16 %v809, %v806
        %v830 = vpack.c.bf16 %v817, %v814
        %v831 = vpack.c.bf16 %v825, %v822
        %v832 = vld [vmem:[%s350] sm:$0xe]
        %v833 = vld [vmem:[%s350 + $0x8] sm:$0xe]
        %v834 = vld [vmem:[%s350 + $0x10] sm:$0xe]
        %v835 = vld [vmem:[%s350 + $0x18] sm:$0xe]
        %v836 = vld [vmem:[%s350 + $0x20] sm:$0xe]
        %v837 = vld [vmem:[%s350 + $0x28] sm:$0xe]
        %v838 = vld [vmem:[%s350 + $0x30] sm:$0xe]
        %v839 = vld [vmem:[%s350 + $0x38] sm:$0xe]
        %vm856 = vcmask 1042432
        %vm857 = vcmask 1046532
        %vm858 = vmor %vm856, %vm857
        %v859 = vrot.slane %v832, 5
        %v860 = vrot.slane %v859, 4
        %v861 = vrot.slane %v360, 5
        %v862 = vsel %vm858, %v860, %v861
        %v863 = vrot.slane %v833, 5
        %v864 = vrot.slane %v863, 4
        %v865 = vrot.slane %v361, 5
        %v866 = vsel %vm858, %v864, %v865
        %v867 = vrot.slane %v834, 5
        %v868 = vrot.slane %v867, 4
        %v869 = vrot.slane %v362, 5
        %v870 = vsel %vm858, %v868, %v869
        %v871 = vrot.slane %v835, 5
        %v872 = vrot.slane %v871, 4
        %v873 = vrot.slane %v363, 5
        %v874 = vsel %vm858, %v872, %v873
        %v875 = vrot.slane %v836, 5
        %v876 = vrot.slane %v875, 4
        %v877 = vrot.slane %v364, 5
        %v878 = vsel %vm858, %v876, %v877
        %v879 = vrot.slane %v837, 5
        %v880 = vrot.slane %v879, 4
        %v881 = vrot.slane %v365, 5
        %v882 = vsel %vm858, %v880, %v881
        %v883 = vrot.slane %v838, 5
        %v884 = vrot.slane %v883, 4
        %v885 = vrot.slane %v366, 5
        %v886 = vsel %vm858, %v884, %v885
        %v887 = vrot.slane %v839, 5
        %v888 = vrot.slane %v887, 4
        %v889 = vrot.slane %v367, 5
        %v890 = vsel %vm858, %v888, %v889
        %v891 = vld [vmem:[%s483] sm:$0xe]
        %v892 = vld [vmem:[%s483 + $0x8] sm:$0xe]
        %v893 = vld [vmem:[%s483 + $0x10] sm:$0xe]
        %v894 = vld [vmem:[%s483 + $0x18] sm:$0xe]
        %v895 = vld [vmem:[%s483 + $0x20] sm:$0xe]
        %v896 = vld [vmem:[%s483 + $0x28] sm:$0xe]
        %v897 = vld [vmem:[%s483 + $0x30] sm:$0xe]
        %v898 = vld [vmem:[%s483 + $0x38] sm:$0xe]
        %v915 = vrot.slane %v891, 5
        %v916 = vrot.slane %v915, 4
        %v917 = vrot.slane %v492, 5
        %v918 = vsel %vm858, %v916, %v917
        %v919 = vrot.slane %v892, 5
        %v920 = vrot.slane %v919, 4
        %v921 = vrot.slane %v493, 5
        %v922 = vsel %vm858, %v920, %v921
        %v923 = vrot.slane %v893, 5
        %v924 = vrot.slane %v923, 4
        %v925 = vrot.slane %v494, 5
        %v926 = vsel %vm858, %v924, %v925
        %v927 = vrot.slane %v894, 5
        %v928 = vrot.slane %v927, 4
        %v929 = vrot.slane %v495, 5
        %v930 = vsel %vm858, %v928, %v929
        %v931 = vrot.slane %v895, 5
        %v932 = vrot.slane %v931, 4
        %v933 = vrot.slane %v496, 5
        %v934 = vsel %vm858, %v932, %v933
        %v935 = vrot.slane %v896, 5
        %v936 = vrot.slane %v935, 4
        %v937 = vrot.slane %v497, 5
        %v938 = vsel %vm858, %v936, %v937
        %v939 = vrot.slane %v897, 5
        %v940 = vrot.slane %v939, 4
        %v941 = vrot.slane %v498, 5
        %v942 = vsel %vm858, %v940, %v941
        %v943 = vrot.slane %v898, 5
        %v944 = vrot.slane %v943, 4
        %v945 = vrot.slane %v499, 5
        %v946 = vsel %vm858, %v944, %v945
        %v947 = vunpack.c.l.b16 %v862
        %v948 = vunpack.c.l.b16 %v866
        %v949 = vunpack.c.l.b16 %v870
        %v950 = vunpack.c.l.b16 %v874
        %v951 = vunpack.c.l.b16 %v878
        %v952 = vunpack.c.l.b16 %v882
        %v953 = vunpack.c.l.b16 %v886
        %v954 = vunpack.c.l.b16 %v890
        %v955 = vpack.c.b16 %v948, %v947
        %v956 = vpack.c.b16 %v950, %v949
        %v957 = vpack.c.b16 %v952, %v951
        %v958 = vpack.c.b16 %v954, %v953
        %959 = vrot.lane.b32.xlu0 %v955, 8
        %v960 = vpop.permute.xlu0 %959
        %961 = vrot.lane.b32.xlu0 %v956, 8
        %v962 = vpop.permute.xlu0 %961
        %963 = vrot.lane.b32.xlu0 %v957, 8
        %v964 = vpop.permute.xlu0 %963
        %965 = vrot.lane.b32.xlu0 %v958, 8
        %v966 = vpop.permute.xlu0 %965
        %967 = vrot.lane.b32.xlu0 %v688, 16
        %v968 = vpop.permute.xlu0 %967
        %969 = vrot.lane.b32.xlu0 %v689, 16
        %v970 = vpop.permute.xlu0 %969
        %971 = vrot.lane.b32.xlu0 %v690, 16
        %v972 = vpop.permute.xlu0 %971
        %973 = vrot.lane.b32.xlu0 %v691, 16
        %v974 = vpop.permute.xlu0 %973
        %v975 = vunpack.c.l.b16 %v918
        %v976 = vunpack.c.l.b16 %v922
        %v977 = vunpack.c.l.b16 %v926
        %v978 = vunpack.c.l.b16 %v930
        %v979 = vunpack.c.l.b16 %v934
        %v980 = vunpack.c.l.b16 %v938
        %v981 = vunpack.c.l.b16 %v942
        %v982 = vunpack.c.l.b16 %v946
        %v983 = vpack.c.b16 %v976, %v975
        %v984 = vpack.c.b16 %v978, %v977
        %v985 = vpack.c.b16 %v980, %v979
        %v986 = vpack.c.b16 %v982, %v981
        %987 = vrot.lane.b32.xlu0 %v983, 24
        %v988 = vpop.permute.xlu0 %987
        %989 = vrot.lane.b32.xlu0 %v984, 24
        %v990 = vpop.permute.xlu0 %989
        %991 = vrot.lane.b32.xlu0 %v985, 24
        %v992 = vpop.permute.xlu0 %991
        %993 = vrot.lane.b32.xlu0 %v986, 24
        %v994 = vpop.permute.xlu0 %993
        %v997 = vsel %vm700, %v640, %v960
        %v1000 = vsel %vm700, %v641, %v962
        %v1003 = vsel %vm700, %v642, %v964
        %v1006 = vsel %vm700, %v643, %v966
        %v1008 = vsel %vm713, %v997, %v968
        %v1010 = vsel %vm713, %v1000, %v970
        %v1012 = vsel %vm713, %v1003, %v972
        %v1014 = vsel %vm713, %v1006, %v974
        %v1016 = vsel %vm722, %v1008, %v988
        %v1018 = vsel %vm722, %v1010, %v990
        %v1020 = vsel %vm722, %v1012, %v992
        %v1022 = vsel %vm722, %v1014, %v994
        %s1023 = scalar_lea.vmem %s3, 16
        %v1024 = vld [vmem:[%s1023] sm:$0xf]
        %v1025 = vld [vmem:[%s1023 + $0x4] sm:$0xf]
        %v1026 = vld [vmem:[%s1023 + $0x8] sm:$0xf]
        %v1027 = vld [vmem:[%s1023 + $0xc] sm:$0xf]
        %v1032 = vunpack.c.l.b16 %v1024
        %v1033 = vunpack.c.l.b16 %v1025
        %v1034 = vunpack.c.l.b16 %v1026
        %v1035 = vunpack.c.l.b16 %v1027
        %v1036 = vpack.c.b16 %v1033, %v1032
        %v1037 = vpack.c.b16 %v1035, %v1034
        %v1040 = vsel %vm754, %v1016, 0
        %v1042 = vsel %vm754, %v1018, 0
        %v1044 = vsel %vm754, %v1020, 0
        %v1046 = vsel %vm754, %v1022, 0
        %1048 = vmatprep.subr.bf16.mxu0 0
        %1049 = vmatpush1.bf16.msra.mxu0 %v1036
        %1050 = vmatprep.subr.bf16.mxu0 0
        %1051 = vmatpush1.bf16.msra.mxu0 %v1037
        %1052 = vmatprep.subr.bf16.mxu0 0
        %1053 = vmatpush1.bf16.msra.mxu0 0
        %1054 = vmatprep.subr.bf16.mxu0 0
        %1055 = vmatpush1.bf16.msra.mxu0 0
        %1056 = vmatprep.subr.bf16.mxu0 0
        %1057 = vmatpush1.bf16.msra.mxu0 0
        %1058 = vmatprep.subr.bf16.mxu0 0
        %1059 = vmatpush1.bf16.msra.mxu0 0
        %1060 = vmatprep.subr.bf16.mxu0 0
        %1061 = vmatpush1.bf16.msra.mxu0 0
        %1062 = vmatprep.subr.bf16.mxu0 0
        %1063 = vmatpush1.bf16.msra.mxu0 0
        %1064 = vmatprep.subr.bf16.mxu0 0
        %1065 = vmatpush1.bf16.msra.mxu0 0
        %1066 = vmatprep.subr.bf16.mxu0 0
        %1067 = vmatpush1.bf16.msra.mxu0 0
        %1068 = vmatprep.subr.bf16.mxu0 0
        %1069 = vmatpush1.bf16.msra.mxu0 0
        %1070 = vmatprep.subr.bf16.mxu0 0
        %1071 = vmatpush1.bf16.msra.mxu0 0
        %1072 = vmatprep.subr.bf16.mxu0 0
        %1073 = vmatpush1.bf16.msra.mxu0 0
        %1074 = vmatprep.subr.bf16.mxu0 0
        %1075 = vmatpush1.bf16.msra.mxu0 0
        %1076 = vmatprep.subr.bf16.mxu0 0
        %1077 = vmatpush1.bf16.msra.mxu0 0
        %1078 = vmatprep.subr.bf16.mxu0 0
        %1079 = vmatpush1.bf16.msra.mxu0 0
        %1080 = vmatprep.mubr.bf16.mxu0 0
        %1081 = vmatmul.mubr.bf16.gmra.mrb[0].mxu0 %v1040
        %v1082 = vpop.f32.mrb[0].mxu0
        %v1083 = vadd.f32 %v740, %v1082
        %v1084 = vpop.f32.mrb[0].mxu0
        %v1085 = vpop.f32.mrb[0].mxu0
        %v1086 = vadd.f32 %v740, %v1085
        %v1087 = vpop.f32.mrb[0].mxu0
        %1088 = vmatprep.mubr.bf16.mxu0 0
        %1089 = vmatmul.mubr.bf16.gmra.mrb[0].mxu0 %v1042
        %v1090 = vpop.f32.mrb[0].mxu0
        %v1091 = vadd.f32 %v740, %v1090
        %v1092 = vpop.f32.mrb[0].mxu0
        %v1093 = vpop.f32.mrb[0].mxu0
        %v1094 = vadd.f32 %v740, %v1093
        %v1095 = vpop.f32.mrb[0].mxu0
        %1096 = vmatprep.mubr.bf16.mxu0 0
        %1097 = vmatmul.mubr.bf16.gmra.mrb[0].mxu0 %v1044
        %v1098 = vpop.f32.mrb[0].mxu0
        %v1099 = vadd.f32 %v740, %v1098
        %v1100 = vpop.f32.mrb[0].mxu0
        %v1101 = vpop.f32.mrb[0].mxu0
        %v1102 = vadd.f32 %v740, %v1101
        %v1103 = vpop.f32.mrb[0].mxu0
        %1104 = vmatprep.mubr.bf16.mxu0 0
        %1105 = vmatmul.mubr.bf16.gmra.mrb[0].mxu0 %v1046
        %v1106 = vpop.f32.mrb[0].mxu0
        %v1107 = vadd.f32 %v740, %v1106
        %v1108 = vpop.f32.mrb[0].mxu0
        %v1109 = vpop.f32.mrb[0].mxu0
        %v1110 = vadd.f32 %v740, %v1109
        %v1111 = vpop.f32.mrb[0].mxu0
        %1112 = vdwg.mxu0
        %v1113 = vpack.c.bf16 %v1086, %v1083
        %v1114 = vpack.c.bf16 %v1094, %v1091
        %v1115 = vpack.c.bf16 %v1102, %v1099
        %v1116 = vpack.c.bf16 %v1110, %v1107
        %s1117 = scalar_lea.vmem %s350, 16
        %v1118 = vld [vmem:[%s1117] sm:$0xf]
        %v1119 = vld [vmem:[%s1117 + $0x8] sm:$0xf]
        %v1120 = vld [vmem:[%s1117 + $0x10] sm:$0xf]
        %v1121 = vld [vmem:[%s1117 + $0x18] sm:$0xf]
        %v1122 = vld [vmem:[%s1117 + $0x20] sm:$0xf]
        %v1123 = vld [vmem:[%s1117 + $0x28] sm:$0xf]
        %v1124 = vld [vmem:[%s1117 + $0x30] sm:$0xf]
        %v1125 = vld [vmem:[%s1117 + $0x38] sm:$0xf]
        %v1126 = vld [vmem:[%s1117 + $0x4] sm:$0x1]
        %v1127 = vld [vmem:[%s1117 + $0xc] sm:$0x1]
        %v1128 = vld [vmem:[%s1117 + $0x14] sm:$0x1]
        %v1129 = vld [vmem:[%s1117 + $0x1c] sm:$0x1]
        %v1130 = vld [vmem:[%s1117 + $0x24] sm:$0x1]
        %v1131 = vld [vmem:[%s1117 + $0x2c] sm:$0x1]
        %v1132 = vld [vmem:[%s1117 + $0x34] sm:$0x1]
        %v1133 = vld [vmem:[%s1117 + $0x3c] sm:$0x1]
        %v1135 = vshrl.u32 %v1118, 16
        %v1137 = vrot.slane %v1135, 4
        %v1138 = vshll.u32 %v1118, 16
        %v1140 = vrot.slane %v1138, 5
        %v1141 = vor.u32 %v1137, %v1140
        %v1142 = vrot.slane %v1141, 4
        %v1144 = vshll.u32 %v1126, 16
        %v1146 = vrot.slane %v1144, 5
        %v1147 = vsel %vm370, %v1142, %v1146
        %v1149 = vshrl.u32 %v1119, 16
        %v1151 = vrot.slane %v1149, 4
        %v1152 = vshll.u32 %v1119, 16
        %v1154 = vrot.slane %v1152, 5
        %v1155 = vor.u32 %v1151, %v1154
        %v1156 = vrot.slane %v1155, 4
        %v1158 = vshll.u32 %v1127, 16
        %v1160 = vrot.slane %v1158, 5
        %v1161 = vsel %vm370, %v1156, %v1160
        %v1163 = vshrl.u32 %v1120, 16
        %v1165 = vrot.slane %v1163, 4
        %v1166 = vshll.u32 %v1120, 16
        %v1168 = vrot.slane %v1166, 5
        %v1169 = vor.u32 %v1165, %v1168
        %v1170 = vrot.slane %v1169, 4
        %v1172 = vshll.u32 %v1128, 16
        %v1174 = vrot.slane %v1172, 5
        %v1175 = vsel %vm370, %v1170, %v1174
        %v1177 = vshrl.u32 %v1121, 16
        %v1179 = vrot.slane %v1177, 4
        %v1180 = vshll.u32 %v1121, 16
        %v1182 = vrot.slane %v1180, 5
        %v1183 = vor.u32 %v1179, %v1182
        %v1184 = vrot.slane %v1183, 4
        %v1186 = vshll.u32 %v1129, 16
        %v1188 = vrot.slane %v1186, 5
        %v1189 = vsel %vm370, %v1184, %v1188
        %v1191 = vshrl.u32 %v1122, 16
        %v1193 = vrot.slane %v1191, 4
        %v1194 = vshll.u32 %v1122, 16
        %v1196 = vrot.slane %v1194, 5
        %v1197 = vor.u32 %v1193, %v1196
        %v1198 = vrot.slane %v1197, 4
        %v1200 = vshll.u32 %v1130, 16
        %v1202 = vrot.slane %v1200, 5
        %v1203 = vsel %vm370, %v1198, %v1202
        %v1205 = vshrl.u32 %v1123, 16
        %v1207 = vrot.slane %v1205, 4
        %v1208 = vshll.u32 %v1123, 16
        %v1210 = vrot.slane %v1208, 5
        %v1211 = vor.u32 %v1207, %v1210
        %v1212 = vrot.slane %v1211, 4
        %v1214 = vshll.u32 %v1131, 16
        %v1216 = vrot.slane %v1214, 5
        %v1217 = vsel %vm370, %v1212, %v1216
        %v1219 = vshrl.u32 %v1124, 16
        %v1221 = vrot.slane %v1219, 4
        %v1222 = vshll.u32 %v1124, 16
        %v1224 = vrot.slane %v1222, 5
        %v1225 = vor.u32 %v1221, %v1224
        %v1226 = vrot.slane %v1225, 4
        %v1228 = vshll.u32 %v1132, 16
        %v1230 = vrot.slane %v1228, 5
        %v1231 = vsel %vm370, %v1226, %v1230
        %v1233 = vshrl.u32 %v1125, 16
        %v1235 = vrot.slane %v1233, 4
        %v1236 = vshll.u32 %v1125, 16
        %v1238 = vrot.slane %v1236, 5
        %v1239 = vor.u32 %v1235, %v1238
        %v1240 = vrot.slane %v1239, 4
        %v1242 = vshll.u32 %v1133, 16
        %v1244 = vrot.slane %v1242, 5
        %v1245 = vsel %vm370, %v1240, %v1244
        %1246 = vrot.lane.b32.xlu0 %v688, 8
        %v1247 = vpop.permute.xlu0 %1246
        %1248 = vrot.lane.b32.xlu0 %v689, 8
        %v1249 = vpop.permute.xlu0 %1248
        %1250 = vrot.lane.b32.xlu0 %v690, 8
        %v1251 = vpop.permute.xlu0 %1250
        %1252 = vrot.lane.b32.xlu0 %v691, 8
        %v1253 = vpop.permute.xlu0 %1252
        %v1262 = vunpack.c.l.b16 %v1118
        %v1263 = vunpack.c.l.b16 %v1119
        %v1264 = vunpack.c.l.b16 %v1120
        %v1265 = vunpack.c.l.b16 %v1121
        %v1266 = vunpack.c.l.b16 %v1122
        %v1267 = vunpack.c.l.b16 %v1123
        %v1268 = vunpack.c.l.b16 %v1124
        %v1269 = vunpack.c.l.b16 %v1125
        %v1270 = vpack.c.b16 %v1263, %v1262
        %v1271 = vpack.c.b16 %v1265, %v1264
        %v1272 = vpack.c.b16 %v1267, %v1266
        %v1273 = vpack.c.b16 %v1269, %v1268
        %1274 = vrot.lane.b32.xlu0 %v1270, 16
        %v1275 = vpop.permute.xlu0 %1274
        %1276 = vrot.lane.b32.xlu0 %v1271, 16
        %v1277 = vpop.permute.xlu0 %1276
        %1278 = vrot.lane.b32.xlu0 %v1272, 16
        %v1279 = vpop.permute.xlu0 %1278
        %1280 = vrot.lane.b32.xlu0 %v1273, 16
        %v1281 = vpop.permute.xlu0 %1280
        %v1282 = vunpack.c.l.b16 %v1147
        %v1283 = vunpack.c.l.b16 %v1161
        %v1284 = vunpack.c.l.b16 %v1175
        %v1285 = vunpack.c.l.b16 %v1189
        %v1286 = vunpack.c.l.b16 %v1203
        %v1287 = vunpack.c.l.b16 %v1217
        %v1288 = vunpack.c.l.b16 %v1231
        %v1289 = vunpack.c.l.b16 %v1245
        %v1290 = vpack.c.b16 %v1283, %v1282
        %v1291 = vpack.c.b16 %v1285, %v1284
        %v1292 = vpack.c.b16 %v1287, %v1286
        %v1293 = vpack.c.b16 %v1289, %v1288
        %1294 = vrot.lane.b32.xlu0 %v1290, 24
        %v1295 = vpop.permute.xlu0 %1294
        %1296 = vrot.lane.b32.xlu0 %v1291, 24
        %v1297 = vpop.permute.xlu0 %1296
        %1298 = vrot.lane.b32.xlu0 %v1292, 24
        %v1299 = vpop.permute.xlu0 %1298
        %1300 = vrot.lane.b32.xlu0 %v1293, 24
        %v1301 = vpop.permute.xlu0 %1300
        %v1304 = vsel %vm700, %v668, %v1247
        %v1307 = vsel %vm700, %v669, %v1249
        %v1310 = vsel %vm700, %v670, %v1251
        %v1313 = vsel %vm700, %v671, %v1253
        %v1315 = vsel %vm713, %v1304, %v1275
        %v1317 = vsel %vm713, %v1307, %v1277
        %v1319 = vsel %vm713, %v1310, %v1279
        %v1321 = vsel %vm713, %v1313, %v1281
        %v1323 = vsel %vm722, %v1315, %v1295
        %v1325 = vsel %vm722, %v1317, %v1297
        %v1327 = vsel %vm722, %v1319, %v1299
        %v1329 = vsel %vm722, %v1321, %v1301
        %s1330 = scalar_lea.vmem %s3, 32
        %v1331 = vld [vmem:[%s1330] sm:$0xf]
        %v1332 = vld [vmem:[%s1330 + $0x4] sm:$0xf]
        %v1333 = vld [vmem:[%s1330 + $0x8] sm:$0xf]
        %v1334 = vld [vmem:[%s1330 + $0xc] sm:$0xf]
        %v1339 = vunpack.c.l.b16 %v1331
        %v1340 = vunpack.c.l.b16 %v1332
        %v1341 = vunpack.c.l.b16 %v1333
        %v1342 = vunpack.c.l.b16 %v1334
        %v1343 = vpack.c.b16 %v1340, %v1339
        %v1344 = vpack.c.b16 %v1342, %v1341
        %v1347 = vsel %vm754, %v1323, 0
        %v1349 = vsel %vm754, %v1325, 0
        %v1351 = vsel %vm754, %v1327, 0
        %v1353 = vsel %vm754, %v1329, 0
        %1355 = vmatprep.subr.bf16.mxu0 0
        %1356 = vmatpush1.bf16.msra.mxu0 %v1343
        %1357 = vmatprep.subr.bf16.mxu0 0
        %1358 = vmatpush1.bf16.msra.mxu0 %v1344
        %1359 = vmatprep.subr.bf16.mxu0 0
        %1360 = vmatpush1.bf16.msra.mxu0 0
        %1361 = vmatprep.subr.bf16.mxu0 0
        %1362 = vmatpush1.bf16.msra.mxu0 0
        %1363 = vmatprep.subr.bf16.mxu0 0
        %1364 = vmatpush1.bf16.msra.mxu0 0
        %1365 = vmatprep.subr.bf16.mxu0 0
        %1366 = vmatpush1.bf16.msra.mxu0 0
        %1367 = vmatprep.subr.bf16.mxu0 0
        %1368 = vmatpush1.bf16.msra.mxu0 0
        %1369 = vmatprep.subr.bf16.mxu0 0
        %1370 = vmatpush1.bf16.msra.mxu0 0
        %1371 = vmatprep.subr.bf16.mxu0 0
        %1372 = vmatpush1.bf16.msra.mxu0 0
        %1373 = vmatprep.subr.bf16.mxu0 0
        %1374 = vmatpush1.bf16.msra.mxu0 0
        %1375 = vmatprep.subr.bf16.mxu0 0
        %1376 = vmatpush1.bf16.msra.mxu0 0
        %1377 = vmatprep.subr.bf16.mxu0 0
        %1378 = vmatpush1.bf16.msra.mxu0 0
        %1379 = vmatprep.subr.bf16.mxu0 0
        %1380 = vmatpush1.bf16.msra.mxu0 0
        %1381 = vmatprep.subr.bf16.mxu0 0
        %1382 = vmatpush1.bf16.msra.mxu0 0
        %1383 = vmatprep.subr.bf16.mxu0 0
        %1384 = vmatpush1.bf16.msra.mxu0 0
        %1385 = vmatprep.subr.bf16.mxu0 0
        %1386 = vmatpush1.bf16.msra.mxu0 0
        %1387 = vmatprep.mubr.bf16.mxu0 0
        %1388 = vmatmul.mubr.bf16.gmra.mrb[0].mxu0 %v1347
        %v1389 = vpop.f32.mrb[0].mxu0
        %v1390 = vadd.f32 %v740, %v1389
        %v1391 = vpop.f32.mrb[0].mxu0
        %v1392 = vpop.f32.mrb[0].mxu0
        %v1393 = vadd.f32 %v740, %v1392
        %v1394 = vpop.f32.mrb[0].mxu0
        %1395 = vmatprep.mubr.bf16.mxu0 0
        %1396 = vmatmul.mubr.bf16.gmra.mrb[0].mxu0 %v1349
        %v1397 = vpop.f32.mrb[0].mxu0
        %v1398 = vadd.f32 %v740, %v1397
        %v1399 = vpop.f32.mrb[0].mxu0
        %v1400 = vpop.f32.mrb[0].mxu0
        %v1401 = vadd.f32 %v740, %v1400
        %v1402 = vpop.f32.mrb[0].mxu0
        %1403 = vmatprep.mubr.bf16.mxu0 0
        %1404 = vmatmul.mubr.bf16.gmra.mrb[0].mxu0 %v1351
        %v1405 = vpop.f32.mrb[0].mxu0
        %v1406 = vadd.f32 %v740, %v1405
        %v1407 = vpop.f32.mrb[0].mxu0
        %v1408 = vpop.f32.mrb[0].mxu0
        %v1409 = vadd.f32 %v740, %v1408
        %v1410 = vpop.f32.mrb[0].mxu0
        %1411 = vmatprep.mubr.bf16.mxu0 0
        %1412 = vmatmul.mubr.bf16.gmra.mrb[0].mxu0 %v1353
        %v1413 = vpop.f32.mrb[0].mxu0
        %v1414 = vadd.f32 %v740, %v1413
        %v1415 = vpop.f32.mrb[0].mxu0
        %v1416 = vpop.f32.mrb[0].mxu0
        %v1417 = vadd.f32 %v740, %v1416
        %v1418 = vpop.f32.mrb[0].mxu0
        %1419 = vdwg.mxu0
        %v1420 = vpack.c.bf16 %v1393, %v1390
        %v1421 = vpack.c.bf16 %v1401, %v1398
        %v1422 = vpack.c.bf16 %v1409, %v1406
        %v1423 = vpack.c.bf16 %v1417, %v1414
        %v1424 = vld [vmem:[%s1117] sm:$0xe]
        %v1425 = vld [vmem:[%s1117 + $0x8] sm:$0xe]
        %v1426 = vld [vmem:[%s1117 + $0x10] sm:$0xe]
        %v1427 = vld [vmem:[%s1117 + $0x18] sm:$0xe]
        %v1428 = vld [vmem:[%s1117 + $0x20] sm:$0xe]
        %v1429 = vld [vmem:[%s1117 + $0x28] sm:$0xe]
        %v1430 = vld [vmem:[%s1117 + $0x30] sm:$0xe]
        %v1431 = vld [vmem:[%s1117 + $0x38] sm:$0xe]
        %v1448 = vrot.slane %v1424, 5
        %v1449 = vrot.slane %v1448, 4
        %v1450 = vrot.slane %v1126, 5
        %v1451 = vsel %vm858, %v1449, %v1450
        %v1452 = vrot.slane %v1425, 5
        %v1453 = vrot.slane %v1452, 4
        %v1454 = vrot.slane %v1127, 5
        %v1455 = vsel %vm858, %v1453, %v1454
        %v1456 = vrot.slane %v1426, 5
        %v1457 = vrot.slane %v1456, 4
        %v1458 = vrot.slane %v1128, 5
        %v1459 = vsel %vm858, %v1457, %v1458
        %v1460 = vrot.slane %v1427, 5
        %v1461 = vrot.slane %v1460, 4
        %v1462 = vrot.slane %v1129, 5
        %v1463 = vsel %vm858, %v1461, %v1462
        %v1464 = vrot.slane %v1428, 5
        %v1465 = vrot.slane %v1464, 4
        %v1466 = vrot.slane %v1130, 5
        %v1467 = vsel %vm858, %v1465, %v1466
        %v1468 = vrot.slane %v1429, 5
        %v1469 = vrot.slane %v1468, 4
        %v1470 = vrot.slane %v1131, 5
        %v1471 = vsel %vm858, %v1469, %v1470
        %v1472 = vrot.slane %v1430, 5
        %v1473 = vrot.slane %v1472, 4
        %v1474 = vrot.slane %v1132, 5
        %v1475 = vsel %vm858, %v1473, %v1474
        %v1476 = vrot.slane %v1431, 5
        %v1477 = vrot.slane %v1476, 4
        %v1478 = vrot.slane %v1133, 5
        %v1479 = vsel %vm858, %v1477, %v1478
        %1480 = vrot.lane.b32.xlu0 %v983, 8
        %v1481 = vpop.permute.xlu0 %1480
        %1482 = vrot.lane.b32.xlu0 %v984, 8
        %v1483 = vpop.permute.xlu0 %1482
        %1484 = vrot.lane.b32.xlu0 %v985, 8
        %v1485 = vpop.permute.xlu0 %1484
        %1486 = vrot.lane.b32.xlu0 %v986, 8
        %v1487 = vpop.permute.xlu0 %1486
        %1488 = vrot.lane.b32.xlu0 %v1290, 16
        %v1489 = vpop.permute.xlu0 %1488
        %1490 = vrot.lane.b32.xlu0 %v1291, 16
        %v1491 = vpop.permute.xlu0 %1490
        %1492 = vrot.lane.b32.xlu0 %v1292, 16
        %v1493 = vpop.permute.xlu0 %1492
        %1494 = vrot.lane.b32.xlu0 %v1293, 16
        %v1495 = vpop.permute.xlu0 %1494
        %v1496 = vunpack.c.l.b16 %v1451
        %v1497 = vunpack.c.l.b16 %v1455
        %v1498 = vunpack.c.l.b16 %v1459
        %v1499 = vunpack.c.l.b16 %v1463
        %v1500 = vunpack.c.l.b16 %v1467
        %v1501 = vunpack.c.l.b16 %v1471
        %v1502 = vunpack.c.l.b16 %v1475
        %v1503 = vunpack.c.l.b16 %v1479
        %v1504 = vpack.c.b16 %v1497, %v1496
        %v1505 = vpack.c.b16 %v1499, %v1498
        %v1506 = vpack.c.b16 %v1501, %v1500
        %v1507 = vpack.c.b16 %v1503, %v1502
        %1508 = vrot.lane.b32.xlu0 %v1504, 24
        %v1509 = vpop.permute.xlu0 %1508
        %1510 = vrot.lane.b32.xlu0 %v1505, 24
        %v1511 = vpop.permute.xlu0 %1510
        %1512 = vrot.lane.b32.xlu0 %v1506, 24
        %v1513 = vpop.permute.xlu0 %1512
        %1514 = vrot.lane.b32.xlu0 %v1507, 24
        %v1515 = vpop.permute.xlu0 %1514
        %v1518 = vsel %vm700, %v688, %v1481
        %v1521 = vsel %vm700, %v689, %v1483
        %v1524 = vsel %vm700, %v690, %v1485
        %v1527 = vsel %vm700, %v691, %v1487
        %v1529 = vsel %vm713, %v1518, %v1489
        %v1531 = vsel %vm713, %v1521, %v1491
        %v1533 = vsel %vm713, %v1524, %v1493
        %v1535 = vsel %vm713, %v1527, %v1495
        %v1537 = vsel %vm722, %v1529, %v1509
        %v1539 = vsel %vm722, %v1531, %v1511
        %v1541 = vsel %vm722, %v1533, %v1513
        %v1543 = vsel %vm722, %v1535, %v1515
        %s1544 = scalar_lea.vmem %s3, 48
        %v1545 = vld [vmem:[%s1544] sm:$0xf]
        %v1546 = vld [vmem:[%s1544 + $0x4] sm:$0xf]
        %v1547 = vld [vmem:[%s1544 + $0x8] sm:$0xf]
        %v1548 = vld [vmem:[%s1544 + $0xc] sm:$0xf]
        %v1553 = vunpack.c.l.b16 %v1545
        %v1554 = vunpack.c.l.b16 %v1546
        %v1555 = vunpack.c.l.b16 %v1547
        %v1556 = vunpack.c.l.b16 %v1548
        %v1557 = vpack.c.b16 %v1554, %v1553
        %v1558 = vpack.c.b16 %v1556, %v1555
        %v1561 = vsel %vm754, %v1537, 0
        %v1563 = vsel %vm754, %v1539, 0
        %v1565 = vsel %vm754, %v1541, 0
        %v1567 = vsel %vm754, %v1543, 0
        %1569 = vmatprep.subr.bf16.mxu0 0
        %1570 = vmatpush1.bf16.msra.mxu0 %v1557
        %1571 = vmatprep.subr.bf16.mxu0 0
        %1572 = vmatpush1.bf16.msra.mxu0 %v1558
        %1573 = vmatprep.subr.bf16.mxu0 0
        %1574 = vmatpush1.bf16.msra.mxu0 0
        %1575 = vmatprep.subr.bf16.mxu0 0
        %1576 = vmatpush1.bf16.msra.mxu0 0
        %1577 = vmatprep.subr.bf16.mxu0 0
        %1578 = vmatpush1.bf16.msra.mxu0 0
        %1579 = vmatprep.subr.bf16.mxu0 0
        %1580 = vmatpush1.bf16.msra.mxu0 0
        %1581 = vmatprep.subr.bf16.mxu0 0
        %1582 = vmatpush1.bf16.msra.mxu0 0
        %1583 = vmatprep.subr.bf16.mxu0 0
        %1584 = vmatpush1.bf16.msra.mxu0 0
        %1585 = vmatprep.subr.bf16.mxu0 0
        %1586 = vmatpush1.bf16.msra.mxu0 0
        %1587 = vmatprep.subr.bf16.mxu0 0
        %1588 = vmatpush1.bf16.msra.mxu0 0
        %1589 = vmatprep.subr.bf16.mxu0 0
        %1590 = vmatpush1.bf16.msra.mxu0 0
        %1591 = vmatprep.subr.bf16.mxu0 0
        %1592 = vmatpush1.bf16.msra.mxu0 0
        %1593 = vmatprep.subr.bf16.mxu0 0
        %1594 = vmatpush1.bf16.msra.mxu0 0
        %1595 = vmatprep.subr.bf16.mxu0 0
        %1596 = vmatpush1.bf16.msra.mxu0 0
        %1597 = vmatprep.subr.bf16.mxu0 0
        %1598 = vmatpush1.bf16.msra.mxu0 0
        %1599 = vmatprep.subr.bf16.mxu0 0
        %1600 = vmatpush1.bf16.msra.mxu0 0
        %1601 = vmatprep.mubr.bf16.mxu0 0
        %1602 = vmatmul.mubr.bf16.gmra.mrb[0].mxu0 %v1561
        %v1603 = vpop.f32.mrb[0].mxu0
        %v1604 = vadd.f32 %v740, %v1603
        %v1605 = vpop.f32.mrb[0].mxu0
        %v1606 = vpop.f32.mrb[0].mxu0
        %v1607 = vadd.f32 %v740, %v1606
        %v1608 = vpop.f32.mrb[0].mxu0
        %1609 = vmatprep.mubr.bf16.mxu0 0
        %1610 = vmatmul.mubr.bf16.gmra.mrb[0].mxu0 %v1563
        %v1611 = vpop.f32.mrb[0].mxu0
        %v1612 = vadd.f32 %v740, %v1611
        %v1613 = vpop.f32.mrb[0].mxu0
        %v1614 = vpop.f32.mrb[0].mxu0
        %v1615 = vadd.f32 %v740, %v1614
        %v1616 = vpop.f32.mrb[0].mxu0
        %1617 = vmatprep.mubr.bf16.mxu0 0
        %1618 = vmatmul.mubr.bf16.gmra.mrb[0].mxu0 %v1565
        %v1619 = vpop.f32.mrb[0].mxu0
        %v1620 = vadd.f32 %v740, %v1619
        %v1621 = vpop.f32.mrb[0].mxu0
        %v1622 = vpop.f32.mrb[0].mxu0
        %v1623 = vadd.f32 %v740, %v1622
        %v1624 = vpop.f32.mrb[0].mxu0
        %1625 = vmatprep.mubr.bf16.mxu0 0
        %1626 = vmatmul.mubr.bf16.gmra.mrb[0].mxu0 %v1567
        %v1627 = vpop.f32.mrb[0].mxu0
        %v1628 = vadd.f32 %v740, %v1627
        %v1629 = vpop.f32.mrb[0].mxu0
        %v1630 = vpop.f32.mrb[0].mxu0
        %v1631 = vadd.f32 %v740, %v1630
        %v1632 = vpop.f32.mrb[0].mxu0
        %1633 = vdwg.mxu0
        %v1634 = vpack.c.bf16 %v1607, %v1604
        %v1635 = vpack.c.bf16 %v1615, %v1612
        %v1636 = vpack.c.bf16 %v1623, %v1620
        %v1637 = vpack.c.bf16 %v1631, %v1628
        %v1638 = vld [vmem:[%s2] sm:$0xff]
        %v1639 = vld [vmem:[%s2 + $0x8] sm:$0xff]
        %v1640 = vld [vmem:[%s2 + $0x10] sm:$0xff]
        %v1641 = vld [vmem:[%s2 + $0x18] sm:$0xff]
        %v1642 = vld [vmem:[%s2 + $0x20] sm:$0xff]
        %v1643 = vld [vmem:[%s2 + $0x28] sm:$0xff]
        %v1644 = vld [vmem:[%s2 + $0x30] sm:$0xff]
        %v1645 = vld [vmem:[%s2 + $0x38] sm:$0xff]
        %v1646 = vld [vmem:[%s2 + $0x40] sm:$0xff]
        %v1647 = vld [vmem:[%s2 + $0x48] sm:$0xff]
        %v1648 = vld [vmem:[%s2 + $0x50] sm:$0xff]
        %v1649 = vld [vmem:[%s2 + $0x58] sm:$0xff]
        %v1650 = vld [vmem:[%s2 + $0x60] sm:$0xff]
        %v1651 = vld [vmem:[%s2 + $0x68] sm:$0xff]
        %v1652 = vld [vmem:[%s2 + $0x70] sm:$0xff]
        %v1653 = vld [vmem:[%s2 + $0x78] sm:$0xff]
        %v1654 = vld [vmem:[%s2 + $0x80] sm:$0xff]
        %v1655 = vld [vmem:[%s2 + $0x88] sm:$0xff]
        %v1656 = vld [vmem:[%s2 + $0x90] sm:$0xff]
        %v1657 = vld [vmem:[%s2 + $0x98] sm:$0xff]
        %v1658 = vld [vmem:[%s2 + $0xa0] sm:$0xff]
        %v1659 = vld [vmem:[%s2 + $0xa8] sm:$0xff]
        %v1660 = vld [vmem:[%s2 + $0xb0] sm:$0xff]
        %v1661 = vld [vmem:[%s2 + $0xb8] sm:$0xff]
        %v1662 = vld [vmem:[%s2 + $0xc0] sm:$0xff]
        %v1663 = vld [vmem:[%s2 + $0xc8] sm:$0xff]
        %v1664 = vld [vmem:[%s2 + $0xd0] sm:$0xff]
        %v1665 = vld [vmem:[%s2 + $0xd8] sm:$0xff]
        %v1666 = vld [vmem:[%s2 + $0xe0] sm:$0xff]
        %v1667 = vld [vmem:[%s2 + $0xe8] sm:$0xff]
        %v1668 = vld [vmem:[%s2 + $0xf0] sm:$0xff]
        %v1669 = vld [vmem:[%s2 + $0xf8] sm:$0xff]
        %v1702 = vunpack.c.l.b16 %v1638
        %v1703 = vunpack.c.h.b16 %v1638
        %v1704 = vunpack.c.l.b16 %v1639
        %v1705 = vunpack.c.h.b16 %v1639
        %v1706 = vunpack.c.l.b16 %v1640
        %v1707 = vunpack.c.h.b16 %v1640
        %v1708 = vunpack.c.l.b16 %v1641
        %v1709 = vunpack.c.h.b16 %v1641
        %v1710 = vunpack.c.l.b16 %v1642
        %v1711 = vunpack.c.h.b16 %v1642
        %v1712 = vunpack.c.l.b16 %v1643
        %v1713 = vunpack.c.h.b16 %v1643
        %v1714 = vunpack.c.l.b16 %v1644
        %v1715 = vunpack.c.h.b16 %v1644
        %v1716 = vunpack.c.l.b16 %v1645
        %v1717 = vunpack.c.h.b16 %v1645
        %v1718 = vunpack.c.l.b16 %v1646
        %v1719 = vunpack.c.h.b16 %v1646
        %v1720 = vunpack.c.l.b16 %v1647
        %v1721 = vunpack.c.h.b16 %v1647
        %v1722 = vunpack.c.l.b16 %v1648
        %v1723 = vunpack.c.h.b16 %v1648
        %v1724 = vunpack.c.l.b16 %v1649
        %v1725 = vunpack.c.h.b16 %v1649
        %v1726 = vunpack.c.l.b16 %v1650
        %v1727 = vunpack.c.h.b16 %v1650
        %v1728 = vunpack.c.l.b16 %v1651
        %v1729 = vunpack.c.h.b16 %v1651
        %v1730 = vunpack.c.l.b16 %v1652
        %v1731 = vunpack.c.h.b16 %v1652
        %v1732 = vunpack.c.l.b16 %v1653
        %v1733 = vunpack.c.h.b16 %v1653
        %v1734 = vunpack.c.l.b16 %v1654
        %v1735 = vunpack.c.h.b16 %v1654
        %v1736 = vunpack.c.l.b16 %v1655
        %v1737 = vunpack.c.h.b16 %v1655
        %v1738 = vunpack.c.l.b16 %v1656
        %v1739 = vunpack.c.h.b16 %v1656
        %v1740 = vunpack.c.l.b16 %v1657
        %v1741 = vunpack.c.h.b16 %v1657
        %v1742 = vunpack.c.l.b16 %v1658
        %v1743 = vunpack.c.h.b16 %v1658
        %v1744 = vunpack.c.l.b16 %v1659
        %v1745 = vunpack.c.h.b16 %v1659
        %v1746 = vunpack.c.l.b16 %v1660
        %v1747 = vunpack.c.h.b16 %v1660
        %v1748 = vunpack.c.l.b16 %v1661
        %v1749 = vunpack.c.h.b16 %v1661
        %v1750 = vunpack.c.l.b16 %v1662
        %v1751 = vunpack.c.h.b16 %v1662
        %v1752 = vunpack.c.l.b16 %v1663
        %v1753 = vunpack.c.h.b16 %v1663
        %v1754 = vunpack.c.l.b16 %v1664
        %v1755 = vunpack.c.h.b16 %v1664
        %v1756 = vunpack.c.l.b16 %v1665
        %v1757 = vunpack.c.h.b16 %v1665
        %v1758 = vunpack.c.l.b16 %v1666
        %v1759 = vunpack.c.h.b16 %v1666
        %v1760 = vunpack.c.l.b16 %v1667
        %v1761 = vunpack.c.h.b16 %v1667
        %v1762 = vunpack.c.l.b16 %v1668
        %v1763 = vunpack.c.h.b16 %v1668
        %v1764 = vunpack.c.l.b16 %v1669
        %v1765 = vunpack.c.h.b16 %v1669
        %v1766 = vpack.c.b16 %v1704, %v1702
        %v1767 = vpack.c.b16 %v1705, %v1703
        %v1768 = vpack.c.b16 %v1708, %v1706
        %v1769 = vpack.c.b16 %v1709, %v1707
        %v1770 = vpack.c.b16 %v1712, %v1710
        %v1771 = vpack.c.b16 %v1713, %v1711
        %v1772 = vpack.c.b16 %v1716, %v1714
        %v1773 = vpack.c.b16 %v1717, %v1715
        %v1774 = vpack.c.b16 %v1720, %v1718
        %v1775 = vpack.c.b16 %v1721, %v1719
        %v1776 = vpack.c.b16 %v1724, %v1722
        %v1777 = vpack.c.b16 %v1725, %v1723
        %v1778 = vpack.c.b16 %v1728, %v1726
        %v1779 = vpack.c.b16 %v1729, %v1727
        %v1780 = vpack.c.b16 %v1732, %v1730
        %v1781 = vpack.c.b16 %v1733, %v1731
        %v1782 = vpack.c.b16 %v1736, %v1734
        %v1783 = vpack.c.b16 %v1737, %v1735
        %v1784 = vpack.c.b16 %v1740, %v1738
        %v1785 = vpack.c.b16 %v1741, %v1739
        %v1786 = vpack.c.b16 %v1744, %v1742
        %v1787 = vpack.c.b16 %v1745, %v1743
        %v1788 = vpack.c.b16 %v1748, %v1746
        %v1789 = vpack.c.b16 %v1749, %v1747
        %v1790 = vpack.c.b16 %v1752, %v1750
        %v1791 = vpack.c.b16 %v1753, %v1751
        %v1792 = vpack.c.b16 %v1756, %v1754
        %v1793 = vpack.c.b16 %v1757, %v1755
        %v1794 = vpack.c.b16 %v1760, %v1758
        %v1795 = vpack.c.b16 %v1761, %v1759
        %v1796 = vpack.c.b16 %v1764, %v1762
        %v1797 = vpack.c.b16 %v1765, %v1763
        %1830 = vmatprep.subr.bf16.mxu0 0
        %1831 = vmatpush1.bf16.msra.mxu0 %v828
        %1832 = vmatprep.subr.bf16.mxu0 0
        %1833 = vmatpush1.bf16.msra.mxu0 %v829
        %1834 = vmatprep.subr.bf16.mxu0 0
        %1835 = vmatpush1.bf16.msra.mxu0 %v830
        %1836 = vmatprep.subr.bf16.mxu0 0
        %1837 = vmatpush1.bf16.msra.mxu0 %v831
        %1838 = vmatprep.subr.bf16.mxu0 0
        %1839 = vmatpush1.bf16.msra.mxu0 %v1113
        %1840 = vmatprep.subr.bf16.mxu0 0
        %1841 = vmatpush1.bf16.msra.mxu0 %v1114
        %1842 = vmatprep.subr.bf16.mxu0 0
        %1843 = vmatpush1.bf16.msra.mxu0 %v1115
        %1844 = vmatprep.subr.bf16.mxu0 0
        %1845 = vmatpush1.bf16.msra.mxu0 %v1116
        %1846 = vmatprep.subr.bf16.mxu0 0
        %1847 = vmatpush1.bf16.msra.mxu0 %v1420
        %1848 = vmatprep.subr.bf16.mxu0 0
        %1849 = vmatpush1.bf16.msra.mxu0 %v1421
        %1850 = vmatprep.subr.bf16.mxu0 0
        %1851 = vmatpush1.bf16.msra.mxu0 %v1422
        %1852 = vmatprep.subr.bf16.mxu0 0
        %1853 = vmatpush1.bf16.msra.mxu0 %v1423
        %1854 = vmatprep.subr.bf16.mxu0 0
        %1855 = vmatpush1.bf16.msra.mxu0 %v1634
        %1856 = vmatprep.subr.bf16.mxu0 0
        %1857 = vmatpush1.bf16.msra.mxu0 %v1635
        %1858 = vmatprep.subr.bf16.mxu0 0
        %1859 = vmatpush1.bf16.msra.mxu0 %v1636
        %1860 = vmatprep.subr.bf16.mxu0 0
        %1861 = vmatpush1.bf16.msra.mxu0 %v1637
        %1862 = vmatprep.mubr.bf16.mxu0 %v1767
        %1863 = vmatmul.mubr.bf16.gmra.mrb[0].mxu0 %v1766
        %v1864 = vpop.f32.mrb[0].mxu0
        %v1865 = vadd.f32 0.0, %v1864
        %v1866 = vpop.f32.mrb[0].mxu0
        %v1867 = vpop.f32.mrb[0].mxu0
        %v1868 = vadd.f32 0.0, %v1867
        %v1869 = vpop.f32.mrb[0].mxu0
        %1870 = vmatprep.mubr.bf16.mxu0 %v1769
        %1871 = vmatmul.mubr.bf16.gmra.mrb[0].mxu0 %v1768
        %v1872 = vpop.f32.mrb[0].mxu0
        %v1873 = vadd.f32 0.0, %v1872
        %v1874 = vpop.f32.mrb[0].mxu0
        %v1875 = vpop.f32.mrb[0].mxu0
        %v1876 = vadd.f32 0.0, %v1875
        %v1877 = vpop.f32.mrb[0].mxu0
        %1878 = vmatprep.mubr.bf16.mxu0 %v1771
        %1879 = vmatmul.mubr.bf16.gmra.mrb[0].mxu0 %v1770
        %v1880 = vpop.f32.mrb[0].mxu0
        %v1881 = vadd.f32 0.0, %v1880
        %v1882 = vpop.f32.mrb[0].mxu0
        %v1883 = vpop.f32.mrb[0].mxu0
        %v1884 = vadd.f32 0.0, %v1883
        %v1885 = vpop.f32.mrb[0].mxu0
        %1886 = vmatprep.mubr.bf16.mxu0 %v1773
        %1887 = vmatmul.mubr.bf16.gmra.mrb[0].mxu0 %v1772
        %v1888 = vpop.f32.mrb[0].mxu0
        %v1889 = vadd.f32 0.0, %v1888
        %v1890 = vpop.f32.mrb[0].mxu0
        %v1891 = vpop.f32.mrb[0].mxu0
        %v1892 = vadd.f32 0.0, %v1891
        %v1893 = vpop.f32.mrb[0].mxu0
        %1894 = vmatprep.mubr.bf16.mxu0 %v1775
        %1895 = vmatmul.mubr.bf16.gmra.mrb[0].mxu0 %v1774
        %v1896 = vpop.f32.mrb[0].mxu0
        %v1897 = vadd.f32 0.0, %v1896
        %v1898 = vpop.f32.mrb[0].mxu0
        %v1899 = vpop.f32.mrb[0].mxu0
        %v1900 = vadd.f32 0.0, %v1899
        %v1901 = vpop.f32.mrb[0].mxu0
        %1902 = vmatprep.mubr.bf16.mxu0 %v1777
        %1903 = vmatmul.mubr.bf16.gmra.mrb[0].mxu0 %v1776
        %v1904 = vpop.f32.mrb[0].mxu0
        %v1905 = vadd.f32 0.0, %v1904
        %v1906 = vpop.f32.mrb[0].mxu0
        %v1907 = vpop.f32.mrb[0].mxu0
        %v1908 = vadd.f32 0.0, %v1907
        %v1909 = vpop.f32.mrb[0].mxu0
        %1910 = vmatprep.mubr.bf16.mxu0 %v1779
        %1911 = vmatmul.mubr.bf16.gmra.mrb[0].mxu0 %v1778
        %v1912 = vpop.f32.mrb[0].mxu0
        %v1913 = vadd.f32 0.0, %v1912
        %v1914 = vpop.f32.mrb[0].mxu0
        %v1915 = vpop.f32.mrb[0].mxu0
        %v1916 = vadd.f32 0.0, %v1915
        %v1917 = vpop.f32.mrb[0].mxu0
        %1918 = vmatprep.mubr.bf16.mxu0 %v1781
        %1919 = vmatmul.mubr.bf16.gmra.mrb[0].mxu0 %v1780
        %v1920 = vpop.f32.mrb[0].mxu0
        %v1921 = vadd.f32 0.0, %v1920
        %v1922 = vpop.f32.mrb[0].mxu0
        %v1923 = vpop.f32.mrb[0].mxu0
        %v1924 = vadd.f32 0.0, %v1923
        %v1925 = vpop.f32.mrb[0].mxu0
        %1926 = vmatprep.mubr.bf16.mxu0 %v1783
        %1927 = vmatmul.mubr.bf16.gmra.mrb[0].mxu0 %v1782
        %v1928 = vpop.f32.mrb[0].mxu0
        %v1929 = vadd.f32 0.0, %v1928
        %v1930 = vpop.f32.mrb[0].mxu0
        %v1931 = vpop.f32.mrb[0].mxu0
        %v1932 = vadd.f32 0.0, %v1931
        %v1933 = vpop.f32.mrb[0].mxu0
        %1934 = vmatprep.mubr.bf16.mxu0 %v1785
        %1935 = vmatmul.mubr.bf16.gmra.mrb[0].mxu0 %v1784
        %v1936 = vpop.f32.mrb[0].mxu0
        %v1937 = vadd.f32 0.0, %v1936
        %v1938 = vpop.f32.mrb[0].mxu0
        %v1939 = vpop.f32.mrb[0].mxu0
        %v1940 = vadd.f32 0.0, %v1939
        %v1941 = vpop.f32.mrb[0].mxu0
        %1942 = vmatprep.mubr.bf16.mxu0 %v1787
        %1943 = vmatmul.mubr.bf16.gmra.mrb[0].mxu0 %v1786
        %v1944 = vpop.f32.mrb[0].mxu0
        %v1945 = vadd.f32 0.0, %v1944
        %v1946 = vpop.f32.mrb[0].mxu0
        %v1947 = vpop.f32.mrb[0].mxu0
        %v1948 = vadd.f32 0.0, %v1947
        %v1949 = vpop.f32.mrb[0].mxu0
        %1950 = vmatprep.mubr.bf16.mxu0 %v1789
        %1951 = vmatmul.mubr.bf16.gmra.mrb[0].mxu0 %v1788
        %v1952 = vpop.f32.mrb[0].mxu0
        %v1953 = vadd.f32 0.0, %v1952
        %v1954 = vpop.f32.mrb[0].mxu0
        %v1955 = vpop.f32.mrb[0].mxu0
        %v1956 = vadd.f32 0.0, %v1955
        %v1957 = vpop.f32.mrb[0].mxu0
        %1958 = vmatprep.mubr.bf16.mxu0 %v1791
        %1959 = vmatmul.mubr.bf16.gmra.mrb[0].mxu0 %v1790
        %v1960 = vpop.f32.mrb[0].mxu0
        %v1961 = vadd.f32 0.0, %v1960
        %v1962 = vpop.f32.mrb[0].mxu0
        %v1963 = vpop.f32.mrb[0].mxu0
        %v1964 = vadd.f32 0.0, %v1963
        %v1965 = vpop.f32.mrb[0].mxu0
        %1966 = vmatprep.mubr.bf16.mxu0 %v1793
        %1967 = vmatmul.mubr.bf16.gmra.mrb[0].mxu0 %v1792
        %v1968 = vpop.f32.mrb[0].mxu0
        %v1969 = vadd.f32 0.0, %v1968
        %v1970 = vpop.f32.mrb[0].mxu0
        %v1971 = vpop.f32.mrb[0].mxu0
        %v1972 = vadd.f32 0.0, %v1971
        %v1973 = vpop.f32.mrb[0].mxu0
        %1974 = vmatprep.mubr.bf16.mxu0 %v1795
        %1975 = vmatmul.mubr.bf16.gmra.mrb[0].mxu0 %v1794
        %v1976 = vpop.f32.mrb[0].mxu0
        %v1977 = vadd.f32 0.0, %v1976
        %v1978 = vpop.f32.mrb[0].mxu0
        %v1979 = vpop.f32.mrb[0].mxu0
        %v1980 = vadd.f32 0.0, %v1979
        %v1981 = vpop.f32.mrb[0].mxu0
        %1982 = vmatprep.mubr.bf16.mxu0 %v1797
        %1983 = vmatmul.mubr.bf16.gmra.mrb[0].mxu0 %v1796
        %v1984 = vpop.f32.mrb[0].mxu0
        %v1985 = vadd.f32 0.0, %v1984
        %v1986 = vpop.f32.mrb[0].mxu0
        %v1987 = vpop.f32.mrb[0].mxu0
        %v1988 = vadd.f32 0.0, %v1987
        %v1989 = vpop.f32.mrb[0].mxu0
        %1990 = vdwg.mxu0
        %vm1991 = vcmask 60416
        %1992 = vst.msk [vmem:[#allocation2] sm:$0xf] %vm1991, 0
        %1993 = vst.msk [vmem:[#allocation2 + $0x4] sm:$0xf] %vm1991, 0
        %vm1994 = vcmask 57344
        %1995 = vst.msk [vmem:[#allocation2 + $0x8] sm:$0x1] %vm1994, 0
        %1996 = vst.msk [vmem:[#allocation2 + $0xc] sm:$0xf] %vm1991, 0
        %1997 = vst.msk [vmem:[#allocation2 + $0x10] sm:$0xf] %vm1991, 0
        %1998 = vst.msk [vmem:[#allocation2 + $0x14] sm:$0x1] %vm1994, 0
        %1999 = vst.msk [vmem:[#allocation2 + $0x18] sm:$0xf] %vm1991, 0
        %2000 = vst.msk [vmem:[#allocation2 + $0x1c] sm:$0xf] %vm1991, 0
        %2001 = vst.msk [vmem:[#allocation2 + $0x20] sm:$0x1] %vm1994, 0
        %2002 = vst.msk [vmem:[#allocation2 + $0x24] sm:$0xf] %vm1991, 0
        %2003 = vst.msk [vmem:[#allocation2 + $0x28] sm:$0xf] %vm1991, 0
        %2004 = vst.msk [vmem:[#allocation2 + $0x2c] sm:$0x1] %vm1994, 0
        %2005 = vst.msk [vmem:[#allocation2 + $0x30] sm:$0xf] %vm1991, 0
        %2006 = vst.msk [vmem:[#allocation2 + $0x34] sm:$0xf] %vm1991, 0
        %2007 = vst.msk [vmem:[#allocation2 + $0x38] sm:$0x1] %vm1994, 0
        %2008 = vst.msk [vmem:[#allocation2 + $0x3c] sm:$0xf] %vm1991, 0
        %2009 = vst.msk [vmem:[#allocation2 + $0x40] sm:$0xf] %vm1991, 0
        %2010 = vst.msk [vmem:[#allocation2 + $0x44] sm:$0x1] %vm1994, 0
        %2011 = vst.msk [vmem:[#allocation2 + $0x48] sm:$0xf] %vm1991, 0
        %2012 = vst.msk [vmem:[#allocation2 + $0x4c] sm:$0xf] %vm1991, 0
        %2013 = vst.msk [vmem:[#allocation2 + $0x50] sm:$0x1] %vm1994, 0
        %2014 = vst.msk [vmem:[#allocation2 + $0x54] sm:$0xf] %vm1991, 0
        %2015 = vst.msk [vmem:[#allocation2 + $0x58] sm:$0xf] %vm1991, 0
        %2016 = vst.msk [vmem:[#allocation2 + $0x5c] sm:$0x1] %vm1994, 0
        %2017 = vst.msk [vmem:[#allocation2 + $0x60] sm:$0xf] %vm1991, 0
        %2018 = vst.msk [vmem:[#allocation2 + $0x64] sm:$0xf] %vm1991, 0
        %2019 = vst.msk [vmem:[#allocation2 + $0x68] sm:$0x1] %vm1994, 0
        %2020 = vst.msk [vmem:[#allocation2 + $0x6c] sm:$0xf] %vm1991, 0
        %2021 = vst.msk [vmem:[#allocation2 + $0x70] sm:$0xf] %vm1991, 0
        %2022 = vst.msk [vmem:[#allocation2 + $0x74] sm:$0x1] %vm1994, 0
        %2023 = vst.msk [vmem:[#allocation2 + $0x78] sm:$0xf] %vm1991, 0
        %2024 = vst.msk [vmem:[#allocation2 + $0x7c] sm:$0xf] %vm1991, 0
        %2025 = vst.msk [vmem:[#allocation2 + $0x80] sm:$0x1] %vm1994, 0
        %2026 = vst.msk [vmem:[#allocation2 + $0x84] sm:$0xf] %vm1991, 0
        %2027 = vst.msk [vmem:[#allocation2 + $0x88] sm:$0xf] %vm1991, 0
        %2028 = vst.msk [vmem:[#allocation2 + $0x8c] sm:$0x1] %vm1994, 0
        %2029 = vst.msk [vmem:[#allocation2 + $0x90] sm:$0xf] %vm1991, 0
        %2030 = vst.msk [vmem:[#allocation2 + $0x94] sm:$0xf] %vm1991, 0
        %2031 = vst.msk [vmem:[#allocation2 + $0x98] sm:$0x1] %vm1994, 0
        %2032 = vst.msk [vmem:[#allocation2 + $0x9c] sm:$0xf] %vm1991, 0
        %2033 = vst.msk [vmem:[#allocation2 + $0xa0] sm:$0xf] %vm1991, 0
        %2034 = vst.msk [vmem:[#allocation2 + $0xa4] sm:$0x1] %vm1994, 0
        %2035 = vst.msk [vmem:[#allocation2 + $0xa8] sm:$0xf] %vm1991, 0
        %2036 = vst.msk [vmem:[#allocation2 + $0xac] sm:$0xf] %vm1991, 0
        %2037 = vst.msk [vmem:[#allocation2 + $0xb0] sm:$0x1] %vm1994, 0
        %2038 = vst.msk [vmem:[#allocation2 + $0xb4] sm:$0xf] %vm1991, 0
        %2039 = vst.msk [vmem:[#allocation2 + $0xb8] sm:$0xf] %vm1991, 0
        %2040 = vst.msk [vmem:[#allocation2 + $0xbc] sm:$0x1] %vm1994, 0
        %2041 = vst.msk [vmem:[#allocation2 + $0xc0] sm:$0xf] %vm1991, 0
        %2042 = vst.msk [vmem:[#allocation2 + $0xc4] sm:$0xf] %vm1991, 0
        %2043 = vst.msk [vmem:[#allocation2 + $0xc8] sm:$0x1] %vm1994, 0
        %2044 = vst.msk [vmem:[#allocation2 + $0xcc] sm:$0xf] %vm1991, 0
        %2045 = vst.msk [vmem:[#allocation2 + $0xd0] sm:$0xf] %vm1991, 0
        %2046 = vst.msk [vmem:[#allocation2 + $0xd4] sm:$0x1] %vm1994, 0
        %v2047 = vld [vmem:[%s345] sm:$0xf]
        %v2048 = vld [vmem:[%s345 + $0x4] sm:$0xf]
        %v2049 = vld [vmem:[%s345 + $0x8] sm:$0xf]
        %v2050 = vld [vmem:[%s345 + $0xc] sm:$0xf]
        %v2051 = vld [vmem:[%s345 + $0x10] sm:$0xf]
        %v2052 = vld [vmem:[%s345 + $0x14] sm:$0xf]
        %v2053 = vld [vmem:[%s345 + $0x18] sm:$0xf]
        %v2054 = vld [vmem:[%s345 + $0x1c] sm:$0xf]
        %v2055 = vld [vmem:[%s345 + $0x20] sm:$0xf]
        %v2056 = vld [vmem:[%s345 + $0x24] sm:$0xf]
        %v2057 = vld [vmem:[%s345 + $0x28] sm:$0xf]
        %v2058 = vld [vmem:[%s345 + $0x2c] sm:$0xf]
        %v2059 = vld [vmem:[%s345 + $0x30] sm:$0xf]
        %v2060 = vld [vmem:[%s345 + $0x34] sm:$0xf]
        %v2061 = vld [vmem:[%s345 + $0x38] sm:$0xf]
        %v2062 = vld [vmem:[%s345 + $0x3c] sm:$0xf]
        %v2063 = vld [vmem:[%s345 + $0x40] sm:$0xf]
        %v2064 = vld [vmem:[%s345 + $0x44] sm:$0xf]
        %v2065 = vld [vmem:[%s345 + $0x48] sm:$0xf]
        %v2066 = vld [vmem:[%s345 + $0x4c] sm:$0xf]
        %v2067 = vld [vmem:[%s345 + $0x50] sm:$0xf]
        %v2068 = vld [vmem:[%s345 + $0x54] sm:$0xf]
        %v2069 = vld [vmem:[%s345 + $0x58] sm:$0xf]
        %v2070 = vld [vmem:[%s345 + $0x5c] sm:$0xf]
        %v2071 = vld [vmem:[%s345 + $0x60] sm:$0xf]
        %v2072 = vld [vmem:[%s345 + $0x64] sm:$0xf]
        %v2073 = vld [vmem:[%s345 + $0x68] sm:$0xf]
        %v2074 = vld [vmem:[%s345 + $0x6c] sm:$0xf]
        %v2075 = vld [vmem:[%s345 + $0x70] sm:$0xf]
        %v2076 = vld [vmem:[%s345 + $0x74] sm:$0xf]
        %v2077 = vld [vmem:[%s345 + $0x78] sm:$0xf]
        %v2078 = vld [vmem:[%s345 + $0x7c] sm:$0xf]
        %vm2079 = vsmask.f32 256
        %vm2080 = vsmask.f32 4368
        %vm2081 = vmor %vm2079, %vm2080
        %v2083 = vshrl.u32 %v2047, 16
        %v2085 = vrot.slane %v2083, 7
        %v2086 = vshll.u32 %v2047, 16
        %v2088 = vor.u32 %v2085, %v2086
        %v2089 = vrot.slane %v2085, 4
        %v2091 = vshrl.u32 %v2048, 16
        %v2093 = vrot.slane %v2091, 7
        %v2094 = vshll.u32 %v2048, 16
        %v2096 = vor.u32 %v2093, %v2094
        %v2097 = vsel %vm2081, %v2089, %v2096
        %v2098 = vrot.slane %v2093, 4
        %v2100 = vshrl.u32 %v2049, 16
        %v2102 = vrot.slane %v2100, 7
        %v2103 = vshll.u32 %v2049, 16
        %v2105 = vor.u32 %v2102, %v2103
        %v2106 = vrot.slane %v2102, 4
        %v2108 = vshrl.u32 %v2050, 16
        %v2110 = vrot.slane %v2108, 7
        %v2111 = vshll.u32 %v2050, 16
        %v2113 = vor.u32 %v2110, %v2111
        %v2114 = vsel %vm2081, %v2106, %v2113
        %v2115 = vrot.slane %v2110, 4
        %v2117 = vshrl.u32 %v2051, 16
        %v2119 = vrot.slane %v2117, 7
        %v2120 = vshll.u32 %v2051, 16
        %v2122 = vor.u32 %v2119, %v2120
        %v2123 = vrot.slane %v2119, 4
        %v2125 = vshrl.u32 %v2052, 16
        %v2127 = vrot.slane %v2125, 7
        %v2128 = vshll.u32 %v2052, 16
        %v2130 = vor.u32 %v2127, %v2128
        %v2131 = vsel %vm2081, %v2123, %v2130
        %v2132 = vrot.slane %v2127, 4
        %v2134 = vshrl.u32 %v2053, 16
        %v2136 = vrot.slane %v2134, 7
        %v2137 = vshll.u32 %v2053, 16
        %v2139 = vor.u32 %v2136, %v2137
        %v2140 = vrot.slane %v2136, 4
        %v2142 = vshrl.u32 %v2054, 16
        %v2144 = vrot.slane %v2142, 7
        %v2145 = vshll.u32 %v2054, 16
        %v2147 = vor.u32 %v2144, %v2145
        %v2148 = vsel %vm2081, %v2140, %v2147
        %v2149 = vrot.slane %v2144, 4
        %v2151 = vshrl.u32 %v2055, 16
        %v2153 = vrot.slane %v2151, 7
        %v2154 = vshll.u32 %v2055, 16
        %v2156 = vor.u32 %v2153, %v2154
        %v2157 = vrot.slane %v2153, 4
        %v2159 = vshrl.u32 %v2056, 16
        %v2161 = vrot.slane %v2159, 7
        %v2162 = vshll.u32 %v2056, 16
        %v2164 = vor.u32 %v2161, %v2162
        %v2165 = vsel %vm2081, %v2157, %v2164
        %v2166 = vrot.slane %v2161, 4
        %v2168 = vshrl.u32 %v2057, 16
        %v2170 = vrot.slane %v2168, 7
        %v2171 = vshll.u32 %v2057, 16
        %v2173 = vor.u32 %v2170, %v2171
        %v2174 = vrot.slane %v2170, 4
        %v2176 = vshrl.u32 %v2058, 16
        %v2178 = vrot.slane %v2176, 7
        %v2179 = vshll.u32 %v2058, 16
        %v2181 = vor.u32 %v2178, %v2179
        %v2182 = vsel %vm2081, %v2174, %v2181
        %v2183 = vrot.slane %v2178, 4
        %v2185 = vshrl.u32 %v2059, 16
        %v2187 = vrot.slane %v2185, 7
        %v2188 = vshll.u32 %v2059, 16
        %v2190 = vor.u32 %v2187, %v2188
        %v2191 = vrot.slane %v2187, 4
        %v2193 = vshrl.u32 %v2060, 16
        %v2195 = vrot.slane %v2193, 7
        %v2196 = vshll.u32 %v2060, 16
        %v2198 = vor.u32 %v2195, %v2196
        %v2199 = vsel %vm2081, %v2191, %v2198
        %v2200 = vrot.slane %v2195, 4
        %v2202 = vshrl.u32 %v2061, 16
        %v2204 = vrot.slane %v2202, 7
        %v2205 = vshll.u32 %v2061, 16
        %v2207 = vor.u32 %v2204, %v2205
        %v2208 = vrot.slane %v2204, 4
        %v2210 = vshrl.u32 %v2062, 16
        %v2212 = vrot.slane %v2210, 7
        %v2213 = vshll.u32 %v2062, 16
        %v2215 = vor.u32 %v2212, %v2213
        %v2216 = vsel %vm2081, %v2208, %v2215
        %v2217 = vrot.slane %v2212, 4
        %v2219 = vshrl.u32 %v2063, 16
        %v2221 = vrot.slane %v2219, 7
        %v2222 = vshll.u32 %v2063, 16
        %v2224 = vor.u32 %v2221, %v2222
        %v2225 = vrot.slane %v2221, 4
        %v2227 = vshrl.u32 %v2064, 16
        %v2229 = vrot.slane %v2227, 7
        %v2230 = vshll.u32 %v2064, 16
        %v2232 = vor.u32 %v2229, %v2230
        %v2233 = vsel %vm2081, %v2225, %v2232
        %v2234 = vrot.slane %v2229, 4
        %v2236 = vshrl.u32 %v2065, 16
        %v2238 = vrot.slane %v2236, 7
        %v2239 = vshll.u32 %v2065, 16
        %v2241 = vor.u32 %v2238, %v2239
        %v2242 = vrot.slane %v2238, 4
        %v2244 = vshrl.u32 %v2066, 16
        %v2246 = vrot.slane %v2244, 7
        %v2247 = vshll.u32 %v2066, 16
        %v2249 = vor.u32 %v2246, %v2247
        %v2250 = vsel %vm2081, %v2242, %v2249
        %v2251 = vrot.slane %v2246, 4
        %v2253 = vshrl.u32 %v2067, 16
        %v2255 = vrot.slane %v2253, 7
        %v2256 = vshll.u32 %v2067, 16
        %v2258 = vor.u32 %v2255, %v2256
        %v2259 = vrot.slane %v2255, 4
        %v2261 = vshrl.u32 %v2068, 16
        %v2263 = vrot.slane %v2261, 7
        %v2264 = vshll.u32 %v2068, 16
        %v2266 = vor.u32 %v2263, %v2264
        %v2267 = vsel %vm2081, %v2259, %v2266
        %v2268 = vrot.slane %v2263, 4
        %v2270 = vshrl.u32 %v2069, 16
        %v2272 = vrot.slane %v2270, 7
        %v2273 = vshll.u32 %v2069, 16
        %v2275 = vor.u32 %v2272, %v2273
        %v2276 = vrot.slane %v2272, 4
        %v2278 = vshrl.u32 %v2070, 16
        %v2280 = vrot.slane %v2278, 7
        %v2281 = vshll.u32 %v2070, 16
        %v2283 = vor.u32 %v2280, %v2281
        %v2284 = vsel %vm2081, %v2276, %v2283
        %v2285 = vrot.slane %v2280, 4
        %v2287 = vshrl.u32 %v2071, 16
        %v2289 = vrot.slane %v2287, 7
        %v2290 = vshll.u32 %v2071, 16
        %v2292 = vor.u32 %v2289, %v2290
        %v2293 = vrot.slane %v2289, 4
        %v2295 = vshrl.u32 %v2072, 16
        %v2297 = vrot.slane %v2295, 7
        %v2298 = vshll.u32 %v2072, 16
        %v2300 = vor.u32 %v2297, %v2298
        %v2301 = vsel %vm2081, %v2293, %v2300
        %v2302 = vrot.slane %v2297, 4
        %v2304 = vshrl.u32 %v2073, 16
        %v2306 = vrot.slane %v2304, 7
        %v2307 = vshll.u32 %v2073, 16
        %v2309 = vor.u32 %v2306, %v2307
        %v2310 = vrot.slane %v2306, 4
        %v2312 = vshrl.u32 %v2074, 16
        %v2314 = vrot.slane %v2312, 7
        %v2315 = vshll.u32 %v2074, 16
        %v2317 = vor.u32 %v2314, %v2315
        %v2318 = vsel %vm2081, %v2310, %v2317
        %v2319 = vrot.slane %v2314, 4
        %v2321 = vshrl.u32 %v2075, 16
        %v2323 = vrot.slane %v2321, 7
        %v2324 = vshll.u32 %v2075, 16
        %v2326 = vor.u32 %v2323, %v2324
        %v2327 = vrot.slane %v2323, 4
        %v2329 = vshrl.u32 %v2076, 16
        %v2331 = vrot.slane %v2329, 7
        %v2332 = vshll.u32 %v2076, 16
        %v2334 = vor.u32 %v2331, %v2332
        %v2335 = vsel %vm2081, %v2327, %v2334
        %v2336 = vrot.slane %v2331, 4
        %v2338 = vshrl.u32 %v2077, 16
        %v2340 = vrot.slane %v2338, 7
        %v2341 = vshll.u32 %v2077, 16
        %v2343 = vor.u32 %v2340, %v2341
        %v2344 = vrot.slane %v2340, 4
        %v2346 = vshrl.u32 %v2078, 16
        %v2348 = vrot.slane %v2346, 7
        %v2349 = vshll.u32 %v2078, 16
        %v2351 = vor.u32 %v2348, %v2349
        %v2352 = vsel %vm2081, %v2344, %v2351
        %v2353 = vrot.slane %v2348, 4
        %s2402 = scalar_lea.vmem [#allocation2], 12
        %vm2403 = vcmask 27648
        %vm2404 = vsmask.f32 7938
        %vm2405 = vmand %vm2403, %vm2404
        %v2406 = vld [vmem:[%s2402] sm:$0xf]
        %v2407 = vsel %vm2405, %v2088, %v2406
        %2408 = vst [vmem:[%s2402] sm:$0xf] %v2407
        %vm2409 = vcmask 27648
        %2410 = vst.msk [vmem:[%s2402 + $0x4] sm:$0xf] %vm2409, %v2097
        %vm2411 = vcmask 24576
        %vm2412 = vmand %vm2411, %vm2079
        %v2413 = vld [vmem:[%s2402 + $0x8] sm:$0x1]
        %v2414 = vsel %vm2412, %v2098, %v2413
        %2415 = vst [vmem:[%s2402 + $0x8] sm:$0x1] %v2414
        %v2416 = vld [vmem:[%s2402 + $0xc] sm:$0xf]
        %v2417 = vsel %vm2405, %v2105, %v2416
        %2418 = vst [vmem:[%s2402 + $0xc] sm:$0xf] %v2417
        %2419 = vst.msk [vmem:[%s2402 + $0x10] sm:$0xf] %vm2409, %v2114
        %v2420 = vld [vmem:[%s2402 + $0x14] sm:$0x1]
        %v2421 = vsel %vm2412, %v2115, %v2420
        %2422 = vst [vmem:[%s2402 + $0x14] sm:$0x1] %v2421
        %v2423 = vld [vmem:[%s2402 + $0x18] sm:$0xf]
        %v2424 = vsel %vm2405, %v2122, %v2423
        %2425 = vst [vmem:[%s2402 + $0x18] sm:$0xf] %v2424
        %2426 = vst.msk [vmem:[%s2402 + $0x1c] sm:$0xf] %vm2409, %v2131
        %v2427 = vld [vmem:[%s2402 + $0x20] sm:$0x1]
        %v2428 = vsel %vm2412, %v2132, %v2427
        %2429 = vst [vmem:[%s2402 + $0x20] sm:$0x1] %v2428
        %v2430 = vld [vmem:[%s2402 + $0x24] sm:$0xf]
        %v2431 = vsel %vm2405, %v2139, %v2430
        %2432 = vst [vmem:[%s2402 + $0x24] sm:$0xf] %v2431
        %2433 = vst.msk [vmem:[%s2402 + $0x28] sm:$0xf] %vm2409, %v2148
        %v2434 = vld [vmem:[%s2402 + $0x2c] sm:$0x1]
        %v2435 = vsel %vm2412, %v2149, %v2434
        %2436 = vst [vmem:[%s2402 + $0x2c] sm:$0x1] %v2435
        %v2437 = vld [vmem:[%s2402 + $0x30] sm:$0xf]
        %v2438 = vsel %vm2405, %v2156, %v2437
        %2439 = vst [vmem:[%s2402 + $0x30] sm:$0xf] %v2438
        %2440 = vst.msk [vmem:[%s2402 + $0x34] sm:$0xf] %vm2409, %v2165
        %v2441 = vld [vmem:[%s2402 + $0x38] sm:$0x1]
        %v2442 = vsel %vm2412, %v2166, %v2441
        %2443 = vst [vmem:[%s2402 + $0x38] sm:$0x1] %v2442
        %v2444 = vld [vmem:[%s2402 + $0x3c] sm:$0xf]
        %v2445 = vsel %vm2405, %v2173, %v2444
        %2446 = vst [vmem:[%s2402 + $0x3c] sm:$0xf] %v2445
        %2447 = vst.msk [vmem:[%s2402 + $0x40] sm:$0xf] %vm2409, %v2182
        %v2448 = vld [vmem:[%s2402 + $0x44] sm:$0x1]
        %v2449 = vsel %vm2412, %v2183, %v2448
        %2450 = vst [vmem:[%s2402 + $0x44] sm:$0x1] %v2449
        %v2451 = vld [vmem:[%s2402 + $0x48] sm:$0xf]
        %v2452 = vsel %vm2405, %v2190, %v2451
        %2453 = vst [vmem:[%s2402 + $0x48] sm:$0xf] %v2452
        %2454 = vst.msk [vmem:[%s2402 + $0x4c] sm:$0xf] %vm2409, %v2199
        %v2455 = vld [vmem:[%s2402 + $0x50] sm:$0x1]
        %v2456 = vsel %vm2412, %v2200, %v2455
        %2457 = vst [vmem:[%s2402 + $0x50] sm:$0x1] %v2456
        %v2458 = vld [vmem:[%s2402 + $0x54] sm:$0xf]
        %v2459 = vsel %vm2405, %v2207, %v2458
        %2460 = vst [vmem:[%s2402 + $0x54] sm:$0xf] %v2459
        %2461 = vst.msk [vmem:[%s2402 + $0x58] sm:$0xf] %vm2409, %v2216
        %v2462 = vld [vmem:[%s2402 + $0x5c] sm:$0x1]
        %v2463 = vsel %vm2412, %v2217, %v2462
        %2464 = vst [vmem:[%s2402 + $0x5c] sm:$0x1] %v2463
        %v2465 = vld [vmem:[%s2402 + $0x60] sm:$0xf]
        %v2466 = vsel %vm2405, %v2224, %v2465
        %2467 = vst [vmem:[%s2402 + $0x60] sm:$0xf] %v2466
        %2468 = vst.msk [vmem:[%s2402 + $0x64] sm:$0xf] %vm2409, %v2233
        %v2469 = vld [vmem:[%s2402 + $0x68] sm:$0x1]
        %v2470 = vsel %vm2412, %v2234, %v2469
        %2471 = vst [vmem:[%s2402 + $0x68] sm:$0x1] %v2470
        %v2472 = vld [vmem:[%s2402 + $0x6c] sm:$0xf]
        %v2473 = vsel %vm2405, %v2241, %v2472
        %2474 = vst [vmem:[%s2402 + $0x6c] sm:$0xf] %v2473
        %2475 = vst.msk [vmem:[%s2402 + $0x70] sm:$0xf] %vm2409, %v2250
        %v2476 = vld [vmem:[%s2402 + $0x74] sm:$0x1]
        %v2477 = vsel %vm2412, %v2251, %v2476
        %2478 = vst [vmem:[%s2402 + $0x74] sm:$0x1] %v2477
        %v2479 = vld [vmem:[%s2402 + $0x78] sm:$0xf]
        %v2480 = vsel %vm2405, %v2258, %v2479
        %2481 = vst [vmem:[%s2402 + $0x78] sm:$0xf] %v2480
        %2482 = vst.msk [vmem:[%s2402 + $0x7c] sm:$0xf] %vm2409, %v2267
        %v2483 = vld [vmem:[%s2402 + $0x80] sm:$0x1]
        %v2484 = vsel %vm2412, %v2268, %v2483
        %2485 = vst [vmem:[%s2402 + $0x80] sm:$0x1] %v2484
        %v2486 = vld [vmem:[%s2402 + $0x84] sm:$0xf]
        %v2487 = vsel %vm2405, %v2275, %v2486
        %2488 = vst [vmem:[%s2402 + $0x84] sm:$0xf] %v2487
        %2489 = vst.msk [vmem:[%s2402 + $0x88] sm:$0xf] %vm2409, %v2284
        %v2490 = vld [vmem:[%s2402 + $0x8c] sm:$0x1]
        %v2491 = vsel %vm2412, %v2285, %v2490
        %2492 = vst [vmem:[%s2402 + $0x8c] sm:$0x1] %v2491
        %v2493 = vld [vmem:[%s2402 + $0x90] sm:$0xf]
        %v2494 = vsel %vm2405, %v2292, %v2493
        %2495 = vst [vmem:[%s2402 + $0x90] sm:$0xf] %v2494
        %2496 = vst.msk [vmem:[%s2402 + $0x94] sm:$0xf] %vm2409, %v2301
        %v2497 = vld [vmem:[%s2402 + $0x98] sm:$0x1]
        %v2498 = vsel %vm2412, %v2302, %v2497
        %2499 = vst [vmem:[%s2402 + $0x98] sm:$0x1] %v2498
        %v2500 = vld [vmem:[%s2402 + $0x9c] sm:$0xf]
        %v2501 = vsel %vm2405, %v2309, %v2500
        %2502 = vst [vmem:[%s2402 + $0x9c] sm:$0xf] %v2501
        %2503 = vst.msk [vmem:[%s2402 + $0xa0] sm:$0xf] %vm2409, %v2318
        %v2504 = vld [vmem:[%s2402 + $0xa4] sm:$0x1]
        %v2505 = vsel %vm2412, %v2319, %v2504
        %2506 = vst [vmem:[%s2402 + $0xa4] sm:$0x1] %v2505
        %v2507 = vld [vmem:[%s2402 + $0xa8] sm:$0xf]
        %v2508 = vsel %vm2405, %v2326, %v2507
        %2509 = vst [vmem:[%s2402 + $0xa8] sm:$0xf] %v2508
        %2510 = vst.msk [vmem:[%s2402 + $0xac] sm:$0xf] %vm2409, %v2335
        %v2511 = vld [vmem:[%s2402 + $0xb0] sm:$0x1]
        %v2512 = vsel %vm2412, %v2336, %v2511
        %2513 = vst [vmem:[%s2402 + $0xb0] sm:$0x1] %v2512
        %v2514 = vld [vmem:[%s2402 + $0xb4] sm:$0xf]
        %v2515 = vsel %vm2405, %v2343, %v2514
        %2516 = vst [vmem:[%s2402 + $0xb4] sm:$0xf] %v2515
        %2517 = vst.msk [vmem:[%s2402 + $0xb8] sm:$0xf] %vm2409, %v2352
        %v2518 = vld [vmem:[%s2402 + $0xbc] sm:$0x1]
        %v2519 = vsel %vm2412, %v2353, %v2518
        %2520 = vst [vmem:[%s2402 + $0xbc] sm:$0x1] %v2519
        %v2521 = vpack.c.bf16 %v1868, %v1865
        %v2522 = vpack.c.bf16 %v1876, %v1873
        %v2523 = vpack.c.bf16 %v1884, %v1881
        %v2524 = vpack.c.bf16 %v1892, %v1889
        %v2525 = vpack.c.bf16 %v1900, %v1897
        %v2526 = vpack.c.bf16 %v1908, %v1905
        %v2527 = vpack.c.bf16 %v1916, %v1913
        %v2528 = vpack.c.bf16 %v1924, %v1921
        %v2529 = vpack.c.bf16 %v1932, %v1929
        %v2530 = vpack.c.bf16 %v1940, %v1937
        %v2531 = vpack.c.bf16 %v1948, %v1945
        %v2532 = vpack.c.bf16 %v1956, %v1953
        %v2533 = vpack.c.bf16 %v1964, %v1961
        %v2534 = vpack.c.bf16 %v1972, %v1969
        %v2535 = vpack.c.bf16 %v1980, %v1977
        %v2536 = vpack.c.bf16 %v1988, %v1985
        %v2553 = vunpack.c.l.b16 %v2521
        %v2554 = vunpack.c.h.b16 %v2521
        %v2555 = vunpack.c.l.b16 %v2522
        %v2556 = vunpack.c.h.b16 %v2522
        %v2557 = vunpack.c.l.b16 %v2523
        %v2558 = vunpack.c.h.b16 %v2523
        %v2559 = vunpack.c.l.b16 %v2524
        %v2560 = vunpack.c.h.b16 %v2524
        %v2561 = vunpack.c.l.b16 %v2525
        %v2562 = vunpack.c.h.b16 %v2525
        %v2563 = vunpack.c.l.b16 %v2526
        %v2564 = vunpack.c.h.b16 %v2526
        %v2565 = vunpack.c.l.b16 %v2527
        %v2566 = vunpack.c.h.b16 %v2527
        %v2567 = vunpack.c.l.b16 %v2528
        %v2568 = vunpack.c.h.b16 %v2528
        %v2569 = vunpack.c.l.b16 %v2529
        %v2570 = vunpack.c.h.b16 %v2529
        %v2571 = vunpack.c.l.b16 %v2530
        %v2572 = vunpack.c.h.b16 %v2530
        %v2573 = vunpack.c.l.b16 %v2531
        %v2574 = vunpack.c.h.b16 %v2531
        %v2575 = vunpack.c.l.b16 %v2532
        %v2576 = vunpack.c.h.b16 %v2532
        %v2577 = vunpack.c.l.b16 %v2533
        %v2578 = vunpack.c.h.b16 %v2533
        %v2579 = vunpack.c.l.b16 %v2534
        %v2580 = vunpack.c.h.b16 %v2534
        %v2581 = vunpack.c.l.b16 %v2535
        %v2582 = vunpack.c.h.b16 %v2535
        %v2583 = vunpack.c.l.b16 %v2536
        %v2584 = vunpack.c.h.b16 %v2536
        %v2585 = vpack.c.b16 %v2553, %v2553
        %v2586 = vpack.c.b16 %v2554, %v2554
        %v2587 = vpack.c.b16 %v2555, %v2555
        %v2588 = vpack.c.b16 %v2556, %v2556
        %v2589 = vpack.c.b16 %v2557, %v2557
        %v2590 = vpack.c.b16 %v2558, %v2558
        %v2591 = vpack.c.b16 %v2559, %v2559
        %v2592 = vpack.c.b16 %v2560, %v2560
        %v2593 = vpack.c.b16 %v2561, %v2561
        %v2594 = vpack.c.b16 %v2562, %v2562
        %v2595 = vpack.c.b16 %v2563, %v2563
        %v2596 = vpack.c.b16 %v2564, %v2564
        %v2597 = vpack.c.b16 %v2565, %v2565
        %v2598 = vpack.c.b16 %v2566, %v2566
        %v2599 = vpack.c.b16 %v2567, %v2567
        %v2600 = vpack.c.b16 %v2568, %v2568
        %v2601 = vpack.c.b16 %v2569, %v2569
        %v2602 = vpack.c.b16 %v2570, %v2570
        %v2603 = vpack.c.b16 %v2571, %v2571
        %v2604 = vpack.c.b16 %v2572, %v2572
        %v2605 = vpack.c.b16 %v2573, %v2573
        %v2606 = vpack.c.b16 %v2574, %v2574
        %v2607 = vpack.c.b16 %v2575, %v2575
        %v2608 = vpack.c.b16 %v2576, %v2576
        %v2609 = vpack.c.b16 %v2577, %v2577
        %v2610 = vpack.c.b16 %v2578, %v2578
        %v2611 = vpack.c.b16 %v2579, %v2579
        %v2612 = vpack.c.b16 %v2580, %v2580
        %v2613 = vpack.c.b16 %v2581, %v2581
        %v2614 = vpack.c.b16 %v2582, %v2582
        %v2615 = vpack.c.b16 %v2583, %v2583
        %v2616 = vpack.c.b16 %v2584, %v2584
        %v2618 = vshrl.u32 %v2585, 16
        %v2620 = vrot.slane %v2618, 7
        %v2621 = vshll.u32 %v2585, 16
        %v2623 = vor.u32 %v2620, %v2621
        %v2624 = vrot.slane %v2620, 4
        %v2626 = vshrl.u32 %v2586, 16
        %v2628 = vrot.slane %v2626, 7
        %v2629 = vshll.u32 %v2586, 16
        %v2631 = vor.u32 %v2628, %v2629
        %v2632 = vsel %vm2081, %v2624, %v2631
        %v2633 = vrot.slane %v2628, 4
        %v2635 = vshrl.u32 %v2587, 16
        %v2637 = vrot.slane %v2635, 7
        %v2638 = vshll.u32 %v2587, 16
        %v2640 = vor.u32 %v2637, %v2638
        %v2641 = vrot.slane %v2637, 4
        %v2643 = vshrl.u32 %v2588, 16
        %v2645 = vrot.slane %v2643, 7
        %v2646 = vshll.u32 %v2588, 16
        %v2648 = vor.u32 %v2645, %v2646
        %v2649 = vsel %vm2081, %v2641, %v2648
        %v2650 = vrot.slane %v2645, 4
        %v2652 = vshrl.u32 %v2589, 16
        %v2654 = vrot.slane %v2652, 7
        %v2655 = vshll.u32 %v2589, 16
        %v2657 = vor.u32 %v2654, %v2655
        %v2658 = vrot.slane %v2654, 4
        %v2660 = vshrl.u32 %v2590, 16
        %v2662 = vrot.slane %v2660, 7
        %v2663 = vshll.u32 %v2590, 16
        %v2665 = vor.u32 %v2662, %v2663
        %v2666 = vsel %vm2081, %v2658, %v2665
        %v2667 = vrot.slane %v2662, 4
        %v2669 = vshrl.u32 %v2591, 16
        %v2671 = vrot.slane %v2669, 7
        %v2672 = vshll.u32 %v2591, 16
        %v2674 = vor.u32 %v2671, %v2672
        %v2675 = vrot.slane %v2671, 4
        %v2677 = vshrl.u32 %v2592, 16
        %v2679 = vrot.slane %v2677, 7
        %v2680 = vshll.u32 %v2592, 16
        %v2682 = vor.u32 %v2679, %v2680
        %v2683 = vsel %vm2081, %v2675, %v2682
        %v2684 = vrot.slane %v2679, 4
        %v2686 = vshrl.u32 %v2593, 16
        %v2688 = vrot.slane %v2686, 7
        %v2689 = vshll.u32 %v2593, 16
        %v2691 = vor.u32 %v2688, %v2689
        %v2692 = vrot.slane %v2688, 4
        %v2694 = vshrl.u32 %v2594, 16
        %v2696 = vrot.slane %v2694, 7
        %v2697 = vshll.u32 %v2594, 16
        %v2699 = vor.u32 %v2696, %v2697
        %v2700 = vsel %vm2081, %v2692, %v2699
        %v2701 = vrot.slane %v2696, 4
        %v2703 = vshrl.u32 %v2595, 16
        %v2705 = vrot.slane %v2703, 7
        %v2706 = vshll.u32 %v2595, 16
        %v2708 = vor.u32 %v2705, %v2706
        %v2709 = vrot.slane %v2705, 4
        %v2711 = vshrl.u32 %v2596, 16
        %v2713 = vrot.slane %v2711, 7
        %v2714 = vshll.u32 %v2596, 16
        %v2716 = vor.u32 %v2713, %v2714
        %v2717 = vsel %vm2081, %v2709, %v2716
        %v2718 = vrot.slane %v2713, 4
        %v2720 = vshrl.u32 %v2597, 16
        %v2722 = vrot.slane %v2720, 7
        %v2723 = vshll.u32 %v2597, 16
        %v2725 = vor.u32 %v2722, %v2723
        %v2726 = vrot.slane %v2722, 4
        %v2728 = vshrl.u32 %v2598, 16
        %v2730 = vrot.slane %v2728, 7
        %v2731 = vshll.u32 %v2598, 16
        %v2733 = vor.u32 %v2730, %v2731
        %v2734 = vsel %vm2081, %v2726, %v2733
        %v2735 = vrot.slane %v2730, 4
        %v2737 = vshrl.u32 %v2599, 16
        %v2739 = vrot.slane %v2737, 7
        %v2740 = vshll.u32 %v2599, 16
        %v2742 = vor.u32 %v2739, %v2740
        %v2743 = vrot.slane %v2739, 4
        %v2745 = vshrl.u32 %v2600, 16
        %v2747 = vrot.slane %v2745, 7
        %v2748 = vshll.u32 %v2600, 16
        %v2750 = vor.u32 %v2747, %v2748
        %v2751 = vsel %vm2081, %v2743, %v2750
        %v2752 = vrot.slane %v2747, 4
        %v2754 = vshrl.u32 %v2601, 16
        %v2756 = vrot.slane %v2754, 7
        %v2757 = vshll.u32 %v2601, 16
        %v2759 = vor.u32 %v2756, %v2757
        %v2760 = vrot.slane %v2756, 4
        %v2762 = vshrl.u32 %v2602, 16
        %v2764 = vrot.slane %v2762, 7
        %v2765 = vshll.u32 %v2602, 16
        %v2767 = vor.u32 %v2764, %v2765
        %v2768 = vsel %vm2081, %v2760, %v2767
        %v2769 = vrot.slane %v2764, 4
        %v2771 = vshrl.u32 %v2603, 16
        %v2773 = vrot.slane %v2771, 7
        %v2774 = vshll.u32 %v2603, 16
        %v2776 = vor.u32 %v2773, %v2774
        %v2777 = vrot.slane %v2773, 4
        %v2779 = vshrl.u32 %v2604, 16
        %v2781 = vrot.slane %v2779, 7
        %v2782 = vshll.u32 %v2604, 16
        %v2784 = vor.u32 %v2781, %v2782
        %v2785 = vsel %vm2081, %v2777, %v2784
        %v2786 = vrot.slane %v2781, 4
        %v2788 = vshrl.u32 %v2605, 16
        %v2790 = vrot.slane %v2788, 7
        %v2791 = vshll.u32 %v2605, 16
        %v2793 = vor.u32 %v2790, %v2791
        %v2794 = vrot.slane %v2790, 4
        %v2796 = vshrl.u32 %v2606, 16
        %v2798 = vrot.slane %v2796, 7
        %v2799 = vshll.u32 %v2606, 16
        %v2801 = vor.u32 %v2798, %v2799
        %v2802 = vsel %vm2081, %v2794, %v2801
        %v2803 = vrot.slane %v2798, 4
        %v2805 = vshrl.u32 %v2607, 16
        %v2807 = vrot.slane %v2805, 7
        %v2808 = vshll.u32 %v2607, 16
        %v2810 = vor.u32 %v2807, %v2808
        %v2811 = vrot.slane %v2807, 4
        %v2813 = vshrl.u32 %v2608, 16
        %v2815 = vrot.slane %v2813, 7
        %v2816 = vshll.u32 %v2608, 16
        %v2818 = vor.u32 %v2815, %v2816
        %v2819 = vsel %vm2081, %v2811, %v2818
        %v2820 = vrot.slane %v2815, 4
        %v2822 = vshrl.u32 %v2609, 16
        %v2824 = vrot.slane %v2822, 7
        %v2825 = vshll.u32 %v2609, 16
        %v2827 = vor.u32 %v2824, %v2825
        %v2828 = vrot.slane %v2824, 4
        %v2830 = vshrl.u32 %v2610, 16
        %v2832 = vrot.slane %v2830, 7
        %v2833 = vshll.u32 %v2610, 16
        %v2835 = vor.u32 %v2832, %v2833
        %v2836 = vsel %vm2081, %v2828, %v2835
        %v2837 = vrot.slane %v2832, 4
        %v2839 = vshrl.u32 %v2611, 16
        %v2841 = vrot.slane %v2839, 7
        %v2842 = vshll.u32 %v2611, 16
        %v2844 = vor.u32 %v2841, %v2842
        %v2845 = vrot.slane %v2841, 4
        %v2847 = vshrl.u32 %v2612, 16
        %v2849 = vrot.slane %v2847, 7
        %v2850 = vshll.u32 %v2612, 16
        %v2852 = vor.u32 %v2849, %v2850
        %v2853 = vsel %vm2081, %v2845, %v2852
        %v2854 = vrot.slane %v2849, 4
        %v2856 = vshrl.u32 %v2613, 16
        %v2858 = vrot.slane %v2856, 7
        %v2859 = vshll.u32 %v2613, 16
        %v2861 = vor.u32 %v2858, %v2859
        %v2862 = vrot.slane %v2858, 4
        %v2864 = vshrl.u32 %v2614, 16
        %v2866 = vrot.slane %v2864, 7
        %v2867 = vshll.u32 %v2614, 16
        %v2869 = vor.u32 %v2866, %v2867
        %v2870 = vsel %vm2081, %v2862, %v2869
        %v2871 = vrot.slane %v2866, 4
        %v2873 = vshrl.u32 %v2615, 16
        %v2875 = vrot.slane %v2873, 7
        %v2876 = vshll.u32 %v2615, 16
        %v2878 = vor.u32 %v2875, %v2876
        %v2879 = vrot.slane %v2875, 4
        %v2881 = vshrl.u32 %v2616, 16
        %v2883 = vrot.slane %v2881, 7
        %v2884 = vshll.u32 %v2616, 16
        %v2886 = vor.u32 %v2883, %v2884
        %v2887 = vsel %vm2081, %v2879, %v2886
        %v2888 = vrot.slane %v2883, 4
        %2889 = vrot.lane.b32.xlu0 %v2623, 4
        %v2890 = vpop.permute.xlu0 %2889
        %2891 = vrot.lane.b32.xlu0 %v2632, 4
        %v2892 = vpop.permute.xlu0 %2891
        %2893 = vrot.lane.b32.xlu0 %v2633, 4
        %v2894 = vpop.permute.xlu0 %2893
        %2895 = vrot.lane.b32.xlu0 %v2640, 4
        %v2896 = vpop.permute.xlu0 %2895
        %2897 = vrot.lane.b32.xlu0 %v2649, 4
        %v2898 = vpop.permute.xlu0 %2897
        %2899 = vrot.lane.b32.xlu0 %v2650, 4
        %v2900 = vpop.permute.xlu0 %2899
        %2901 = vrot.lane.b32.xlu0 %v2657, 4
        %v2902 = vpop.permute.xlu0 %2901
        %2903 = vrot.lane.b32.xlu0 %v2666, 4
        %v2904 = vpop.permute.xlu0 %2903
        %2905 = vrot.lane.b32.xlu0 %v2667, 4
        %v2906 = vpop.permute.xlu0 %2905
        %2907 = vrot.lane.b32.xlu0 %v2674, 4
        %v2908 = vpop.permute.xlu0 %2907
        %2909 = vrot.lane.b32.xlu0 %v2683, 4
        %v2910 = vpop.permute.xlu0 %2909
        %2911 = vrot.lane.b32.xlu0 %v2684, 4
        %v2912 = vpop.permute.xlu0 %2911
        %2913 = vrot.lane.b32.xlu0 %v2691, 4
        %v2914 = vpop.permute.xlu0 %2913
        %2915 = vrot.lane.b32.xlu0 %v2700, 4
        %v2916 = vpop.permute.xlu0 %2915
        %2917 = vrot.lane.b32.xlu0 %v2701, 4
        %v2918 = vpop.permute.xlu0 %2917
        %2919 = vrot.lane.b32.xlu0 %v2708, 4
        %v2920 = vpop.permute.xlu0 %2919
        %2921 = vrot.lane.b32.xlu0 %v2717, 4
        %v2922 = vpop.permute.xlu0 %2921
        %2923 = vrot.lane.b32.xlu0 %v2718, 4
        %v2924 = vpop.permute.xlu0 %2923
        %2925 = vrot.lane.b32.xlu0 %v2725, 4
        %v2926 = vpop.permute.xlu0 %2925
        %2927 = vrot.lane.b32.xlu0 %v2734, 4
        %v2928 = vpop.permute.xlu0 %2927
        %2929 = vrot.lane.b32.xlu0 %v2735, 4
        %v2930 = vpop.permute.xlu0 %2929
        %2931 = vrot.lane.b32.xlu0 %v2742, 4
        %v2932 = vpop.permute.xlu0 %2931
        %2933 = vrot.lane.b32.xlu0 %v2751, 4
        %v2934 = vpop.permute.xlu0 %2933
        %2935 = vrot.lane.b32.xlu0 %v2752, 4
        %v2936 = vpop.permute.xlu0 %2935
        %2937 = vrot.lane.b32.xlu0 %v2759, 4
        %v2938 = vpop.permute.xlu0 %2937
        %2939 = vrot.lane.b32.xlu0 %v2768, 4
        %v2940 = vpop.permute.xlu0 %2939
        %2941 = vrot.lane.b32.xlu0 %v2769, 4
        %v2942 = vpop.permute.xlu0 %2941
        %2943 = vrot.lane.b32.xlu0 %v2776, 4
        %v2944 = vpop.permute.xlu0 %2943
        %2945 = vrot.lane.b32.xlu0 %v2785, 4
        %v2946 = vpop.permute.xlu0 %2945
        %2947 = vrot.lane.b32.xlu0 %v2786, 4
        %v2948 = vpop.permute.xlu0 %2947
        %2949 = vrot.lane.b32.xlu0 %v2793, 4
        %v2950 = vpop.permute.xlu0 %2949
        %2951 = vrot.lane.b32.xlu0 %v2802, 4
        %v2952 = vpop.permute.xlu0 %2951
        %2953 = vrot.lane.b32.xlu0 %v2803, 4
        %v2954 = vpop.permute.xlu0 %2953
        %2955 = vrot.lane.b32.xlu0 %v2810, 4
        %v2956 = vpop.permute.xlu0 %2955
        %2957 = vrot.lane.b32.xlu0 %v2819, 4
        %v2958 = vpop.permute.xlu0 %2957
        %2959 = vrot.lane.b32.xlu0 %v2820, 4
        %v2960 = vpop.permute.xlu0 %2959
        %2961 = vrot.lane.b32.xlu0 %v2827, 4
        %v2962 = vpop.permute.xlu0 %2961
        %2963 = vrot.lane.b32.xlu0 %v2836, 4
        %v2964 = vpop.permute.xlu0 %2963
        %2965 = vrot.lane.b32.xlu0 %v2837, 4
        %v2966 = vpop.permute.xlu0 %2965
        %2967 = vrot.lane.b32.xlu0 %v2844, 4
        %v2968 = vpop.permute.xlu0 %2967
        %2969 = vrot.lane.b32.xlu0 %v2853, 4
        %v2970 = vpop.permute.xlu0 %2969
        %2971 = vrot.lane.b32.xlu0 %v2854, 4
        %v2972 = vpop.permute.xlu0 %2971
        %2973 = vrot.lane.b32.xlu0 %v2861, 4
        %v2974 = vpop.permute.xlu0 %2973
        %2975 = vrot.lane.b32.xlu0 %v2870, 4
        %v2976 = vpop.permute.xlu0 %2975
        %2977 = vrot.lane.b32.xlu0 %v2871, 4
        %v2978 = vpop.permute.xlu0 %2977
        %2979 = vrot.lane.b32.xlu0 %v2878, 4
        %v2980 = vpop.permute.xlu0 %2979
        %2981 = vrot.lane.b32.xlu0 %v2887, 4
        %v2982 = vpop.permute.xlu0 %2981
        %2983 = vrot.lane.b32.xlu0 %v2888, 4
        %v2984 = vpop.permute.xlu0 %2983
        %vm3033 = vcmask 60448
        %vm3034 = vmand %vm3033, %vm2404
        %v3035 = vld [vmem:[%s2402] sm:$0xf]
        %v3036 = vsel %vm3034, %v2890, %v3035
        %3037 = vst [vmem:[%s2402] sm:$0xf] %v3036
        %vm3038 = vcmask 60448
        %3039 = vst.msk [vmem:[%s2402 + $0x4] sm:$0xf] %vm3038, %v2892
        %vm3040 = vcmask 57376
        %vm3041 = vmand %vm3040, %vm2079
        %v3042 = vld [vmem:[%s2402 + $0x8] sm:$0x1]
        %v3043 = vsel %vm3041, %v2894, %v3042
        %3044 = vst [vmem:[%s2402 + $0x8] sm:$0x1] %v3043
        %v3045 = vld [vmem:[%s2402 + $0xc] sm:$0xf]
        %v3046 = vsel %vm3034, %v2896, %v3045
        %3047 = vst [vmem:[%s2402 + $0xc] sm:$0xf] %v3046
        %3048 = vst.msk [vmem:[%s2402 + $0x10] sm:$0xf] %vm3038, %v2898
        %v3049 = vld [vmem:[%s2402 + $0x14] sm:$0x1]
        %v3050 = vsel %vm3041, %v2900, %v3049
        %3051 = vst [vmem:[%s2402 + $0x14] sm:$0x1] %v3050
        %v3052 = vld [vmem:[%s2402 + $0x18] sm:$0xf]
        %v3053 = vsel %vm3034, %v2902, %v3052
        %3054 = vst [vmem:[%s2402 + $0x18] sm:$0xf] %v3053
        %3055 = vst.msk [vmem:[%s2402 + $0x1c] sm:$0xf] %vm3038, %v2904
        %v3056 = vld [vmem:[%s2402 + $0x20] sm:$0x1]
        %v3057 = vsel %vm3041, %v2906, %v3056
        %3058 = vst [vmem:[%s2402 + $0x20] sm:$0x1] %v3057
        %v3059 = vld [vmem:[%s2402 + $0x24] sm:$0xf]
        %v3060 = vsel %vm3034, %v2908, %v3059
        %3061 = vst [vmem:[%s2402 + $0x24] sm:$0xf] %v3060
        %3062 = vst.msk [vmem:[%s2402 + $0x28] sm:$0xf] %vm3038, %v2910
        %v3063 = vld [vmem:[%s2402 + $0x2c] sm:$0x1]
        %v3064 = vsel %vm3041, %v2912, %v3063
        %3065 = vst [vmem:[%s2402 + $0x2c] sm:$0x1] %v3064
        %v3066 = vld [vmem:[%s2402 + $0x30] sm:$0xf]
        %v3067 = vsel %vm3034, %v2914, %v3066
        %3068 = vst [vmem:[%s2402 + $0x30] sm:$0xf] %v3067
        %3069 = vst.msk [vmem:[%s2402 + $0x34] sm:$0xf] %vm3038, %v2916
        %v3070 = vld [vmem:[%s2402 + $0x38] sm:$0x1]
        %v3071 = vsel %vm3041, %v2918, %v3070
        %3072 = vst [vmem:[%s2402 + $0x38] sm:$0x1] %v3071
        %v3073 = vld [vmem:[%s2402 + $0x3c] sm:$0xf]
        %v3074 = vsel %vm3034, %v2920, %v3073
        %3075 = vst [vmem:[%s2402 + $0x3c] sm:$0xf] %v3074
        %3076 = vst.msk [vmem:[%s2402 + $0x40] sm:$0xf] %vm3038, %v2922
        %v3077 = vld [vmem:[%s2402 + $0x44] sm:$0x1]
        %v3078 = vsel %vm3041, %v2924, %v3077
        %3079 = vst [vmem:[%s2402 + $0x44] sm:$0x1] %v3078
        %v3080 = vld [vmem:[%s2402 + $0x48] sm:$0xf]
        %v3081 = vsel %vm3034, %v2926, %v3080
        %3082 = vst [vmem:[%s2402 + $0x48] sm:$0xf] %v3081
        %3083 = vst.msk [vmem:[%s2402 + $0x4c] sm:$0xf] %vm3038, %v2928
        %v3084 = vld [vmem:[%s2402 + $0x50] sm:$0x1]
        %v3085 = vsel %vm3041, %v2930, %v3084
        %3086 = vst [vmem:[%s2402 + $0x50] sm:$0x1] %v3085
        %v3087 = vld [vmem:[%s2402 + $0x54] sm:$0xf]
        %v3088 = vsel %vm3034, %v2932, %v3087
        %3089 = vst [vmem:[%s2402 + $0x54] sm:$0xf] %v3088
        %3090 = vst.msk [vmem:[%s2402 + $0x58] sm:$0xf] %vm3038, %v2934
        %v3091 = vld [vmem:[%s2402 + $0x5c] sm:$0x1]
        %v3092 = vsel %vm3041, %v2936, %v3091
        %3093 = vst [vmem:[%s2402 + $0x5c] sm:$0x1] %v3092
        %v3094 = vld [vmem:[%s2402 + $0x60] sm:$0xf]
        %v3095 = vsel %vm3034, %v2938, %v3094
        %3096 = vst [vmem:[%s2402 + $0x60] sm:$0xf] %v3095
        %3097 = vst.msk [vmem:[%s2402 + $0x64] sm:$0xf] %vm3038, %v2940
        %v3098 = vld [vmem:[%s2402 + $0x68] sm:$0x1]
        %v3099 = vsel %vm3041, %v2942, %v3098
        %3100 = vst [vmem:[%s2402 + $0x68] sm:$0x1] %v3099
        %v3101 = vld [vmem:[%s2402 + $0x6c] sm:$0xf]
        %v3102 = vsel %vm3034, %v2944, %v3101
        %3103 = vst [vmem:[%s2402 + $0x6c] sm:$0xf] %v3102
        %3104 = vst.msk [vmem:[%s2402 + $0x70] sm:$0xf] %vm3038, %v2946
        %v3105 = vld [vmem:[%s2402 + $0x74] sm:$0x1]
        %v3106 = vsel %vm3041, %v2948, %v3105
        %3107 = vst [vmem:[%s2402 + $0x74] sm:$0x1] %v3106
        %v3108 = vld [vmem:[%s2402 + $0x78] sm:$0xf]
        %v3109 = vsel %vm3034, %v2950, %v3108
        %3110 = vst [vmem:[%s2402 + $0x78] sm:$0xf] %v3109
        %3111 = vst.msk [vmem:[%s2402 + $0x7c] sm:$0xf] %vm3038, %v2952
        %v3112 = vld [vmem:[%s2402 + $0x80] sm:$0x1]
        %v3113 = vsel %vm3041, %v2954, %v3112
        %3114 = vst [vmem:[%s2402 + $0x80] sm:$0x1] %v3113
        %v3115 = vld [vmem:[%s2402 + $0x84] sm:$0xf]
        %v3116 = vsel %vm3034, %v2956, %v3115
        %3117 = vst [vmem:[%s2402 + $0x84] sm:$0xf] %v3116
        %3118 = vst.msk [vmem:[%s2402 + $0x88] sm:$0xf] %vm3038, %v2958
        %v3119 = vld [vmem:[%s2402 + $0x8c] sm:$0x1]
        %v3120 = vsel %vm3041, %v2960, %v3119
        %3121 = vst [vmem:[%s2402 + $0x8c] sm:$0x1] %v3120
        %v3122 = vld [vmem:[%s2402 + $0x90] sm:$0xf]
        %v3123 = vsel %vm3034, %v2962, %v3122
        %3124 = vst [vmem:[%s2402 + $0x90] sm:$0xf] %v3123
        %3125 = vst.msk [vmem:[%s2402 + $0x94] sm:$0xf] %vm3038, %v2964
        %v3126 = vld [vmem:[%s2402 + $0x98] sm:$0x1]
        %v3127 = vsel %vm3041, %v2966, %v3126
        %3128 = vst [vmem:[%s2402 + $0x98] sm:$0x1] %v3127
        %v3129 = vld [vmem:[%s2402 + $0x9c] sm:$0xf]
        %v3130 = vsel %vm3034, %v2968, %v3129
        %3131 = vst [vmem:[%s2402 + $0x9c] sm:$0xf] %v3130
        %3132 = vst.msk [vmem:[%s2402 + $0xa0] sm:$0xf] %vm3038, %v2970
        %v3133 = vld [vmem:[%s2402 + $0xa4] sm:$0x1]
        %v3134 = vsel %vm3041, %v2972, %v3133
        %3135 = vst [vmem:[%s2402 + $0xa4] sm:$0x1] %v3134
        %v3136 = vld [vmem:[%s2402 + $0xa8] sm:$0xf]
        %v3137 = vsel %vm3034, %v2974, %v3136
        %3138 = vst [vmem:[%s2402 + $0xa8] sm:$0xf] %v3137
        %3139 = vst.msk [vmem:[%s2402 + $0xac] sm:$0xf] %vm3038, %v2976
        %v3140 = vld [vmem:[%s2402 + $0xb0] sm:$0x1]
        %v3141 = vsel %vm3041, %v2978, %v3140
        %3142 = vst [vmem:[%s2402 + $0xb0] sm:$0x1] %v3141
        %v3143 = vld [vmem:[%s2402 + $0xb4] sm:$0xf]
        %v3144 = vsel %vm3034, %v2980, %v3143
        %3145 = vst [vmem:[%s2402 + $0xb4] sm:$0xf] %v3144
        %3146 = vst.msk [vmem:[%s2402 + $0xb8] sm:$0xf] %vm3038, %v2982
        %v3147 = vld [vmem:[%s2402 + $0xbc] sm:$0x1]
        %v3148 = vsel %vm3041, %v2984, %v3147
        %3149 = vst [vmem:[%s2402 + $0xbc] sm:$0x1] %v3148
        %v3150 = vld [vmem:[#allocation2] sm:$0xf]
        %v3151 = vld [vmem:[#allocation2 + $0x4] sm:$0xf]
        %v3152 = vld [vmem:[#allocation2 + $0xc] sm:$0xf]
        %v3153 = vld [vmem:[#allocation2 + $0x10] sm:$0xf]
        %v3154 = vld [vmem:[#allocation2 + $0x18] sm:$0xf]
        %v3155 = vld [vmem:[#allocation2 + $0x1c] sm:$0xf]
        %v3156 = vld [vmem:[#allocation2 + $0x24] sm:$0xf]
        %v3157 = vld [vmem:[#allocation2 + $0x28] sm:$0xf]
        %v3158 = vld [vmem:[#allocation2 + $0x30] sm:$0xf]
        %v3159 = vld [vmem:[#allocation2 + $0x34] sm:$0xf]
        %v3160 = vld [vmem:[#allocation2 + $0x3c] sm:$0xf]
        %v3161 = vld [vmem:[#allocation2 + $0x40] sm:$0xf]
        %v3162 = vld [vmem:[#allocation2 + $0x48] sm:$0xf]
        %v3163 = vld [vmem:[#allocation2 + $0x4c] sm:$0xf]
        %v3164 = vld [vmem:[#allocation2 + $0x54] sm:$0xf]
        %v3165 = vld [vmem:[#allocation2 + $0x58] sm:$0xf]
        %v3166 = vld [vmem:[#allocation2 + $0x60] sm:$0xf]
        %v3167 = vld [vmem:[#allocation2 + $0x64] sm:$0xf]
        %v3168 = vld [vmem:[#allocation2 + $0x6c] sm:$0xf]
        %v3169 = vld [vmem:[#allocation2 + $0x70] sm:$0xf]
        %v3170 = vld [vmem:[#allocation2 + $0x78] sm:$0xf]
        %v3171 = vld [vmem:[#allocation2 + $0x7c] sm:$0xf]
        %v3172 = vld [vmem:[#allocation2 + $0x84] sm:$0xf]
        %v3173 = vld [vmem:[#allocation2 + $0x88] sm:$0xf]
        %v3174 = vld [vmem:[#allocation2 + $0x90] sm:$0xf]
        %v3175 = vld [vmem:[#allocation2 + $0x94] sm:$0xf]
        %v3176 = vld [vmem:[#allocation2 + $0x9c] sm:$0xf]
        %v3177 = vld [vmem:[#allocation2 + $0xa0] sm:$0xf]
        %v3178 = vld [vmem:[#allocation2 + $0xa8] sm:$0xf]
        %v3179 = vld [vmem:[#allocation2 + $0xac] sm:$0xf]
        %v3180 = vld [vmem:[#allocation2 + $0xb4] sm:$0xf]
        %v3181 = vld [vmem:[#allocation2 + $0xb8] sm:$0xf]
        %v3182 = vld [vmem:[#allocation2 + $0x8] sm:$0x1]
        %v3183 = vld [vmem:[#allocation2 + $0x14] sm:$0x1]
        %v3184 = vld [vmem:[#allocation2 + $0x20] sm:$0x1]
        %v3185 = vld [vmem:[#allocation2 + $0x2c] sm:$0x1]
        %v3186 = vld [vmem:[#allocation2 + $0x38] sm:$0x1]
        %v3187 = vld [vmem:[#allocation2 + $0x44] sm:$0x1]
        %v3188 = vld [vmem:[#allocation2 + $0x50] sm:$0x1]
        %v3189 = vld [vmem:[#allocation2 + $0x5c] sm:$0x1]
        %v3190 = vld [vmem:[#allocation2 + $0x68] sm:$0x1]
        %v3191 = vld [vmem:[#allocation2 + $0x74] sm:$0x1]
        %v3192 = vld [vmem:[#allocation2 + $0x80] sm:$0x1]
        %v3193 = vld [vmem:[#allocation2 + $0x8c] sm:$0x1]
        %v3194 = vld [vmem:[#allocation2 + $0x98] sm:$0x1]
        %v3195 = vld [vmem:[#allocation2 + $0xa4] sm:$0x1]
        %v3196 = vld [vmem:[#allocation2 + $0xb0] sm:$0x1]
        %v3197 = vld [vmem:[#allocation2 + $0xbc] sm:$0x1]
        %v3199 = vshrl.u32 %v3150, 16
        %v3201 = vrot.slane %v3199, 4
        %v3202 = vshll.u32 %v3150, 16
        %v3204 = vrot.slane %v3202, 5
        %v3205 = vor.u32 %v3201, %v3204
        %v3206 = vrot.slane %v3205, 4
        %v3208 = vshll.u32 %v3151, 16
        %v3210 = vrot.slane %v3208, 5
        %v3211 = vsel %vm370, %v3206, %v3210
        %v3212 = vshrl.u32 %v3151, 16
        %v3214 = vrot.slane %v3212, 4
        %v3215 = vor.u32 %v3214, %v3210
        %v3216 = vrot.slane %v3215, 4
        %v3218 = vshll.u32 %v3182, 16
        %v3220 = vrot.slane %v3218, 5
        %v3221 = vsel %vm370, %v3216, %v3220
        %v3223 = vshrl.u32 %v3152, 16
        %v3225 = vrot.slane %v3223, 4
        %v3226 = vshll.u32 %v3152, 16
        %v3228 = vrot.slane %v3226, 5
        %v3229 = vor.u32 %v3225, %v3228
        %v3230 = vrot.slane %v3229, 4
        %v3232 = vshll.u32 %v3153, 16
        %v3234 = vrot.slane %v3232, 5
        %v3235 = vsel %vm370, %v3230, %v3234
        %v3236 = vshrl.u32 %v3153, 16
        %v3238 = vrot.slane %v3236, 4
        %v3239 = vor.u32 %v3238, %v3234
        %v3240 = vrot.slane %v3239, 4
        %v3242 = vshll.u32 %v3183, 16
        %v3244 = vrot.slane %v3242, 5
        %v3245 = vsel %vm370, %v3240, %v3244
        %v3247 = vshrl.u32 %v3154, 16
        %v3249 = vrot.slane %v3247, 4
        %v3250 = vshll.u32 %v3154, 16
        %v3252 = vrot.slane %v3250, 5
        %v3253 = vor.u32 %v3249, %v3252
        %v3254 = vrot.slane %v3253, 4
        %v3256 = vshll.u32 %v3155, 16
        %v3258 = vrot.slane %v3256, 5
        %v3259 = vsel %vm370, %v3254, %v3258
        %v3260 = vshrl.u32 %v3155, 16
        %v3262 = vrot.slane %v3260, 4
        %v3263 = vor.u32 %v3262, %v3258
        %v3264 = vrot.slane %v3263, 4
        %v3266 = vshll.u32 %v3184, 16
        %v3268 = vrot.slane %v3266, 5
        %v3269 = vsel %vm370, %v3264, %v3268
        %v3271 = vshrl.u32 %v3156, 16
        %v3273 = vrot.slane %v3271, 4
        %v3274 = vshll.u32 %v3156, 16
        %v3276 = vrot.slane %v3274, 5
        %v3277 = vor.u32 %v3273, %v3276
        %v3278 = vrot.slane %v3277, 4
        %v3280 = vshll.u32 %v3157, 16
        %v3282 = vrot.slane %v3280, 5
        %v3283 = vsel %vm370, %v3278, %v3282
        %v3284 = vshrl.u32 %v3157, 16
        %v3286 = vrot.slane %v3284, 4
        %v3287 = vor.u32 %v3286, %v3282
        %v3288 = vrot.slane %v3287, 4
        %v3290 = vshll.u32 %v3185, 16
        %v3292 = vrot.slane %v3290, 5
        %v3293 = vsel %vm370, %v3288, %v3292
        %v3295 = vshrl.u32 %v3158, 16
        %v3297 = vrot.slane %v3295, 4
        %v3298 = vshll.u32 %v3158, 16
        %v3300 = vrot.slane %v3298, 5
        %v3301 = vor.u32 %v3297, %v3300
        %v3302 = vrot.slane %v3301, 4
        %v3304 = vshll.u32 %v3159, 16
        %v3306 = vrot.slane %v3304, 5
        %v3307 = vsel %vm370, %v3302, %v3306
        %v3308 = vshrl.u32 %v3159, 16
        %v3310 = vrot.slane %v3308, 4
        %v3311 = vor.u32 %v3310, %v3306
        %v3312 = vrot.slane %v3311, 4
        %v3314 = vshll.u32 %v3186, 16
        %v3316 = vrot.slane %v3314, 5
        %v3317 = vsel %vm370, %v3312, %v3316
        %v3319 = vshrl.u32 %v3160, 16
        %v3321 = vrot.slane %v3319, 4
        %v3322 = vshll.u32 %v3160, 16
        %v3324 = vrot.slane %v3322, 5
        %v3325 = vor.u32 %v3321, %v3324
        %v3326 = vrot.slane %v3325, 4
        %v3328 = vshll.u32 %v3161, 16
        %v3330 = vrot.slane %v3328, 5
        %v3331 = vsel %vm370, %v3326, %v3330
        %v3332 = vshrl.u32 %v3161, 16
        %v3334 = vrot.slane %v3332, 4
        %v3335 = vor.u32 %v3334, %v3330
        %v3336 = vrot.slane %v3335, 4
        %v3338 = vshll.u32 %v3187, 16
        %v3340 = vrot.slane %v3338, 5
        %v3341 = vsel %vm370, %v3336, %v3340
        %v3343 = vshrl.u32 %v3162, 16
        %v3345 = vrot.slane %v3343, 4
        %v3346 = vshll.u32 %v3162, 16
        %v3348 = vrot.slane %v3346, 5
        %v3349 = vor.u32 %v3345, %v3348
        %v3350 = vrot.slane %v3349, 4
        %v3352 = vshll.u32 %v3163, 16
        %v3354 = vrot.slane %v3352, 5
        %v3355 = vsel %vm370, %v3350, %v3354
        %v3356 = vshrl.u32 %v3163, 16
        %v3358 = vrot.slane %v3356, 4
        %v3359 = vor.u32 %v3358, %v3354
        %v3360 = vrot.slane %v3359, 4
        %v3362 = vshll.u32 %v3188, 16
        %v3364 = vrot.slane %v3362, 5
        %v3365 = vsel %vm370, %v3360, %v3364
        %v3367 = vshrl.u32 %v3164, 16
        %v3369 = vrot.slane %v3367, 4
        %v3370 = vshll.u32 %v3164, 16
        %v3372 = vrot.slane %v3370, 5
        %v3373 = vor.u32 %v3369, %v3372
        %v3374 = vrot.slane %v3373, 4
        %v3376 = vshll.u32 %v3165, 16
        %v3378 = vrot.slane %v3376, 5
        %v3379 = vsel %vm370, %v3374, %v3378
        %v3380 = vshrl.u32 %v3165, 16
        %v3382 = vrot.slane %v3380, 4
        %v3383 = vor.u32 %v3382, %v3378
        %v3384 = vrot.slane %v3383, 4
        %v3386 = vshll.u32 %v3189, 16
        %v3388 = vrot.slane %v3386, 5
        %v3389 = vsel %vm370, %v3384, %v3388
        %v3391 = vshrl.u32 %v3166, 16
        %v3393 = vrot.slane %v3391, 4
        %v3394 = vshll.u32 %v3166, 16
        %v3396 = vrot.slane %v3394, 5
        %v3397 = vor.u32 %v3393, %v3396
        %v3398 = vrot.slane %v3397, 4
        %v3400 = vshll.u32 %v3167, 16
        %v3402 = vrot.slane %v3400, 5
        %v3403 = vsel %vm370, %v3398, %v3402
        %v3404 = vshrl.u32 %v3167, 16
        %v3406 = vrot.slane %v3404, 4
        %v3407 = vor.u32 %v3406, %v3402
        %v3408 = vrot.slane %v3407, 4
        %v3410 = vshll.u32 %v3190, 16
        %v3412 = vrot.slane %v3410, 5
        %v3413 = vsel %vm370, %v3408, %v3412
        %v3415 = vshrl.u32 %v3168, 16
        %v3417 = vrot.slane %v3415, 4
        %v3418 = vshll.u32 %v3168, 16
        %v3420 = vrot.slane %v3418, 5
        %v3421 = vor.u32 %v3417, %v3420
        %v3422 = vrot.slane %v3421, 4
        %v3424 = vshll.u32 %v3169, 16
        %v3426 = vrot.slane %v3424, 5
        %v3427 = vsel %vm370, %v3422, %v3426
        %v3428 = vshrl.u32 %v3169, 16
        %v3430 = vrot.slane %v3428, 4
        %v3431 = vor.u32 %v3430, %v3426
        %v3432 = vrot.slane %v3431, 4
        %v3434 = vshll.u32 %v3191, 16
        %v3436 = vrot.slane %v3434, 5
        %v3437 = vsel %vm370, %v3432, %v3436
        %v3439 = vshrl.u32 %v3170, 16
        %v3441 = vrot.slane %v3439, 4
        %v3442 = vshll.u32 %v3170, 16
        %v3444 = vrot.slane %v3442, 5
        %v3445 = vor.u32 %v3441, %v3444
        %v3446 = vrot.slane %v3445, 4
        %v3448 = vshll.u32 %v3171, 16
        %v3450 = vrot.slane %v3448, 5
        %v3451 = vsel %vm370, %v3446, %v3450
        %v3452 = vshrl.u32 %v3171, 16
        %v3454 = vrot.slane %v3452, 4
        %v3455 = vor.u32 %v3454, %v3450
        %v3456 = vrot.slane %v3455, 4
        %v3458 = vshll.u32 %v3192, 16
        %v3460 = vrot.slane %v3458, 5
        %v3461 = vsel %vm370, %v3456, %v3460
        %v3463 = vshrl.u32 %v3172, 16
        %v3465 = vrot.slane %v3463, 4
        %v3466 = vshll.u32 %v3172, 16
        %v3468 = vrot.slane %v3466, 5
        %v3469 = vor.u32 %v3465, %v3468
        %v3470 = vrot.slane %v3469, 4
        %v3472 = vshll.u32 %v3173, 16
        %v3474 = vrot.slane %v3472, 5
        %v3475 = vsel %vm370, %v3470, %v3474
        %v3476 = vshrl.u32 %v3173, 16
        %v3478 = vrot.slane %v3476, 4
        %v3479 = vor.u32 %v3478, %v3474
        %v3480 = vrot.slane %v3479, 4
        %v3482 = vshll.u32 %v3193, 16
        %v3484 = vrot.slane %v3482, 5
        %v3485 = vsel %vm370, %v3480, %v3484
        %v3487 = vshrl.u32 %v3174, 16
        %v3489 = vrot.slane %v3487, 4
        %v3490 = vshll.u32 %v3174, 16
        %v3492 = vrot.slane %v3490, 5
        %v3493 = vor.u32 %v3489, %v3492
        %v3494 = vrot.slane %v3493, 4
        %v3496 = vshll.u32 %v3175, 16
        %v3498 = vrot.slane %v3496, 5
        %v3499 = vsel %vm370, %v3494, %v3498
        %v3500 = vshrl.u32 %v3175, 16
        %v3502 = vrot.slane %v3500, 4
        %v3503 = vor.u32 %v3502, %v3498
        %v3504 = vrot.slane %v3503, 4
        %v3506 = vshll.u32 %v3194, 16
        %v3508 = vrot.slane %v3506, 5
        %v3509 = vsel %vm370, %v3504, %v3508
        %v3511 = vshrl.u32 %v3176, 16
        %v3513 = vrot.slane %v3511, 4
        %v3514 = vshll.u32 %v3176, 16
        %v3516 = vrot.slane %v3514, 5
        %v3517 = vor.u32 %v3513, %v3516
        %v3518 = vrot.slane %v3517, 4
        %v3520 = vshll.u32 %v3177, 16
        %v3522 = vrot.slane %v3520, 5
        %v3523 = vsel %vm370, %v3518, %v3522
        %v3524 = vshrl.u32 %v3177, 16
        %v3526 = vrot.slane %v3524, 4
        %v3527 = vor.u32 %v3526, %v3522
        %v3528 = vrot.slane %v3527, 4
        %v3530 = vshll.u32 %v3195, 16
        %v3532 = vrot.slane %v3530, 5
        %v3533 = vsel %vm370, %v3528, %v3532
        %v3535 = vshrl.u32 %v3178, 16
        %v3537 = vrot.slane %v3535, 4
        %v3538 = vshll.u32 %v3178, 16
        %v3540 = vrot.slane %v3538, 5
        %v3541 = vor.u32 %v3537, %v3540
        %v3542 = vrot.slane %v3541, 4
        %v3544 = vshll.u32 %v3179, 16
        %v3546 = vrot.slane %v3544, 5
        %v3547 = vsel %vm370, %v3542, %v3546
        %v3548 = vshrl.u32 %v3179, 16
        %v3550 = vrot.slane %v3548, 4
        %v3551 = vor.u32 %v3550, %v3546
        %v3552 = vrot.slane %v3551, 4
        %v3554 = vshll.u32 %v3196, 16
        %v3556 = vrot.slane %v3554, 5
        %v3557 = vsel %vm370, %v3552, %v3556
        %v3559 = vshrl.u32 %v3180, 16
        %v3561 = vrot.slane %v3559, 4
        %v3562 = vshll.u32 %v3180, 16
        %v3564 = vrot.slane %v3562, 5
        %v3565 = vor.u32 %v3561, %v3564
        %v3566 = vrot.slane %v3565, 4
        %v3568 = vshll.u32 %v3181, 16
        %v3570 = vrot.slane %v3568, 5
        %v3571 = vsel %vm370, %v3566, %v3570
        %v3572 = vshrl.u32 %v3181, 16
        %v3574 = vrot.slane %v3572, 4
        %v3575 = vor.u32 %v3574, %v3570
        %v3576 = vrot.slane %v3575, 4
        %v3578 = vshll.u32 %v3197, 16
        %v3580 = vrot.slane %v3578, 5
        %v3581 = vsel %vm370, %v3576, %v3580
        %v3582 = vld [vmem:[#allocation2] sm:$0xe]
        %v3583 = vld [vmem:[#allocation2 + $0xc] sm:$0xe]
        %v3584 = vld [vmem:[#allocation2 + $0x18] sm:$0xe]
        %v3585 = vld [vmem:[#allocation2 + $0x24] sm:$0xe]
        %v3586 = vld [vmem:[#allocation2 + $0x30] sm:$0xe]
        %v3587 = vld [vmem:[#allocation2 + $0x3c] sm:$0xe]
        %v3588 = vld [vmem:[#allocation2 + $0x48] sm:$0xe]
        %v3589 = vld [vmem:[#allocation2 + $0x54] sm:$0xe]
        %v3590 = vld [vmem:[#allocation2 + $0x60] sm:$0xe]
        %v3591 = vld [vmem:[#allocation2 + $0x6c] sm:$0xe]
        %v3592 = vld [vmem:[#allocation2 + $0x78] sm:$0xe]
        %v3593 = vld [vmem:[#allocation2 + $0x84] sm:$0xe]
        %v3594 = vld [vmem:[#allocation2 + $0x90] sm:$0xe]
        %v3595 = vld [vmem:[#allocation2 + $0x9c] sm:$0xe]
        %v3596 = vld [vmem:[#allocation2 + $0xa8] sm:$0xe]
        %v3597 = vld [vmem:[#allocation2 + $0xb4] sm:$0xe]
        %v3646 = vrot.slane %v3582, 5
        %v3647 = vrot.slane %v3646, 4
        %v3648 = vrot.slane %v3151, 5
        %v3649 = vsel %vm858, %v3647, %v3648
        %v3650 = vrot.slane %v3648, 4
        %v3651 = vrot.slane %v3182, 5
        %v3652 = vsel %vm858, %v3650, %v3651
        %v3653 = vrot.slane %v3583, 5
        %v3654 = vrot.slane %v3653, 4
        %v3655 = vrot.slane %v3153, 5
        %v3656 = vsel %vm858, %v3654, %v3655
        %v3657 = vrot.slane %v3655, 4
        %v3658 = vrot.slane %v3183, 5
        %v3659 = vsel %vm858, %v3657, %v3658
        %v3660 = vrot.slane %v3584, 5
        %v3661 = vrot.slane %v3660, 4
        %v3662 = vrot.slane %v3155, 5
        %v3663 = vsel %vm858, %v3661, %v3662
        %v3664 = vrot.slane %v3662, 4
        %v3665 = vrot.slane %v3184, 5
        %v3666 = vsel %vm858, %v3664, %v3665
        %v3667 = vrot.slane %v3585, 5
        %v3668 = vrot.slane %v3667, 4
        %v3669 = vrot.slane %v3157, 5
        %v3670 = vsel %vm858, %v3668, %v3669
        %v3671 = vrot.slane %v3669, 4
        %v3672 = vrot.slane %v3185, 5
        %v3673 = vsel %vm858, %v3671, %v3672
        %v3674 = vrot.slane %v3586, 5
        %v3675 = vrot.slane %v3674, 4
        %v3676 = vrot.slane %v3159, 5
        %v3677 = vsel %vm858, %v3675, %v3676
        %v3678 = vrot.slane %v3676, 4
        %v3679 = vrot.slane %v3186, 5
        %v3680 = vsel %vm858, %v3678, %v3679
        %v3681 = vrot.slane %v3587, 5
        %v3682 = vrot.slane %v3681, 4
        %v3683 = vrot.slane %v3161, 5
        %v3684 = vsel %vm858, %v3682, %v3683
        %v3685 = vrot.slane %v3683, 4
        %v3686 = vrot.slane %v3187, 5
        %v3687 = vsel %vm858, %v3685, %v3686
        %v3688 = vrot.slane %v3588, 5
        %v3689 = vrot.slane %v3688, 4
        %v3690 = vrot.slane %v3163, 5
        %v3691 = vsel %vm858, %v3689, %v3690
        %v3692 = vrot.slane %v3690, 4
        %v3693 = vrot.slane %v3188, 5
        %v3694 = vsel %vm858, %v3692, %v3693
        %v3695 = vrot.slane %v3589, 5
        %v3696 = vrot.slane %v3695, 4
        %v3697 = vrot.slane %v3165, 5
        %v3698 = vsel %vm858, %v3696, %v3697
        %v3699 = vrot.slane %v3697, 4
        %v3700 = vrot.slane %v3189, 5
        %v3701 = vsel %vm858, %v3699, %v3700
        %v3702 = vrot.slane %v3590, 5
        %v3703 = vrot.slane %v3702, 4
        %v3704 = vrot.slane %v3167, 5
        %v3705 = vsel %vm858, %v3703, %v3704
        %v3706 = vrot.slane %v3704, 4
        %v3707 = vrot.slane %v3190, 5
        %v3708 = vsel %vm858, %v3706, %v3707
        %v3709 = vrot.slane %v3591, 5
        %v3710 = vrot.slane %v3709, 4
        %v3711 = vrot.slane %v3169, 5
        %v3712 = vsel %vm858, %v3710, %v3711
        %v3713 = vrot.slane %v3711, 4
        %v3714 = vrot.slane %v3191, 5
        %v3715 = vsel %vm858, %v3713, %v3714
        %v3716 = vrot.slane %v3592, 5
        %v3717 = vrot.slane %v3716, 4
        %v3718 = vrot.slane %v3171, 5
        %v3719 = vsel %vm858, %v3717, %v3718
        %v3720 = vrot.slane %v3718, 4
        %v3721 = vrot.slane %v3192, 5
        %v3722 = vsel %vm858, %v3720, %v3721
        %v3723 = vrot.slane %v3593, 5
        %v3724 = vrot.slane %v3723, 4
        %v3725 = vrot.slane %v3173, 5
        %v3726 = vsel %vm858, %v3724, %v3725
        %v3727 = vrot.slane %v3725, 4
        %v3728 = vrot.slane %v3193, 5
        %v3729 = vsel %vm858, %v3727, %v3728
        %v3730 = vrot.slane %v3594, 5
        %v3731 = vrot.slane %v3730, 4
        %v3732 = vrot.slane %v3175, 5
        %v3733 = vsel %vm858, %v3731, %v3732
        %v3734 = vrot.slane %v3732, 4
        %v3735 = vrot.slane %v3194, 5
        %v3736 = vsel %vm858, %v3734, %v3735
        %v3737 = vrot.slane %v3595, 5
        %v3738 = vrot.slane %v3737, 4
        %v3739 = vrot.slane %v3177, 5
        %v3740 = vsel %vm858, %v3738, %v3739
        %v3741 = vrot.slane %v3739, 4
        %v3742 = vrot.slane %v3195, 5
        %v3743 = vsel %vm858, %v3741, %v3742
        %v3744 = vrot.slane %v3596, 5
        %v3745 = vrot.slane %v3744, 4
        %v3746 = vrot.slane %v3179, 5
        %v3747 = vsel %vm858, %v3745, %v3746
        %v3748 = vrot.slane %v3746, 4
        %v3749 = vrot.slane %v3196, 5
        %v3750 = vsel %vm858, %v3748, %v3749
        %v3751 = vrot.slane %v3597, 5
        %v3752 = vrot.slane %v3751, 4
        %v3753 = vrot.slane %v3181, 5
        %v3754 = vsel %vm858, %v3752, %v3753
        %v3755 = vrot.slane %v3753, 4
        %v3756 = vrot.slane %v3197, 5
        %v3757 = vsel %vm858, %v3755, %v3756
        %v3758 = vld [vmem:[%s2402] sm:$0xf]
        %v3759 = vld [vmem:[%s2402 + $0x4] sm:$0xf]
        %v3760 = vld [vmem:[%s2402 + $0xc] sm:$0xf]
        %v3761 = vld [vmem:[%s2402 + $0x10] sm:$0xf]
        %v3762 = vld [vmem:[%s2402 + $0x18] sm:$0xf]
        %v3763 = vld [vmem:[%s2402 + $0x1c] sm:$0xf]
        %v3764 = vld [vmem:[%s2402 + $0x24] sm:$0xf]
        %v3765 = vld [vmem:[%s2402 + $0x28] sm:$0xf]
        %v3766 = vld [vmem:[%s2402 + $0x30] sm:$0xf]
        %v3767 = vld [vmem:[%s2402 + $0x34] sm:$0xf]
        %v3768 = vld [vmem:[%s2402 + $0x3c] sm:$0xf]
        %v3769 = vld [vmem:[%s2402 + $0x40] sm:$0xf]
        %v3770 = vld [vmem:[%s2402 + $0x48] sm:$0xf]
        %v3771 = vld [vmem:[%s2402 + $0x4c] sm:$0xf]
        %v3772 = vld [vmem:[%s2402 + $0x54] sm:$0xf]
        %v3773 = vld [vmem:[%s2402 + $0x58] sm:$0xf]
        %v3774 = vld [vmem:[%s2402 + $0x60] sm:$0xf]
        %v3775 = vld [vmem:[%s2402 + $0x64] sm:$0xf]
        %v3776 = vld [vmem:[%s2402 + $0x6c] sm:$0xf]
        %v3777 = vld [vmem:[%s2402 + $0x70] sm:$0xf]
        %v3778 = vld [vmem:[%s2402 + $0x78] sm:$0xf]
        %v3779 = vld [vmem:[%s2402 + $0x7c] sm:$0xf]
        %v3780 = vld [vmem:[%s2402 + $0x84] sm:$0xf]
        %v3781 = vld [vmem:[%s2402 + $0x88] sm:$0xf]
        %v3782 = vld [vmem:[%s2402 + $0x90] sm:$0xf]
        %v3783 = vld [vmem:[%s2402 + $0x94] sm:$0xf]
        %v3784 = vld [vmem:[%s2402 + $0x9c] sm:$0xf]
        %v3785 = vld [vmem:[%s2402 + $0xa0] sm:$0xf]
        %v3786 = vld [vmem:[%s2402 + $0xa8] sm:$0xf]
        %v3787 = vld [vmem:[%s2402 + $0xac] sm:$0xf]
        %v3788 = vld [vmem:[%s2402 + $0xb4] sm:$0xf]
        %v3789 = vld [vmem:[%s2402 + $0xb8] sm:$0xf]
        %v3790 = vld [vmem:[%s2402 + $0x8] sm:$0x1]
        %v3791 = vld [vmem:[%s2402 + $0x14] sm:$0x1]
        %v3792 = vld [vmem:[%s2402 + $0x20] sm:$0x1]
        %v3793 = vld [vmem:[%s2402 + $0x2c] sm:$0x1]
        %v3794 = vld [vmem:[%s2402 + $0x38] sm:$0x1]
        %v3795 = vld [vmem:[%s2402 + $0x44] sm:$0x1]
        %v3796 = vld [vmem:[%s2402 + $0x50] sm:$0x1]
        %v3797 = vld [vmem:[%s2402 + $0x5c] sm:$0x1]
        %v3798 = vld [vmem:[%s2402 + $0x68] sm:$0x1]
        %v3799 = vld [vmem:[%s2402 + $0x74] sm:$0x1]
        %v3800 = vld [vmem:[%s2402 + $0x80] sm:$0x1]
        %v3801 = vld [vmem:[%s2402 + $0x8c] sm:$0x1]
        %v3802 = vld [vmem:[%s2402 + $0x98] sm:$0x1]
        %v3803 = vld [vmem:[%s2402 + $0xa4] sm:$0x1]
        %v3804 = vld [vmem:[%s2402 + $0xb0] sm:$0x1]
        %v3805 = vld [vmem:[%s2402 + $0xbc] sm:$0x1]
        %v3807 = vshrl.u32 %v3758, 16
        %v3809 = vrot.slane %v3807, 4
        %v3810 = vshll.u32 %v3758, 16
        %v3812 = vrot.slane %v3810, 5
        %v3813 = vor.u32 %v3809, %v3812
        %v3814 = vrot.slane %v3813, 4
        %v3816 = vshll.u32 %v3759, 16
        %v3818 = vrot.slane %v3816, 5
        %v3819 = vsel %vm370, %v3814, %v3818
        %v3820 = vshrl.u32 %v3759, 16
        %v3822 = vrot.slane %v3820, 4
        %v3823 = vor.u32 %v3822, %v3818
        %v3824 = vrot.slane %v3823, 4
        %v3826 = vshll.u32 %v3790, 16
        %v3828 = vrot.slane %v3826, 5
        %v3829 = vsel %vm370, %v3824, %v3828
        %v3831 = vshrl.u32 %v3760, 16
        %v3833 = vrot.slane %v3831, 4
        %v3834 = vshll.u32 %v3760, 16
        %v3836 = vrot.slane %v3834, 5
        %v3837 = vor.u32 %v3833, %v3836
        %v3838 = vrot.slane %v3837, 4
        %v3840 = vshll.u32 %v3761, 16
        %v3842 = vrot.slane %v3840, 5
        %v3843 = vsel %vm370, %v3838, %v3842
        %v3844 = vshrl.u32 %v3761, 16
        %v3846 = vrot.slane %v3844, 4
        %v3847 = vor.u32 %v3846, %v3842
        %v3848 = vrot.slane %v3847, 4
        %v3850 = vshll.u32 %v3791, 16
        %v3852 = vrot.slane %v3850, 5
        %v3853 = vsel %vm370, %v3848, %v3852
        %v3855 = vshrl.u32 %v3762, 16
        %v3857 = vrot.slane %v3855, 4
        %v3858 = vshll.u32 %v3762, 16
        %v3860 = vrot.slane %v3858, 5
        %v3861 = vor.u32 %v3857, %v3860
        %v3862 = vrot.slane %v3861, 4
        %v3864 = vshll.u32 %v3763, 16
        %v3866 = vrot.slane %v3864, 5
        %v3867 = vsel %vm370, %v3862, %v3866
        %v3868 = vshrl.u32 %v3763, 16
        %v3870 = vrot.slane %v3868, 4
        %v3871 = vor.u32 %v3870, %v3866
        %v3872 = vrot.slane %v3871, 4
        %v3874 = vshll.u32 %v3792, 16
        %v3876 = vrot.slane %v3874, 5
        %v3877 = vsel %vm370, %v3872, %v3876
        %v3879 = vshrl.u32 %v3764, 16
        %v3881 = vrot.slane %v3879, 4
        %v3882 = vshll.u32 %v3764, 16
        %v3884 = vrot.slane %v3882, 5
        %v3885 = vor.u32 %v3881, %v3884
        %v3886 = vrot.slane %v3885, 4
        %v3888 = vshll.u32 %v3765, 16
        %v3890 = vrot.slane %v3888, 5
        %v3891 = vsel %vm370, %v3886, %v3890
        %v3892 = vshrl.u32 %v3765, 16
        %v3894 = vrot.slane %v3892, 4
        %v3895 = vor.u32 %v3894, %v3890
        %v3896 = vrot.slane %v3895, 4
        %v3898 = vshll.u32 %v3793, 16
        %v3900 = vrot.slane %v3898, 5
        %v3901 = vsel %vm370, %v3896, %v3900
        %v3903 = vshrl.u32 %v3766, 16
        %v3905 = vrot.slane %v3903, 4
        %v3906 = vshll.u32 %v3766, 16
        %v3908 = vrot.slane %v3906, 5
        %v3909 = vor.u32 %v3905, %v3908
        %v3910 = vrot.slane %v3909, 4
        %v3912 = vshll.u32 %v3767, 16
        %v3914 = vrot.slane %v3912, 5
        %v3915 = vsel %vm370, %v3910, %v3914
        %v3916 = vshrl.u32 %v3767, 16
        %v3918 = vrot.slane %v3916, 4
        %v3919 = vor.u32 %v3918, %v3914
        %v3920 = vrot.slane %v3919, 4
        %v3922 = vshll.u32 %v3794, 16
        %v3924 = vrot.slane %v3922, 5
        %v3925 = vsel %vm370, %v3920, %v3924
        %v3927 = vshrl.u32 %v3768, 16
        %v3929 = vrot.slane %v3927, 4
        %v3930 = vshll.u32 %v3768, 16
        %v3932 = vrot.slane %v3930, 5
        %v3933 = vor.u32 %v3929, %v3932
        %v3934 = vrot.slane %v3933, 4
        %v3936 = vshll.u32 %v3769, 16
        %v3938 = vrot.slane %v3936, 5
        %v3939 = vsel %vm370, %v3934, %v3938
        %v3940 = vshrl.u32 %v3769, 16
        %v3942 = vrot.slane %v3940, 4
        %v3943 = vor.u32 %v3942, %v3938
        %v3944 = vrot.slane %v3943, 4
        %v3946 = vshll.u32 %v3795, 16
        %v3948 = vrot.slane %v3946, 5
        %v3949 = vsel %vm370, %v3944, %v3948
        %v3951 = vshrl.u32 %v3770, 16
        %v3953 = vrot.slane %v3951, 4
        %v3954 = vshll.u32 %v3770, 16
        %v3956 = vrot.slane %v3954, 5
        %v3957 = vor.u32 %v3953, %v3956
        %v3958 = vrot.slane %v3957, 4
        %v3960 = vshll.u32 %v3771, 16
        %v3962 = vrot.slane %v3960, 5
        %v3963 = vsel %vm370, %v3958, %v3962
        %v3964 = vshrl.u32 %v3771, 16
        %v3966 = vrot.slane %v3964, 4
        %v3967 = vor.u32 %v3966, %v3962
        %v3968 = vrot.slane %v3967, 4
        %v3970 = vshll.u32 %v3796, 16
        %v3972 = vrot.slane %v3970, 5
        %v3973 = vsel %vm370, %v3968, %v3972
        %v3975 = vshrl.u32 %v3772, 16
        %v3977 = vrot.slane %v3975, 4
        %v3978 = vshll.u32 %v3772, 16
        %v3980 = vrot.slane %v3978, 5
        %v3981 = vor.u32 %v3977, %v3980
        %v3982 = vrot.slane %v3981, 4
        %v3984 = vshll.u32 %v3773, 16
        %v3986 = vrot.slane %v3984, 5
        %v3987 = vsel %vm370, %v3982, %v3986
        %v3988 = vshrl.u32 %v3773, 16
        %v3990 = vrot.slane %v3988, 4
        %v3991 = vor.u32 %v3990, %v3986
        %v3992 = vrot.slane %v3991, 4
        %v3994 = vshll.u32 %v3797, 16
        %v3996 = vrot.slane %v3994, 5
        %v3997 = vsel %vm370, %v3992, %v3996
        %v3999 = vshrl.u32 %v3774, 16
        %v4001 = vrot.slane %v3999, 4
        %v4002 = vshll.u32 %v3774, 16
        %v4004 = vrot.slane %v4002, 5
        %v4005 = vor.u32 %v4001, %v4004
        %v4006 = vrot.slane %v4005, 4
        %v4008 = vshll.u32 %v3775, 16
        %v4010 = vrot.slane %v4008, 5
        %v4011 = vsel %vm370, %v4006, %v4010
        %v4012 = vshrl.u32 %v3775, 16
        %v4014 = vrot.slane %v4012, 4
        %v4015 = vor.u32 %v4014, %v4010
        %v4016 = vrot.slane %v4015, 4
        %v4018 = vshll.u32 %v3798, 16
        %v4020 = vrot.slane %v4018, 5
        %v4021 = vsel %vm370, %v4016, %v4020
        %v4023 = vshrl.u32 %v3776, 16
        %v4025 = vrot.slane %v4023, 4
        %v4026 = vshll.u32 %v3776, 16
        %v4028 = vrot.slane %v4026, 5
        %v4029 = vor.u32 %v4025, %v4028
        %v4030 = vrot.slane %v4029, 4
        %v4032 = vshll.u32 %v3777, 16
        %v4034 = vrot.slane %v4032, 5
        %v4035 = vsel %vm370, %v4030, %v4034
        %v4036 = vshrl.u32 %v3777, 16
        %v4038 = vrot.slane %v4036, 4
        %v4039 = vor.u32 %v4038, %v4034
        %v4040 = vrot.slane %v4039, 4
        %v4042 = vshll.u32 %v3799, 16
        %v4044 = vrot.slane %v4042, 5
        %v4045 = vsel %vm370, %v4040, %v4044
        %v4047 = vshrl.u32 %v3778, 16
        %v4049 = vrot.slane %v4047, 4
        %v4050 = vshll.u32 %v3778, 16
        %v4052 = vrot.slane %v4050, 5
        %v4053 = vor.u32 %v4049, %v4052
        %v4054 = vrot.slane %v4053, 4
        %v4056 = vshll.u32 %v3779, 16
        %v4058 = vrot.slane %v4056, 5
        %v4059 = vsel %vm370, %v4054, %v4058
        %v4060 = vshrl.u32 %v3779, 16
        %v4062 = vrot.slane %v4060, 4
        %v4063 = vor.u32 %v4062, %v4058
        %v4064 = vrot.slane %v4063, 4
        %v4066 = vshll.u32 %v3800, 16
        %v4068 = vrot.slane %v4066, 5
        %v4069 = vsel %vm370, %v4064, %v4068
        %v4071 = vshrl.u32 %v3780, 16
        %v4073 = vrot.slane %v4071, 4
        %v4074 = vshll.u32 %v3780, 16
        %v4076 = vrot.slane %v4074, 5
        %v4077 = vor.u32 %v4073, %v4076
        %v4078 = vrot.slane %v4077, 4
        %v4080 = vshll.u32 %v3781, 16
        %v4082 = vrot.slane %v4080, 5
        %v4083 = vsel %vm370, %v4078, %v4082
        %v4084 = vshrl.u32 %v3781, 16
        %v4086 = vrot.slane %v4084, 4
        %v4087 = vor.u32 %v4086, %v4082
        %v4088 = vrot.slane %v4087, 4
        %v4090 = vshll.u32 %v3801, 16
        %v4092 = vrot.slane %v4090, 5
        %v4093 = vsel %vm370, %v4088, %v4092
        %v4095 = vshrl.u32 %v3782, 16
        %v4097 = vrot.slane %v4095, 4
        %v4098 = vshll.u32 %v3782, 16
        %v4100 = vrot.slane %v4098, 5
        %v4101 = vor.u32 %v4097, %v4100
        %v4102 = vrot.slane %v4101, 4
        %v4104 = vshll.u32 %v3783, 16
        %v4106 = vrot.slane %v4104, 5
        %v4107 = vsel %vm370, %v4102, %v4106
        %v4108 = vshrl.u32 %v3783, 16
        %v4110 = vrot.slane %v4108, 4
        %v4111 = vor.u32 %v4110, %v4106
        %v4112 = vrot.slane %v4111, 4
        %v4114 = vshll.u32 %v3802, 16
        %v4116 = vrot.slane %v4114, 5
        %v4117 = vsel %vm370, %v4112, %v4116
        %v4119 = vshrl.u32 %v3784, 16
        %v4121 = vrot.slane %v4119, 4
        %v4122 = vshll.u32 %v3784, 16
        %v4124 = vrot.slane %v4122, 5
        %v4125 = vor.u32 %v4121, %v4124
        %v4126 = vrot.slane %v4125, 4
        %v4128 = vshll.u32 %v3785, 16
        %v4130 = vrot.slane %v4128, 5
        %v4131 = vsel %vm370, %v4126, %v4130
        %v4132 = vshrl.u32 %v3785, 16
        %v4134 = vrot.slane %v4132, 4
        %v4135 = vor.u32 %v4134, %v4130
        %v4136 = vrot.slane %v4135, 4
        %v4138 = vshll.u32 %v3803, 16
        %v4140 = vrot.slane %v4138, 5
        %v4141 = vsel %vm370, %v4136, %v4140
        %v4143 = vshrl.u32 %v3786, 16
        %v4145 = vrot.slane %v4143, 4
        %v4146 = vshll.u32 %v3786, 16
        %v4148 = vrot.slane %v4146, 5
        %v4149 = vor.u32 %v4145, %v4148
        %v4150 = vrot.slane %v4149, 4
        %v4152 = vshll.u32 %v3787, 16
        %v4154 = vrot.slane %v4152, 5
        %v4155 = vsel %vm370, %v4150, %v4154
        %v4156 = vshrl.u32 %v3787, 16
        %v4158 = vrot.slane %v4156, 4
        %v4159 = vor.u32 %v4158, %v4154
        %v4160 = vrot.slane %v4159, 4
        %v4162 = vshll.u32 %v3804, 16
        %v4164 = vrot.slane %v4162, 5
        %v4165 = vsel %vm370, %v4160, %v4164
        %v4167 = vshrl.u32 %v3788, 16
        %v4169 = vrot.slane %v4167, 4
        %v4170 = vshll.u32 %v3788, 16
        %v4172 = vrot.slane %v4170, 5
        %v4173 = vor.u32 %v4169, %v4172
        %v4174 = vrot.slane %v4173, 4
        %v4176 = vshll.u32 %v3789, 16
        %v4178 = vrot.slane %v4176, 5
        %v4179 = vsel %vm370, %v4174, %v4178
        %v4180 = vshrl.u32 %v3789, 16
        %v4182 = vrot.slane %v4180, 4
        %v4183 = vor.u32 %v4182, %v4178
        %v4184 = vrot.slane %v4183, 4
        %v4186 = vshll.u32 %v3805, 16
        %v4188 = vrot.slane %v4186, 5
        %v4189 = vsel %vm370, %v4184, %v4188
        %v4190 = vld [vmem:[%s2402] sm:$0xe]
        %v4191 = vld [vmem:[%s2402 + $0xc] sm:$0xe]
        %v4192 = vld [vmem:[%s2402 + $0x18] sm:$0xe]
        %v4193 = vld [vmem:[%s2402 + $0x24] sm:$0xe]
        %v4194 = vld [vmem:[%s2402 + $0x30] sm:$0xe]
        %v4195 = vld [vmem:[%s2402 + $0x3c] sm:$0xe]
        %v4196 = vld [vmem:[%s2402 + $0x48] sm:$0xe]
        %v4197 = vld [vmem:[%s2402 + $0x54] sm:$0xe]
        %v4198 = vld [vmem:[%s2402 + $0x60] sm:$0xe]
        %v4199 = vld [vmem:[%s2402 + $0x6c] sm:$0xe]
        %v4200 = vld [vmem:[%s2402 + $0x78] sm:$0xe]
        %v4201 = vld [vmem:[%s2402 + $0x84] sm:$0xe]
        %v4202 = vld [vmem:[%s2402 + $0x90] sm:$0xe]
        %v4203 = vld [vmem:[%s2402 + $0x9c] sm:$0xe]
        %v4204 = vld [vmem:[%s2402 + $0xa8] sm:$0xe]
        %v4205 = vld [vmem:[%s2402 + $0xb4] sm:$0xe]
        %v4254 = vrot.slane %v4190, 5
        %v4255 = vrot.slane %v4254, 4
        %v4256 = vrot.slane %v3759, 5
        %v4257 = vsel %vm858, %v4255, %v4256
        %v4258 = vrot.slane %v4256, 4
        %v4259 = vrot.slane %v3790, 5
        %v4260 = vsel %vm858, %v4258, %v4259
        %v4261 = vrot.slane %v4191, 5
        %v4262 = vrot.slane %v4261, 4
        %v4263 = vrot.slane %v3761, 5
        %v4264 = vsel %vm858, %v4262, %v4263
        %v4265 = vrot.slane %v4263, 4
        %v4266 = vrot.slane %v3791, 5
        %v4267 = vsel %vm858, %v4265, %v4266
        %v4268 = vrot.slane %v4192, 5
        %v4269 = vrot.slane %v4268, 4
        %v4270 = vrot.slane %v3763, 5
        %v4271 = vsel %vm858, %v4269, %v4270
        %v4272 = vrot.slane %v4270, 4
        %v4273 = vrot.slane %v3792, 5
        %v4274 = vsel %vm858, %v4272, %v4273
        %v4275 = vrot.slane %v4193, 5
        %v4276 = vrot.slane %v4275, 4
        %v4277 = vrot.slane %v3765, 5
        %v4278 = vsel %vm858, %v4276, %v4277
        %v4279 = vrot.slane %v4277, 4
        %v4280 = vrot.slane %v3793, 5
        %v4281 = vsel %vm858, %v4279, %v4280
        %v4282 = vrot.slane %v4194, 5
        %v4283 = vrot.slane %v4282, 4
        %v4284 = vrot.slane %v3767, 5
        %v4285 = vsel %vm858, %v4283, %v4284
        %v4286 = vrot.slane %v4284, 4
        %v4287 = vrot.slane %v3794, 5
        %v4288 = vsel %vm858, %v4286, %v4287
        %v4289 = vrot.slane %v4195, 5
        %v4290 = vrot.slane %v4289, 4
        %v4291 = vrot.slane %v3769, 5
        %v4292 = vsel %vm858, %v4290, %v4291
        %v4293 = vrot.slane %v4291, 4
        %v4294 = vrot.slane %v3795, 5
        %v4295 = vsel %vm858, %v4293, %v4294
        %v4296 = vrot.slane %v4196, 5
        %v4297 = vrot.slane %v4296, 4
        %v4298 = vrot.slane %v3771, 5
        %v4299 = vsel %vm858, %v4297, %v4298
        %v4300 = vrot.slane %v4298, 4
        %v4301 = vrot.slane %v3796, 5
        %v4302 = vsel %vm858, %v4300, %v4301
        %v4303 = vrot.slane %v4197, 5
        %v4304 = vrot.slane %v4303, 4
        %v4305 = vrot.slane %v3773, 5
        %v4306 = vsel %vm858, %v4304, %v4305
        %v4307 = vrot.slane %v4305, 4
        %v4308 = vrot.slane %v3797, 5
        %v4309 = vsel %vm858, %v4307, %v4308
        %v4310 = vrot.slane %v4198, 5
        %v4311 = vrot.slane %v4310, 4
        %v4312 = vrot.slane %v3775, 5
        %v4313 = vsel %vm858, %v4311, %v4312
        %v4314 = vrot.slane %v4312, 4
        %v4315 = vrot.slane %v3798, 5
        %v4316 = vsel %vm858, %v4314, %v4315
        %v4317 = vrot.slane %v4199, 5
        %v4318 = vrot.slane %v4317, 4
        %v4319 = vrot.slane %v3777, 5
        %v4320 = vsel %vm858, %v4318, %v4319
        %v4321 = vrot.slane %v4319, 4
        %v4322 = vrot.slane %v3799, 5
        %v4323 = vsel %vm858, %v4321, %v4322
        %v4324 = vrot.slane %v4200, 5
        %v4325 = vrot.slane %v4324, 4
        %v4326 = vrot.slane %v3779, 5
        %v4327 = vsel %vm858, %v4325, %v4326
        %v4328 = vrot.slane %v4326, 4
        %v4329 = vrot.slane %v3800, 5
        %v4330 = vsel %vm858, %v4328, %v4329
        %v4331 = vrot.slane %v4201, 5
        %v4332 = vrot.slane %v4331, 4
        %v4333 = vrot.slane %v3781, 5
        %v4334 = vsel %vm858, %v4332, %v4333
        %v4335 = vrot.slane %v4333, 4
        %v4336 = vrot.slane %v3801, 5
        %v4337 = vsel %vm858, %v4335, %v4336
        %v4338 = vrot.slane %v4202, 5
        %v4339 = vrot.slane %v4338, 4
        %v4340 = vrot.slane %v3783, 5
        %v4341 = vsel %vm858, %v4339, %v4340
        %v4342 = vrot.slane %v4340, 4
        %v4343 = vrot.slane %v3802, 5
        %v4344 = vsel %vm858, %v4342, %v4343
        %v4345 = vrot.slane %v4203, 5
        %v4346 = vrot.slane %v4345, 4
        %v4347 = vrot.slane %v3785, 5
        %v4348 = vsel %vm858, %v4346, %v4347
        %v4349 = vrot.slane %v4347, 4
        %v4350 = vrot.slane %v3803, 5
        %v4351 = vsel %vm858, %v4349, %v4350
        %v4352 = vrot.slane %v4204, 5
        %v4353 = vrot.slane %v4352, 4
        %v4354 = vrot.slane %v3787, 5
        %v4355 = vsel %vm858, %v4353, %v4354
        %v4356 = vrot.slane %v4354, 4
        %v4357 = vrot.slane %v3804, 5
        %v4358 = vsel %vm858, %v4356, %v4357
        %v4359 = vrot.slane %v4205, 5
        %v4360 = vrot.slane %v4359, 4
        %v4361 = vrot.slane %v3789, 5
        %v4362 = vsel %vm858, %v4360, %v4361
        %v4363 = vrot.slane %v4361, 4
        %v4364 = vrot.slane %v3805, 5
        %v4365 = vsel %vm858, %v4363, %v4364
        %s4366 = scalar_lea.vmem [#allocation2], 24
        %v4367 = vld [vmem:[%s4366] sm:$0xf]
        %v4368 = vld [vmem:[%s4366 + $0x4] sm:$0xf]
        %v4369 = vld [vmem:[%s4366 + $0xc] sm:$0xf]
        %v4370 = vld [vmem:[%s4366 + $0x10] sm:$0xf]
        %v4371 = vld [vmem:[%s4366 + $0x18] sm:$0xf]
        %v4372 = vld [vmem:[%s4366 + $0x1c] sm:$0xf]
        %v4373 = vld [vmem:[%s4366 + $0x24] sm:$0xf]
        %v4374 = vld [vmem:[%s4366 + $0x28] sm:$0xf]
        %v4375 = vld [vmem:[%s4366 + $0x30] sm:$0xf]
        %v4376 = vld [vmem:[%s4366 + $0x34] sm:$0xf]
        %v4377 = vld [vmem:[%s4366 + $0x3c] sm:$0xf]
        %v4378 = vld [vmem:[%s4366 + $0x40] sm:$0xf]
        %v4379 = vld [vmem:[%s4366 + $0x48] sm:$0xf]
        %v4380 = vld [vmem:[%s4366 + $0x4c] sm:$0xf]
        %v4381 = vld [vmem:[%s4366 + $0x54] sm:$0xf]
        %v4382 = vld [vmem:[%s4366 + $0x58] sm:$0xf]
        %v4383 = vld [vmem:[%s4366 + $0x60] sm:$0xf]
        %v4384 = vld [vmem:[%s4366 + $0x64] sm:$0xf]
        %v4385 = vld [vmem:[%s4366 + $0x6c] sm:$0xf]
        %v4386 = vld [vmem:[%s4366 + $0x70] sm:$0xf]
        %v4387 = vld [vmem:[%s4366 + $0x78] sm:$0xf]
        %v4388 = vld [vmem:[%s4366 + $0x7c] sm:$0xf]
        %v4389 = vld [vmem:[%s4366 + $0x84] sm:$0xf]
        %v4390 = vld [vmem:[%s4366 + $0x88] sm:$0xf]
        %v4391 = vld [vmem:[%s4366 + $0x90] sm:$0xf]
        %v4392 = vld [vmem:[%s4366 + $0x94] sm:$0xf]
        %v4393 = vld [vmem:[%s4366 + $0x9c] sm:$0xf]
        %v4394 = vld [vmem:[%s4366 + $0xa0] sm:$0xf]
        %v4395 = vld [vmem:[%s4366 + $0xa8] sm:$0xf]
        %v4396 = vld [vmem:[%s4366 + $0xac] sm:$0xf]
        %v4397 = vld [vmem:[%s4366 + $0xb4] sm:$0xf]
        %v4398 = vld [vmem:[%s4366 + $0xb8] sm:$0xf]
        %v4399 = vld [vmem:[%s4366 + $0x8] sm:$0x1]
        %v4400 = vld [vmem:[%s4366 + $0x14] sm:$0x1]
        %v4401 = vld [vmem:[%s4366 + $0x20] sm:$0x1]
        %v4402 = vld [vmem:[%s4366 + $0x2c] sm:$0x1]
        %v4403 = vld [vmem:[%s4366 + $0x38] sm:$0x1]
        %v4404 = vld [vmem:[%s4366 + $0x44] sm:$0x1]
        %v4405 = vld [vmem:[%s4366 + $0x50] sm:$0x1]
        %v4406 = vld [vmem:[%s4366 + $0x5c] sm:$0x1]
        %v4407 = vld [vmem:[%s4366 + $0x68] sm:$0x1]
        %v4408 = vld [vmem:[%s4366 + $0x74] sm:$0x1]
        %v4409 = vld [vmem:[%s4366 + $0x80] sm:$0x1]
        %v4410 = vld [vmem:[%s4366 + $0x8c] sm:$0x1]
        %v4411 = vld [vmem:[%s4366 + $0x98] sm:$0x1]
        %v4412 = vld [vmem:[%s4366 + $0xa4] sm:$0x1]
        %v4413 = vld [vmem:[%s4366 + $0xb0] sm:$0x1]
        %v4414 = vld [vmem:[%s4366 + $0xbc] sm:$0x1]
        %v4416 = vshrl.u32 %v4367, 16
        %v4418 = vrot.slane %v4416, 4
        %v4419 = vshll.u32 %v4367, 16
        %v4421 = vrot.slane %v4419, 5
        %v4422 = vor.u32 %v4418, %v4421
        %v4423 = vrot.slane %v4422, 4
        %v4425 = vshll.u32 %v4368, 16
        %v4427 = vrot.slane %v4425, 5
        %v4428 = vsel %vm370, %v4423, %v4427
        %v4429 = vshrl.u32 %v4368, 16
        %v4431 = vrot.slane %v4429, 4
        %v4432 = vor.u32 %v4431, %v4427
        %v4433 = vrot.slane %v4432, 4
        %v4435 = vshll.u32 %v4399, 16
        %v4437 = vrot.slane %v4435, 5
        %v4438 = vsel %vm370, %v4433, %v4437
        %v4440 = vshrl.u32 %v4369, 16
        %v4442 = vrot.slane %v4440, 4
        %v4443 = vshll.u32 %v4369, 16
        %v4445 = vrot.slane %v4443, 5
        %v4446 = vor.u32 %v4442, %v4445
        %v4447 = vrot.slane %v4446, 4
        %v4449 = vshll.u32 %v4370, 16
        %v4451 = vrot.slane %v4449, 5
        %v4452 = vsel %vm370, %v4447, %v4451
        %v4453 = vshrl.u32 %v4370, 16
        %v4455 = vrot.slane %v4453, 4
        %v4456 = vor.u32 %v4455, %v4451
        %v4457 = vrot.slane %v4456, 4
        %v4459 = vshll.u32 %v4400, 16
        %v4461 = vrot.slane %v4459, 5
        %v4462 = vsel %vm370, %v4457, %v4461
        %v4464 = vshrl.u32 %v4371, 16
        %v4466 = vrot.slane %v4464, 4
        %v4467 = vshll.u32 %v4371, 16
        %v4469 = vrot.slane %v4467, 5
        %v4470 = vor.u32 %v4466, %v4469
        %v4471 = vrot.slane %v4470, 4
        %v4473 = vshll.u32 %v4372, 16
        %v4475 = vrot.slane %v4473, 5
        %v4476 = vsel %vm370, %v4471, %v4475
        %v4477 = vshrl.u32 %v4372, 16
        %v4479 = vrot.slane %v4477, 4
        %v4480 = vor.u32 %v4479, %v4475
        %v4481 = vrot.slane %v4480, 4
        %v4483 = vshll.u32 %v4401, 16
        %v4485 = vrot.slane %v4483, 5
        %v4486 = vsel %vm370, %v4481, %v4485
        %v4488 = vshrl.u32 %v4373, 16
        %v4490 = vrot.slane %v4488, 4
        %v4491 = vshll.u32 %v4373, 16
        %v4493 = vrot.slane %v4491, 5
        %v4494 = vor.u32 %v4490, %v4493
        %v4495 = vrot.slane %v4494, 4
        %v4497 = vshll.u32 %v4374, 16
        %v4499 = vrot.slane %v4497, 5
        %v4500 = vsel %vm370, %v4495, %v4499
        %v4501 = vshrl.u32 %v4374, 16
        %v4503 = vrot.slane %v4501, 4
        %v4504 = vor.u32 %v4503, %v4499
        %v4505 = vrot.slane %v4504, 4
        %v4507 = vshll.u32 %v4402, 16
        %v4509 = vrot.slane %v4507, 5
        %v4510 = vsel %vm370, %v4505, %v4509
        %v4512 = vshrl.u32 %v4375, 16
        %v4514 = vrot.slane %v4512, 4
        %v4515 = vshll.u32 %v4375, 16
        %v4517 = vrot.slane %v4515, 5
        %v4518 = vor.u32 %v4514, %v4517
        %v4519 = vrot.slane %v4518, 4
        %v4521 = vshll.u32 %v4376, 16
        %v4523 = vrot.slane %v4521, 5
        %v4524 = vsel %vm370, %v4519, %v4523
        %v4525 = vshrl.u32 %v4376, 16
        %v4527 = vrot.slane %v4525, 4
        %v4528 = vor.u32 %v4527, %v4523
        %v4529 = vrot.slane %v4528, 4
        %v4531 = vshll.u32 %v4403, 16
        %v4533 = vrot.slane %v4531, 5
        %v4534 = vsel %vm370, %v4529, %v4533
        %v4536 = vshrl.u32 %v4377, 16
        %v4538 = vrot.slane %v4536, 4
        %v4539 = vshll.u32 %v4377, 16
        %v4541 = vrot.slane %v4539, 5
        %v4542 = vor.u32 %v4538, %v4541
        %v4543 = vrot.slane %v4542, 4
        %v4545 = vshll.u32 %v4378, 16
        %v4547 = vrot.slane %v4545, 5
        %v4548 = vsel %vm370, %v4543, %v4547
        %v4549 = vshrl.u32 %v4378, 16
        %v4551 = vrot.slane %v4549, 4
        %v4552 = vor.u32 %v4551, %v4547
        %v4553 = vrot.slane %v4552, 4
        %v4555 = vshll.u32 %v4404, 16
        %v4557 = vrot.slane %v4555, 5
        %v4558 = vsel %vm370, %v4553, %v4557
        %v4560 = vshrl.u32 %v4379, 16
        %v4562 = vrot.slane %v4560, 4
        %v4563 = vshll.u32 %v4379, 16
        %v4565 = vrot.slane %v4563, 5
        %v4566 = vor.u32 %v4562, %v4565
        %v4567 = vrot.slane %v4566, 4
        %v4569 = vshll.u32 %v4380, 16
        %v4571 = vrot.slane %v4569, 5
        %v4572 = vsel %vm370, %v4567, %v4571
        %v4573 = vshrl.u32 %v4380, 16
        %v4575 = vrot.slane %v4573, 4
        %v4576 = vor.u32 %v4575, %v4571
        %v4577 = vrot.slane %v4576, 4
        %v4579 = vshll.u32 %v4405, 16
        %v4581 = vrot.slane %v4579, 5
        %v4582 = vsel %vm370, %v4577, %v4581
        %v4584 = vshrl.u32 %v4381, 16
        %v4586 = vrot.slane %v4584, 4
        %v4587 = vshll.u32 %v4381, 16
        %v4589 = vrot.slane %v4587, 5
        %v4590 = vor.u32 %v4586, %v4589
        %v4591 = vrot.slane %v4590, 4
        %v4593 = vshll.u32 %v4382, 16
        %v4595 = vrot.slane %v4593, 5
        %v4596 = vsel %vm370, %v4591, %v4595
        %v4597 = vshrl.u32 %v4382, 16
        %v4599 = vrot.slane %v4597, 4
        %v4600 = vor.u32 %v4599, %v4595
        %v4601 = vrot.slane %v4600, 4
        %v4603 = vshll.u32 %v4406, 16
        %v4605 = vrot.slane %v4603, 5
        %v4606 = vsel %vm370, %v4601, %v4605
        %v4608 = vshrl.u32 %v4383, 16
        %v4610 = vrot.slane %v4608, 4
        %v4611 = vshll.u32 %v4383, 16
        %v4613 = vrot.slane %v4611, 5
        %v4614 = vor.u32 %v4610, %v4613
        %v4615 = vrot.slane %v4614, 4
        %v4617 = vshll.u32 %v4384, 16
        %v4619 = vrot.slane %v4617, 5
        %v4620 = vsel %vm370, %v4615, %v4619
        %v4621 = vshrl.u32 %v4384, 16
        %v4623 = vrot.slane %v4621, 4
        %v4624 = vor.u32 %v4623, %v4619
        %v4625 = vrot.slane %v4624, 4
        %v4627 = vshll.u32 %v4407, 16
        %v4629 = vrot.slane %v4627, 5
        %v4630 = vsel %vm370, %v4625, %v4629
        %v4632 = vshrl.u32 %v4385, 16
        %v4634 = vrot.slane %v4632, 4
        %v4635 = vshll.u32 %v4385, 16
        %v4637 = vrot.slane %v4635, 5
        %v4638 = vor.u32 %v4634, %v4637
        %v4639 = vrot.slane %v4638, 4
        %v4641 = vshll.u32 %v4386, 16
        %v4643 = vrot.slane %v4641, 5
        %v4644 = vsel %vm370, %v4639, %v4643
        %v4645 = vshrl.u32 %v4386, 16
        %v4647 = vrot.slane %v4645, 4
        %v4648 = vor.u32 %v4647, %v4643
        %v4649 = vrot.slane %v4648, 4
        %v4651 = vshll.u32 %v4408, 16
        %v4653 = vrot.slane %v4651, 5
        %v4654 = vsel %vm370, %v4649, %v4653
        %v4656 = vshrl.u32 %v4387, 16
        %v4658 = vrot.slane %v4656, 4
        %v4659 = vshll.u32 %v4387, 16
        %v4661 = vrot.slane %v4659, 5
        %v4662 = vor.u32 %v4658, %v4661
        %v4663 = vrot.slane %v4662, 4
        %v4665 = vshll.u32 %v4388, 16
        %v4667 = vrot.slane %v4665, 5
        %v4668 = vsel %vm370, %v4663, %v4667
        %v4669 = vshrl.u32 %v4388, 16
        %v4671 = vrot.slane %v4669, 4
        %v4672 = vor.u32 %v4671, %v4667
        %v4673 = vrot.slane %v4672, 4
        %v4675 = vshll.u32 %v4409, 16
        %v4677 = vrot.slane %v4675, 5
        %v4678 = vsel %vm370, %v4673, %v4677
        %v4680 = vshrl.u32 %v4389, 16
        %v4682 = vrot.slane %v4680, 4
        %v4683 = vshll.u32 %v4389, 16
        %v4685 = vrot.slane %v4683, 5
        %v4686 = vor.u32 %v4682, %v4685
        %v4687 = vrot.slane %v4686, 4
        %v4689 = vshll.u32 %v4390, 16
        %v4691 = vrot.slane %v4689, 5
        %v4692 = vsel %vm370, %v4687, %v4691
        %v4693 = vshrl.u32 %v4390, 16
        %v4695 = vrot.slane %v4693, 4
        %v4696 = vor.u32 %v4695, %v4691
        %v4697 = vrot.slane %v4696, 4
        %v4699 = vshll.u32 %v4410, 16
        %v4701 = vrot.slane %v4699, 5
        %v4702 = vsel %vm370, %v4697, %v4701
        %v4704 = vshrl.u32 %v4391, 16
        %v4706 = vrot.slane %v4704, 4
        %v4707 = vshll.u32 %v4391, 16
        %v4709 = vrot.slane %v4707, 5
        %v4710 = vor.u32 %v4706, %v4709
        %v4711 = vrot.slane %v4710, 4
        %v4713 = vshll.u32 %v4392, 16
        %v4715 = vrot.slane %v4713, 5
        %v4716 = vsel %vm370, %v4711, %v4715
        %v4717 = vshrl.u32 %v4392, 16
        %v4719 = vrot.slane %v4717, 4
        %v4720 = vor.u32 %v4719, %v4715
        %v4721 = vrot.slane %v4720, 4
        %v4723 = vshll.u32 %v4411, 16
        %v4725 = vrot.slane %v4723, 5
        %v4726 = vsel %vm370, %v4721, %v4725
        %v4728 = vshrl.u32 %v4393, 16
        %v4730 = vrot.slane %v4728, 4
        %v4731 = vshll.u32 %v4393, 16
        %v4733 = vrot.slane %v4731, 5
        %v4734 = vor.u32 %v4730, %v4733
        %v4735 = vrot.slane %v4734, 4
        %v4737 = vshll.u32 %v4394, 16
        %v4739 = vrot.slane %v4737, 5
        %v4740 = vsel %vm370, %v4735, %v4739
        %v4741 = vshrl.u32 %v4394, 16
        %v4743 = vrot.slane %v4741, 4
        %v4744 = vor.u32 %v4743, %v4739
        %v4745 = vrot.slane %v4744, 4
        %v4747 = vshll.u32 %v4412, 16
        %v4749 = vrot.slane %v4747, 5
        %v4750 = vsel %vm370, %v4745, %v4749
        %v4752 = vshrl.u32 %v4395, 16
        %v4754 = vrot.slane %v4752, 4
        %v4755 = vshll.u32 %v4395, 16
        %v4757 = vrot.slane %v4755, 5
        %v4758 = vor.u32 %v4754, %v4757
        %v4759 = vrot.slane %v4758, 4
        %v4761 = vshll.u32 %v4396, 16
        %v4763 = vrot.slane %v4761, 5
        %v4764 = vsel %vm370, %v4759, %v4763
        %v4765 = vshrl.u32 %v4396, 16
        %v4767 = vrot.slane %v4765, 4
        %v4768 = vor.u32 %v4767, %v4763
        %v4769 = vrot.slane %v4768, 4
        %v4771 = vshll.u32 %v4413, 16
        %v4773 = vrot.slane %v4771, 5
        %v4774 = vsel %vm370, %v4769, %v4773
        %v4776 = vshrl.u32 %v4397, 16
        %v4778 = vrot.slane %v4776, 4
        %v4779 = vshll.u32 %v4397, 16
        %v4781 = vrot.slane %v4779, 5
        %v4782 = vor.u32 %v4778, %v4781
        %v4783 = vrot.slane %v4782, 4
        %v4785 = vshll.u32 %v4398, 16
        %v4787 = vrot.slane %v4785, 5
        %v4788 = vsel %vm370, %v4783, %v4787
        %v4789 = vshrl.u32 %v4398, 16
        %v4791 = vrot.slane %v4789, 4
        %v4792 = vor.u32 %v4791, %v4787
        %v4793 = vrot.slane %v4792, 4
        %v4795 = vshll.u32 %v4414, 16
        %v4797 = vrot.slane %v4795, 5
        %v4798 = vsel %vm370, %v4793, %v4797
        %v4799 = vld [vmem:[%s4366] sm:$0xe]
        %v4800 = vld [vmem:[%s4366 + $0xc] sm:$0xe]
        %v4801 = vld [vmem:[%s4366 + $0x18] sm:$0xe]
        %v4802 = vld [vmem:[%s4366 + $0x24] sm:$0xe]
        %v4803 = vld [vmem:[%s4366 + $0x30] sm:$0xe]
        %v4804 = vld [vmem:[%s4366 + $0x3c] sm:$0xe]
        %v4805 = vld [vmem:[%s4366 + $0x48] sm:$0xe]
        %v4806 = vld [vmem:[%s4366 + $0x54] sm:$0xe]
        %v4807 = vld [vmem:[%s4366 + $0x60] sm:$0xe]
        %v4808 = vld [vmem:[%s4366 + $0x6c] sm:$0xe]
        %v4809 = vld [vmem:[%s4366 + $0x78] sm:$0xe]
        %v4810 = vld [vmem:[%s4366 + $0x84] sm:$0xe]
        %v4811 = vld [vmem:[%s4366 + $0x90] sm:$0xe]
        %v4812 = vld [vmem:[%s4366 + $0x9c] sm:$0xe]
        %v4813 = vld [vmem:[%s4366 + $0xa8] sm:$0xe]
        %v4814 = vld [vmem:[%s4366 + $0xb4] sm:$0xe]
        %v4863 = vrot.slane %v4799, 5
        %v4864 = vrot.slane %v4863, 4
        %v4865 = vrot.slane %v4368, 5
        %v4866 = vsel %vm858, %v4864, %v4865
        %v4867 = vrot.slane %v4865, 4
        %v4868 = vrot.slane %v4399, 5
        %v4869 = vsel %vm858, %v4867, %v4868
        %v4870 = vrot.slane %v4800, 5
        %v4871 = vrot.slane %v4870, 4
        %v4872 = vrot.slane %v4370, 5
        %v4873 = vsel %vm858, %v4871, %v4872
        %v4874 = vrot.slane %v4872, 4
        %v4875 = vrot.slane %v4400, 5
        %v4876 = vsel %vm858, %v4874, %v4875
        %v4877 = vrot.slane %v4801, 5
        %v4878 = vrot.slane %v4877, 4
        %v4879 = vrot.slane %v4372, 5
        %v4880 = vsel %vm858, %v4878, %v4879
        %v4881 = vrot.slane %v4879, 4
        %v4882 = vrot.slane %v4401, 5
        %v4883 = vsel %vm858, %v4881, %v4882
        %v4884 = vrot.slane %v4802, 5
        %v4885 = vrot.slane %v4884, 4
        %v4886 = vrot.slane %v4374, 5
        %v4887 = vsel %vm858, %v4885, %v4886
        %v4888 = vrot.slane %v4886, 4
        %v4889 = vrot.slane %v4402, 5
        %v4890 = vsel %vm858, %v4888, %v4889
        %v4891 = vrot.slane %v4803, 5
        %v4892 = vrot.slane %v4891, 4
        %v4893 = vrot.slane %v4376, 5
        %v4894 = vsel %vm858, %v4892, %v4893
        %v4895 = vrot.slane %v4893, 4
        %v4896 = vrot.slane %v4403, 5
        %v4897 = vsel %vm858, %v4895, %v4896
        %v4898 = vrot.slane %v4804, 5
        %v4899 = vrot.slane %v4898, 4
        %v4900 = vrot.slane %v4378, 5
        %v4901 = vsel %vm858, %v4899, %v4900
        %v4902 = vrot.slane %v4900, 4
        %v4903 = vrot.slane %v4404, 5
        %v4904 = vsel %vm858, %v4902, %v4903
        %v4905 = vrot.slane %v4805, 5
        %v4906 = vrot.slane %v4905, 4
        %v4907 = vrot.slane %v4380, 5
        %v4908 = vsel %vm858, %v4906, %v4907
        %v4909 = vrot.slane %v4907, 4
        %v4910 = vrot.slane %v4405, 5
        %v4911 = vsel %vm858, %v4909, %v4910
        %v4912 = vrot.slane %v4806, 5
        %v4913 = vrot.slane %v4912, 4
        %v4914 = vrot.slane %v4382, 5
        %v4915 = vsel %vm858, %v4913, %v4914
        %v4916 = vrot.slane %v4914, 4
        %v4917 = vrot.slane %v4406, 5
        %v4918 = vsel %vm858, %v4916, %v4917
        %v4919 = vrot.slane %v4807, 5
        %v4920 = vrot.slane %v4919, 4
        %v4921 = vrot.slane %v4384, 5
        %v4922 = vsel %vm858, %v4920, %v4921
        %v4923 = vrot.slane %v4921, 4
        %v4924 = vrot.slane %v4407, 5
        %v4925 = vsel %vm858, %v4923, %v4924
        %v4926 = vrot.slane %v4808, 5
        %v4927 = vrot.slane %v4926, 4
        %v4928 = vrot.slane %v4386, 5
        %v4929 = vsel %vm858, %v4927, %v4928
        %v4930 = vrot.slane %v4928, 4
        %v4931 = vrot.slane %v4408, 5
        %v4932 = vsel %vm858, %v4930, %v4931
        %v4933 = vrot.slane %v4809, 5
        %v4934 = vrot.slane %v4933, 4
        %v4935 = vrot.slane %v4388, 5
        %v4936 = vsel %vm858, %v4934, %v4935
        %v4937 = vrot.slane %v4935, 4
        %v4938 = vrot.slane %v4409, 5
        %v4939 = vsel %vm858, %v4937, %v4938
        %v4940 = vrot.slane %v4810, 5
        %v4941 = vrot.slane %v4940, 4
        %v4942 = vrot.slane %v4390, 5
        %v4943 = vsel %vm858, %v4941, %v4942
        %v4944 = vrot.slane %v4942, 4
        %v4945 = vrot.slane %v4410, 5
        %v4946 = vsel %vm858, %v4944, %v4945
        %v4947 = vrot.slane %v4811, 5
        %v4948 = vrot.slane %v4947, 4
        %v4949 = vrot.slane %v4392, 5
        %v4950 = vsel %vm858, %v4948, %v4949
        %v4951 = vrot.slane %v4949, 4
        %v4952 = vrot.slane %v4411, 5
        %v4953 = vsel %vm858, %v4951, %v4952
        %v4954 = vrot.slane %v4812, 5
        %v4955 = vrot.slane %v4954, 4
        %v4956 = vrot.slane %v4394, 5
        %v4957 = vsel %vm858, %v4955, %v4956
        %v4958 = vrot.slane %v4956, 4
        %v4959 = vrot.slane %v4412, 5
        %v4960 = vsel %vm858, %v4958, %v4959
        %v4961 = vrot.slane %v4813, 5
        %v4962 = vrot.slane %v4961, 4
        %v4963 = vrot.slane %v4396, 5
        %v4964 = vsel %vm858, %v4962, %v4963
        %v4965 = vrot.slane %v4963, 4
        %v4966 = vrot.slane %v4413, 5
        %v4967 = vsel %vm858, %v4965, %v4966
        %v4968 = vrot.slane %v4814, 5
        %v4969 = vrot.slane %v4968, 4
        %v4970 = vrot.slane %v4398, 5
        %v4971 = vsel %vm858, %v4969, %v4970
        %v4972 = vrot.slane %v4970, 4
        %v4973 = vrot.slane %v4414, 5
        %v4974 = vsel %vm858, %v4972, %v4973
        %v4991 = vunpack.c.l.b16 %v3150
        %v4992 = vunpack.c.l.b16 %v3151
        %v4993 = vunpack.c.l.b16 %v3152
        %v4994 = vunpack.c.l.b16 %v3153
        %v4995 = vunpack.c.l.b16 %v3154
        %v4996 = vunpack.c.l.b16 %v3155
        %v4997 = vunpack.c.l.b16 %v3156
        %v4998 = vunpack.c.l.b16 %v3157
        %v4999 = vunpack.c.l.b16 %v3158
        %v5000 = vunpack.c.l.b16 %v3159
        %v5001 = vunpack.c.l.b16 %v3160
        %v5002 = vunpack.c.l.b16 %v3161
        %v5003 = vunpack.c.l.b16 %v3162
        %v5004 = vunpack.c.l.b16 %v3163
        %v5005 = vunpack.c.l.b16 %v3164
        %v5006 = vunpack.c.l.b16 %v3165
        %v5007 = vunpack.c.l.b16 %v3166
        %v5008 = vunpack.c.l.b16 %v3167
        %v5009 = vunpack.c.l.b16 %v3168
        %v5010 = vunpack.c.l.b16 %v3169
        %v5011 = vunpack.c.l.b16 %v3170
        %v5012 = vunpack.c.l.b16 %v3171
        %v5013 = vunpack.c.l.b16 %v3172
        %v5014 = vunpack.c.l.b16 %v3173
        %v5015 = vunpack.c.l.b16 %v3174
        %v5016 = vunpack.c.l.b16 %v3175
        %v5017 = vunpack.c.l.b16 %v3176
        %v5018 = vunpack.c.l.b16 %v3177
        %v5019 = vunpack.c.l.b16 %v3178
        %v5020 = vunpack.c.l.b16 %v3179
        %v5021 = vunpack.c.l.b16 %v3180
        %v5022 = vunpack.c.l.b16 %v3181
        %v5023 = vpack.c.b16 %v4992, %v4991
        %v5024 = vpack.c.b16 %v4994, %v4993
        %v5025 = vpack.c.b16 %v4996, %v4995
        %v5026 = vpack.c.b16 %v4998, %v4997
        %v5027 = vpack.c.b16 %v5000, %v4999
        %v5028 = vpack.c.b16 %v5002, %v5001
        %v5029 = vpack.c.b16 %v5004, %v5003
        %v5030 = vpack.c.b16 %v5006, %v5005
        %v5031 = vpack.c.b16 %v5008, %v5007
        %v5032 = vpack.c.b16 %v5010, %v5009
        %v5033 = vpack.c.b16 %v5012, %v5011
        %v5034 = vpack.c.b16 %v5014, %v5013
        %v5035 = vpack.c.b16 %v5016, %v5015
        %v5036 = vpack.c.b16 %v5018, %v5017
        %v5037 = vpack.c.b16 %v5020, %v5019
        %v5038 = vpack.c.b16 %v5022, %v5021
        %v5039 = vunpack.c.l.b16 %v3211
        %v5040 = vunpack.c.l.b16 %v3221
        %v5041 = vunpack.c.l.b16 %v3235
        %v5042 = vunpack.c.l.b16 %v3245
        %v5043 = vunpack.c.l.b16 %v3259
        %v5044 = vunpack.c.l.b16 %v3269
        %v5045 = vunpack.c.l.b16 %v3283
        %v5046 = vunpack.c.l.b16 %v3293
        %v5047 = vunpack.c.l.b16 %v3307
        %v5048 = vunpack.c.l.b16 %v3317
        %v5049 = vunpack.c.l.b16 %v3331
        %v5050 = vunpack.c.l.b16 %v3341
        %v5051 = vunpack.c.l.b16 %v3355
        %v5052 = vunpack.c.l.b16 %v3365
        %v5053 = vunpack.c.l.b16 %v3379
        %v5054 = vunpack.c.l.b16 %v3389
        %v5055 = vunpack.c.l.b16 %v3403
        %v5056 = vunpack.c.l.b16 %v3413
        %v5057 = vunpack.c.l.b16 %v3427
        %v5058 = vunpack.c.l.b16 %v3437
        %v5059 = vunpack.c.l.b16 %v3451
        %v5060 = vunpack.c.l.b16 %v3461
        %v5061 = vunpack.c.l.b16 %v3475
        %v5062 = vunpack.c.l.b16 %v3485
        %v5063 = vunpack.c.l.b16 %v3499
        %v5064 = vunpack.c.l.b16 %v3509
        %v5065 = vunpack.c.l.b16 %v3523
        %v5066 = vunpack.c.l.b16 %v3533
        %v5067 = vunpack.c.l.b16 %v3547
        %v5068 = vunpack.c.l.b16 %v3557
        %v5069 = vunpack.c.l.b16 %v3571
        %v5070 = vunpack.c.l.b16 %v3581
        %v5071 = vpack.c.b16 %v5040, %v5039
        %v5072 = vpack.c.b16 %v5042, %v5041
        %v5073 = vpack.c.b16 %v5044, %v5043
        %v5074 = vpack.c.b16 %v5046, %v5045
        %v5075 = vpack.c.b16 %v5048, %v5047
        %v5076 = vpack.c.b16 %v5050, %v5049
        %v5077 = vpack.c.b16 %v5052, %v5051
        %v5078 = vpack.c.b16 %v5054, %v5053
        %v5079 = vpack.c.b16 %v5056, %v5055
        %v5080 = vpack.c.b16 %v5058, %v5057
        %v5081 = vpack.c.b16 %v5060, %v5059
        %v5082 = vpack.c.b16 %v5062, %v5061
        %v5083 = vpack.c.b16 %v5064, %v5063
        %v5084 = vpack.c.b16 %v5066, %v5065
        %v5085 = vpack.c.b16 %v5068, %v5067
        %v5086 = vpack.c.b16 %v5070, %v5069
        %5087 = vrot.lane.b32.xlu0 %v5071, 8
        %v5088 = vpop.permute.xlu0 %5087
        %5089 = vrot.lane.b32.xlu0 %v5072, 8
        %v5090 = vpop.permute.xlu0 %5089
        %5091 = vrot.lane.b32.xlu0 %v5073, 8
        %v5092 = vpop.permute.xlu0 %5091
        %5093 = vrot.lane.b32.xlu0 %v5074, 8
        %v5094 = vpop.permute.xlu0 %5093
        %5095 = vrot.lane.b32.xlu0 %v5075, 8
        %v5096 = vpop.permute.xlu0 %5095
        %5097 = vrot.lane.b32.xlu0 %v5076, 8
        %v5098 = vpop.permute.xlu0 %5097
        %5099 = vrot.lane.b32.xlu0 %v5077, 8
        %v5100 = vpop.permute.xlu0 %5099
        %5101 = vrot.lane.b32.xlu0 %v5078, 8
        %v5102 = vpop.permute.xlu0 %5101
        %5103 = vrot.lane.b32.xlu0 %v5079, 8
        %v5104 = vpop.permute.xlu0 %5103
        %5105 = vrot.lane.b32.xlu0 %v5080, 8
        %v5106 = vpop.permute.xlu0 %5105
        %5107 = vrot.lane.b32.xlu0 %v5081, 8
        %v5108 = vpop.permute.xlu0 %5107
        %5109 = vrot.lane.b32.xlu0 %v5082, 8
        %v5110 = vpop.permute.xlu0 %5109
        %5111 = vrot.lane.b32.xlu0 %v5083, 8
        %v5112 = vpop.permute.xlu0 %5111
        %5113 = vrot.lane.b32.xlu0 %v5084, 8
        %v5114 = vpop.permute.xlu0 %5113
        %5115 = vrot.lane.b32.xlu0 %v5085, 8
        %v5116 = vpop.permute.xlu0 %5115
        %5117 = vrot.lane.b32.xlu0 %v5086, 8
        %v5118 = vpop.permute.xlu0 %5117
        %v5119 = vunpack.c.l.b16 %v3649
        %v5120 = vunpack.c.l.b16 %v3652
        %v5121 = vunpack.c.l.b16 %v3656
        %v5122 = vunpack.c.l.b16 %v3659
        %v5123 = vunpack.c.l.b16 %v3663
        %v5124 = vunpack.c.l.b16 %v3666
        %v5125 = vunpack.c.l.b16 %v3670
        %v5126 = vunpack.c.l.b16 %v3673
        %v5127 = vunpack.c.l.b16 %v3677
        %v5128 = vunpack.c.l.b16 %v3680
        %v5129 = vunpack.c.l.b16 %v3684
        %v5130 = vunpack.c.l.b16 %v3687
        %v5131 = vunpack.c.l.b16 %v3691
        %v5132 = vunpack.c.l.b16 %v3694
        %v5133 = vunpack.c.l.b16 %v3698
        %v5134 = vunpack.c.l.b16 %v3701
        %v5135 = vunpack.c.l.b16 %v3705
        %v5136 = vunpack.c.l.b16 %v3708
        %v5137 = vunpack.c.l.b16 %v3712
        %v5138 = vunpack.c.l.b16 %v3715
        %v5139 = vunpack.c.l.b16 %v3719
        %v5140 = vunpack.c.l.b16 %v3722
        %v5141 = vunpack.c.l.b16 %v3726
        %v5142 = vunpack.c.l.b16 %v3729
        %v5143 = vunpack.c.l.b16 %v3733
        %v5144 = vunpack.c.l.b16 %v3736
        %v5145 = vunpack.c.l.b16 %v3740
        %v5146 = vunpack.c.l.b16 %v3743
        %v5147 = vunpack.c.l.b16 %v3747
        %v5148 = vunpack.c.l.b16 %v3750
        %v5149 = vunpack.c.l.b16 %v3754
        %v5150 = vunpack.c.l.b16 %v3757
        %v5151 = vpack.c.b16 %v5120, %v5119
        %v5152 = vpack.c.b16 %v5122, %v5121
        %v5153 = vpack.c.b16 %v5124, %v5123
        %v5154 = vpack.c.b16 %v5126, %v5125
        %v5155 = vpack.c.b16 %v5128, %v5127
        %v5156 = vpack.c.b16 %v5130, %v5129
        %v5157 = vpack.c.b16 %v5132, %v5131
        %v5158 = vpack.c.b16 %v5134, %v5133
        %v5159 = vpack.c.b16 %v5136, %v5135
        %v5160 = vpack.c.b16 %v5138, %v5137
        %v5161 = vpack.c.b16 %v5140, %v5139
        %v5162 = vpack.c.b16 %v5142, %v5141
        %v5163 = vpack.c.b16 %v5144, %v5143
        %v5164 = vpack.c.b16 %v5146, %v5145
        %v5165 = vpack.c.b16 %v5148, %v5147
        %v5166 = vpack.c.b16 %v5150, %v5149
        %5167 = vrot.lane.b32.xlu0 %v5151, 16
        %v5168 = vpop.permute.xlu0 %5167
        %5169 = vrot.lane.b32.xlu0 %v5152, 16
        %v5170 = vpop.permute.xlu0 %5169
        %5171 = vrot.lane.b32.xlu0 %v5153, 16
        %v5172 = vpop.permute.xlu0 %5171
        %5173 = vrot.lane.b32.xlu0 %v5154, 16
        %v5174 = vpop.permute.xlu0 %5173
        %5175 = vrot.lane.b32.xlu0 %v5155, 16
        %v5176 = vpop.permute.xlu0 %5175
        %5177 = vrot.lane.b32.xlu0 %v5156, 16
        %v5178 = vpop.permute.xlu0 %5177
        %5179 = vrot.lane.b32.xlu0 %v5157, 16
        %v5180 = vpop.permute.xlu0 %5179
        %5181 = vrot.lane.b32.xlu0 %v5158, 16
        %v5182 = vpop.permute.xlu0 %5181
        %5183 = vrot.lane.b32.xlu0 %v5159, 16
        %v5184 = vpop.permute.xlu0 %5183
        %5185 = vrot.lane.b32.xlu0 %v5160, 16
        %v5186 = vpop.permute.xlu0 %5185
        %5187 = vrot.lane.b32.xlu0 %v5161, 16
        %v5188 = vpop.permute.xlu0 %5187
        %5189 = vrot.lane.b32.xlu0 %v5162, 16
        %v5190 = vpop.permute.xlu0 %5189
        %5191 = vrot.lane.b32.xlu0 %v5163, 16
        %v5192 = vpop.permute.xlu0 %5191
        %5193 = vrot.lane.b32.xlu0 %v5164, 16
        %v5194 = vpop.permute.xlu0 %5193
        %5195 = vrot.lane.b32.xlu0 %v5165, 16
        %v5196 = vpop.permute.xlu0 %5195
        %5197 = vrot.lane.b32.xlu0 %v5166, 16
        %v5198 = vpop.permute.xlu0 %5197
        %v5215 = vunpack.c.l.b16 %v3758
        %v5216 = vunpack.c.l.b16 %v3759
        %v5217 = vunpack.c.l.b16 %v3760
        %v5218 = vunpack.c.l.b16 %v3761
        %v5219 = vunpack.c.l.b16 %v3762
        %v5220 = vunpack.c.l.b16 %v3763
        %v5221 = vunpack.c.l.b16 %v3764
        %v5222 = vunpack.c.l.b16 %v3765
        %v5223 = vunpack.c.l.b16 %v3766
        %v5224 = vunpack.c.l.b16 %v3767
        %v5225 = vunpack.c.l.b16 %v3768
        %v5226 = vunpack.c.l.b16 %v3769
        %v5227 = vunpack.c.l.b16 %v3770
        %v5228 = vunpack.c.l.b16 %v3771
        %v5229 = vunpack.c.l.b16 %v3772
        %v5230 = vunpack.c.l.b16 %v3773
        %v5231 = vunpack.c.l.b16 %v3774
        %v5232 = vunpack.c.l.b16 %v3775
        %v5233 = vunpack.c.l.b16 %v3776
        %v5234 = vunpack.c.l.b16 %v3777
        %v5235 = vunpack.c.l.b16 %v3778
        %v5236 = vunpack.c.l.b16 %v3779
        %v5237 = vunpack.c.l.b16 %v3780
        %v5238 = vunpack.c.l.b16 %v3781
        %v5239 = vunpack.c.l.b16 %v3782
        %v5240 = vunpack.c.l.b16 %v3783
        %v5241 = vunpack.c.l.b16 %v3784
        %v5242 = vunpack.c.l.b16 %v3785
        %v5243 = vunpack.c.l.b16 %v3786
        %v5244 = vunpack.c.l.b16 %v3787
        %v5245 = vunpack.c.l.b16 %v3788
        %v5246 = vunpack.c.l.b16 %v3789
        %v5247 = vpack.c.b16 %v5216, %v5215
        %v5248 = vpack.c.b16 %v5218, %v5217
        %v5249 = vpack.c.b16 %v5220, %v5219
        %v5250 = vpack.c.b16 %v5222, %v5221
        %v5251 = vpack.c.b16 %v5224, %v5223
        %v5252 = vpack.c.b16 %v5226, %v5225
        %v5253 = vpack.c.b16 %v5228, %v5227
        %v5254 = vpack.c.b16 %v5230, %v5229
        %v5255 = vpack.c.b16 %v5232, %v5231
        %v5256 = vpack.c.b16 %v5234, %v5233
        %v5257 = vpack.c.b16 %v5236, %v5235
        %v5258 = vpack.c.b16 %v5238, %v5237
        %v5259 = vpack.c.b16 %v5240, %v5239
        %v5260 = vpack.c.b16 %v5242, %v5241
        %v5261 = vpack.c.b16 %v5244, %v5243
        %v5262 = vpack.c.b16 %v5246, %v5245
        %5263 = vrot.lane.b32.xlu0 %v5247, 24
        %v5264 = vpop.permute.xlu0 %5263
        %5265 = vrot.lane.b32.xlu0 %v5248, 24
        %v5266 = vpop.permute.xlu0 %5265
        %5267 = vrot.lane.b32.xlu0 %v5249, 24
        %v5268 = vpop.permute.xlu0 %5267
        %5269 = vrot.lane.b32.xlu0 %v5250, 24
        %v5270 = vpop.permute.xlu0 %5269
        %5271 = vrot.lane.b32.xlu0 %v5251, 24
        %v5272 = vpop.permute.xlu0 %5271
        %5273 = vrot.lane.b32.xlu0 %v5252, 24
        %v5274 = vpop.permute.xlu0 %5273
        %5275 = vrot.lane.b32.xlu0 %v5253, 24
        %v5276 = vpop.permute.xlu0 %5275
        %5277 = vrot.lane.b32.xlu0 %v5254, 24
        %v5278 = vpop.permute.xlu0 %5277
        %5279 = vrot.lane.b32.xlu0 %v5255, 24
        %v5280 = vpop.permute.xlu0 %5279
        %5281 = vrot.lane.b32.xlu0 %v5256, 24
        %v5282 = vpop.permute.xlu0 %5281
        %5283 = vrot.lane.b32.xlu0 %v5257, 24
        %v5284 = vpop.permute.xlu0 %5283
        %5285 = vrot.lane.b32.xlu0 %v5258, 24
        %v5286 = vpop.permute.xlu0 %5285
        %5287 = vrot.lane.b32.xlu0 %v5259, 24
        %v5288 = vpop.permute.xlu0 %5287
        %5289 = vrot.lane.b32.xlu0 %v5260, 24
        %v5290 = vpop.permute.xlu0 %5289
        %5291 = vrot.lane.b32.xlu0 %v5261, 24
        %v5292 = vpop.permute.xlu0 %5291
        %5293 = vrot.lane.b32.xlu0 %v5262, 24
        %v5294 = vpop.permute.xlu0 %5293
        %v5295 = vunpack.c.l.b16 %v3819
        %v5296 = vunpack.c.l.b16 %v3829
        %v5297 = vunpack.c.l.b16 %v3843
        %v5298 = vunpack.c.l.b16 %v3853
        %v5299 = vunpack.c.l.b16 %v3867
        %v5300 = vunpack.c.l.b16 %v3877
        %v5301 = vunpack.c.l.b16 %v3891
        %v5302 = vunpack.c.l.b16 %v3901
        %v5303 = vunpack.c.l.b16 %v3915
        %v5304 = vunpack.c.l.b16 %v3925
        %v5305 = vunpack.c.l.b16 %v3939
        %v5306 = vunpack.c.l.b16 %v3949
        %v5307 = vunpack.c.l.b16 %v3963
        %v5308 = vunpack.c.l.b16 %v3973
        %v5309 = vunpack.c.l.b16 %v3987
        %v5310 = vunpack.c.l.b16 %v3997
        %v5311 = vunpack.c.l.b16 %v4011
        %v5312 = vunpack.c.l.b16 %v4021
        %v5313 = vunpack.c.l.b16 %v4035
        %v5314 = vunpack.c.l.b16 %v4045
        %v5315 = vunpack.c.l.b16 %v4059
        %v5316 = vunpack.c.l.b16 %v4069
        %v5317 = vunpack.c.l.b16 %v4083
        %v5318 = vunpack.c.l.b16 %v4093
        %v5319 = vunpack.c.l.b16 %v4107
        %v5320 = vunpack.c.l.b16 %v4117
        %v5321 = vunpack.c.l.b16 %v4131
        %v5322 = vunpack.c.l.b16 %v4141
        %v5323 = vunpack.c.l.b16 %v4155
        %v5324 = vunpack.c.l.b16 %v4165
        %v5325 = vunpack.c.l.b16 %v4179
        %v5326 = vunpack.c.l.b16 %v4189
        %v5327 = vpack.c.b16 %v5296, %v5295
        %v5328 = vpack.c.b16 %v5298, %v5297
        %v5329 = vpack.c.b16 %v5300, %v5299
        %v5330 = vpack.c.b16 %v5302, %v5301
        %v5331 = vpack.c.b16 %v5304, %v5303
        %v5332 = vpack.c.b16 %v5306, %v5305
        %v5333 = vpack.c.b16 %v5308, %v5307
        %v5334 = vpack.c.b16 %v5310, %v5309
        %v5335 = vpack.c.b16 %v5312, %v5311
        %v5336 = vpack.c.b16 %v5314, %v5313
        %v5337 = vpack.c.b16 %v5316, %v5315
        %v5338 = vpack.c.b16 %v5318, %v5317
        %v5339 = vpack.c.b16 %v5320, %v5319
        %v5340 = vpack.c.b16 %v5322, %v5321
        %v5341 = vpack.c.b16 %v5324, %v5323
        %v5342 = vpack.c.b16 %v5326, %v5325
        %5343 = vrot.lane.b32.xlu0 %v5327, 32
        %v5344 = vpop.permute.xlu0 %5343
        %5345 = vrot.lane.b32.xlu0 %v5328, 32
        %v5346 = vpop.permute.xlu0 %5345
        %5347 = vrot.lane.b32.xlu0 %v5329, 32
        %v5348 = vpop.permute.xlu0 %5347
        %5349 = vrot.lane.b32.xlu0 %v5330, 32
        %v5350 = vpop.permute.xlu0 %5349
        %5351 = vrot.lane.b32.xlu0 %v5331, 32
        %v5352 = vpop.permute.xlu0 %5351
        %5353 = vrot.lane.b32.xlu0 %v5332, 32
        %v5354 = vpop.permute.xlu0 %5353
        %5355 = vrot.lane.b32.xlu0 %v5333, 32
        %v5356 = vpop.permute.xlu0 %5355
        %5357 = vrot.lane.b32.xlu0 %v5334, 32
        %v5358 = vpop.permute.xlu0 %5357
        %5359 = vrot.lane.b32.xlu0 %v5335, 32
        %v5360 = vpop.permute.xlu0 %5359
        %5361 = vrot.lane.b32.xlu0 %v5336, 32
        %v5362 = vpop.permute.xlu0 %5361
        %5363 = vrot.lane.b32.xlu0 %v5337, 32
        %v5364 = vpop.permute.xlu0 %5363
        %5365 = vrot.lane.b32.xlu0 %v5338, 32
        %v5366 = vpop.permute.xlu0 %5365
        %5367 = vrot.lane.b32.xlu0 %v5339, 32
        %v5368 = vpop.permute.xlu0 %5367
        %5369 = vrot.lane.b32.xlu0 %v5340, 32
        %v5370 = vpop.permute.xlu0 %5369
        %5371 = vrot.lane.b32.xlu0 %v5341, 32
        %v5372 = vpop.permute.xlu0 %5371
        %5373 = vrot.lane.b32.xlu0 %v5342, 32
        %v5374 = vpop.permute.xlu0 %5373
        %v5375 = vunpack.c.l.b16 %v4257
        %v5376 = vunpack.c.l.b16 %v4260
        %v5377 = vunpack.c.l.b16 %v4264
        %v5378 = vunpack.c.l.b16 %v4267
        %v5379 = vunpack.c.l.b16 %v4271
        %v5380 = vunpack.c.l.b16 %v4274
        %v5381 = vunpack.c.l.b16 %v4278
        %v5382 = vunpack.c.l.b16 %v4281
        %v5383 = vunpack.c.l.b16 %v4285
        %v5384 = vunpack.c.l.b16 %v4288
        %v5385 = vunpack.c.l.b16 %v4292
        %v5386 = vunpack.c.l.b16 %v4295
        %v5387 = vunpack.c.l.b16 %v4299
        %v5388 = vunpack.c.l.b16 %v4302
        %v5389 = vunpack.c.l.b16 %v4306
        %v5390 = vunpack.c.l.b16 %v4309
        %v5391 = vunpack.c.l.b16 %v4313
        %v5392 = vunpack.c.l.b16 %v4316
        %v5393 = vunpack.c.l.b16 %v4320
        %v5394 = vunpack.c.l.b16 %v4323
        %v5395 = vunpack.c.l.b16 %v4327
        %v5396 = vunpack.c.l.b16 %v4330
        %v5397 = vunpack.c.l.b16 %v4334
        %v5398 = vunpack.c.l.b16 %v4337
        %v5399 = vunpack.c.l.b16 %v4341
        %v5400 = vunpack.c.l.b16 %v4344
        %v5401 = vunpack.c.l.b16 %v4348
        %v5402 = vunpack.c.l.b16 %v4351
        %v5403 = vunpack.c.l.b16 %v4355
        %v5404 = vunpack.c.l.b16 %v4358
        %v5405 = vunpack.c.l.b16 %v4362
        %v5406 = vunpack.c.l.b16 %v4365
        %v5407 = vpack.c.b16 %v5376, %v5375
        %v5408 = vpack.c.b16 %v5378, %v5377
        %v5409 = vpack.c.b16 %v5380, %v5379
        %v5410 = vpack.c.b16 %v5382, %v5381
        %v5411 = vpack.c.b16 %v5384, %v5383
        %v5412 = vpack.c.b16 %v5386, %v5385
        %v5413 = vpack.c.b16 %v5388, %v5387
        %v5414 = vpack.c.b16 %v5390, %v5389
        %v5415 = vpack.c.b16 %v5392, %v5391
        %v5416 = vpack.c.b16 %v5394, %v5393
        %v5417 = vpack.c.b16 %v5396, %v5395
        %v5418 = vpack.c.b16 %v5398, %v5397
        %v5419 = vpack.c.b16 %v5400, %v5399
        %v5420 = vpack.c.b16 %v5402, %v5401
        %v5421 = vpack.c.b16 %v5404, %v5403
        %v5422 = vpack.c.b16 %v5406, %v5405
        %5423 = vrot.lane.b32.xlu0 %v5407, 40
        %v5424 = vpop.permute.xlu0 %5423
        %5425 = vrot.lane.b32.xlu0 %v5408, 40
        %v5426 = vpop.permute.xlu0 %5425
        %5427 = vrot.lane.b32.xlu0 %v5409, 40
        %v5428 = vpop.permute.xlu0 %5427
        %5429 = vrot.lane.b32.xlu0 %v5410, 40
        %v5430 = vpop.permute.xlu0 %5429
        %5431 = vrot.lane.b32.xlu0 %v5411, 40
        %v5432 = vpop.permute.xlu0 %5431
        %5433 = vrot.lane.b32.xlu0 %v5412, 40
        %v5434 = vpop.permute.xlu0 %5433
        %5435 = vrot.lane.b32.xlu0 %v5413, 40
        %v5436 = vpop.permute.xlu0 %5435
        %5437 = vrot.lane.b32.xlu0 %v5414, 40
        %v5438 = vpop.permute.xlu0 %5437
        %5439 = vrot.lane.b32.xlu0 %v5415, 40
        %v5440 = vpop.permute.xlu0 %5439
        %5441 = vrot.lane.b32.xlu0 %v5416, 40
        %v5442 = vpop.permute.xlu0 %5441
        %5443 = vrot.lane.b32.xlu0 %v5417, 40
        %v5444 = vpop.permute.xlu0 %5443
        %5445 = vrot.lane.b32.xlu0 %v5418, 40
        %v5446 = vpop.permute.xlu0 %5445
        %5447 = vrot.lane.b32.xlu0 %v5419, 40
        %v5448 = vpop.permute.xlu0 %5447
        %5449 = vrot.lane.b32.xlu0 %v5420, 40
        %v5450 = vpop.permute.xlu0 %5449
        %5451 = vrot.lane.b32.xlu0 %v5421, 40
        %v5452 = vpop.permute.xlu0 %5451
        %5453 = vrot.lane.b32.xlu0 %v5422, 40
        %v5454 = vpop.permute.xlu0 %5453
        %v5471 = vunpack.c.l.b16 %v4367
        %v5472 = vunpack.c.l.b16 %v4368
        %v5473 = vunpack.c.l.b16 %v4369
        %v5474 = vunpack.c.l.b16 %v4370
        %v5475 = vunpack.c.l.b16 %v4371
        %v5476 = vunpack.c.l.b16 %v4372
        %v5477 = vunpack.c.l.b16 %v4373
        %v5478 = vunpack.c.l.b16 %v4374
        %v5479 = vunpack.c.l.b16 %v4375
        %v5480 = vunpack.c.l.b16 %v4376
        %v5481 = vunpack.c.l.b16 %v4377
        %v5482 = vunpack.c.l.b16 %v4378
        %v5483 = vunpack.c.l.b16 %v4379
        %v5484 = vunpack.c.l.b16 %v4380
        %v5485 = vunpack.c.l.b16 %v4381
        %v5486 = vunpack.c.l.b16 %v4382
        %v5487 = vunpack.c.l.b16 %v4383
        %v5488 = vunpack.c.l.b16 %v4384
        %v5489 = vunpack.c.l.b16 %v4385
        %v5490 = vunpack.c.l.b16 %v4386
        %v5491 = vunpack.c.l.b16 %v4387
        %v5492 = vunpack.c.l.b16 %v4388
        %v5493 = vunpack.c.l.b16 %v4389
        %v5494 = vunpack.c.l.b16 %v4390
        %v5495 = vunpack.c.l.b16 %v4391
        %v5496 = vunpack.c.l.b16 %v4392
        %v5497 = vunpack.c.l.b16 %v4393
        %v5498 = vunpack.c.l.b16 %v4394
        %v5499 = vunpack.c.l.b16 %v4395
        %v5500 = vunpack.c.l.b16 %v4396
        %v5501 = vunpack.c.l.b16 %v4397
        %v5502 = vunpack.c.l.b16 %v4398
        %v5503 = vpack.c.b16 %v5472, %v5471
        %v5504 = vpack.c.b16 %v5474, %v5473
        %v5505 = vpack.c.b16 %v5476, %v5475
        %v5506 = vpack.c.b16 %v5478, %v5477
        %v5507 = vpack.c.b16 %v5480, %v5479
        %v5508 = vpack.c.b16 %v5482, %v5481
        %v5509 = vpack.c.b16 %v5484, %v5483
        %v5510 = vpack.c.b16 %v5486, %v5485
        %v5511 = vpack.c.b16 %v5488, %v5487
        %v5512 = vpack.c.b16 %v5490, %v5489
        %v5513 = vpack.c.b16 %v5492, %v5491
        %v5514 = vpack.c.b16 %v5494, %v5493
        %v5515 = vpack.c.b16 %v5496, %v5495
        %v5516 = vpack.c.b16 %v5498, %v5497
        %v5517 = vpack.c.b16 %v5500, %v5499
        %v5518 = vpack.c.b16 %v5502, %v5501
        %5519 = vrot.lane.b32.xlu0 %v5503, 48
        %v5520 = vpop.permute.xlu0 %5519
        %5521 = vrot.lane.b32.xlu0 %v5504, 48
        %v5522 = vpop.permute.xlu0 %5521
        %5523 = vrot.lane.b32.xlu0 %v5505, 48
        %v5524 = vpop.permute.xlu0 %5523
        %5525 = vrot.lane.b32.xlu0 %v5506, 48
        %v5526 = vpop.permute.xlu0 %5525
        %5527 = vrot.lane.b32.xlu0 %v5507, 48
        %v5528 = vpop.permute.xlu0 %5527
        %5529 = vrot.lane.b32.xlu0 %v5508, 48
        %v5530 = vpop.permute.xlu0 %5529
        %5531 = vrot.lane.b32.xlu0 %v5509, 48
        %v5532 = vpop.permute.xlu0 %5531
        %5533 = vrot.lane.b32.xlu0 %v5510, 48
        %v5534 = vpop.permute.xlu0 %5533
        %5535 = vrot.lane.b32.xlu0 %v5511, 48
        %v5536 = vpop.permute.xlu0 %5535
        %5537 = vrot.lane.b32.xlu0 %v5512, 48
        %v5538 = vpop.permute.xlu0 %5537
        %5539 = vrot.lane.b32.xlu0 %v5513, 48
        %v5540 = vpop.permute.xlu0 %5539
        %5541 = vrot.lane.b32.xlu0 %v5514, 48
        %v5542 = vpop.permute.xlu0 %5541
        %5543 = vrot.lane.b32.xlu0 %v5515, 48
        %v5544 = vpop.permute.xlu0 %5543
        %5545 = vrot.lane.b32.xlu0 %v5516, 48
        %v5546 = vpop.permute.xlu0 %5545
        %5547 = vrot.lane.b32.xlu0 %v5517, 48
        %v5548 = vpop.permute.xlu0 %5547
        %5549 = vrot.lane.b32.xlu0 %v5518, 48
        %v5550 = vpop.permute.xlu0 %5549
        %v5551 = vunpack.c.l.b16 %v4428
        %v5552 = vunpack.c.l.b16 %v4438
        %v5553 = vunpack.c.l.b16 %v4452
        %v5554 = vunpack.c.l.b16 %v4462
        %v5555 = vunpack.c.l.b16 %v4476
        %v5556 = vunpack.c.l.b16 %v4486
        %v5557 = vunpack.c.l.b16 %v4500
        %v5558 = vunpack.c.l.b16 %v4510
        %v5559 = vunpack.c.l.b16 %v4524
        %v5560 = vunpack.c.l.b16 %v4534
        %v5561 = vunpack.c.l.b16 %v4548
        %v5562 = vunpack.c.l.b16 %v4558
        %v5563 = vunpack.c.l.b16 %v4572
        %v5564 = vunpack.c.l.b16 %v4582
        %v5565 = vunpack.c.l.b16 %v4596
        %v5566 = vunpack.c.l.b16 %v4606
        %v5567 = vunpack.c.l.b16 %v4620
        %v5568 = vunpack.c.l.b16 %v4630
        %v5569 = vunpack.c.l.b16 %v4644
        %v5570 = vunpack.c.l.b16 %v4654
        %v5571 = vunpack.c.l.b16 %v4668
        %v5572 = vunpack.c.l.b16 %v4678
        %v5573 = vunpack.c.l.b16 %v4692
        %v5574 = vunpack.c.l.b16 %v4702
        %v5575 = vunpack.c.l.b16 %v4716
        %v5576 = vunpack.c.l.b16 %v4726
        %v5577 = vunpack.c.l.b16 %v4740
        %v5578 = vunpack.c.l.b16 %v4750
        %v5579 = vunpack.c.l.b16 %v4764
        %v5580 = vunpack.c.l.b16 %v4774
        %v5581 = vunpack.c.l.b16 %v4788
        %v5582 = vunpack.c.l.b16 %v4798
        %v5583 = vpack.c.b16 %v5552, %v5551
        %v5584 = vpack.c.b16 %v5554, %v5553
        %v5585 = vpack.c.b16 %v5556, %v5555
        %v5586 = vpack.c.b16 %v5558, %v5557
        %v5587 = vpack.c.b16 %v5560, %v5559
        %v5588 = vpack.c.b16 %v5562, %v5561
        %v5589 = vpack.c.b16 %v5564, %v5563
        %v5590 = vpack.c.b16 %v5566, %v5565
        %v5591 = vpack.c.b16 %v5568, %v5567
        %v5592 = vpack.c.b16 %v5570, %v5569
        %v5593 = vpack.c.b16 %v5572, %v5571
        %v5594 = vpack.c.b16 %v5574, %v5573
        %v5595 = vpack.c.b16 %v5576, %v5575
        %v5596 = vpack.c.b16 %v5578, %v5577
        %v5597 = vpack.c.b16 %v5580, %v5579
        %v5598 = vpack.c.b16 %v5582, %v5581
        %5599 = vrot.lane.b32.xlu0 %v5583, 56
        %v5600 = vpop.permute.xlu0 %5599
        %5601 = vrot.lane.b32.xlu0 %v5584, 56
        %v5602 = vpop.permute.xlu0 %5601
        %5603 = vrot.lane.b32.xlu0 %v5585, 56
        %v5604 = vpop.permute.xlu0 %5603
        %5605 = vrot.lane.b32.xlu0 %v5586, 56
        %v5606 = vpop.permute.xlu0 %5605
        %5607 = vrot.lane.b32.xlu0 %v5587, 56
        %v5608 = vpop.permute.xlu0 %5607
        %5609 = vrot.lane.b32.xlu0 %v5588, 56
        %v5610 = vpop.permute.xlu0 %5609
        %5611 = vrot.lane.b32.xlu0 %v5589, 56
        %v5612 = vpop.permute.xlu0 %5611
        %5613 = vrot.lane.b32.xlu0 %v5590, 56
        %v5614 = vpop.permute.xlu0 %5613
        %5615 = vrot.lane.b32.xlu0 %v5591, 56
        %v5616 = vpop.permute.xlu0 %5615
        %5617 = vrot.lane.b32.xlu0 %v5592, 56
        %v5618 = vpop.permute.xlu0 %5617
        %5619 = vrot.lane.b32.xlu0 %v5593, 56
        %v5620 = vpop.permute.xlu0 %5619
        %5621 = vrot.lane.b32.xlu0 %v5594, 56
        %v5622 = vpop.permute.xlu0 %5621
        %5623 = vrot.lane.b32.xlu0 %v5595, 56
        %v5624 = vpop.permute.xlu0 %5623
        %5625 = vrot.lane.b32.xlu0 %v5596, 56
        %v5626 = vpop.permute.xlu0 %5625
        %5627 = vrot.lane.b32.xlu0 %v5597, 56
        %v5628 = vpop.permute.xlu0 %5627
        %5629 = vrot.lane.b32.xlu0 %v5598, 56
        %v5630 = vpop.permute.xlu0 %5629
        %v5631 = vunpack.c.l.b16 %v4866
        %v5632 = vunpack.c.l.b16 %v4869
        %v5633 = vunpack.c.l.b16 %v4873
        %v5634 = vunpack.c.l.b16 %v4876
        %v5635 = vunpack.c.l.b16 %v4880
        %v5636 = vunpack.c.l.b16 %v4883
        %v5637 = vunpack.c.l.b16 %v4887
        %v5638 = vunpack.c.l.b16 %v4890
        %v5639 = vunpack.c.l.b16 %v4894
        %v5640 = vunpack.c.l.b16 %v4897
        %v5641 = vunpack.c.l.b16 %v4901
        %v5642 = vunpack.c.l.b16 %v4904
        %v5643 = vunpack.c.l.b16 %v4908
        %v5644 = vunpack.c.l.b16 %v4911
        %v5645 = vunpack.c.l.b16 %v4915
        %v5646 = vunpack.c.l.b16 %v4918
        %v5647 = vunpack.c.l.b16 %v4922
        %v5648 = vunpack.c.l.b16 %v4925
        %v5649 = vunpack.c.l.b16 %v4929
        %v5650 = vunpack.c.l.b16 %v4932
        %v5651 = vunpack.c.l.b16 %v4936
        %v5652 = vunpack.c.l.b16 %v4939
        %v5653 = vunpack.c.l.b16 %v4943
        %v5654 = vunpack.c.l.b16 %v4946
        %v5655 = vunpack.c.l.b16 %v4950
        %v5656 = vunpack.c.l.b16 %v4953
        %v5657 = vunpack.c.l.b16 %v4957
        %v5658 = vunpack.c.l.b16 %v4960
        %v5659 = vunpack.c.l.b16 %v4964
        %v5660 = vunpack.c.l.b16 %v4967
        %v5661 = vunpack.c.l.b16 %v4971
        %v5662 = vunpack.c.l.b16 %v4974
        %v5663 = vpack.c.b16 %v5632, %v5631
        %v5664 = vpack.c.b16 %v5634, %v5633
        %v5665 = vpack.c.b16 %v5636, %v5635
        %v5666 = vpack.c.b16 %v5638, %v5637
        %v5667 = vpack.c.b16 %v5640, %v5639
        %v5668 = vpack.c.b16 %v5642, %v5641
        %v5669 = vpack.c.b16 %v5644, %v5643
        %v5670 = vpack.c.b16 %v5646, %v5645
        %v5671 = vpack.c.b16 %v5648, %v5647
        %v5672 = vpack.c.b16 %v5650, %v5649
        %v5673 = vpack.c.b16 %v5652, %v5651
        %v5674 = vpack.c.b16 %v5654, %v5653
        %v5675 = vpack.c.b16 %v5656, %v5655
        %v5676 = vpack.c.b16 %v5658, %v5657
        %v5677 = vpack.c.b16 %v5660, %v5659
        %v5678 = vpack.c.b16 %v5662, %v5661
        %5679 = vrot.lane.b32.xlu0 %v5663, 64
        %v5680 = vpop.permute.xlu0 %5679
        %5681 = vrot.lane.b32.xlu0 %v5664, 64
        %v5682 = vpop.permute.xlu0 %5681
        %5683 = vrot.lane.b32.xlu0 %v5665, 64
        %v5684 = vpop.permute.xlu0 %5683
        %5685 = vrot.lane.b32.xlu0 %v5666, 64
        %v5686 = vpop.permute.xlu0 %5685
        %5687 = vrot.lane.b32.xlu0 %v5667, 64
        %v5688 = vpop.permute.xlu0 %5687
        %5689 = vrot.lane.b32.xlu0 %v5668, 64
        %v5690 = vpop.permute.xlu0 %5689
        %5691 = vrot.lane.b32.xlu0 %v5669, 64
        %v5692 = vpop.permute.xlu0 %5691
        %5693 = vrot.lane.b32.xlu0 %v5670, 64
        %v5694 = vpop.permute.xlu0 %5693
        %5695 = vrot.lane.b32.xlu0 %v5671, 64
        %v5696 = vpop.permute.xlu0 %5695
        %5697 = vrot.lane.b32.xlu0 %v5672, 64
        %v5698 = vpop.permute.xlu0 %5697
        %5699 = vrot.lane.b32.xlu0 %v5673, 64
        %v5700 = vpop.permute.xlu0 %5699
        %5701 = vrot.lane.b32.xlu0 %v5674, 64
        %v5702 = vpop.permute.xlu0 %5701
        %5703 = vrot.lane.b32.xlu0 %v5675, 64
        %v5704 = vpop.permute.xlu0 %5703
        %5705 = vrot.lane.b32.xlu0 %v5676, 64
        %v5706 = vpop.permute.xlu0 %5705
        %5707 = vrot.lane.b32.xlu0 %v5677, 64
        %v5708 = vpop.permute.xlu0 %5707
        %5709 = vrot.lane.b32.xlu0 %v5678, 64
        %v5710 = vpop.permute.xlu0 %5709
        %v5713 = vsel %vm700, %v5023, %v5088
        %v5716 = vsel %vm700, %v5024, %v5090
        %v5719 = vsel %vm700, %v5025, %v5092
        %v5722 = vsel %vm700, %v5026, %v5094
        %v5725 = vsel %vm700, %v5027, %v5096
        %v5728 = vsel %vm700, %v5028, %v5098
        %v5731 = vsel %vm700, %v5029, %v5100
        %v5734 = vsel %vm700, %v5030, %v5102
        %v5737 = vsel %vm700, %v5031, %v5104
        %v5740 = vsel %vm700, %v5032, %v5106
        %v5743 = vsel %vm700, %v5033, %v5108
        %v5746 = vsel %vm700, %v5034, %v5110
        %v5749 = vsel %vm700, %v5035, %v5112
        %v5752 = vsel %vm700, %v5036, %v5114
        %v5755 = vsel %vm700, %v5037, %v5116
        %v5758 = vsel %vm700, %v5038, %v5118
        %v5760 = vsel %vm713, %v5713, %v5168
        %v5762 = vsel %vm713, %v5716, %v5170
        %v5764 = vsel %vm713, %v5719, %v5172
        %v5766 = vsel %vm713, %v5722, %v5174
        %v5768 = vsel %vm713, %v5725, %v5176
        %v5770 = vsel %vm713, %v5728, %v5178
        %v5772 = vsel %vm713, %v5731, %v5180
        %v5774 = vsel %vm713, %v5734, %v5182
        %v5776 = vsel %vm713, %v5737, %v5184
        %v5778 = vsel %vm713, %v5740, %v5186
        %v5780 = vsel %vm713, %v5743, %v5188
        %v5782 = vsel %vm713, %v5746, %v5190
        %v5784 = vsel %vm713, %v5749, %v5192
        %v5786 = vsel %vm713, %v5752, %v5194
        %v5788 = vsel %vm713, %v5755, %v5196
        %v5790 = vsel %vm713, %v5758, %v5198
        %v5792 = vsel %vm722, %v5760, %v5264
        %v5794 = vsel %vm722, %v5762, %v5266
        %v5796 = vsel %vm722, %v5764, %v5268
        %v5798 = vsel %vm722, %v5766, %v5270
        %v5800 = vsel %vm722, %v5768, %v5272
        %v5802 = vsel %vm722, %v5770, %v5274
        %v5804 = vsel %vm722, %v5772, %v5276
        %v5806 = vsel %vm722, %v5774, %v5278
        %v5808 = vsel %vm722, %v5776, %v5280
        %v5810 = vsel %vm722, %v5778, %v5282
        %v5812 = vsel %vm722, %v5780, %v5284
        %v5814 = vsel %vm722, %v5782, %v5286
        %v5816 = vsel %vm722, %v5784, %v5288
        %v5818 = vsel %vm722, %v5786, %v5290
        %v5820 = vsel %vm722, %v5788, %v5292
        %v5822 = vsel %vm722, %v5790, %v5294
        %v5824 = vsel %vm754, %v5792, %v5344
        %v5826 = vsel %vm754, %v5794, %v5346
        %v5828 = vsel %vm754, %v5796, %v5348
        %v5830 = vsel %vm754, %v5798, %v5350
        %v5832 = vsel %vm754, %v5800, %v5352
        %v5834 = vsel %vm754, %v5802, %v5354
        %v5836 = vsel %vm754, %v5804, %v5356
        %v5838 = vsel %vm754, %v5806, %v5358
        %v5840 = vsel %vm754, %v5808, %v5360
        %v5842 = vsel %vm754, %v5810, %v5362
        %v5844 = vsel %vm754, %v5812, %v5364
        %v5846 = vsel %vm754, %v5814, %v5366
        %v5848 = vsel %vm754, %v5816, %v5368
        %v5850 = vsel %vm754, %v5818, %v5370
        %v5852 = vsel %vm754, %v5820, %v5372
        %v5854 = vsel %vm754, %v5822, %v5374
        %vm5855 = vcmask 326656
        %v5857 = vsel %vm5855, %v5824, %v5424
        %v5859 = vsel %vm5855, %v5826, %v5426
        %v5861 = vsel %vm5855, %v5828, %v5428
        %v5863 = vsel %vm5855, %v5830, %v5430
        %v5865 = vsel %vm5855, %v5832, %v5432
        %v5867 = vsel %vm5855, %v5834, %v5434
        %v5869 = vsel %vm5855, %v5836, %v5436
        %v5871 = vsel %vm5855, %v5838, %v5438
        %v5873 = vsel %vm5855, %v5840, %v5440
        %v5875 = vsel %vm5855, %v5842, %v5442
        %v5877 = vsel %vm5855, %v5844, %v5444
        %v5879 = vsel %vm5855, %v5846, %v5446
        %v5881 = vsel %vm5855, %v5848, %v5448
        %v5883 = vsel %vm5855, %v5850, %v5450
        %v5885 = vsel %vm5855, %v5852, %v5452
        %v5887 = vsel %vm5855, %v5854, %v5454
        %vm5888 = vcmask 392192
        %v5890 = vsel %vm5888, %v5857, %v5520
        %v5892 = vsel %vm5888, %v5859, %v5522
        %v5894 = vsel %vm5888, %v5861, %v5524
        %v5896 = vsel %vm5888, %v5863, %v5526
        %v5898 = vsel %vm5888, %v5865, %v5528
        %v5900 = vsel %vm5888, %v5867, %v5530
        %v5902 = vsel %vm5888, %v5869, %v5532
        %v5904 = vsel %vm5888, %v5871, %v5534
        %v5906 = vsel %vm5888, %v5873, %v5536
        %v5908 = vsel %vm5888, %v5875, %v5538
        %v5910 = vsel %vm5888, %v5877, %v5540
        %v5912 = vsel %vm5888, %v5879, %v5542
        %v5914 = vsel %vm5888, %v5881, %v5544
        %v5916 = vsel %vm5888, %v5883, %v5546
        %v5918 = vsel %vm5888, %v5885, %v5548
        %v5920 = vsel %vm5888, %v5887, %v5550
        %vm5921 = vcmask 457728
        %v5923 = vsel %vm5921, %v5890, %v5600
        %v5925 = vsel %vm5921, %v5892, %v5602
        %v5927 = vsel %vm5921, %v5894, %v5604
        %v5929 = vsel %vm5921, %v5896, %v5606
        %v5931 = vsel %vm5921, %v5898, %v5608
        %v5933 = vsel %vm5921, %v5900, %v5610
        %v5935 = vsel %vm5921, %v5902, %v5612
        %v5937 = vsel %vm5921, %v5904, %v5614
        %v5939 = vsel %vm5921, %v5906, %v5616
        %v5941 = vsel %vm5921, %v5908, %v5618
        %v5943 = vsel %vm5921, %v5910, %v5620
        %v5945 = vsel %vm5921, %v5912, %v5622
        %v5947 = vsel %vm5921, %v5914, %v5624
        %v5949 = vsel %vm5921, %v5916, %v5626
        %v5951 = vsel %vm5921, %v5918, %v5628
        %v5953 = vsel %vm5921, %v5920, %v5630
        %vm5954 = vcmask 523264
        %v5956 = vsel %vm5954, %v5923, %v5680
        %v5958 = vsel %vm5954, %v5925, %v5682
        %v5960 = vsel %vm5954, %v5927, %v5684
        %v5962 = vsel %vm5954, %v5929, %v5686
        %v5964 = vsel %vm5954, %v5931, %v5688
        %v5966 = vsel %vm5954, %v5933, %v5690
        %v5968 = vsel %vm5954, %v5935, %v5692
        %v5970 = vsel %vm5954, %v5937, %v5694
        %v5972 = vsel %vm5954, %v5939, %v5696
        %v5974 = vsel %vm5954, %v5941, %v5698
        %v5976 = vsel %vm5954, %v5943, %v5700
        %v5978 = vsel %vm5954, %v5945, %v5702
        %v5980 = vsel %vm5954, %v5947, %v5704
        %v5982 = vsel %vm5954, %v5949, %v5706
        %v5984 = vsel %vm5954, %v5951, %v5708
        %v5986 = vsel %vm5954, %v5953, %v5710
        %v5987 = vld [vmem:[%s5] sm:$0xf]
        %v5988 = vld [vmem:[%s5 + $0x4] sm:$0xf]
        %v5989 = vld [vmem:[%s5 + $0x8] sm:$0xf]
        %v5990 = vld [vmem:[%s5 + $0xc] sm:$0xf]
        %v5991 = vld [vmem:[%s5 + $0x10] sm:$0xf]
        %v5992 = vld [vmem:[%s5 + $0x14] sm:$0xf]
        %v5993 = vld [vmem:[%s5 + $0x18] sm:$0xf]
        %v5994 = vld [vmem:[%s5 + $0x1c] sm:$0xf]
        %v5995 = vld [vmem:[%s5 + $0x20] sm:$0xf]
        %v5996 = vld [vmem:[%s6] sm:$0x1]
        %v5998 = vlaneseq
        %v5999 = vshrl.u32 %v5998, 7
        %v6000 = vsub.s32 0, %v5999
        %v6001 = vrot.slane %v5996, %v6000
        %v6012 = vunpack.c.l.b16 %v5987
        %v6013 = vunpack.c.l.b16 %v5988
        %v6014 = vunpack.c.l.b16 %v5989
        %v6015 = vunpack.c.l.b16 %v5990
        %v6016 = vunpack.c.l.b16 %v5991
        %v6017 = vunpack.c.l.b16 %v5992
        %v6018 = vunpack.c.l.b16 %v5993
        %v6019 = vunpack.c.l.b16 %v5994
        %v6020 = vunpack.c.l.b16 %v5995
        %v6021 = vpack.c.b16 %v6013, %v6012
        %v6022 = vpack.c.b16 %v6015, %v6014
        %v6023 = vpack.c.b16 %v6017, %v6016
        %v6024 = vpack.c.b16 %v6019, %v6018
        %v6025 = vpack.c.b16 %v6020, %v6020
        %vm6030 = vcmask 588800
        %v6031 = vsel %vm6030, %v5956, 0
        %v6033 = vsel %vm6030, %v5958, 0
        %v6035 = vsel %vm6030, %v5960, 0
        %v6037 = vsel %vm6030, %v5962, 0
        %v6039 = vsel %vm6030, %v5964, 0
        %v6041 = vsel %vm6030, %v5966, 0
        %v6043 = vsel %vm6030, %v5968, 0
        %v6045 = vsel %vm6030, %v5970, 0
        %v6047 = vsel %vm6030, %v5972, 0
        %v6049 = vsel %vm6030, %v5974, 0
        %v6051 = vsel %vm6030, %v5976, 0
        %v6053 = vsel %vm6030, %v5978, 0
        %v6055 = vsel %vm6030, %v5980, 0
        %v6057 = vsel %vm6030, %v5982, 0
        %v6059 = vsel %vm6030, %v5984, 0
        %v6061 = vsel %vm6030, %v5986, 0
        %vm6063 = vcmask 1043456
        %v6065 = vsel %vm6063, %v6025, 0
        %6067 = vmatprep.subr.bf16.mxu0 0
        %6068 = vmatpush1.bf16.msra.mxu0 %v6021
        %6069 = vmatprep.subr.bf16.mxu0 0
        %6070 = vmatpush1.bf16.msra.mxu0 %v6022
        %6071 = vmatprep.subr.bf16.mxu0 0
        %6072 = vmatpush1.bf16.msra.mxu0 %v6023
        %6073 = vmatprep.subr.bf16.mxu0 0
        %6074 = vmatpush1.bf16.msra.mxu0 %v6024
        %6075 = vmatprep.subr.bf16.mxu0 0
        %6076 = vmatpush1.bf16.msra.mxu0 %v6065
        %6077 = vmatprep.subr.bf16.mxu0 0
        %6078 = vmatpush1.bf16.msra.mxu0 0
        %6079 = vmatprep.subr.bf16.mxu0 0
        %6080 = vmatpush1.bf16.msra.mxu0 0
        %6081 = vmatprep.subr.bf16.mxu0 0
        %6082 = vmatpush1.bf16.msra.mxu0 0
        %6083 = vmatprep.subr.bf16.mxu0 0
        %6084 = vmatpush1.bf16.msra.mxu0 0
        %6085 = vmatprep.subr.bf16.mxu0 0
        %6086 = vmatpush1.bf16.msra.mxu0 0
        %6087 = vmatprep.subr.bf16.mxu0 0
        %6088 = vmatpush1.bf16.msra.mxu0 0
        %6089 = vmatprep.subr.bf16.mxu0 0
        %6090 = vmatpush1.bf16.msra.mxu0 0
        %6091 = vmatprep.subr.bf16.mxu0 0
        %6092 = vmatpush1.bf16.msra.mxu0 0
        %6093 = vmatprep.subr.bf16.mxu0 0
        %6094 = vmatpush1.bf16.msra.mxu0 0
        %6095 = vmatprep.subr.bf16.mxu0 0
        %6096 = vmatpush1.bf16.msra.mxu0 0
        %6097 = vmatprep.subr.bf16.mxu0 0
        %6098 = vmatpush1.bf16.msra.mxu0 0
        %6099 = vmatprep.mubr.bf16.mxu0 0
        %6100 = vmatmul.mubr.bf16.gmra.mrb[0].mxu0 %v6031
        %v6101 = vpop.f32.mrb[0].mxu0
        %v6102 = vadd.f32 %v6001, %v6101
        %v6103 = vpop.f32.mrb[0].mxu0
        %v6104 = vpop.f32.mrb[0].mxu0
        %v6105 = vadd.f32 %v6001, %v6104
        %v6106 = vpop.f32.mrb[0].mxu0
        %6107 = vmatprep.mubr.bf16.mxu0 0
        %6108 = vmatmul.mubr.bf16.gmra.mrb[0].mxu0 %v6033
        %v6109 = vpop.f32.mrb[0].mxu0
        %v6110 = vadd.f32 %v6001, %v6109
        %v6111 = vpop.f32.mrb[0].mxu0
        %v6112 = vpop.f32.mrb[0].mxu0
        %v6113 = vadd.f32 %v6001, %v6112
        %v6114 = vpop.f32.mrb[0].mxu0
        %6115 = vmatprep.mubr.bf16.mxu0 0
        %6116 = vmatmul.mubr.bf16.gmra.mrb[0].mxu0 %v6035
        %v6117 = vpop.f32.mrb[0].mxu0
        %v6118 = vadd.f32 %v6001, %v6117
        %v6119 = vpop.f32.mrb[0].mxu0
        %v6120 = vpop.f32.mrb[0].mxu0
        %v6121 = vadd.f32 %v6001, %v6120
        %v6122 = vpop.f32.mrb[0].mxu0
        %6123 = vmatprep.mubr.bf16.mxu0 0
        %6124 = vmatmul.mubr.bf16.gmra.mrb[0].mxu0 %v6037
        %v6125 = vpop.f32.mrb[0].mxu0
        %v6126 = vadd.f32 %v6001, %v6125
        %v6127 = vpop.f32.mrb[0].mxu0
        %v6128 = vpop.f32.mrb[0].mxu0
        %v6129 = vadd.f32 %v6001, %v6128
        %v6130 = vpop.f32.mrb[0].mxu0
        %6131 = vmatprep.mubr.bf16.mxu0 0
        %6132 = vmatmul.mubr.bf16.gmra.mrb[0].mxu0 %v6039
        %v6133 = vpop.f32.mrb[0].mxu0
        %v6134 = vadd.f32 %v6001, %v6133
        %v6135 = vpop.f32.mrb[0].mxu0
        %v6136 = vpop.f32.mrb[0].mxu0
        %v6137 = vadd.f32 %v6001, %v6136
        %v6138 = vpop.f32.mrb[0].mxu0
        %6139 = vmatprep.mubr.bf16.mxu0 0
        %6140 = vmatmul.mubr.bf16.gmra.mrb[0].mxu0 %v6041
        %v6141 = vpop.f32.mrb[0].mxu0
        %v6142 = vadd.f32 %v6001, %v6141
        %v6143 = vpop.f32.mrb[0].mxu0
        %v6144 = vpop.f32.mrb[0].mxu0
        %v6145 = vadd.f32 %v6001, %v6144
        %v6146 = vpop.f32.mrb[0].mxu0
        %6147 = vmatprep.mubr.bf16.mxu0 0
        %6148 = vmatmul.mubr.bf16.gmra.mrb[0].mxu0 %v6043
        %v6149 = vpop.f32.mrb[0].mxu0
        %v6150 = vadd.f32 %v6001, %v6149
        %v6151 = vpop.f32.mrb[0].mxu0
        %v6152 = vpop.f32.mrb[0].mxu0
        %v6153 = vadd.f32 %v6001, %v6152
        %v6154 = vpop.f32.mrb[0].mxu0
        %6155 = vmatprep.mubr.bf16.mxu0 0
        %6156 = vmatmul.mubr.bf16.gmra.mrb[0].mxu0 %v6045
        %v6157 = vpop.f32.mrb[0].mxu0
        %v6158 = vadd.f32 %v6001, %v6157
        %v6159 = vpop.f32.mrb[0].mxu0
        %v6160 = vpop.f32.mrb[0].mxu0
        %v6161 = vadd.f32 %v6001, %v6160
        %v6162 = vpop.f32.mrb[0].mxu0
        %6163 = vmatprep.mubr.bf16.mxu0 0
        %6164 = vmatmul.mubr.bf16.gmra.mrb[0].mxu0 %v6047
        %v6165 = vpop.f32.mrb[0].mxu0
        %v6166 = vadd.f32 %v6001, %v6165
        %v6167 = vpop.f32.mrb[0].mxu0
        %v6168 = vpop.f32.mrb[0].mxu0
        %v6169 = vadd.f32 %v6001, %v6168
        %v6170 = vpop.f32.mrb[0].mxu0
        %6171 = vmatprep.mubr.bf16.mxu0 0
        %6172 = vmatmul.mubr.bf16.gmra.mrb[0].mxu0 %v6049
        %v6173 = vpop.f32.mrb[0].mxu0
        %v6174 = vadd.f32 %v6001, %v6173
        %v6175 = vpop.f32.mrb[0].mxu0
        %v6176 = vpop.f32.mrb[0].mxu0
        %v6177 = vadd.f32 %v6001, %v6176
        %v6178 = vpop.f32.mrb[0].mxu0
        %6179 = vmatprep.mubr.bf16.mxu0 0
        %6180 = vmatmul.mubr.bf16.gmra.mrb[0].mxu0 %v6051
        %v6181 = vpop.f32.mrb[0].mxu0
        %v6182 = vadd.f32 %v6001, %v6181
        %v6183 = vpop.f32.mrb[0].mxu0
        %v6184 = vpop.f32.mrb[0].mxu0
        %v6185 = vadd.f32 %v6001, %v6184
        %v6186 = vpop.f32.mrb[0].mxu0
        %6187 = vmatprep.mubr.bf16.mxu0 0
        %6188 = vmatmul.mubr.bf16.gmra.mrb[0].mxu0 %v6053
        %v6189 = vpop.f32.mrb[0].mxu0
        %v6190 = vadd.f32 %v6001, %v6189
        %v6191 = vpop.f32.mrb[0].mxu0
        %v6192 = vpop.f32.mrb[0].mxu0
        %v6193 = vadd.f32 %v6001, %v6192
        %v6194 = vpop.f32.mrb[0].mxu0
        %6195 = vmatprep.mubr.bf16.mxu0 0
        %6196 = vmatmul.mubr.bf16.gmra.mrb[0].mxu0 %v6055
        %v6197 = vpop.f32.mrb[0].mxu0
        %v6198 = vadd.f32 %v6001, %v6197
        %v6199 = vpop.f32.mrb[0].mxu0
        %v6200 = vpop.f32.mrb[0].mxu0
        %v6201 = vadd.f32 %v6001, %v6200
        %v6202 = vpop.f32.mrb[0].mxu0
        %6203 = vmatprep.mubr.bf16.mxu0 0
        %6204 = vmatmul.mubr.bf16.gmra.mrb[0].mxu0 %v6057
        %v6205 = vpop.f32.mrb[0].mxu0
        %v6206 = vadd.f32 %v6001, %v6205
        %v6207 = vpop.f32.mrb[0].mxu0
        %v6208 = vpop.f32.mrb[0].mxu0
        %v6209 = vadd.f32 %v6001, %v6208
        %v6210 = vpop.f32.mrb[0].mxu0
        %6211 = vmatprep.mubr.bf16.mxu0 0
        %6212 = vmatmul.mubr.bf16.gmra.mrb[0].mxu0 %v6059
        %v6213 = vpop.f32.mrb[0].mxu0
        %v6214 = vadd.f32 %v6001, %v6213
        %v6215 = vpop.f32.mrb[0].mxu0
        %v6216 = vpop.f32.mrb[0].mxu0
        %v6217 = vadd.f32 %v6001, %v6216
        %v6218 = vpop.f32.mrb[0].mxu0
        %6219 = vmatprep.mubr.bf16.mxu0 0
        %6220 = vmatmul.mubr.bf16.gmra.mrb[0].mxu0 %v6061
        %v6221 = vpop.f32.mrb[0].mxu0
        %v6222 = vadd.f32 %v6001, %v6221
        %v6223 = vpop.f32.mrb[0].mxu0
        %v6224 = vpop.f32.mrb[0].mxu0
        %v6225 = vadd.f32 %v6001, %v6224
        %v6226 = vpop.f32.mrb[0].mxu0
        %6227 = vdwg.mxu0
        %v6228 = vmax.f32 %v6102, 0.0
        %v6229 = vmax.f32 %v6105, 0.0
        %v6230 = vmax.f32 %v6110, 0.0
        %v6231 = vmax.f32 %v6113, 0.0
        %v6232 = vmax.f32 %v6118, 0.0
        %v6233 = vmax.f32 %v6121, 0.0
        %v6234 = vmax.f32 %v6126, 0.0
        %v6235 = vmax.f32 %v6129, 0.0
        %v6236 = vmax.f32 %v6134, 0.0
        %v6237 = vmax.f32 %v6137, 0.0
        %v6238 = vmax.f32 %v6142, 0.0
        %v6239 = vmax.f32 %v6145, 0.0
        %v6240 = vmax.f32 %v6150, 0.0
        %v6241 = vmax.f32 %v6153, 0.0
        %v6242 = vmax.f32 %v6158, 0.0
        %v6243 = vmax.f32 %v6161, 0.0
        %v6244 = vmax.f32 %v6166, 0.0
        %v6245 = vmax.f32 %v6169, 0.0
        %v6246 = vmax.f32 %v6174, 0.0
        %v6247 = vmax.f32 %v6177, 0.0
        %v6248 = vmax.f32 %v6182, 0.0
        %v6249 = vmax.f32 %v6185, 0.0
        %v6250 = vmax.f32 %v6190, 0.0
        %v6251 = vmax.f32 %v6193, 0.0
        %v6252 = vmax.f32 %v6198, 0.0
        %v6253 = vmax.f32 %v6201, 0.0
        %v6254 = vmax.f32 %v6206, 0.0
        %v6255 = vmax.f32 %v6209, 0.0
        %v6256 = vmax.f32 %v6214, 0.0
        %v6257 = vmax.f32 %v6217, 0.0
        %v6258 = vmax.f32 %v6222, 0.0
        %v6259 = vmax.f32 %v6225, 0.0
        %6260 = vst.msk [vmem:[#allocation3] sm:$0xf] %vm2409, 0
        %6261 = vst.msk [vmem:[#allocation3 + $0x4] sm:$0xf] %vm2409, 0
        %vm6262 = vcmask 24576
        %6263 = vst.msk [vmem:[#allocation3 + $0x8] sm:$0x1] %vm6262, 0
        %6264 = vst.msk [vmem:[#allocation3 + $0xc] sm:$0xf] %vm2409, 0
        %6265 = vst.msk [vmem:[#allocation3 + $0x10] sm:$0xf] %vm2409, 0
        %6266 = vst.msk [vmem:[#allocation3 + $0x14] sm:$0x1] %vm6262, 0
        %6267 = vst.msk [vmem:[#allocation3 + $0x18] sm:$0xf] %vm2409, 0
        %6268 = vst.msk [vmem:[#allocation3 + $0x1c] sm:$0xf] %vm2409, 0
        %6269 = vst.msk [vmem:[#allocation3 + $0x20] sm:$0x1] %vm6262, 0
        %6270 = vst.msk [vmem:[#allocation3 + $0x24] sm:$0xf] %vm2409, 0
        %6271 = vst.msk [vmem:[#allocation3 + $0x28] sm:$0xf] %vm2409, 0
        %6272 = vst.msk [vmem:[#allocation3 + $0x2c] sm:$0x1] %vm6262, 0
        %6273 = vst.msk [vmem:[#allocation3 + $0x30] sm:$0xf] %vm2409, 0
        %6274 = vst.msk [vmem:[#allocation3 + $0x34] sm:$0xf] %vm2409, 0
        %6275 = vst.msk [vmem:[#allocation3 + $0x38] sm:$0x1] %vm6262, 0
        %6276 = vst.msk [vmem:[#allocation3 + $0x3c] sm:$0xf] %vm2409, 0
        %6277 = vst.msk [vmem:[#allocation3 + $0x40] sm:$0xf] %vm2409, 0
        %6278 = vst.msk [vmem:[#allocation3 + $0x44] sm:$0x1] %vm6262, 0
        %6279 = vst.msk [vmem:[#allocation3 + $0x48] sm:$0xf] %vm2409, 0
        %6280 = vst.msk [vmem:[#allocation3 + $0x4c] sm:$0xf] %vm2409, 0
        %6281 = vst.msk [vmem:[#allocation3 + $0x50] sm:$0x1] %vm6262, 0
        %6282 = vst.msk [vmem:[#allocation3 + $0x54] sm:$0xf] %vm2409, 0
        %6283 = vst.msk [vmem:[#allocation3 + $0x58] sm:$0xf] %vm2409, 0
        %6284 = vst.msk [vmem:[#allocation3 + $0x5c] sm:$0x1] %vm6262, 0
        %6285 = vst.msk [vmem:[#allocation3 + $0x60] sm:$0xf] %vm2409, 0
        %6286 = vst.msk [vmem:[#allocation3 + $0x64] sm:$0xf] %vm2409, 0
        %6287 = vst.msk [vmem:[#allocation3 + $0x68] sm:$0x1] %vm6262, 0
        %6288 = vst.msk [vmem:[#allocation3 + $0x6c] sm:$0xf] %vm2409, 0
        %6289 = vst.msk [vmem:[#allocation3 + $0x70] sm:$0xf] %vm2409, 0
        %6290 = vst.msk [vmem:[#allocation3 + $0x74] sm:$0x1] %vm6262, 0
        %6291 = vst.msk [vmem:[#allocation3 + $0x78] sm:$0xf] %vm2409, 0
        %6292 = vst.msk [vmem:[#allocation3 + $0x7c] sm:$0xf] %vm2409, 0
        %6293 = vst.msk [vmem:[#allocation3 + $0x80] sm:$0x1] %vm6262, 0
        %6294 = vst.msk [vmem:[#allocation3 + $0x84] sm:$0xf] %vm2409, 0
        %6295 = vst.msk [vmem:[#allocation3 + $0x88] sm:$0xf] %vm2409, 0
        %6296 = vst.msk [vmem:[#allocation3 + $0x8c] sm:$0x1] %vm6262, 0
        %6297 = vst.msk [vmem:[#allocation3 + $0x90] sm:$0xf] %vm2409, 0
        %6298 = vst.msk [vmem:[#allocation3 + $0x94] sm:$0xf] %vm2409, 0
        %6299 = vst.msk [vmem:[#allocation3 + $0x98] sm:$0x1] %vm6262, 0
        %6300 = vst.msk [vmem:[#allocation3 + $0x9c] sm:$0xf] %vm2409, 0
        %6301 = vst.msk [vmem:[#allocation3 + $0xa0] sm:$0xf] %vm2409, 0
        %6302 = vst.msk [vmem:[#allocation3 + $0xa4] sm:$0x1] %vm6262, 0
        %6303 = vst.msk [vmem:[#allocation3 + $0xa8] sm:$0xf] %vm2409, 0
        %6304 = vst.msk [vmem:[#allocation3 + $0xac] sm:$0xf] %vm2409, 0
        %6305 = vst.msk [vmem:[#allocation3 + $0xb0] sm:$0x1] %vm6262, 0
        %6306 = vst.msk [vmem:[#allocation3 + $0xb4] sm:$0xf] %vm2409, 0
        %6307 = vst.msk [vmem:[#allocation3 + $0xb8] sm:$0xf] %vm2409, 0
        %6308 = vst.msk [vmem:[#allocation3 + $0xbc] sm:$0x1] %vm6262, 0
        %6309 = vst.msk [vmem:[#allocation3 + $0xc0] sm:$0xf] %vm2409, 0
        %6310 = vst.msk [vmem:[#allocation3 + $0xc4] sm:$0xf] %vm2409, 0
        %6311 = vst.msk [vmem:[#allocation3 + $0xc8] sm:$0x1] %vm6262, 0
        %6312 = vst.msk [vmem:[#allocation3 + $0xcc] sm:$0xf] %vm2409, 0
        %6313 = vst.msk [vmem:[#allocation3 + $0xd0] sm:$0xf] %vm2409, 0
        %6314 = vst.msk [vmem:[#allocation3 + $0xd4] sm:$0x1] %vm6262, 0
        %v6315 = vpack.c.bf16 %v6229, %v6228
        %v6316 = vpack.c.bf16 %v6231, %v6230
        %v6317 = vpack.c.bf16 %v6233, %v6232
        %v6318 = vpack.c.bf16 %v6235, %v6234
        %v6319 = vpack.c.bf16 %v6237, %v6236
        %v6320 = vpack.c.bf16 %v6239, %v6238
        %v6321 = vpack.c.bf16 %v6241, %v6240
        %v6322 = vpack.c.bf16 %v6243, %v6242
        %v6323 = vpack.c.bf16 %v6245, %v6244
        %v6324 = vpack.c.bf16 %v6247, %v6246
        %v6325 = vpack.c.bf16 %v6249, %v6248
        %v6326 = vpack.c.bf16 %v6251, %v6250
        %v6327 = vpack.c.bf16 %v6253, %v6252
        %v6328 = vpack.c.bf16 %v6255, %v6254
        %v6329 = vpack.c.bf16 %v6257, %v6256
        %v6330 = vpack.c.bf16 %v6259, %v6258
        %v6347 = vunpack.c.l.b16 %v6315
        %v6348 = vunpack.c.h.b16 %v6315
        %v6349 = vunpack.c.l.b16 %v6316
        %v6350 = vunpack.c.h.b16 %v6316
        %v6351 = vunpack.c.l.b16 %v6317
        %v6352 = vunpack.c.h.b16 %v6317
        %v6353 = vunpack.c.l.b16 %v6318
        %v6354 = vunpack.c.h.b16 %v6318
        %v6355 = vunpack.c.l.b16 %v6319
        %v6356 = vunpack.c.h.b16 %v6319
        %v6357 = vunpack.c.l.b16 %v6320
        %v6358 = vunpack.c.h.b16 %v6320
        %v6359 = vunpack.c.l.b16 %v6321
        %v6360 = vunpack.c.h.b16 %v6321
        %v6361 = vunpack.c.l.b16 %v6322
        %v6362 = vunpack.c.h.b16 %v6322
        %v6363 = vunpack.c.l.b16 %v6323
        %v6364 = vunpack.c.h.b16 %v6323
        %v6365 = vunpack.c.l.b16 %v6324
        %v6366 = vunpack.c.h.b16 %v6324
        %v6367 = vunpack.c.l.b16 %v6325
        %v6368 = vunpack.c.h.b16 %v6325
        %v6369 = vunpack.c.l.b16 %v6326
        %v6370 = vunpack.c.h.b16 %v6326
        %v6371 = vunpack.c.l.b16 %v6327
        %v6372 = vunpack.c.h.b16 %v6327
        %v6373 = vunpack.c.l.b16 %v6328
        %v6374 = vunpack.c.h.b16 %v6328
        %v6375 = vunpack.c.l.b16 %v6329
        %v6376 = vunpack.c.h.b16 %v6329
        %v6377 = vunpack.c.l.b16 %v6330
        %v6378 = vunpack.c.h.b16 %v6330
        %v6379 = vpack.c.b16 %v6347, %v6347
        %v6380 = vpack.c.b16 %v6348, %v6348
        %v6381 = vpack.c.b16 %v6349, %v6349
        %v6382 = vpack.c.b16 %v6350, %v6350
        %v6383 = vpack.c.b16 %v6351, %v6351
        %v6384 = vpack.c.b16 %v6352, %v6352
        %v6385 = vpack.c.b16 %v6353, %v6353
        %v6386 = vpack.c.b16 %v6354, %v6354
        %v6387 = vpack.c.b16 %v6355, %v6355
        %v6388 = vpack.c.b16 %v6356, %v6356
        %v6389 = vpack.c.b16 %v6357, %v6357
        %v6390 = vpack.c.b16 %v6358, %v6358
        %v6391 = vpack.c.b16 %v6359, %v6359
        %v6392 = vpack.c.b16 %v6360, %v6360
        %v6393 = vpack.c.b16 %v6361, %v6361
        %v6394 = vpack.c.b16 %v6362, %v6362
        %v6395 = vpack.c.b16 %v6363, %v6363
        %v6396 = vpack.c.b16 %v6364, %v6364
        %v6397 = vpack.c.b16 %v6365, %v6365
        %v6398 = vpack.c.b16 %v6366, %v6366
        %v6399 = vpack.c.b16 %v6367, %v6367
        %v6400 = vpack.c.b16 %v6368, %v6368
        %v6401 = vpack.c.b16 %v6369, %v6369
        %v6402 = vpack.c.b16 %v6370, %v6370
        %v6403 = vpack.c.b16 %v6371, %v6371
        %v6404 = vpack.c.b16 %v6372, %v6372
        %v6405 = vpack.c.b16 %v6373, %v6373
        %v6406 = vpack.c.b16 %v6374, %v6374
        %v6407 = vpack.c.b16 %v6375, %v6375
        %v6408 = vpack.c.b16 %v6376, %v6376
        %v6409 = vpack.c.b16 %v6377, %v6377
        %v6410 = vpack.c.b16 %v6378, %v6378
        %v6412 = vshrl.u32 %v6379, 16
        %v6414 = vrot.slane %v6412, 7
        %v6415 = vshll.u32 %v6379, 16
        %v6417 = vor.u32 %v6414, %v6415
        %v6418 = vrot.slane %v6414, 4
        %v6420 = vshrl.u32 %v6380, 16
        %v6422 = vrot.slane %v6420, 7
        %v6423 = vshll.u32 %v6380, 16
        %v6425 = vor.u32 %v6422, %v6423
        %v6426 = vsel %vm2081, %v6418, %v6425
        %v6427 = vrot.slane %v6422, 4
        %v6429 = vshrl.u32 %v6381, 16
        %v6431 = vrot.slane %v6429, 7
        %v6432 = vshll.u32 %v6381, 16
        %v6434 = vor.u32 %v6431, %v6432
        %v6435 = vrot.slane %v6431, 4
        %v6437 = vshrl.u32 %v6382, 16
        %v6439 = vrot.slane %v6437, 7
        %v6440 = vshll.u32 %v6382, 16
        %v6442 = vor.u32 %v6439, %v6440
        %v6443 = vsel %vm2081, %v6435, %v6442
        %v6444 = vrot.slane %v6439, 4
        %v6446 = vshrl.u32 %v6383, 16
        %v6448 = vrot.slane %v6446, 7
        %v6449 = vshll.u32 %v6383, 16
        %v6451 = vor.u32 %v6448, %v6449
        %v6452 = vrot.slane %v6448, 4
        %v6454 = vshrl.u32 %v6384, 16
        %v6456 = vrot.slane %v6454, 7
        %v6457 = vshll.u32 %v6384, 16
        %v6459 = vor.u32 %v6456, %v6457
        %v6460 = vsel %vm2081, %v6452, %v6459
        %v6461 = vrot.slane %v6456, 4
        %v6463 = vshrl.u32 %v6385, 16
        %v6465 = vrot.slane %v6463, 7
        %v6466 = vshll.u32 %v6385, 16
        %v6468 = vor.u32 %v6465, %v6466
        %v6469 = vrot.slane %v6465, 4
        %v6471 = vshrl.u32 %v6386, 16
        %v6473 = vrot.slane %v6471, 7
        %v6474 = vshll.u32 %v6386, 16
        %v6476 = vor.u32 %v6473, %v6474
        %v6477 = vsel %vm2081, %v6469, %v6476
        %v6478 = vrot.slane %v6473, 4
        %v6480 = vshrl.u32 %v6387, 16
        %v6482 = vrot.slane %v6480, 7
        %v6483 = vshll.u32 %v6387, 16
        %v6485 = vor.u32 %v6482, %v6483
        %v6486 = vrot.slane %v6482, 4
        %v6488 = vshrl.u32 %v6388, 16
        %v6490 = vrot.slane %v6488, 7
        %v6491 = vshll.u32 %v6388, 16
        %v6493 = vor.u32 %v6490, %v6491
        %v6494 = vsel %vm2081, %v6486, %v6493
        %v6495 = vrot.slane %v6490, 4
        %v6497 = vshrl.u32 %v6389, 16
        %v6499 = vrot.slane %v6497, 7
        %v6500 = vshll.u32 %v6389, 16
        %v6502 = vor.u32 %v6499, %v6500
        %v6503 = vrot.slane %v6499, 4
        %v6505 = vshrl.u32 %v6390, 16
        %v6507 = vrot.slane %v6505, 7
        %v6508 = vshll.u32 %v6390, 16
        %v6510 = vor.u32 %v6507, %v6508
        %v6511 = vsel %vm2081, %v6503, %v6510
        %v6512 = vrot.slane %v6507, 4
        %v6514 = vshrl.u32 %v6391, 16
        %v6516 = vrot.slane %v6514, 7
        %v6517 = vshll.u32 %v6391, 16
        %v6519 = vor.u32 %v6516, %v6517
        %v6520 = vrot.slane %v6516, 4
        %v6522 = vshrl.u32 %v6392, 16
        %v6524 = vrot.slane %v6522, 7
        %v6525 = vshll.u32 %v6392, 16
        %v6527 = vor.u32 %v6524, %v6525
        %v6528 = vsel %vm2081, %v6520, %v6527
        %v6529 = vrot.slane %v6524, 4
        %v6531 = vshrl.u32 %v6393, 16
        %v6533 = vrot.slane %v6531, 7
        %v6534 = vshll.u32 %v6393, 16
        %v6536 = vor.u32 %v6533, %v6534
        %v6537 = vrot.slane %v6533, 4
        %v6539 = vshrl.u32 %v6394, 16
        %v6541 = vrot.slane %v6539, 7
        %v6542 = vshll.u32 %v6394, 16
        %v6544 = vor.u32 %v6541, %v6542
        %v6545 = vsel %vm2081, %v6537, %v6544
        %v6546 = vrot.slane %v6541, 4
        %v6548 = vshrl.u32 %v6395, 16
        %v6550 = vrot.slane %v6548, 7
        %v6551 = vshll.u32 %v6395, 16
        %v6553 = vor.u32 %v6550, %v6551
        %v6554 = vrot.slane %v6550, 4
        %v6556 = vshrl.u32 %v6396, 16
        %v6558 = vrot.slane %v6556, 7
        %v6559 = vshll.u32 %v6396, 16
        %v6561 = vor.u32 %v6558, %v6559
        %v6562 = vsel %vm2081, %v6554, %v6561
        %v6563 = vrot.slane %v6558, 4
        %v6565 = vshrl.u32 %v6397, 16
        %v6567 = vrot.slane %v6565, 7
        %v6568 = vshll.u32 %v6397, 16
        %v6570 = vor.u32 %v6567, %v6568
        %v6571 = vrot.slane %v6567, 4
        %v6573 = vshrl.u32 %v6398, 16
        %v6575 = vrot.slane %v6573, 7
        %v6576 = vshll.u32 %v6398, 16
        %v6578 = vor.u32 %v6575, %v6576
        %v6579 = vsel %vm2081, %v6571, %v6578
        %v6580 = vrot.slane %v6575, 4
        %v6582 = vshrl.u32 %v6399, 16
        %v6584 = vrot.slane %v6582, 7
        %v6585 = vshll.u32 %v6399, 16
        %v6587 = vor.u32 %v6584, %v6585
        %v6588 = vrot.slane %v6584, 4
        %v6590 = vshrl.u32 %v6400, 16
        %v6592 = vrot.slane %v6590, 7
        %v6593 = vshll.u32 %v6400, 16
        %v6595 = vor.u32 %v6592, %v6593
        %v6596 = vsel %vm2081, %v6588, %v6595
        %v6597 = vrot.slane %v6592, 4
        %v6599 = vshrl.u32 %v6401, 16
        %v6601 = vrot.slane %v6599, 7
        %v6602 = vshll.u32 %v6401, 16
        %v6604 = vor.u32 %v6601, %v6602
        %v6605 = vrot.slane %v6601, 4
        %v6607 = vshrl.u32 %v6402, 16
        %v6609 = vrot.slane %v6607, 7
        %v6610 = vshll.u32 %v6402, 16
        %v6612 = vor.u32 %v6609, %v6610
        %v6613 = vsel %vm2081, %v6605, %v6612
        %v6614 = vrot.slane %v6609, 4
        %v6616 = vshrl.u32 %v6403, 16
        %v6618 = vrot.slane %v6616, 7
        %v6619 = vshll.u32 %v6403, 16
        %v6621 = vor.u32 %v6618, %v6619
        %v6622 = vrot.slane %v6618, 4
        %v6624 = vshrl.u32 %v6404, 16
        %v6626 = vrot.slane %v6624, 7
        %v6627 = vshll.u32 %v6404, 16
        %v6629 = vor.u32 %v6626, %v6627
        %v6630 = vsel %vm2081, %v6622, %v6629
        %v6631 = vrot.slane %v6626, 4
        %v6633 = vshrl.u32 %v6405, 16
        %v6635 = vrot.slane %v6633, 7
        %v6636 = vshll.u32 %v6405, 16
        %v6638 = vor.u32 %v6635, %v6636
        %v6639 = vrot.slane %v6635, 4
        %v6641 = vshrl.u32 %v6406, 16
        %v6643 = vrot.slane %v6641, 7
        %v6644 = vshll.u32 %v6406, 16
        %v6646 = vor.u32 %v6643, %v6644
        %v6647 = vsel %vm2081, %v6639, %v6646
        %v6648 = vrot.slane %v6643, 4
        %v6650 = vshrl.u32 %v6407, 16
        %v6652 = vrot.slane %v6650, 7
        %v6653 = vshll.u32 %v6407, 16
        %v6655 = vor.u32 %v6652, %v6653
        %v6656 = vrot.slane %v6652, 4
        %v6658 = vshrl.u32 %v6408, 16
        %v6660 = vrot.slane %v6658, 7
        %v6661 = vshll.u32 %v6408, 16
        %v6663 = vor.u32 %v6660, %v6661
        %v6664 = vsel %vm2081, %v6656, %v6663
        %v6665 = vrot.slane %v6660, 4
        %v6667 = vshrl.u32 %v6409, 16
        %v6669 = vrot.slane %v6667, 7
        %v6670 = vshll.u32 %v6409, 16
        %v6672 = vor.u32 %v6669, %v6670
        %v6673 = vrot.slane %v6669, 4
        %v6675 = vshrl.u32 %v6410, 16
        %v6677 = vrot.slane %v6675, 7
        %v6678 = vshll.u32 %v6410, 16
        %v6680 = vor.u32 %v6677, %v6678
        %v6681 = vsel %vm2081, %v6673, %v6680
        %v6682 = vrot.slane %v6677, 4
        %s6731 = scalar_lea.vmem [#allocation3], 12
        %v6732 = vld [vmem:[%s6731] sm:$0xf]
        %v6733 = vsel %vm2405, %v6417, %v6732
        %6734 = vst [vmem:[%s6731] sm:$0xf] %v6733
        %6735 = vst.msk [vmem:[%s6731 + $0x4] sm:$0xf] %vm2409, %v6426
        %v6736 = vld [vmem:[%s6731 + $0x8] sm:$0x1]
        %v6737 = vsel %vm2412, %v6427, %v6736
        %6738 = vst [vmem:[%s6731 + $0x8] sm:$0x1] %v6737
        %v6739 = vld [vmem:[%s6731 + $0xc] sm:$0xf]
        %v6740 = vsel %vm2405, %v6434, %v6739
        %6741 = vst [vmem:[%s6731 + $0xc] sm:$0xf] %v6740
        %6742 = vst.msk [vmem:[%s6731 + $0x10] sm:$0xf] %vm2409, %v6443
        %v6743 = vld [vmem:[%s6731 + $0x14] sm:$0x1]
        %v6744 = vsel %vm2412, %v6444, %v6743
        %6745 = vst [vmem:[%s6731 + $0x14] sm:$0x1] %v6744
        %v6746 = vld [vmem:[%s6731 + $0x18] sm:$0xf]
        %v6747 = vsel %vm2405, %v6451, %v6746
        %6748 = vst [vmem:[%s6731 + $0x18] sm:$0xf] %v6747
        %6749 = vst.msk [vmem:[%s6731 + $0x1c] sm:$0xf] %vm2409, %v6460
        %v6750 = vld [vmem:[%s6731 + $0x20] sm:$0x1]
        %v6751 = vsel %vm2412, %v6461, %v6750
        %6752 = vst [vmem:[%s6731 + $0x20] sm:$0x1] %v6751
        %v6753 = vld [vmem:[%s6731 + $0x24] sm:$0xf]
        %v6754 = vsel %vm2405, %v6468, %v6753
        %6755 = vst [vmem:[%s6731 + $0x24] sm:$0xf] %v6754
        %6756 = vst.msk [vmem:[%s6731 + $0x28] sm:$0xf] %vm2409, %v6477
        %v6757 = vld [vmem:[%s6731 + $0x2c] sm:$0x1]
        %v6758 = vsel %vm2412, %v6478, %v6757
        %6759 = vst [vmem:[%s6731 + $0x2c] sm:$0x1] %v6758
        %v6760 = vld [vmem:[%s6731 + $0x30] sm:$0xf]
        %v6761 = vsel %vm2405, %v6485, %v6760
        %6762 = vst [vmem:[%s6731 + $0x30] sm:$0xf] %v6761
        %6763 = vst.msk [vmem:[%s6731 + $0x34] sm:$0xf] %vm2409, %v6494
        %v6764 = vld [vmem:[%s6731 + $0x38] sm:$0x1]
        %v6765 = vsel %vm2412, %v6495, %v6764
        %6766 = vst [vmem:[%s6731 + $0x38] sm:$0x1] %v6765
        %v6767 = vld [vmem:[%s6731 + $0x3c] sm:$0xf]
        %v6768 = vsel %vm2405, %v6502, %v6767
        %6769 = vst [vmem:[%s6731 + $0x3c] sm:$0xf] %v6768
        %6770 = vst.msk [vmem:[%s6731 + $0x40] sm:$0xf] %vm2409, %v6511
        %v6771 = vld [vmem:[%s6731 + $0x44] sm:$0x1]
        %v6772 = vsel %vm2412, %v6512, %v6771
        %6773 = vst [vmem:[%s6731 + $0x44] sm:$0x1] %v6772
        %v6774 = vld [vmem:[%s6731 + $0x48] sm:$0xf]
        %v6775 = vsel %vm2405, %v6519, %v6774
        %6776 = vst [vmem:[%s6731 + $0x48] sm:$0xf] %v6775
        %6777 = vst.msk [vmem:[%s6731 + $0x4c] sm:$0xf] %vm2409, %v6528
        %v6778 = vld [vmem:[%s6731 + $0x50] sm:$0x1]
        %v6779 = vsel %vm2412, %v6529, %v6778
        %6780 = vst [vmem:[%s6731 + $0x50] sm:$0x1] %v6779
        %v6781 = vld [vmem:[%s6731 + $0x54] sm:$0xf]
        %v6782 = vsel %vm2405, %v6536, %v6781
        %6783 = vst [vmem:[%s6731 + $0x54] sm:$0xf] %v6782
        %6784 = vst.msk [vmem:[%s6731 + $0x58] sm:$0xf] %vm2409, %v6545
        %v6785 = vld [vmem:[%s6731 + $0x5c] sm:$0x1]
        %v6786 = vsel %vm2412, %v6546, %v6785
        %6787 = vst [vmem:[%s6731 + $0x5c] sm:$0x1] %v6786
        %v6788 = vld [vmem:[%s6731 + $0x60] sm:$0xf]
        %v6789 = vsel %vm2405, %v6553, %v6788
        %6790 = vst [vmem:[%s6731 + $0x60] sm:$0xf] %v6789
        %6791 = vst.msk [vmem:[%s6731 + $0x64] sm:$0xf] %vm2409, %v6562
        %v6792 = vld [vmem:[%s6731 + $0x68] sm:$0x1]
        %v6793 = vsel %vm2412, %v6563, %v6792
        %6794 = vst [vmem:[%s6731 + $0x68] sm:$0x1] %v6793
        %v6795 = vld [vmem:[%s6731 + $0x6c] sm:$0xf]
        %v6796 = vsel %vm2405, %v6570, %v6795
        %6797 = vst [vmem:[%s6731 + $0x6c] sm:$0xf] %v6796
        %6798 = vst.msk [vmem:[%s6731 + $0x70] sm:$0xf] %vm2409, %v6579
        %v6799 = vld [vmem:[%s6731 + $0x74] sm:$0x1]
        %v6800 = vsel %vm2412, %v6580, %v6799
        %6801 = vst [vmem:[%s6731 + $0x74] sm:$0x1] %v6800
        %v6802 = vld [vmem:[%s6731 + $0x78] sm:$0xf]
        %v6803 = vsel %vm2405, %v6587, %v6802
        %6804 = vst [vmem:[%s6731 + $0x78] sm:$0xf] %v6803
        %6805 = vst.msk [vmem:[%s6731 + $0x7c] sm:$0xf] %vm2409, %v6596
        %v6806 = vld [vmem:[%s6731 + $0x80] sm:$0x1]
        %v6807 = vsel %vm2412, %v6597, %v6806
        %6808 = vst [vmem:[%s6731 + $0x80] sm:$0x1] %v6807
        %v6809 = vld [vmem:[%s6731 + $0x84] sm:$0xf]
        %v6810 = vsel %vm2405, %v6604, %v6809
        %6811 = vst [vmem:[%s6731 + $0x84] sm:$0xf] %v6810
        %6812 = vst.msk [vmem:[%s6731 + $0x88] sm:$0xf] %vm2409, %v6613
        %v6813 = vld [vmem:[%s6731 + $0x8c] sm:$0x1]
        %v6814 = vsel %vm2412, %v6614, %v6813
        %6815 = vst [vmem:[%s6731 + $0x8c] sm:$0x1] %v6814
        %v6816 = vld [vmem:[%s6731 + $0x90] sm:$0xf]
        %v6817 = vsel %vm2405, %v6621, %v6816
        %6818 = vst [vmem:[%s6731 + $0x90] sm:$0xf] %v6817
        %6819 = vst.msk [vmem:[%s6731 + $0x94] sm:$0xf] %vm2409, %v6630
        %v6820 = vld [vmem:[%s6731 + $0x98] sm:$0x1]
        %v6821 = vsel %vm2412, %v6631, %v6820
        %6822 = vst [vmem:[%s6731 + $0x98] sm:$0x1] %v6821
        %v6823 = vld [vmem:[%s6731 + $0x9c] sm:$0xf]
        %v6824 = vsel %vm2405, %v6638, %v6823
        %6825 = vst [vmem:[%s6731 + $0x9c] sm:$0xf] %v6824
        %6826 = vst.msk [vmem:[%s6731 + $0xa0] sm:$0xf] %vm2409, %v6647
        %v6827 = vld [vmem:[%s6731 + $0xa4] sm:$0x1]
        %v6828 = vsel %vm2412, %v6648, %v6827
        %6829 = vst [vmem:[%s6731 + $0xa4] sm:$0x1] %v6828
        %v6830 = vld [vmem:[%s6731 + $0xa8] sm:$0xf]
        %v6831 = vsel %vm2405, %v6655, %v6830
        %6832 = vst [vmem:[%s6731 + $0xa8] sm:$0xf] %v6831
        %6833 = vst.msk [vmem:[%s6731 + $0xac] sm:$0xf] %vm2409, %v6664
        %v6834 = vld [vmem:[%s6731 + $0xb0] sm:$0x1]
        %v6835 = vsel %vm2412, %v6665, %v6834
        %6836 = vst [vmem:[%s6731 + $0xb0] sm:$0x1] %v6835
        %v6837 = vld [vmem:[%s6731 + $0xb4] sm:$0xf]
        %v6838 = vsel %vm2405, %v6672, %v6837
        %6839 = vst [vmem:[%s6731 + $0xb4] sm:$0xf] %v6838
        %6840 = vst.msk [vmem:[%s6731 + $0xb8] sm:$0xf] %vm2409, %v6681
        %v6841 = vld [vmem:[%s6731 + $0xbc] sm:$0x1]
        %v6842 = vsel %vm2412, %v6682, %v6841
        %6843 = vst [vmem:[%s6731 + $0xbc] sm:$0x1] %v6842
        %v6844 = vld [vmem:[#allocation3] sm:$0xf]
        %v6845 = vld [vmem:[#allocation3 + $0x4] sm:$0xf]
        %v6846 = vld [vmem:[#allocation3 + $0xc] sm:$0xf]
        %v6847 = vld [vmem:[#allocation3 + $0x10] sm:$0xf]
        %v6848 = vld [vmem:[#allocation3 + $0x18] sm:$0xf]
        %v6849 = vld [vmem:[#allocation3 + $0x1c] sm:$0xf]
        %v6850 = vld [vmem:[#allocation3 + $0x24] sm:$0xf]
        %v6851 = vld [vmem:[#allocation3 + $0x28] sm:$0xf]
        %v6852 = vld [vmem:[#allocation3 + $0x30] sm:$0xf]
        %v6853 = vld [vmem:[#allocation3 + $0x34] sm:$0xf]
        %v6854 = vld [vmem:[#allocation3 + $0x3c] sm:$0xf]
        %v6855 = vld [vmem:[#allocation3 + $0x40] sm:$0xf]
        %v6856 = vld [vmem:[#allocation3 + $0x48] sm:$0xf]
        %v6857 = vld [vmem:[#allocation3 + $0x4c] sm:$0xf]
        %v6858 = vld [vmem:[#allocation3 + $0x54] sm:$0xf]
        %v6859 = vld [vmem:[#allocation3 + $0x58] sm:$0xf]
        %v6860 = vld [vmem:[#allocation3 + $0x60] sm:$0xf]
        %v6861 = vld [vmem:[#allocation3 + $0x64] sm:$0xf]
        %v6862 = vld [vmem:[#allocation3 + $0x6c] sm:$0xf]
        %v6863 = vld [vmem:[#allocation3 + $0x70] sm:$0xf]
        %v6864 = vld [vmem:[#allocation3 + $0x78] sm:$0xf]
        %v6865 = vld [vmem:[#allocation3 + $0x7c] sm:$0xf]
        %v6866 = vld [vmem:[#allocation3 + $0x84] sm:$0xf]
        %v6867 = vld [vmem:[#allocation3 + $0x88] sm:$0xf]
        %v6868 = vld [vmem:[#allocation3 + $0x90] sm:$0xf]
        %v6869 = vld [vmem:[#allocation3 + $0x94] sm:$0xf]
        %v6870 = vld [vmem:[#allocation3 + $0x9c] sm:$0xf]
        %v6871 = vld [vmem:[#allocation3 + $0xa0] sm:$0xf]
        %v6872 = vld [vmem:[#allocation3 + $0xa8] sm:$0xf]
        %v6873 = vld [vmem:[#allocation3 + $0xac] sm:$0xf]
        %v6874 = vld [vmem:[#allocation3 + $0xb4] sm:$0xf]
        %v6875 = vld [vmem:[#allocation3 + $0xb8] sm:$0xf]
        %v6876 = vld [vmem:[#allocation3 + $0x8] sm:$0x1]
        %v6877 = vld [vmem:[#allocation3 + $0x14] sm:$0x1]
        %v6878 = vld [vmem:[#allocation3 + $0x20] sm:$0x1]
        %v6879 = vld [vmem:[#allocation3 + $0x2c] sm:$0x1]
        %v6880 = vld [vmem:[#allocation3 + $0x38] sm:$0x1]
        %v6881 = vld [vmem:[#allocation3 + $0x44] sm:$0x1]
        %v6882 = vld [vmem:[#allocation3 + $0x50] sm:$0x1]
        %v6883 = vld [vmem:[#allocation3 + $0x5c] sm:$0x1]
        %v6884 = vld [vmem:[#allocation3 + $0x68] sm:$0x1]
        %v6885 = vld [vmem:[#allocation3 + $0x74] sm:$0x1]
        %v6886 = vld [vmem:[#allocation3 + $0x80] sm:$0x1]
        %v6887 = vld [vmem:[#allocation3 + $0x8c] sm:$0x1]
        %v6888 = vld [vmem:[#allocation3 + $0x98] sm:$0x1]
        %v6889 = vld [vmem:[#allocation3 + $0xa4] sm:$0x1]
        %v6890 = vld [vmem:[#allocation3 + $0xb0] sm:$0x1]
        %v6891 = vld [vmem:[#allocation3 + $0xbc] sm:$0x1]
        %v6893 = vshrl.u32 %v6844, 16
        %v6895 = vrot.slane %v6893, 4
        %v6896 = vshll.u32 %v6844, 16
        %v6898 = vrot.slane %v6896, 5
        %v6899 = vor.u32 %v6895, %v6898
        %v6900 = vrot.slane %v6899, 4
        %v6902 = vshll.u32 %v6845, 16
        %v6904 = vrot.slane %v6902, 5
        %v6905 = vsel %vm370, %v6900, %v6904
        %v6906 = vshrl.u32 %v6845, 16
        %v6908 = vrot.slane %v6906, 4
        %v6909 = vor.u32 %v6908, %v6904
        %v6910 = vrot.slane %v6909, 4
        %v6912 = vshll.u32 %v6876, 16
        %v6914 = vrot.slane %v6912, 5
        %v6915 = vsel %vm370, %v6910, %v6914
        %v6917 = vshrl.u32 %v6846, 16
        %v6919 = vrot.slane %v6917, 4
        %v6920 = vshll.u32 %v6846, 16
        %v6922 = vrot.slane %v6920, 5
        %v6923 = vor.u32 %v6919, %v6922
        %v6924 = vrot.slane %v6923, 4
        %v6926 = vshll.u32 %v6847, 16
        %v6928 = vrot.slane %v6926, 5
        %v6929 = vsel %vm370, %v6924, %v6928
        %v6930 = vshrl.u32 %v6847, 16
        %v6932 = vrot.slane %v6930, 4
        %v6933 = vor.u32 %v6932, %v6928
        %v6934 = vrot.slane %v6933, 4
        %v6936 = vshll.u32 %v6877, 16
        %v6938 = vrot.slane %v6936, 5
        %v6939 = vsel %vm370, %v6934, %v6938
        %v6941 = vshrl.u32 %v6848, 16
        %v6943 = vrot.slane %v6941, 4
        %v6944 = vshll.u32 %v6848, 16
        %v6946 = vrot.slane %v6944, 5
        %v6947 = vor.u32 %v6943, %v6946
        %v6948 = vrot.slane %v6947, 4
        %v6950 = vshll.u32 %v6849, 16
        %v6952 = vrot.slane %v6950, 5
        %v6953 = vsel %vm370, %v6948, %v6952
        %v6954 = vshrl.u32 %v6849, 16
        %v6956 = vrot.slane %v6954, 4
        %v6957 = vor.u32 %v6956, %v6952
        %v6958 = vrot.slane %v6957, 4
        %v6960 = vshll.u32 %v6878, 16
        %v6962 = vrot.slane %v6960, 5
        %v6963 = vsel %vm370, %v6958, %v6962
        %v6965 = vshrl.u32 %v6850, 16
        %v6967 = vrot.slane %v6965, 4
        %v6968 = vshll.u32 %v6850, 16
        %v6970 = vrot.slane %v6968, 5
        %v6971 = vor.u32 %v6967, %v6970
        %v6972 = vrot.slane %v6971, 4
        %v6974 = vshll.u32 %v6851, 16
        %v6976 = vrot.slane %v6974, 5
        %v6977 = vsel %vm370, %v6972, %v6976
        %v6978 = vshrl.u32 %v6851, 16
        %v6980 = vrot.slane %v6978, 4
        %v6981 = vor.u32 %v6980, %v6976
        %v6982 = vrot.slane %v6981, 4
        %v6984 = vshll.u32 %v6879, 16
        %v6986 = vrot.slane %v6984, 5
        %v6987 = vsel %vm370, %v6982, %v6986
        %v6989 = vshrl.u32 %v6852, 16
        %v6991 = vrot.slane %v6989, 4
        %v6992 = vshll.u32 %v6852, 16
        %v6994 = vrot.slane %v6992, 5
        %v6995 = vor.u32 %v6991, %v6994
        %v6996 = vrot.slane %v6995, 4
        %v6998 = vshll.u32 %v6853, 16
        %v7000 = vrot.slane %v6998, 5
        %v7001 = vsel %vm370, %v6996, %v7000
        %v7002 = vshrl.u32 %v6853, 16
        %v7004 = vrot.slane %v7002, 4
        %v7005 = vor.u32 %v7004, %v7000
        %v7006 = vrot.slane %v7005, 4
        %v7008 = vshll.u32 %v6880, 16
        %v7010 = vrot.slane %v7008, 5
        %v7011 = vsel %vm370, %v7006, %v7010
        %v7013 = vshrl.u32 %v6854, 16
        %v7015 = vrot.slane %v7013, 4
        %v7016 = vshll.u32 %v6854, 16
        %v7018 = vrot.slane %v7016, 5
        %v7019 = vor.u32 %v7015, %v7018
        %v7020 = vrot.slane %v7019, 4
        %v7022 = vshll.u32 %v6855, 16
        %v7024 = vrot.slane %v7022, 5
        %v7025 = vsel %vm370, %v7020, %v7024
        %v7026 = vshrl.u32 %v6855, 16
        %v7028 = vrot.slane %v7026, 4
        %v7029 = vor.u32 %v7028, %v7024
        %v7030 = vrot.slane %v7029, 4
        %v7032 = vshll.u32 %v6881, 16
        %v7034 = vrot.slane %v7032, 5
        %v7035 = vsel %vm370, %v7030, %v7034
        %v7037 = vshrl.u32 %v6856, 16
        %v7039 = vrot.slane %v7037, 4
        %v7040 = vshll.u32 %v6856, 16
        %v7042 = vrot.slane %v7040, 5
        %v7043 = vor.u32 %v7039, %v7042
        %v7044 = vrot.slane %v7043, 4
        %v7046 = vshll.u32 %v6857, 16
        %v7048 = vrot.slane %v7046, 5
        %v7049 = vsel %vm370, %v7044, %v7048
        %v7050 = vshrl.u32 %v6857, 16
        %v7052 = vrot.slane %v7050, 4
        %v7053 = vor.u32 %v7052, %v7048
        %v7054 = vrot.slane %v7053, 4
        %v7056 = vshll.u32 %v6882, 16
        %v7058 = vrot.slane %v7056, 5
        %v7059 = vsel %vm370, %v7054, %v7058
        %v7061 = vshrl.u32 %v6858, 16
        %v7063 = vrot.slane %v7061, 4
        %v7064 = vshll.u32 %v6858, 16
        %v7066 = vrot.slane %v7064, 5
        %v7067 = vor.u32 %v7063, %v7066
        %v7068 = vrot.slane %v7067, 4
        %v7070 = vshll.u32 %v6859, 16
        %v7072 = vrot.slane %v7070, 5
        %v7073 = vsel %vm370, %v7068, %v7072
        %v7074 = vshrl.u32 %v6859, 16
        %v7076 = vrot.slane %v7074, 4
        %v7077 = vor.u32 %v7076, %v7072
        %v7078 = vrot.slane %v7077, 4
        %v7080 = vshll.u32 %v6883, 16
        %v7082 = vrot.slane %v7080, 5
        %v7083 = vsel %vm370, %v7078, %v7082
        %v7085 = vshrl.u32 %v6860, 16
        %v7087 = vrot.slane %v7085, 4
        %v7088 = vshll.u32 %v6860, 16
        %v7090 = vrot.slane %v7088, 5
        %v7091 = vor.u32 %v7087, %v7090
        %v7092 = vrot.slane %v7091, 4
        %v7094 = vshll.u32 %v6861, 16
        %v7096 = vrot.slane %v7094, 5
        %v7097 = vsel %vm370, %v7092, %v7096
        %v7098 = vshrl.u32 %v6861, 16
        %v7100 = vrot.slane %v7098, 4
        %v7101 = vor.u32 %v7100, %v7096
        %v7102 = vrot.slane %v7101, 4
        %v7104 = vshll.u32 %v6884, 16
        %v7106 = vrot.slane %v7104, 5
        %v7107 = vsel %vm370, %v7102, %v7106
        %v7109 = vshrl.u32 %v6862, 16
        %v7111 = vrot.slane %v7109, 4
        %v7112 = vshll.u32 %v6862, 16
        %v7114 = vrot.slane %v7112, 5
        %v7115 = vor.u32 %v7111, %v7114
        %v7116 = vrot.slane %v7115, 4
        %v7118 = vshll.u32 %v6863, 16
        %v7120 = vrot.slane %v7118, 5
        %v7121 = vsel %vm370, %v7116, %v7120
        %v7122 = vshrl.u32 %v6863, 16
        %v7124 = vrot.slane %v7122, 4
        %v7125 = vor.u32 %v7124, %v7120
        %v7126 = vrot.slane %v7125, 4
        %v7128 = vshll.u32 %v6885, 16
        %v7130 = vrot.slane %v7128, 5
        %v7131 = vsel %vm370, %v7126, %v7130
        %v7133 = vshrl.u32 %v6864, 16
        %v7135 = vrot.slane %v7133, 4
        %v7136 = vshll.u32 %v6864, 16
        %v7138 = vrot.slane %v7136, 5
        %v7139 = vor.u32 %v7135, %v7138
        %v7140 = vrot.slane %v7139, 4
        %v7142 = vshll.u32 %v6865, 16
        %v7144 = vrot.slane %v7142, 5
        %v7145 = vsel %vm370, %v7140, %v7144
        %v7146 = vshrl.u32 %v6865, 16
        %v7148 = vrot.slane %v7146, 4
        %v7149 = vor.u32 %v7148, %v7144
        %v7150 = vrot.slane %v7149, 4
        %v7152 = vshll.u32 %v6886, 16
        %v7154 = vrot.slane %v7152, 5
        %v7155 = vsel %vm370, %v7150, %v7154
        %v7157 = vshrl.u32 %v6866, 16
        %v7159 = vrot.slane %v7157, 4
        %v7160 = vshll.u32 %v6866, 16
        %v7162 = vrot.slane %v7160, 5
        %v7163 = vor.u32 %v7159, %v7162
        %v7164 = vrot.slane %v7163, 4
        %v7166 = vshll.u32 %v6867, 16
        %v7168 = vrot.slane %v7166, 5
        %v7169 = vsel %vm370, %v7164, %v7168
        %v7170 = vshrl.u32 %v6867, 16
        %v7172 = vrot.slane %v7170, 4
        %v7173 = vor.u32 %v7172, %v7168
        %v7174 = vrot.slane %v7173, 4
        %v7176 = vshll.u32 %v6887, 16
        %v7178 = vrot.slane %v7176, 5
        %v7179 = vsel %vm370, %v7174, %v7178
        %v7181 = vshrl.u32 %v6868, 16
        %v7183 = vrot.slane %v7181, 4
        %v7184 = vshll.u32 %v6868, 16
        %v7186 = vrot.slane %v7184, 5
        %v7187 = vor.u32 %v7183, %v7186
        %v7188 = vrot.slane %v7187, 4
        %v7190 = vshll.u32 %v6869, 16
        %v7192 = vrot.slane %v7190, 5
        %v7193 = vsel %vm370, %v7188, %v7192
        %v7194 = vshrl.u32 %v6869, 16
        %v7196 = vrot.slane %v7194, 4
        %v7197 = vor.u32 %v7196, %v7192
        %v7198 = vrot.slane %v7197, 4
        %v7200 = vshll.u32 %v6888, 16
        %v7202 = vrot.slane %v7200, 5
        %v7203 = vsel %vm370, %v7198, %v7202
        %v7205 = vshrl.u32 %v6870, 16
        %v7207 = vrot.slane %v7205, 4
        %v7208 = vshll.u32 %v6870, 16
        %v7210 = vrot.slane %v7208, 5
        %v7211 = vor.u32 %v7207, %v7210
        %v7212 = vrot.slane %v7211, 4
        %v7214 = vshll.u32 %v6871, 16
        %v7216 = vrot.slane %v7214, 5
        %v7217 = vsel %vm370, %v7212, %v7216
        %v7218 = vshrl.u32 %v6871, 16
        %v7220 = vrot.slane %v7218, 4
        %v7221 = vor.u32 %v7220, %v7216
        %v7222 = vrot.slane %v7221, 4
        %v7224 = vshll.u32 %v6889, 16
        %v7226 = vrot.slane %v7224, 5
        %v7227 = vsel %vm370, %v7222, %v7226
        %v7229 = vshrl.u32 %v6872, 16
        %v7231 = vrot.slane %v7229, 4
        %v7232 = vshll.u32 %v6872, 16
        %v7234 = vrot.slane %v7232, 5
        %v7235 = vor.u32 %v7231, %v7234
        %v7236 = vrot.slane %v7235, 4
        %v7238 = vshll.u32 %v6873, 16
        %v7240 = vrot.slane %v7238, 5
        %v7241 = vsel %vm370, %v7236, %v7240
        %v7242 = vshrl.u32 %v6873, 16
        %v7244 = vrot.slane %v7242, 4
        %v7245 = vor.u32 %v7244, %v7240
        %v7246 = vrot.slane %v7245, 4
        %v7248 = vshll.u32 %v6890, 16
        %v7250 = vrot.slane %v7248, 5
        %v7251 = vsel %vm370, %v7246, %v7250
        %v7253 = vshrl.u32 %v6874, 16
        %v7255 = vrot.slane %v7253, 4
        %v7256 = vshll.u32 %v6874, 16
        %v7258 = vrot.slane %v7256, 5
        %v7259 = vor.u32 %v7255, %v7258
        %v7260 = vrot.slane %v7259, 4
        %v7262 = vshll.u32 %v6875, 16
        %v7264 = vrot.slane %v7262, 5
        %v7265 = vsel %vm370, %v7260, %v7264
        %v7266 = vshrl.u32 %v6875, 16
        %v7268 = vrot.slane %v7266, 4
        %v7269 = vor.u32 %v7268, %v7264
        %v7270 = vrot.slane %v7269, 4
        %v7272 = vshll.u32 %v6891, 16
        %v7274 = vrot.slane %v7272, 5
        %v7275 = vsel %vm370, %v7270, %v7274
        %v7276 = vld [vmem:[#allocation3] sm:$0xe]
        %v7277 = vld [vmem:[#allocation3 + $0xc] sm:$0xe]
        %v7278 = vld [vmem:[#allocation3 + $0x18] sm:$0xe]
        %v7279 = vld [vmem:[#allocation3 + $0x24] sm:$0xe]
        %v7280 = vld [vmem:[#allocation3 + $0x30] sm:$0xe]
        %v7281 = vld [vmem:[#allocation3 + $0x3c] sm:$0xe]
        %v7282 = vld [vmem:[#allocation3 + $0x48] sm:$0xe]
        %v7283 = vld [vmem:[#allocation3 + $0x54] sm:$0xe]
        %v7284 = vld [vmem:[#allocation3 + $0x60] sm:$0xe]
        %v7285 = vld [vmem:[#allocation3 + $0x6c] sm:$0xe]
        %v7286 = vld [vmem:[#allocation3 + $0x78] sm:$0xe]
        %v7287 = vld [vmem:[#allocation3 + $0x84] sm:$0xe]
        %v7288 = vld [vmem:[#allocation3 + $0x90] sm:$0xe]
        %v7289 = vld [vmem:[#allocation3 + $0x9c] sm:$0xe]
        %v7290 = vld [vmem:[#allocation3 + $0xa8] sm:$0xe]
        %v7291 = vld [vmem:[#allocation3 + $0xb4] sm:$0xe]
        %v7340 = vrot.slane %v7276, 5
        %v7341 = vrot.slane %v7340, 4
        %v7342 = vrot.slane %v6845, 5
        %v7343 = vsel %vm858, %v7341, %v7342
        %v7344 = vrot.slane %v7342, 4
        %v7345 = vrot.slane %v6876, 5
        %v7346 = vsel %vm858, %v7344, %v7345
        %v7347 = vrot.slane %v7277, 5
        %v7348 = vrot.slane %v7347, 4
        %v7349 = vrot.slane %v6847, 5
        %v7350 = vsel %vm858, %v7348, %v7349
        %v7351 = vrot.slane %v7349, 4
        %v7352 = vrot.slane %v6877, 5
        %v7353 = vsel %vm858, %v7351, %v7352
        %v7354 = vrot.slane %v7278, 5
        %v7355 = vrot.slane %v7354, 4
        %v7356 = vrot.slane %v6849, 5
        %v7357 = vsel %vm858, %v7355, %v7356
        %v7358 = vrot.slane %v7356, 4
        %v7359 = vrot.slane %v6878, 5
        %v7360 = vsel %vm858, %v7358, %v7359
        %v7361 = vrot.slane %v7279, 5
        %v7362 = vrot.slane %v7361, 4
        %v7363 = vrot.slane %v6851, 5
        %v7364 = vsel %vm858, %v7362, %v7363
        %v7365 = vrot.slane %v7363, 4
        %v7366 = vrot.slane %v6879, 5
        %v7367 = vsel %vm858, %v7365, %v7366
        %v7368 = vrot.slane %v7280, 5
        %v7369 = vrot.slane %v7368, 4
        %v7370 = vrot.slane %v6853, 5
        %v7371 = vsel %vm858, %v7369, %v7370
        %v7372 = vrot.slane %v7370, 4
        %v7373 = vrot.slane %v6880, 5
        %v7374 = vsel %vm858, %v7372, %v7373
        %v7375 = vrot.slane %v7281, 5
        %v7376 = vrot.slane %v7375, 4
        %v7377 = vrot.slane %v6855, 5
        %v7378 = vsel %vm858, %v7376, %v7377
        %v7379 = vrot.slane %v7377, 4
        %v7380 = vrot.slane %v6881, 5
        %v7381 = vsel %vm858, %v7379, %v7380
        %v7382 = vrot.slane %v7282, 5
        %v7383 = vrot.slane %v7382, 4
        %v7384 = vrot.slane %v6857, 5
        %v7385 = vsel %vm858, %v7383, %v7384
        %v7386 = vrot.slane %v7384, 4
        %v7387 = vrot.slane %v6882, 5
        %v7388 = vsel %vm858, %v7386, %v7387
        %v7389 = vrot.slane %v7283, 5
        %v7390 = vrot.slane %v7389, 4
        %v7391 = vrot.slane %v6859, 5
        %v7392 = vsel %vm858, %v7390, %v7391
        %v7393 = vrot.slane %v7391, 4
        %v7394 = vrot.slane %v6883, 5
        %v7395 = vsel %vm858, %v7393, %v7394
        %v7396 = vrot.slane %v7284, 5
        %v7397 = vrot.slane %v7396, 4
        %v7398 = vrot.slane %v6861, 5
        %v7399 = vsel %vm858, %v7397, %v7398
        %v7400 = vrot.slane %v7398, 4
        %v7401 = vrot.slane %v6884, 5
        %v7402 = vsel %vm858, %v7400, %v7401
        %v7403 = vrot.slane %v7285, 5
        %v7404 = vrot.slane %v7403, 4
        %v7405 = vrot.slane %v6863, 5
        %v7406 = vsel %vm858, %v7404, %v7405
        %v7407 = vrot.slane %v7405, 4
        %v7408 = vrot.slane %v6885, 5
        %v7409 = vsel %vm858, %v7407, %v7408
        %v7410 = vrot.slane %v7286, 5
        %v7411 = vrot.slane %v7410, 4
        %v7412 = vrot.slane %v6865, 5
        %v7413 = vsel %vm858, %v7411, %v7412
        %v7414 = vrot.slane %v7412, 4
        %v7415 = vrot.slane %v6886, 5
        %v7416 = vsel %vm858, %v7414, %v7415
        %v7417 = vrot.slane %v7287, 5
        %v7418 = vrot.slane %v7417, 4
        %v7419 = vrot.slane %v6867, 5
        %v7420 = vsel %vm858, %v7418, %v7419
        %v7421 = vrot.slane %v7419, 4
        %v7422 = vrot.slane %v6887, 5
        %v7423 = vsel %vm858, %v7421, %v7422
        %v7424 = vrot.slane %v7288, 5
        %v7425 = vrot.slane %v7424, 4
        %v7426 = vrot.slane %v6869, 5
        %v7427 = vsel %vm858, %v7425, %v7426
        %v7428 = vrot.slane %v7426, 4
        %v7429 = vrot.slane %v6888, 5
        %v7430 = vsel %vm858, %v7428, %v7429
        %v7431 = vrot.slane %v7289, 5
        %v7432 = vrot.slane %v7431, 4
        %v7433 = vrot.slane %v6871, 5
        %v7434 = vsel %vm858, %v7432, %v7433
        %v7435 = vrot.slane %v7433, 4
        %v7436 = vrot.slane %v6889, 5
        %v7437 = vsel %vm858, %v7435, %v7436
        %v7438 = vrot.slane %v7290, 5
        %v7439 = vrot.slane %v7438, 4
        %v7440 = vrot.slane %v6873, 5
        %v7441 = vsel %vm858, %v7439, %v7440
        %v7442 = vrot.slane %v7440, 4
        %v7443 = vrot.slane %v6890, 5
        %v7444 = vsel %vm858, %v7442, %v7443
        %v7445 = vrot.slane %v7291, 5
        %v7446 = vrot.slane %v7445, 4
        %v7447 = vrot.slane %v6875, 5
        %v7448 = vsel %vm858, %v7446, %v7447
        %v7449 = vrot.slane %v7447, 4
        %v7450 = vrot.slane %v6891, 5
        %v7451 = vsel %vm858, %v7449, %v7450
        %v7452 = vld [vmem:[%s6731] sm:$0xf]
        %v7453 = vld [vmem:[%s6731 + $0x4] sm:$0xf]
        %v7454 = vld [vmem:[%s6731 + $0xc] sm:$0xf]
        %v7455 = vld [vmem:[%s6731 + $0x10] sm:$0xf]
        %v7456 = vld [vmem:[%s6731 + $0x18] sm:$0xf]
        %v7457 = vld [vmem:[%s6731 + $0x1c] sm:$0xf]
        %v7458 = vld [vmem:[%s6731 + $0x24] sm:$0xf]
        %v7459 = vld [vmem:[%s6731 + $0x28] sm:$0xf]
        %v7460 = vld [vmem:[%s6731 + $0x30] sm:$0xf]
        %v7461 = vld [vmem:[%s6731 + $0x34] sm:$0xf]
        %v7462 = vld [vmem:[%s6731 + $0x3c] sm:$0xf]
        %v7463 = vld [vmem:[%s6731 + $0x40] sm:$0xf]
        %v7464 = vld [vmem:[%s6731 + $0x48] sm:$0xf]
        %v7465 = vld [vmem:[%s6731 + $0x4c] sm:$0xf]
        %v7466 = vld [vmem:[%s6731 + $0x54] sm:$0xf]
        %v7467 = vld [vmem:[%s6731 + $0x58] sm:$0xf]
        %v7468 = vld [vmem:[%s6731 + $0x60] sm:$0xf]
        %v7469 = vld [vmem:[%s6731 + $0x64] sm:$0xf]
        %v7470 = vld [vmem:[%s6731 + $0x6c] sm:$0xf]
        %v7471 = vld [vmem:[%s6731 + $0x70] sm:$0xf]
        %v7472 = vld [vmem:[%s6731 + $0x78] sm:$0xf]
        %v7473 = vld [vmem:[%s6731 + $0x7c] sm:$0xf]
        %v7474 = vld [vmem:[%s6731 + $0x84] sm:$0xf]
        %v7475 = vld [vmem:[%s6731 + $0x88] sm:$0xf]
        %v7476 = vld [vmem:[%s6731 + $0x90] sm:$0xf]
        %v7477 = vld [vmem:[%s6731 + $0x94] sm:$0xf]
        %v7478 = vld [vmem:[%s6731 + $0x9c] sm:$0xf]
        %v7479 = vld [vmem:[%s6731 + $0xa0] sm:$0xf]
        %v7480 = vld [vmem:[%s6731 + $0xa8] sm:$0xf]
        %v7481 = vld [vmem:[%s6731 + $0xac] sm:$0xf]
        %v7482 = vld [vmem:[%s6731 + $0xb4] sm:$0xf]
        %v7483 = vld [vmem:[%s6731 + $0xb8] sm:$0xf]
        %v7484 = vld [vmem:[%s6731 + $0x8] sm:$0x1]
        %v7485 = vld [vmem:[%s6731 + $0x14] sm:$0x1]
        %v7486 = vld [vmem:[%s6731 + $0x20] sm:$0x1]
        %v7487 = vld [vmem:[%s6731 + $0x2c] sm:$0x1]
        %v7488 = vld [vmem:[%s6731 + $0x38] sm:$0x1]
        %v7489 = vld [vmem:[%s6731 + $0x44] sm:$0x1]
        %v7490 = vld [vmem:[%s6731 + $0x50] sm:$0x1]
        %v7491 = vld [vmem:[%s6731 + $0x5c] sm:$0x1]
        %v7492 = vld [vmem:[%s6731 + $0x68] sm:$0x1]
        %v7493 = vld [vmem:[%s6731 + $0x74] sm:$0x1]
        %v7494 = vld [vmem:[%s6731 + $0x80] sm:$0x1]
        %v7495 = vld [vmem:[%s6731 + $0x8c] sm:$0x1]
        %v7496 = vld [vmem:[%s6731 + $0x98] sm:$0x1]
        %v7497 = vld [vmem:[%s6731 + $0xa4] sm:$0x1]
        %v7498 = vld [vmem:[%s6731 + $0xb0] sm:$0x1]
        %v7499 = vld [vmem:[%s6731 + $0xbc] sm:$0x1]
        %v7501 = vshrl.u32 %v7452, 16
        %v7503 = vrot.slane %v7501, 4
        %v7504 = vshll.u32 %v7452, 16
        %v7506 = vrot.slane %v7504, 5
        %v7507 = vor.u32 %v7503, %v7506
        %v7508 = vrot.slane %v7507, 4
        %v7510 = vshll.u32 %v7453, 16
        %v7512 = vrot.slane %v7510, 5
        %v7513 = vsel %vm370, %v7508, %v7512
        %v7514 = vshrl.u32 %v7453, 16
        %v7516 = vrot.slane %v7514, 4
        %v7517 = vor.u32 %v7516, %v7512
        %v7518 = vrot.slane %v7517, 4
        %v7520 = vshll.u32 %v7484, 16
        %v7522 = vrot.slane %v7520, 5
        %v7523 = vsel %vm370, %v7518, %v7522
        %v7525 = vshrl.u32 %v7454, 16
        %v7527 = vrot.slane %v7525, 4
        %v7528 = vshll.u32 %v7454, 16
        %v7530 = vrot.slane %v7528, 5
        %v7531 = vor.u32 %v7527, %v7530
        %v7532 = vrot.slane %v7531, 4
        %v7534 = vshll.u32 %v7455, 16
        %v7536 = vrot.slane %v7534, 5
        %v7537 = vsel %vm370, %v7532, %v7536
        %v7538 = vshrl.u32 %v7455, 16
        %v7540 = vrot.slane %v7538, 4
        %v7541 = vor.u32 %v7540, %v7536
        %v7542 = vrot.slane %v7541, 4
        %v7544 = vshll.u32 %v7485, 16
        %v7546 = vrot.slane %v7544, 5
        %v7547 = vsel %vm370, %v7542, %v7546
        %v7549 = vshrl.u32 %v7456, 16
        %v7551 = vrot.slane %v7549, 4
        %v7552 = vshll.u32 %v7456, 16
        %v7554 = vrot.slane %v7552, 5
        %v7555 = vor.u32 %v7551, %v7554
        %v7556 = vrot.slane %v7555, 4
        %v7558 = vshll.u32 %v7457, 16
        %v7560 = vrot.slane %v7558, 5
        %v7561 = vsel %vm370, %v7556, %v7560
        %v7562 = vshrl.u32 %v7457, 16
        %v7564 = vrot.slane %v7562, 4
        %v7565 = vor.u32 %v7564, %v7560
        %v7566 = vrot.slane %v7565, 4
        %v7568 = vshll.u32 %v7486, 16
        %v7570 = vrot.slane %v7568, 5
        %v7571 = vsel %vm370, %v7566, %v7570
        %v7573 = vshrl.u32 %v7458, 16
        %v7575 = vrot.slane %v7573, 4
        %v7576 = vshll.u32 %v7458, 16
        %v7578 = vrot.slane %v7576, 5
        %v7579 = vor.u32 %v7575, %v7578
        %v7580 = vrot.slane %v7579, 4
        %v7582 = vshll.u32 %v7459, 16
        %v7584 = vrot.slane %v7582, 5
        %v7585 = vsel %vm370, %v7580, %v7584
        %v7586 = vshrl.u32 %v7459, 16
        %v7588 = vrot.slane %v7586, 4
        %v7589 = vor.u32 %v7588, %v7584
        %v7590 = vrot.slane %v7589, 4
        %v7592 = vshll.u32 %v7487, 16
        %v7594 = vrot.slane %v7592, 5
        %v7595 = vsel %vm370, %v7590, %v7594
        %v7597 = vshrl.u32 %v7460, 16
        %v7599 = vrot.slane %v7597, 4
        %v7600 = vshll.u32 %v7460, 16
        %v7602 = vrot.slane %v7600, 5
        %v7603 = vor.u32 %v7599, %v7602
        %v7604 = vrot.slane %v7603, 4
        %v7606 = vshll.u32 %v7461, 16
        %v7608 = vrot.slane %v7606, 5
        %v7609 = vsel %vm370, %v7604, %v7608
        %v7610 = vshrl.u32 %v7461, 16
        %v7612 = vrot.slane %v7610, 4
        %v7613 = vor.u32 %v7612, %v7608
        %v7614 = vrot.slane %v7613, 4
        %v7616 = vshll.u32 %v7488, 16
        %v7618 = vrot.slane %v7616, 5
        %v7619 = vsel %vm370, %v7614, %v7618
        %v7621 = vshrl.u32 %v7462, 16
        %v7623 = vrot.slane %v7621, 4
        %v7624 = vshll.u32 %v7462, 16
        %v7626 = vrot.slane %v7624, 5
        %v7627 = vor.u32 %v7623, %v7626
        %v7628 = vrot.slane %v7627, 4
        %v7630 = vshll.u32 %v7463, 16
        %v7632 = vrot.slane %v7630, 5
        %v7633 = vsel %vm370, %v7628, %v7632
        %v7634 = vshrl.u32 %v7463, 16
        %v7636 = vrot.slane %v7634, 4
        %v7637 = vor.u32 %v7636, %v7632
        %v7638 = vrot.slane %v7637, 4
        %v7640 = vshll.u32 %v7489, 16
        %v7642 = vrot.slane %v7640, 5
        %v7643 = vsel %vm370, %v7638, %v7642
        %v7645 = vshrl.u32 %v7464, 16
        %v7647 = vrot.slane %v7645, 4
        %v7648 = vshll.u32 %v7464, 16
        %v7650 = vrot.slane %v7648, 5
        %v7651 = vor.u32 %v7647, %v7650
        %v7652 = vrot.slane %v7651, 4
        %v7654 = vshll.u32 %v7465, 16
        %v7656 = vrot.slane %v7654, 5
        %v7657 = vsel %vm370, %v7652, %v7656
        %v7658 = vshrl.u32 %v7465, 16
        %v7660 = vrot.slane %v7658, 4
        %v7661 = vor.u32 %v7660, %v7656
        %v7662 = vrot.slane %v7661, 4
        %v7664 = vshll.u32 %v7490, 16
        %v7666 = vrot.slane %v7664, 5
        %v7667 = vsel %vm370, %v7662, %v7666
        %v7669 = vshrl.u32 %v7466, 16
        %v7671 = vrot.slane %v7669, 4
        %v7672 = vshll.u32 %v7466, 16
        %v7674 = vrot.slane %v7672, 5
        %v7675 = vor.u32 %v7671, %v7674
        %v7676 = vrot.slane %v7675, 4
        %v7678 = vshll.u32 %v7467, 16
        %v7680 = vrot.slane %v7678, 5
        %v7681 = vsel %vm370, %v7676, %v7680
        %v7682 = vshrl.u32 %v7467, 16
        %v7684 = vrot.slane %v7682, 4
        %v7685 = vor.u32 %v7684, %v7680
        %v7686 = vrot.slane %v7685, 4
        %v7688 = vshll.u32 %v7491, 16
        %v7690 = vrot.slane %v7688, 5
        %v7691 = vsel %vm370, %v7686, %v7690
        %v7693 = vshrl.u32 %v7468, 16
        %v7695 = vrot.slane %v7693, 4
        %v7696 = vshll.u32 %v7468, 16
        %v7698 = vrot.slane %v7696, 5
        %v7699 = vor.u32 %v7695, %v7698
        %v7700 = vrot.slane %v7699, 4
        %v7702 = vshll.u32 %v7469, 16
        %v7704 = vrot.slane %v7702, 5
        %v7705 = vsel %vm370, %v7700, %v7704
        %v7706 = vshrl.u32 %v7469, 16
        %v7708 = vrot.slane %v7706, 4
        %v7709 = vor.u32 %v7708, %v7704
        %v7710 = vrot.slane %v7709, 4
        %v7712 = vshll.u32 %v7492, 16
        %v7714 = vrot.slane %v7712, 5
        %v7715 = vsel %vm370, %v7710, %v7714
        %v7717 = vshrl.u32 %v7470, 16
        %v7719 = vrot.slane %v7717, 4
        %v7720 = vshll.u32 %v7470, 16
        %v7722 = vrot.slane %v7720, 5
        %v7723 = vor.u32 %v7719, %v7722
        %v7724 = vrot.slane %v7723, 4
        %v7726 = vshll.u32 %v7471, 16
        %v7728 = vrot.slane %v7726, 5
        %v7729 = vsel %vm370, %v7724, %v7728
        %v7730 = vshrl.u32 %v7471, 16
        %v7732 = vrot.slane %v7730, 4
        %v7733 = vor.u32 %v7732, %v7728
        %v7734 = vrot.slane %v7733, 4
        %v7736 = vshll.u32 %v7493, 16
        %v7738 = vrot.slane %v7736, 5
        %v7739 = vsel %vm370, %v7734, %v7738
        %v7741 = vshrl.u32 %v7472, 16
        %v7743 = vrot.slane %v7741, 4
        %v7744 = vshll.u32 %v7472, 16
        %v7746 = vrot.slane %v7744, 5
        %v7747 = vor.u32 %v7743, %v7746
        %v7748 = vrot.slane %v7747, 4
        %v7750 = vshll.u32 %v7473, 16
        %v7752 = vrot.slane %v7750, 5
        %v7753 = vsel %vm370, %v7748, %v7752
        %v7754 = vshrl.u32 %v7473, 16
        %v7756 = vrot.slane %v7754, 4
        %v7757 = vor.u32 %v7756, %v7752
        %v7758 = vrot.slane %v7757, 4
        %v7760 = vshll.u32 %v7494, 16
        %v7762 = vrot.slane %v7760, 5
        %v7763 = vsel %vm370, %v7758, %v7762
        %v7765 = vshrl.u32 %v7474, 16
        %v7767 = vrot.slane %v7765, 4
        %v7768 = vshll.u32 %v7474, 16
        %v7770 = vrot.slane %v7768, 5
        %v7771 = vor.u32 %v7767, %v7770
        %v7772 = vrot.slane %v7771, 4
        %v7774 = vshll.u32 %v7475, 16
        %v7776 = vrot.slane %v7774, 5
        %v7777 = vsel %vm370, %v7772, %v7776
        %v7778 = vshrl.u32 %v7475, 16
        %v7780 = vrot.slane %v7778, 4
        %v7781 = vor.u32 %v7780, %v7776
        %v7782 = vrot.slane %v7781, 4
        %v7784 = vshll.u32 %v7495, 16
        %v7786 = vrot.slane %v7784, 5
        %v7787 = vsel %vm370, %v7782, %v7786
        %v7789 = vshrl.u32 %v7476, 16
        %v7791 = vrot.slane %v7789, 4
        %v7792 = vshll.u32 %v7476, 16
        %v7794 = vrot.slane %v7792, 5
        %v7795 = vor.u32 %v7791, %v7794
        %v7796 = vrot.slane %v7795, 4
        %v7798 = vshll.u32 %v7477, 16
        %v7800 = vrot.slane %v7798, 5
        %v7801 = vsel %vm370, %v7796, %v7800
        %v7802 = vshrl.u32 %v7477, 16
        %v7804 = vrot.slane %v7802, 4
        %v7805 = vor.u32 %v7804, %v7800
        %v7806 = vrot.slane %v7805, 4
        %v7808 = vshll.u32 %v7496, 16
        %v7810 = vrot.slane %v7808, 5
        %v7811 = vsel %vm370, %v7806, %v7810
        %v7813 = vshrl.u32 %v7478, 16
        %v7815 = vrot.slane %v7813, 4
        %v7816 = vshll.u32 %v7478, 16
        %v7818 = vrot.slane %v7816, 5
        %v7819 = vor.u32 %v7815, %v7818
        %v7820 = vrot.slane %v7819, 4
        %v7822 = vshll.u32 %v7479, 16
        %v7824 = vrot.slane %v7822, 5
        %v7825 = vsel %vm370, %v7820, %v7824
        %v7826 = vshrl.u32 %v7479, 16
        %v7828 = vrot.slane %v7826, 4
        %v7829 = vor.u32 %v7828, %v7824
        %v7830 = vrot.slane %v7829, 4
        %v7832 = vshll.u32 %v7497, 16
        %v7834 = vrot.slane %v7832, 5
        %v7835 = vsel %vm370, %v7830, %v7834
        %v7837 = vshrl.u32 %v7480, 16
        %v7839 = vrot.slane %v7837, 4
        %v7840 = vshll.u32 %v7480, 16
        %v7842 = vrot.slane %v7840, 5
        %v7843 = vor.u32 %v7839, %v7842
        %v7844 = vrot.slane %v7843, 4
        %v7846 = vshll.u32 %v7481, 16
        %v7848 = vrot.slane %v7846, 5
        %v7849 = vsel %vm370, %v7844, %v7848
        %v7850 = vshrl.u32 %v7481, 16
        %v7852 = vrot.slane %v7850, 4
        %v7853 = vor.u32 %v7852, %v7848
        %v7854 = vrot.slane %v7853, 4
        %v7856 = vshll.u32 %v7498, 16
        %v7858 = vrot.slane %v7856, 5
        %v7859 = vsel %vm370, %v7854, %v7858
        %v7861 = vshrl.u32 %v7482, 16
        %v7863 = vrot.slane %v7861, 4
        %v7864 = vshll.u32 %v7482, 16
        %v7866 = vrot.slane %v7864, 5
        %v7867 = vor.u32 %v7863, %v7866
        %v7868 = vrot.slane %v7867, 4
        %v7870 = vshll.u32 %v7483, 16
        %v7872 = vrot.slane %v7870, 5
        %v7873 = vsel %vm370, %v7868, %v7872
        %v7874 = vshrl.u32 %v7483, 16
        %v7876 = vrot.slane %v7874, 4
        %v7877 = vor.u32 %v7876, %v7872
        %v7878 = vrot.slane %v7877, 4
        %v7880 = vshll.u32 %v7499, 16
        %v7882 = vrot.slane %v7880, 5
        %v7883 = vsel %vm370, %v7878, %v7882
        %v7884 = vld [vmem:[%s6731] sm:$0xe]
        %v7885 = vld [vmem:[%s6731 + $0xc] sm:$0xe]
        %v7886 = vld [vmem:[%s6731 + $0x18] sm:$0xe]
        %v7887 = vld [vmem:[%s6731 + $0x24] sm:$0xe]
        %v7888 = vld [vmem:[%s6731 + $0x30] sm:$0xe]
        %v7889 = vld [vmem:[%s6731 + $0x3c] sm:$0xe]
        %v7890 = vld [vmem:[%s6731 + $0x48] sm:$0xe]
        %v7891 = vld [vmem:[%s6731 + $0x54] sm:$0xe]
        %v7892 = vld [vmem:[%s6731 + $0x60] sm:$0xe]
        %v7893 = vld [vmem:[%s6731 + $0x6c] sm:$0xe]
        %v7894 = vld [vmem:[%s6731 + $0x78] sm:$0xe]
        %v7895 = vld [vmem:[%s6731 + $0x84] sm:$0xe]
        %v7896 = vld [vmem:[%s6731 + $0x90] sm:$0xe]
        %v7897 = vld [vmem:[%s6731 + $0x9c] sm:$0xe]
        %v7898 = vld [vmem:[%s6731 + $0xa8] sm:$0xe]
        %v7899 = vld [vmem:[%s6731 + $0xb4] sm:$0xe]
        %v7948 = vrot.slane %v7884, 5
        %v7949 = vrot.slane %v7948, 4
        %v7950 = vrot.slane %v7453, 5
        %v7951 = vsel %vm858, %v7949, %v7950
        %v7952 = vrot.slane %v7950, 4
        %v7953 = vrot.slane %v7484, 5
        %v7954 = vsel %vm858, %v7952, %v7953
        %v7955 = vrot.slane %v7885, 5
        %v7956 = vrot.slane %v7955, 4
        %v7957 = vrot.slane %v7455, 5
        %v7958 = vsel %vm858, %v7956, %v7957
        %v7959 = vrot.slane %v7957, 4
        %v7960 = vrot.slane %v7485, 5
        %v7961 = vsel %vm858, %v7959, %v7960
        %v7962 = vrot.slane %v7886, 5
        %v7963 = vrot.slane %v7962, 4
        %v7964 = vrot.slane %v7457, 5
        %v7965 = vsel %vm858, %v7963, %v7964
        %v7966 = vrot.slane %v7964, 4
        %v7967 = vrot.slane %v7486, 5
        %v7968 = vsel %vm858, %v7966, %v7967
        %v7969 = vrot.slane %v7887, 5
        %v7970 = vrot.slane %v7969, 4
        %v7971 = vrot.slane %v7459, 5
        %v7972 = vsel %vm858, %v7970, %v7971
        %v7973 = vrot.slane %v7971, 4
        %v7974 = vrot.slane %v7487, 5
        %v7975 = vsel %vm858, %v7973, %v7974
        %v7976 = vrot.slane %v7888, 5
        %v7977 = vrot.slane %v7976, 4
        %v7978 = vrot.slane %v7461, 5
        %v7979 = vsel %vm858, %v7977, %v7978
        %v7980 = vrot.slane %v7978, 4
        %v7981 = vrot.slane %v7488, 5
        %v7982 = vsel %vm858, %v7980, %v7981
        %v7983 = vrot.slane %v7889, 5
        %v7984 = vrot.slane %v7983, 4
        %v7985 = vrot.slane %v7463, 5
        %v7986 = vsel %vm858, %v7984, %v7985
        %v7987 = vrot.slane %v7985, 4
        %v7988 = vrot.slane %v7489, 5
        %v7989 = vsel %vm858, %v7987, %v7988
        %v7990 = vrot.slane %v7890, 5
        %v7991 = vrot.slane %v7990, 4
        %v7992 = vrot.slane %v7465, 5
        %v7993 = vsel %vm858, %v7991, %v7992
        %v7994 = vrot.slane %v7992, 4
        %v7995 = vrot.slane %v7490, 5
        %v7996 = vsel %vm858, %v7994, %v7995
        %v7997 = vrot.slane %v7891, 5
        %v7998 = vrot.slane %v7997, 4
        %v7999 = vrot.slane %v7467, 5
        %v8000 = vsel %vm858, %v7998, %v7999
        %v8001 = vrot.slane %v7999, 4
        %v8002 = vrot.slane %v7491, 5
        %v8003 = vsel %vm858, %v8001, %v8002
        %v8004 = vrot.slane %v7892, 5
        %v8005 = vrot.slane %v8004, 4
        %v8006 = vrot.slane %v7469, 5
        %v8007 = vsel %vm858, %v8005, %v8006
        %v8008 = vrot.slane %v8006, 4
        %v8009 = vrot.slane %v7492, 5
        %v8010 = vsel %vm858, %v8008, %v8009
        %v8011 = vrot.slane %v7893, 5
        %v8012 = vrot.slane %v8011, 4
        %v8013 = vrot.slane %v7471, 5
        %v8014 = vsel %vm858, %v8012, %v8013
        %v8015 = vrot.slane %v8013, 4
        %v8016 = vrot.slane %v7493, 5
        %v8017 = vsel %vm858, %v8015, %v8016
        %v8018 = vrot.slane %v7894, 5
        %v8019 = vrot.slane %v8018, 4
        %v8020 = vrot.slane %v7473, 5
        %v8021 = vsel %vm858, %v8019, %v8020
        %v8022 = vrot.slane %v8020, 4
        %v8023 = vrot.slane %v7494, 5
        %v8024 = vsel %vm858, %v8022, %v8023
        %v8025 = vrot.slane %v7895, 5
        %v8026 = vrot.slane %v8025, 4
        %v8027 = vrot.slane %v7475, 5
        %v8028 = vsel %vm858, %v8026, %v8027
        %v8029 = vrot.slane %v8027, 4
        %v8030 = vrot.slane %v7495, 5
        %v8031 = vsel %vm858, %v8029, %v8030
        %v8032 = vrot.slane %v7896, 5
        %v8033 = vrot.slane %v8032, 4
        %v8034 = vrot.slane %v7477, 5
        %v8035 = vsel %vm858, %v8033, %v8034
        %v8036 = vrot.slane %v8034, 4
        %v8037 = vrot.slane %v7496, 5
        %v8038 = vsel %vm858, %v8036, %v8037
        %v8039 = vrot.slane %v7897, 5
        %v8040 = vrot.slane %v8039, 4
        %v8041 = vrot.slane %v7479, 5
        %v8042 = vsel %vm858, %v8040, %v8041
        %v8043 = vrot.slane %v8041, 4
        %v8044 = vrot.slane %v7497, 5
        %v8045 = vsel %vm858, %v8043, %v8044
        %v8046 = vrot.slane %v7898, 5
        %v8047 = vrot.slane %v8046, 4
        %v8048 = vrot.slane %v7481, 5
        %v8049 = vsel %vm858, %v8047, %v8048
        %v8050 = vrot.slane %v8048, 4
        %v8051 = vrot.slane %v7498, 5
        %v8052 = vsel %vm858, %v8050, %v8051
        %v8053 = vrot.slane %v7899, 5
        %v8054 = vrot.slane %v8053, 4
        %v8055 = vrot.slane %v7483, 5
        %v8056 = vsel %vm858, %v8054, %v8055
        %v8057 = vrot.slane %v8055, 4
        %v8058 = vrot.slane %v7499, 5
        %v8059 = vsel %vm858, %v8057, %v8058
        %s8060 = scalar_lea.vmem [#allocation3], 24
        %v8061 = vld [vmem:[%s8060] sm:$0xf]
        %v8062 = vld [vmem:[%s8060 + $0x4] sm:$0xf]
        %v8063 = vld [vmem:[%s8060 + $0xc] sm:$0xf]
        %v8064 = vld [vmem:[%s8060 + $0x10] sm:$0xf]
        %v8065 = vld [vmem:[%s8060 + $0x18] sm:$0xf]
        %v8066 = vld [vmem:[%s8060 + $0x1c] sm:$0xf]
        %v8067 = vld [vmem:[%s8060 + $0x24] sm:$0xf]
        %v8068 = vld [vmem:[%s8060 + $0x28] sm:$0xf]
        %v8069 = vld [vmem:[%s8060 + $0x30] sm:$0xf]
        %v8070 = vld [vmem:[%s8060 + $0x34] sm:$0xf]
        %v8071 = vld [vmem:[%s8060 + $0x3c] sm:$0xf]
        %v8072 = vld [vmem:[%s8060 + $0x40] sm:$0xf]
        %v8073 = vld [vmem:[%s8060 + $0x48] sm:$0xf]
        %v8074 = vld [vmem:[%s8060 + $0x4c] sm:$0xf]
        %v8075 = vld [vmem:[%s8060 + $0x54] sm:$0xf]
        %v8076 = vld [vmem:[%s8060 + $0x58] sm:$0xf]
        %v8077 = vld [vmem:[%s8060 + $0x60] sm:$0xf]
        %v8078 = vld [vmem:[%s8060 + $0x64] sm:$0xf]
        %v8079 = vld [vmem:[%s8060 + $0x6c] sm:$0xf]
        %v8080 = vld [vmem:[%s8060 + $0x70] sm:$0xf]
        %v8081 = vld [vmem:[%s8060 + $0x78] sm:$0xf]
        %v8082 = vld [vmem:[%s8060 + $0x7c] sm:$0xf]
        %v8083 = vld [vmem:[%s8060 + $0x84] sm:$0xf]
        %v8084 = vld [vmem:[%s8060 + $0x88] sm:$0xf]
        %v8085 = vld [vmem:[%s8060 + $0x90] sm:$0xf]
        %v8086 = vld [vmem:[%s8060 + $0x94] sm:$0xf]
        %v8087 = vld [vmem:[%s8060 + $0x9c] sm:$0xf]
        %v8088 = vld [vmem:[%s8060 + $0xa0] sm:$0xf]
        %v8089 = vld [vmem:[%s8060 + $0xa8] sm:$0xf]
        %v8090 = vld [vmem:[%s8060 + $0xac] sm:$0xf]
        %v8091 = vld [vmem:[%s8060 + $0xb4] sm:$0xf]
        %v8092 = vld [vmem:[%s8060 + $0xb8] sm:$0xf]
        %v8093 = vld [vmem:[%s8060 + $0x8] sm:$0x1]
        %v8094 = vld [vmem:[%s8060 + $0x14] sm:$0x1]
        %v8095 = vld [vmem:[%s8060 + $0x20] sm:$0x1]
        %v8096 = vld [vmem:[%s8060 + $0x2c] sm:$0x1]
        %v8097 = vld [vmem:[%s8060 + $0x38] sm:$0x1]
        %v8098 = vld [vmem:[%s8060 + $0x44] sm:$0x1]
        %v8099 = vld [vmem:[%s8060 + $0x50] sm:$0x1]
        %v8100 = vld [vmem:[%s8060 + $0x5c] sm:$0x1]
        %v8101 = vld [vmem:[%s8060 + $0x68] sm:$0x1]
        %v8102 = vld [vmem:[%s8060 + $0x74] sm:$0x1]
        %v8103 = vld [vmem:[%s8060 + $0x80] sm:$0x1]
        %v8104 = vld [vmem:[%s8060 + $0x8c] sm:$0x1]
        %v8105 = vld [vmem:[%s8060 + $0x98] sm:$0x1]
        %v8106 = vld [vmem:[%s8060 + $0xa4] sm:$0x1]
        %v8107 = vld [vmem:[%s8060 + $0xb0] sm:$0x1]
        %v8108 = vld [vmem:[%s8060 + $0xbc] sm:$0x1]
        %v8110 = vshrl.u32 %v8061, 16
        %v8112 = vrot.slane %v8110, 4
        %v8113 = vshll.u32 %v8061, 16
        %v8115 = vrot.slane %v8113, 5
        %v8116 = vor.u32 %v8112, %v8115
        %v8117 = vrot.slane %v8116, 4
        %v8119 = vshll.u32 %v8062, 16
        %v8121 = vrot.slane %v8119, 5
        %v8122 = vsel %vm370, %v8117, %v8121
        %v8123 = vshrl.u32 %v8062, 16
        %v8125 = vrot.slane %v8123, 4
        %v8126 = vor.u32 %v8125, %v8121
        %v8127 = vrot.slane %v8126, 4
        %v8129 = vshll.u32 %v8093, 16
        %v8131 = vrot.slane %v8129, 5
        %v8132 = vsel %vm370, %v8127, %v8131
        %v8134 = vshrl.u32 %v8063, 16
        %v8136 = vrot.slane %v8134, 4
        %v8137 = vshll.u32 %v8063, 16
        %v8139 = vrot.slane %v8137, 5
        %v8140 = vor.u32 %v8136, %v8139
        %v8141 = vrot.slane %v8140, 4
        %v8143 = vshll.u32 %v8064, 16
        %v8145 = vrot.slane %v8143, 5
        %v8146 = vsel %vm370, %v8141, %v8145
        %v8147 = vshrl.u32 %v8064, 16
        %v8149 = vrot.slane %v8147, 4
        %v8150 = vor.u32 %v8149, %v8145
        %v8151 = vrot.slane %v8150, 4
        %v8153 = vshll.u32 %v8094, 16
        %v8155 = vrot.slane %v8153, 5
        %v8156 = vsel %vm370, %v8151, %v8155
        %v8158 = vshrl.u32 %v8065, 16
        %v8160 = vrot.slane %v8158, 4
        %v8161 = vshll.u32 %v8065, 16
        %v8163 = vrot.slane %v8161, 5
        %v8164 = vor.u32 %v8160, %v8163
        %v8165 = vrot.slane %v8164, 4
        %v8167 = vshll.u32 %v8066, 16
        %v8169 = vrot.slane %v8167, 5
        %v8170 = vsel %vm370, %v8165, %v8169
        %v8171 = vshrl.u32 %v8066, 16
        %v8173 = vrot.slane %v8171, 4
        %v8174 = vor.u32 %v8173, %v8169
        %v8175 = vrot.slane %v8174, 4
        %v8177 = vshll.u32 %v8095, 16
        %v8179 = vrot.slane %v8177, 5
        %v8180 = vsel %vm370, %v8175, %v8179
        %v8182 = vshrl.u32 %v8067, 16
        %v8184 = vrot.slane %v8182, 4
        %v8185 = vshll.u32 %v8067, 16
        %v8187 = vrot.slane %v8185, 5
        %v8188 = vor.u32 %v8184, %v8187
        %v8189 = vrot.slane %v8188, 4
        %v8191 = vshll.u32 %v8068, 16
        %v8193 = vrot.slane %v8191, 5
        %v8194 = vsel %vm370, %v8189, %v8193
        %v8195 = vshrl.u32 %v8068, 16
        %v8197 = vrot.slane %v8195, 4
        %v8198 = vor.u32 %v8197, %v8193
        %v8199 = vrot.slane %v8198, 4
        %v8201 = vshll.u32 %v8096, 16
        %v8203 = vrot.slane %v8201, 5
        %v8204 = vsel %vm370, %v8199, %v8203
        %v8206 = vshrl.u32 %v8069, 16
        %v8208 = vrot.slane %v8206, 4
        %v8209 = vshll.u32 %v8069, 16
        %v8211 = vrot.slane %v8209, 5
        %v8212 = vor.u32 %v8208, %v8211
        %v8213 = vrot.slane %v8212, 4
        %v8215 = vshll.u32 %v8070, 16
        %v8217 = vrot.slane %v8215, 5
        %v8218 = vsel %vm370, %v8213, %v8217
        %v8219 = vshrl.u32 %v8070, 16
        %v8221 = vrot.slane %v8219, 4
        %v8222 = vor.u32 %v8221, %v8217
        %v8223 = vrot.slane %v8222, 4
        %v8225 = vshll.u32 %v8097, 16
        %v8227 = vrot.slane %v8225, 5
        %v8228 = vsel %vm370, %v8223, %v8227
        %v8230 = vshrl.u32 %v8071, 16
        %v8232 = vrot.slane %v8230, 4
        %v8233 = vshll.u32 %v8071, 16
        %v8235 = vrot.slane %v8233, 5
        %v8236 = vor.u32 %v8232, %v8235
        %v8237 = vrot.slane %v8236, 4
        %v8239 = vshll.u32 %v8072, 16
        %v8241 = vrot.slane %v8239, 5
        %v8242 = vsel %vm370, %v8237, %v8241
        %v8243 = vshrl.u32 %v8072, 16
        %v8245 = vrot.slane %v8243, 4
        %v8246 = vor.u32 %v8245, %v8241
        %v8247 = vrot.slane %v8246, 4
        %v8249 = vshll.u32 %v8098, 16
        %v8251 = vrot.slane %v8249, 5
        %v8252 = vsel %vm370, %v8247, %v8251
        %v8254 = vshrl.u32 %v8073, 16
        %v8256 = vrot.slane %v8254, 4
        %v8257 = vshll.u32 %v8073, 16
        %v8259 = vrot.slane %v8257, 5
        %v8260 = vor.u32 %v8256, %v8259
        %v8261 = vrot.slane %v8260, 4
        %v8263 = vshll.u32 %v8074, 16
        %v8265 = vrot.slane %v8263, 5
        %v8266 = vsel %vm370, %v8261, %v8265
        %v8267 = vshrl.u32 %v8074, 16
        %v8269 = vrot.slane %v8267, 4
        %v8270 = vor.u32 %v8269, %v8265
        %v8271 = vrot.slane %v8270, 4
        %v8273 = vshll.u32 %v8099, 16
        %v8275 = vrot.slane %v8273, 5
        %v8276 = vsel %vm370, %v8271, %v8275
        %v8278 = vshrl.u32 %v8075, 16
        %v8280 = vrot.slane %v8278, 4
        %v8281 = vshll.u32 %v8075, 16
        %v8283 = vrot.slane %v8281, 5
        %v8284 = vor.u32 %v8280, %v8283
        %v8285 = vrot.slane %v8284, 4
        %v8287 = vshll.u32 %v8076, 16
        %v8289 = vrot.slane %v8287, 5
        %v8290 = vsel %vm370, %v8285, %v8289
        %v8291 = vshrl.u32 %v8076, 16
        %v8293 = vrot.slane %v8291, 4
        %v8294 = vor.u32 %v8293, %v8289
        %v8295 = vrot.slane %v8294, 4
        %v8297 = vshll.u32 %v8100, 16
        %v8299 = vrot.slane %v8297, 5
        %v8300 = vsel %vm370, %v8295, %v8299
        %v8302 = vshrl.u32 %v8077, 16
        %v8304 = vrot.slane %v8302, 4
        %v8305 = vshll.u32 %v8077, 16
        %v8307 = vrot.slane %v8305, 5
        %v8308 = vor.u32 %v8304, %v8307
        %v8309 = vrot.slane %v8308, 4
        %v8311 = vshll.u32 %v8078, 16
        %v8313 = vrot.slane %v8311, 5
        %v8314 = vsel %vm370, %v8309, %v8313
        %v8315 = vshrl.u32 %v8078, 16
        %v8317 = vrot.slane %v8315, 4
        %v8318 = vor.u32 %v8317, %v8313
        %v8319 = vrot.slane %v8318, 4
        %v8321 = vshll.u32 %v8101, 16
        %v8323 = vrot.slane %v8321, 5
        %v8324 = vsel %vm370, %v8319, %v8323
        %v8326 = vshrl.u32 %v8079, 16
        %v8328 = vrot.slane %v8326, 4
        %v8329 = vshll.u32 %v8079, 16
        %v8331 = vrot.slane %v8329, 5
        %v8332 = vor.u32 %v8328, %v8331
        %v8333 = vrot.slane %v8332, 4
        %v8335 = vshll.u32 %v8080, 16
        %v8337 = vrot.slane %v8335, 5
        %v8338 = vsel %vm370, %v8333, %v8337
        %v8339 = vshrl.u32 %v8080, 16
        %v8341 = vrot.slane %v8339, 4
        %v8342 = vor.u32 %v8341, %v8337
        %v8343 = vrot.slane %v8342, 4
        %v8345 = vshll.u32 %v8102, 16
        %v8347 = vrot.slane %v8345, 5
        %v8348 = vsel %vm370, %v8343, %v8347
        %v8350 = vshrl.u32 %v8081, 16
        %v8352 = vrot.slane %v8350, 4
        %v8353 = vshll.u32 %v8081, 16
        %v8355 = vrot.slane %v8353, 5
        %v8356 = vor.u32 %v8352, %v8355
        %v8357 = vrot.slane %v8356, 4
        %v8359 = vshll.u32 %v8082, 16
        %v8361 = vrot.slane %v8359, 5
        %v8362 = vsel %vm370, %v8357, %v8361
        %v8363 = vshrl.u32 %v8082, 16
        %v8365 = vrot.slane %v8363, 4
        %v8366 = vor.u32 %v8365, %v8361
        %v8367 = vrot.slane %v8366, 4
        %v8369 = vshll.u32 %v8103, 16
        %v8371 = vrot.slane %v8369, 5
        %v8372 = vsel %vm370, %v8367, %v8371
        %v8374 = vshrl.u32 %v8083, 16
        %v8376 = vrot.slane %v8374, 4
        %v8377 = vshll.u32 %v8083, 16
        %v8379 = vrot.slane %v8377, 5
        %v8380 = vor.u32 %v8376, %v8379
        %v8381 = vrot.slane %v8380, 4
        %v8383 = vshll.u32 %v8084, 16
        %v8385 = vrot.slane %v8383, 5
        %v8386 = vsel %vm370, %v8381, %v8385
        %v8387 = vshrl.u32 %v8084, 16
        %v8389 = vrot.slane %v8387, 4
        %v8390 = vor.u32 %v8389, %v8385
        %v8391 = vrot.slane %v8390, 4
        %v8393 = vshll.u32 %v8104, 16
        %v8395 = vrot.slane %v8393, 5
        %v8396 = vsel %vm370, %v8391, %v8395
        %v8398 = vshrl.u32 %v8085, 16
        %v8400 = vrot.slane %v8398, 4
        %v8401 = vshll.u32 %v8085, 16
        %v8403 = vrot.slane %v8401, 5
        %v8404 = vor.u32 %v8400, %v8403
        %v8405 = vrot.slane %v8404, 4
        %v8407 = vshll.u32 %v8086, 16
        %v8409 = vrot.slane %v8407, 5
        %v8410 = vsel %vm370, %v8405, %v8409
        %v8411 = vshrl.u32 %v8086, 16
        %v8413 = vrot.slane %v8411, 4
        %v8414 = vor.u32 %v8413, %v8409
        %v8415 = vrot.slane %v8414, 4
        %v8417 = vshll.u32 %v8105, 16
        %v8419 = vrot.slane %v8417, 5
        %v8420 = vsel %vm370, %v8415, %v8419
        %v8422 = vshrl.u32 %v8087, 16
        %v8424 = vrot.slane %v8422, 4
        %v8425 = vshll.u32 %v8087, 16
        %v8427 = vrot.slane %v8425, 5
        %v8428 = vor.u32 %v8424, %v8427
        %v8429 = vrot.slane %v8428, 4
        %v8431 = vshll.u32 %v8088, 16
        %v8433 = vrot.slane %v8431, 5
        %v8434 = vsel %vm370, %v8429, %v8433
        %v8435 = vshrl.u32 %v8088, 16
        %v8437 = vrot.slane %v8435, 4
        %v8438 = vor.u32 %v8437, %v8433
        %v8439 = vrot.slane %v8438, 4
        %v8441 = vshll.u32 %v8106, 16
        %v8443 = vrot.slane %v8441, 5
        %v8444 = vsel %vm370, %v8439, %v8443
        %v8446 = vshrl.u32 %v8089, 16
        %v8448 = vrot.slane %v8446, 4
        %v8449 = vshll.u32 %v8089, 16
        %v8451 = vrot.slane %v8449, 5
        %v8452 = vor.u32 %v8448, %v8451
        %v8453 = vrot.slane %v8452, 4
        %v8455 = vshll.u32 %v8090, 16
        %v8457 = vrot.slane %v8455, 5
        %v8458 = vsel %vm370, %v8453, %v8457
        %v8459 = vshrl.u32 %v8090, 16
        %v8461 = vrot.slane %v8459, 4
        %v8462 = vor.u32 %v8461, %v8457
        %v8463 = vrot.slane %v8462, 4
        %v8465 = vshll.u32 %v8107, 16
        %v8467 = vrot.slane %v8465, 5
        %v8468 = vsel %vm370, %v8463, %v8467
        %v8470 = vshrl.u32 %v8091, 16
        %v8472 = vrot.slane %v8470, 4
        %v8473 = vshll.u32 %v8091, 16
        %v8475 = vrot.slane %v8473, 5
        %v8476 = vor.u32 %v8472, %v8475
        %v8477 = vrot.slane %v8476, 4
        %v8479 = vshll.u32 %v8092, 16
        %v8481 = vrot.slane %v8479, 5
        %v8482 = vsel %vm370, %v8477, %v8481
        %v8483 = vshrl.u32 %v8092, 16
        %v8485 = vrot.slane %v8483, 4
        %v8486 = vor.u32 %v8485, %v8481
        %v8487 = vrot.slane %v8486, 4
        %v8489 = vshll.u32 %v8108, 16
        %v8491 = vrot.slane %v8489, 5
        %v8492 = vsel %vm370, %v8487, %v8491
        %v8493 = vld [vmem:[%s8060] sm:$0xe]
        %v8494 = vld [vmem:[%s8060 + $0xc] sm:$0xe]
        %v8495 = vld [vmem:[%s8060 + $0x18] sm:$0xe]
        %v8496 = vld [vmem:[%s8060 + $0x24] sm:$0xe]
        %v8497 = vld [vmem:[%s8060 + $0x30] sm:$0xe]
        %v8498 = vld [vmem:[%s8060 + $0x3c] sm:$0xe]
        %v8499 = vld [vmem:[%s8060 + $0x48] sm:$0xe]
        %v8500 = vld [vmem:[%s8060 + $0x54] sm:$0xe]
        %v8501 = vld [vmem:[%s8060 + $0x60] sm:$0xe]
        %v8502 = vld [vmem:[%s8060 + $0x6c] sm:$0xe]
        %v8503 = vld [vmem:[%s8060 + $0x78] sm:$0xe]
        %v8504 = vld [vmem:[%s8060 + $0x84] sm:$0xe]
        %v8505 = vld [vmem:[%s8060 + $0x90] sm:$0xe]
        %v8506 = vld [vmem:[%s8060 + $0x9c] sm:$0xe]
        %v8507 = vld [vmem:[%s8060 + $0xa8] sm:$0xe]
        %v8508 = vld [vmem:[%s8060 + $0xb4] sm:$0xe]
        %v8557 = vrot.slane %v8493, 5
        %v8558 = vrot.slane %v8557, 4
        %v8559 = vrot.slane %v8062, 5
        %v8560 = vsel %vm858, %v8558, %v8559
        %v8561 = vrot.slane %v8559, 4
        %v8562 = vrot.slane %v8093, 5
        %v8563 = vsel %vm858, %v8561, %v8562
        %v8564 = vrot.slane %v8494, 5
        %v8565 = vrot.slane %v8564, 4
        %v8566 = vrot.slane %v8064, 5
        %v8567 = vsel %vm858, %v8565, %v8566
        %v8568 = vrot.slane %v8566, 4
        %v8569 = vrot.slane %v8094, 5
        %v8570 = vsel %vm858, %v8568, %v8569
        %v8571 = vrot.slane %v8495, 5
        %v8572 = vrot.slane %v8571, 4
        %v8573 = vrot.slane %v8066, 5
        %v8574 = vsel %vm858, %v8572, %v8573
        %v8575 = vrot.slane %v8573, 4
        %v8576 = vrot.slane %v8095, 5
        %v8577 = vsel %vm858, %v8575, %v8576
        %v8578 = vrot.slane %v8496, 5
        %v8579 = vrot.slane %v8578, 4
        %v8580 = vrot.slane %v8068, 5
        %v8581 = vsel %vm858, %v8579, %v8580
        %v8582 = vrot.slane %v8580, 4
        %v8583 = vrot.slane %v8096, 5
        %v8584 = vsel %vm858, %v8582, %v8583
        %v8585 = vrot.slane %v8497, 5
        %v8586 = vrot.slane %v8585, 4
        %v8587 = vrot.slane %v8070, 5
        %v8588 = vsel %vm858, %v8586, %v8587
        %v8589 = vrot.slane %v8587, 4
        %v8590 = vrot.slane %v8097, 5
        %v8591 = vsel %vm858, %v8589, %v8590
        %v8592 = vrot.slane %v8498, 5
        %v8593 = vrot.slane %v8592, 4
        %v8594 = vrot.slane %v8072, 5
        %v8595 = vsel %vm858, %v8593, %v8594
        %v8596 = vrot.slane %v8594, 4
        %v8597 = vrot.slane %v8098, 5
        %v8598 = vsel %vm858, %v8596, %v8597
        %v8599 = vrot.slane %v8499, 5
        %v8600 = vrot.slane %v8599, 4
        %v8601 = vrot.slane %v8074, 5
        %v8602 = vsel %vm858, %v8600, %v8601
        %v8603 = vrot.slane %v8601, 4
        %v8604 = vrot.slane %v8099, 5
        %v8605 = vsel %vm858, %v8603, %v8604
        %v8606 = vrot.slane %v8500, 5
        %v8607 = vrot.slane %v8606, 4
        %v8608 = vrot.slane %v8076, 5
        %v8609 = vsel %vm858, %v8607, %v8608
        %v8610 = vrot.slane %v8608, 4
        %v8611 = vrot.slane %v8100, 5
        %v8612 = vsel %vm858, %v8610, %v8611
        %v8613 = vrot.slane %v8501, 5
        %v8614 = vrot.slane %v8613, 4
        %v8615 = vrot.slane %v8078, 5
        %v8616 = vsel %vm858, %v8614, %v8615
        %v8617 = vrot.slane %v8615, 4
        %v8618 = vrot.slane %v8101, 5
        %v8619 = vsel %vm858, %v8617, %v8618
        %v8620 = vrot.slane %v8502, 5
        %v8621 = vrot.slane %v8620, 4
        %v8622 = vrot.slane %v8080, 5
        %v8623 = vsel %vm858, %v8621, %v8622
        %v8624 = vrot.slane %v8622, 4
        %v8625 = vrot.slane %v8102, 5
        %v8626 = vsel %vm858, %v8624, %v8625
        %v8627 = vrot.slane %v8503, 5
        %v8628 = vrot.slane %v8627, 4
        %v8629 = vrot.slane %v8082, 5
        %v8630 = vsel %vm858, %v8628, %v8629
        %v8631 = vrot.slane %v8629, 4
        %v8632 = vrot.slane %v8103, 5
        %v8633 = vsel %vm858, %v8631, %v8632
        %v8634 = vrot.slane %v8504, 5
        %v8635 = vrot.slane %v8634, 4
        %v8636 = vrot.slane %v8084, 5
        %v8637 = vsel %vm858, %v8635, %v8636
        %v8638 = vrot.slane %v8636, 4
        %v8639 = vrot.slane %v8104, 5
        %v8640 = vsel %vm858, %v8638, %v8639
        %v8641 = vrot.slane %v8505, 5
        %v8642 = vrot.slane %v8641, 4
        %v8643 = vrot.slane %v8086, 5
        %v8644 = vsel %vm858, %v8642, %v8643
        %v8645 = vrot.slane %v8643, 4
        %v8646 = vrot.slane %v8105, 5
        %v8647 = vsel %vm858, %v8645, %v8646
        %v8648 = vrot.slane %v8506, 5
        %v8649 = vrot.slane %v8648, 4
        %v8650 = vrot.slane %v8088, 5
        %v8651 = vsel %vm858, %v8649, %v8650
        %v8652 = vrot.slane %v8650, 4
        %v8653 = vrot.slane %v8106, 5
        %v8654 = vsel %vm858, %v8652, %v8653
        %v8655 = vrot.slane %v8507, 5
        %v8656 = vrot.slane %v8655, 4
        %v8657 = vrot.slane %v8090, 5
        %v8658 = vsel %vm858, %v8656, %v8657
        %v8659 = vrot.slane %v8657, 4
        %v8660 = vrot.slane %v8107, 5
        %v8661 = vsel %vm858, %v8659, %v8660
        %v8662 = vrot.slane %v8508, 5
        %v8663 = vrot.slane %v8662, 4
        %v8664 = vrot.slane %v8092, 5
        %v8665 = vsel %vm858, %v8663, %v8664
        %v8666 = vrot.slane %v8664, 4
        %v8667 = vrot.slane %v8108, 5
        %v8668 = vsel %vm858, %v8666, %v8667
        %v8685 = vunpack.c.l.b16 %v6844
        %v8686 = vunpack.c.l.b16 %v6845
        %v8687 = vunpack.c.l.b16 %v6846
        %v8688 = vunpack.c.l.b16 %v6847
        %v8689 = vunpack.c.l.b16 %v6848
        %v8690 = vunpack.c.l.b16 %v6849
        %v8691 = vunpack.c.l.b16 %v6850
        %v8692 = vunpack.c.l.b16 %v6851
        %v8693 = vunpack.c.l.b16 %v6852
        %v8694 = vunpack.c.l.b16 %v6853
        %v8695 = vunpack.c.l.b16 %v6854
        %v8696 = vunpack.c.l.b16 %v6855
        %v8697 = vunpack.c.l.b16 %v6856
        %v8698 = vunpack.c.l.b16 %v6857
        %v8699 = vunpack.c.l.b16 %v6858
        %v8700 = vunpack.c.l.b16 %v6859
        %v8701 = vunpack.c.l.b16 %v6860
        %v8702 = vunpack.c.l.b16 %v6861
        %v8703 = vunpack.c.l.b16 %v6862
        %v8704 = vunpack.c.l.b16 %v6863
        %v8705 = vunpack.c.l.b16 %v6864
        %v8706 = vunpack.c.l.b16 %v6865
        %v8707 = vunpack.c.l.b16 %v6866
        %v8708 = vunpack.c.l.b16 %v6867
        %v8709 = vunpack.c.l.b16 %v6868
        %v8710 = vunpack.c.l.b16 %v6869
        %v8711 = vunpack.c.l.b16 %v6870
        %v8712 = vunpack.c.l.b16 %v6871
        %v8713 = vunpack.c.l.b16 %v6872
        %v8714 = vunpack.c.l.b16 %v6873
        %v8715 = vunpack.c.l.b16 %v6874
        %v8716 = vunpack.c.l.b16 %v6875
        %v8717 = vpack.c.b16 %v8686, %v8685
        %v8718 = vpack.c.b16 %v8688, %v8687
        %v8719 = vpack.c.b16 %v8690, %v8689
        %v8720 = vpack.c.b16 %v8692, %v8691
        %v8721 = vpack.c.b16 %v8694, %v8693
        %v8722 = vpack.c.b16 %v8696, %v8695
        %v8723 = vpack.c.b16 %v8698, %v8697
        %v8724 = vpack.c.b16 %v8700, %v8699
        %v8725 = vpack.c.b16 %v8702, %v8701
        %v8726 = vpack.c.b16 %v8704, %v8703
        %v8727 = vpack.c.b16 %v8706, %v8705
        %v8728 = vpack.c.b16 %v8708, %v8707
        %v8729 = vpack.c.b16 %v8710, %v8709
        %v8730 = vpack.c.b16 %v8712, %v8711
        %v8731 = vpack.c.b16 %v8714, %v8713
        %v8732 = vpack.c.b16 %v8716, %v8715
        %v8733 = vunpack.c.l.b16 %v6905
        %v8734 = vunpack.c.l.b16 %v6915
        %v8735 = vunpack.c.l.b16 %v6929
        %v8736 = vunpack.c.l.b16 %v6939
        %v8737 = vunpack.c.l.b16 %v6953
        %v8738 = vunpack.c.l.b16 %v6963
        %v8739 = vunpack.c.l.b16 %v6977
        %v8740 = vunpack.c.l.b16 %v6987
        %v8741 = vunpack.c.l.b16 %v7001
        %v8742 = vunpack.c.l.b16 %v7011
        %v8743 = vunpack.c.l.b16 %v7025
        %v8744 = vunpack.c.l.b16 %v7035
        %v8745 = vunpack.c.l.b16 %v7049
        %v8746 = vunpack.c.l.b16 %v7059
        %v8747 = vunpack.c.l.b16 %v7073
        %v8748 = vunpack.c.l.b16 %v7083
        %v8749 = vunpack.c.l.b16 %v7097
        %v8750 = vunpack.c.l.b16 %v7107
        %v8751 = vunpack.c.l.b16 %v7121
        %v8752 = vunpack.c.l.b16 %v7131
        %v8753 = vunpack.c.l.b16 %v7145
        %v8754 = vunpack.c.l.b16 %v7155
        %v8755 = vunpack.c.l.b16 %v7169
        %v8756 = vunpack.c.l.b16 %v7179
        %v8757 = vunpack.c.l.b16 %v7193
        %v8758 = vunpack.c.l.b16 %v7203
        %v8759 = vunpack.c.l.b16 %v7217
        %v8760 = vunpack.c.l.b16 %v7227
        %v8761 = vunpack.c.l.b16 %v7241
        %v8762 = vunpack.c.l.b16 %v7251
        %v8763 = vunpack.c.l.b16 %v7265
        %v8764 = vunpack.c.l.b16 %v7275
        %v8765 = vpack.c.b16 %v8734, %v8733
        %v8766 = vpack.c.b16 %v8736, %v8735
        %v8767 = vpack.c.b16 %v8738, %v8737
        %v8768 = vpack.c.b16 %v8740, %v8739
        %v8769 = vpack.c.b16 %v8742, %v8741
        %v8770 = vpack.c.b16 %v8744, %v8743
        %v8771 = vpack.c.b16 %v8746, %v8745
        %v8772 = vpack.c.b16 %v8748, %v8747
        %v8773 = vpack.c.b16 %v8750, %v8749
        %v8774 = vpack.c.b16 %v8752, %v8751
        %v8775 = vpack.c.b16 %v8754, %v8753
        %v8776 = vpack.c.b16 %v8756, %v8755
        %v8777 = vpack.c.b16 %v8758, %v8757
        %v8778 = vpack.c.b16 %v8760, %v8759
        %v8779 = vpack.c.b16 %v8762, %v8761
        %v8780 = vpack.c.b16 %v8764, %v8763
        %8781 = vrot.lane.b32.xlu0 %v8765, 4
        %v8782 = vpop.permute.xlu0 %8781
        %8783 = vrot.lane.b32.xlu0 %v8766, 4
        %v8784 = vpop.permute.xlu0 %8783
        %8785 = vrot.lane.b32.xlu0 %v8767, 4
        %v8786 = vpop.permute.xlu0 %8785
        %8787 = vrot.lane.b32.xlu0 %v8768, 4
        %v8788 = vpop.permute.xlu0 %8787
        %8789 = vrot.lane.b32.xlu0 %v8769, 4
        %v8790 = vpop.permute.xlu0 %8789
        %8791 = vrot.lane.b32.xlu0 %v8770, 4
        %v8792 = vpop.permute.xlu0 %8791
        %8793 = vrot.lane.b32.xlu0 %v8771, 4
        %v8794 = vpop.permute.xlu0 %8793
        %8795 = vrot.lane.b32.xlu0 %v8772, 4
        %v8796 = vpop.permute.xlu0 %8795
        %8797 = vrot.lane.b32.xlu0 %v8773, 4
        %v8798 = vpop.permute.xlu0 %8797
        %8799 = vrot.lane.b32.xlu0 %v8774, 4
        %v8800 = vpop.permute.xlu0 %8799
        %8801 = vrot.lane.b32.xlu0 %v8775, 4
        %v8802 = vpop.permute.xlu0 %8801
        %8803 = vrot.lane.b32.xlu0 %v8776, 4
        %v8804 = vpop.permute.xlu0 %8803
        %8805 = vrot.lane.b32.xlu0 %v8777, 4
        %v8806 = vpop.permute.xlu0 %8805
        %8807 = vrot.lane.b32.xlu0 %v8778, 4
        %v8808 = vpop.permute.xlu0 %8807
        %8809 = vrot.lane.b32.xlu0 %v8779, 4
        %v8810 = vpop.permute.xlu0 %8809
        %8811 = vrot.lane.b32.xlu0 %v8780, 4
        %v8812 = vpop.permute.xlu0 %8811
        %v8813 = vunpack.c.l.b16 %v7343
        %v8814 = vunpack.c.l.b16 %v7346
        %v8815 = vunpack.c.l.b16 %v7350
        %v8816 = vunpack.c.l.b16 %v7353
        %v8817 = vunpack.c.l.b16 %v7357
        %v8818 = vunpack.c.l.b16 %v7360
        %v8819 = vunpack.c.l.b16 %v7364
        %v8820 = vunpack.c.l.b16 %v7367
        %v8821 = vunpack.c.l.b16 %v7371
        %v8822 = vunpack.c.l.b16 %v7374
        %v8823 = vunpack.c.l.b16 %v7378
        %v8824 = vunpack.c.l.b16 %v7381
        %v8825 = vunpack.c.l.b16 %v7385
        %v8826 = vunpack.c.l.b16 %v7388
        %v8827 = vunpack.c.l.b16 %v7392
        %v8828 = vunpack.c.l.b16 %v7395
        %v8829 = vunpack.c.l.b16 %v7399
        %v8830 = vunpack.c.l.b16 %v7402
        %v8831 = vunpack.c.l.b16 %v7406
        %v8832 = vunpack.c.l.b16 %v7409
        %v8833 = vunpack.c.l.b16 %v7413
        %v8834 = vunpack.c.l.b16 %v7416
        %v8835 = vunpack.c.l.b16 %v7420
        %v8836 = vunpack.c.l.b16 %v7423
        %v8837 = vunpack.c.l.b16 %v7427
        %v8838 = vunpack.c.l.b16 %v7430
        %v8839 = vunpack.c.l.b16 %v7434
        %v8840 = vunpack.c.l.b16 %v7437
        %v8841 = vunpack.c.l.b16 %v7441
        %v8842 = vunpack.c.l.b16 %v7444
        %v8843 = vunpack.c.l.b16 %v7448
        %v8844 = vunpack.c.l.b16 %v7451
        %v8845 = vpack.c.b16 %v8814, %v8813
        %v8846 = vpack.c.b16 %v8816, %v8815
        %v8847 = vpack.c.b16 %v8818, %v8817
        %v8848 = vpack.c.b16 %v8820, %v8819
        %v8849 = vpack.c.b16 %v8822, %v8821
        %v8850 = vpack.c.b16 %v8824, %v8823
        %v8851 = vpack.c.b16 %v8826, %v8825
        %v8852 = vpack.c.b16 %v8828, %v8827
        %v8853 = vpack.c.b16 %v8830, %v8829
        %v8854 = vpack.c.b16 %v8832, %v8831
        %v8855 = vpack.c.b16 %v8834, %v8833
        %v8856 = vpack.c.b16 %v8836, %v8835
        %v8857 = vpack.c.b16 %v8838, %v8837
        %v8858 = vpack.c.b16 %v8840, %v8839
        %v8859 = vpack.c.b16 %v8842, %v8841
        %v8860 = vpack.c.b16 %v8844, %v8843
        %8861 = vrot.lane.b32.xlu0 %v8845, 8
        %v8862 = vpop.permute.xlu0 %8861
        %8863 = vrot.lane.b32.xlu0 %v8846, 8
        %v8864 = vpop.permute.xlu0 %8863
        %8865 = vrot.lane.b32.xlu0 %v8847, 8
        %v8866 = vpop.permute.xlu0 %8865
        %8867 = vrot.lane.b32.xlu0 %v8848, 8
        %v8868 = vpop.permute.xlu0 %8867
        %8869 = vrot.lane.b32.xlu0 %v8849, 8
        %v8870 = vpop.permute.xlu0 %8869
        %8871 = vrot.lane.b32.xlu0 %v8850, 8
        %v8872 = vpop.permute.xlu0 %8871
        %8873 = vrot.lane.b32.xlu0 %v8851, 8
        %v8874 = vpop.permute.xlu0 %8873
        %8875 = vrot.lane.b32.xlu0 %v8852, 8
        %v8876 = vpop.permute.xlu0 %8875
        %8877 = vrot.lane.b32.xlu0 %v8853, 8
        %v8878 = vpop.permute.xlu0 %8877
        %8879 = vrot.lane.b32.xlu0 %v8854, 8
        %v8880 = vpop.permute.xlu0 %8879
        %8881 = vrot.lane.b32.xlu0 %v8855, 8
        %v8882 = vpop.permute.xlu0 %8881
        %8883 = vrot.lane.b32.xlu0 %v8856, 8
        %v8884 = vpop.permute.xlu0 %8883
        %8885 = vrot.lane.b32.xlu0 %v8857, 8
        %v8886 = vpop.permute.xlu0 %8885
        %8887 = vrot.lane.b32.xlu0 %v8858, 8
        %v8888 = vpop.permute.xlu0 %8887
        %8889 = vrot.lane.b32.xlu0 %v8859, 8
        %v8890 = vpop.permute.xlu0 %8889
        %8891 = vrot.lane.b32.xlu0 %v8860, 8
        %v8892 = vpop.permute.xlu0 %8891
        %v8909 = vunpack.c.l.b16 %v7452
        %v8910 = vunpack.c.l.b16 %v7453
        %v8911 = vunpack.c.l.b16 %v7454
        %v8912 = vunpack.c.l.b16 %v7455
        %v8913 = vunpack.c.l.b16 %v7456
        %v8914 = vunpack.c.l.b16 %v7457
        %v8915 = vunpack.c.l.b16 %v7458
        %v8916 = vunpack.c.l.b16 %v7459
        %v8917 = vunpack.c.l.b16 %v7460
        %v8918 = vunpack.c.l.b16 %v7461
        %v8919 = vunpack.c.l.b16 %v7462
        %v8920 = vunpack.c.l.b16 %v7463
        %v8921 = vunpack.c.l.b16 %v7464
        %v8922 = vunpack.c.l.b16 %v7465
        %v8923 = vunpack.c.l.b16 %v7466
        %v8924 = vunpack.c.l.b16 %v7467
        %v8925 = vunpack.c.l.b16 %v7468
        %v8926 = vunpack.c.l.b16 %v7469
        %v8927 = vunpack.c.l.b16 %v7470
        %v8928 = vunpack.c.l.b16 %v7471
        %v8929 = vunpack.c.l.b16 %v7472
        %v8930 = vunpack.c.l.b16 %v7473
        %v8931 = vunpack.c.l.b16 %v7474
        %v8932 = vunpack.c.l.b16 %v7475
        %v8933 = vunpack.c.l.b16 %v7476
        %v8934 = vunpack.c.l.b16 %v7477
        %v8935 = vunpack.c.l.b16 %v7478
        %v8936 = vunpack.c.l.b16 %v7479
        %v8937 = vunpack.c.l.b16 %v7480
        %v8938 = vunpack.c.l.b16 %v7481
        %v8939 = vunpack.c.l.b16 %v7482
        %v8940 = vunpack.c.l.b16 %v7483
        %v8941 = vpack.c.b16 %v8910, %v8909
        %v8942 = vpack.c.b16 %v8912, %v8911
        %v8943 = vpack.c.b16 %v8914, %v8913
        %v8944 = vpack.c.b16 %v8916, %v8915
        %v8945 = vpack.c.b16 %v8918, %v8917
        %v8946 = vpack.c.b16 %v8920, %v8919
        %v8947 = vpack.c.b16 %v8922, %v8921
        %v8948 = vpack.c.b16 %v8924, %v8923
        %v8949 = vpack.c.b16 %v8926, %v8925
        %v8950 = vpack.c.b16 %v8928, %v8927
        %v8951 = vpack.c.b16 %v8930, %v8929
        %v8952 = vpack.c.b16 %v8932, %v8931
        %v8953 = vpack.c.b16 %v8934, %v8933
        %v8954 = vpack.c.b16 %v8936, %v8935
        %v8955 = vpack.c.b16 %v8938, %v8937
        %v8956 = vpack.c.b16 %v8940, %v8939
        %8957 = vrot.lane.b32.xlu0 %v8941, 12
        %v8958 = vpop.permute.xlu0 %8957
        %8959 = vrot.lane.b32.xlu0 %v8942, 12
        %v8960 = vpop.permute.xlu0 %8959
        %8961 = vrot.lane.b32.xlu0 %v8943, 12
        %v8962 = vpop.permute.xlu0 %8961
        %8963 = vrot.lane.b32.xlu0 %v8944, 12
        %v8964 = vpop.permute.xlu0 %8963
        %8965 = vrot.lane.b32.xlu0 %v8945, 12
        %v8966 = vpop.permute.xlu0 %8965
        %8967 = vrot.lane.b32.xlu0 %v8946, 12
        %v8968 = vpop.permute.xlu0 %8967
        %8969 = vrot.lane.b32.xlu0 %v8947, 12
        %v8970 = vpop.permute.xlu0 %8969
        %8971 = vrot.lane.b32.xlu0 %v8948, 12
        %v8972 = vpop.permute.xlu0 %8971
        %8973 = vrot.lane.b32.xlu0 %v8949, 12
        %v8974 = vpop.permute.xlu0 %8973
        %8975 = vrot.lane.b32.xlu0 %v8950, 12
        %v8976 = vpop.permute.xlu0 %8975
        %8977 = vrot.lane.b32.xlu0 %v8951, 12
        %v8978 = vpop.permute.xlu0 %8977
        %8979 = vrot.lane.b32.xlu0 %v8952, 12
        %v8980 = vpop.permute.xlu0 %8979
        %8981 = vrot.lane.b32.xlu0 %v8953, 12
        %v8982 = vpop.permute.xlu0 %8981
        %8983 = vrot.lane.b32.xlu0 %v8954, 12
        %v8984 = vpop.permute.xlu0 %8983
        %8985 = vrot.lane.b32.xlu0 %v8955, 12
        %v8986 = vpop.permute.xlu0 %8985
        %8987 = vrot.lane.b32.xlu0 %v8956, 12
        %v8988 = vpop.permute.xlu0 %8987
        %v8989 = vunpack.c.l.b16 %v7513
        %v8990 = vunpack.c.l.b16 %v7523
        %v8991 = vunpack.c.l.b16 %v7537
        %v8992 = vunpack.c.l.b16 %v7547
        %v8993 = vunpack.c.l.b16 %v7561
        %v8994 = vunpack.c.l.b16 %v7571
        %v8995 = vunpack.c.l.b16 %v7585
        %v8996 = vunpack.c.l.b16 %v7595
        %v8997 = vunpack.c.l.b16 %v7609
        %v8998 = vunpack.c.l.b16 %v7619
        %v8999 = vunpack.c.l.b16 %v7633
        %v9000 = vunpack.c.l.b16 %v7643
        %v9001 = vunpack.c.l.b16 %v7657
        %v9002 = vunpack.c.l.b16 %v7667
        %v9003 = vunpack.c.l.b16 %v7681
        %v9004 = vunpack.c.l.b16 %v7691
        %v9005 = vunpack.c.l.b16 %v7705
        %v9006 = vunpack.c.l.b16 %v7715
        %v9007 = vunpack.c.l.b16 %v7729
        %v9008 = vunpack.c.l.b16 %v7739
        %v9009 = vunpack.c.l.b16 %v7753
        %v9010 = vunpack.c.l.b16 %v7763
        %v9011 = vunpack.c.l.b16 %v7777
        %v9012 = vunpack.c.l.b16 %v7787
        %v9013 = vunpack.c.l.b16 %v7801
        %v9014 = vunpack.c.l.b16 %v7811
        %v9015 = vunpack.c.l.b16 %v7825
        %v9016 = vunpack.c.l.b16 %v7835
        %v9017 = vunpack.c.l.b16 %v7849
        %v9018 = vunpack.c.l.b16 %v7859
        %v9019 = vunpack.c.l.b16 %v7873
        %v9020 = vunpack.c.l.b16 %v7883
        %v9021 = vpack.c.b16 %v8990, %v8989
        %v9022 = vpack.c.b16 %v8992, %v8991
        %v9023 = vpack.c.b16 %v8994, %v8993
        %v9024 = vpack.c.b16 %v8996, %v8995
        %v9025 = vpack.c.b16 %v8998, %v8997
        %v9026 = vpack.c.b16 %v9000, %v8999
        %v9027 = vpack.c.b16 %v9002, %v9001
        %v9028 = vpack.c.b16 %v9004, %v9003
        %v9029 = vpack.c.b16 %v9006, %v9005
        %v9030 = vpack.c.b16 %v9008, %v9007
        %v9031 = vpack.c.b16 %v9010, %v9009
        %v9032 = vpack.c.b16 %v9012, %v9011
        %v9033 = vpack.c.b16 %v9014, %v9013
        %v9034 = vpack.c.b16 %v9016, %v9015
        %v9035 = vpack.c.b16 %v9018, %v9017
        %v9036 = vpack.c.b16 %v9020, %v9019
        %9037 = vrot.lane.b32.xlu0 %v9021, 16
        %v9038 = vpop.permute.xlu0 %9037
        %9039 = vrot.lane.b32.xlu0 %v9022, 16
        %v9040 = vpop.permute.xlu0 %9039
        %9041 = vrot.lane.b32.xlu0 %v9023, 16
        %v9042 = vpop.permute.xlu0 %9041
        %9043 = vrot.lane.b32.xlu0 %v9024, 16
        %v9044 = vpop.permute.xlu0 %9043
        %9045 = vrot.lane.b32.xlu0 %v9025, 16
        %v9046 = vpop.permute.xlu0 %9045
        %9047 = vrot.lane.b32.xlu0 %v9026, 16
        %v9048 = vpop.permute.xlu0 %9047
        %9049 = vrot.lane.b32.xlu0 %v9027, 16
        %v9050 = vpop.permute.xlu0 %9049
        %9051 = vrot.lane.b32.xlu0 %v9028, 16
        %v9052 = vpop.permute.xlu0 %9051
        %9053 = vrot.lane.b32.xlu0 %v9029, 16
        %v9054 = vpop.permute.xlu0 %9053
        %9055 = vrot.lane.b32.xlu0 %v9030, 16
        %v9056 = vpop.permute.xlu0 %9055
        %9057 = vrot.lane.b32.xlu0 %v9031, 16
        %v9058 = vpop.permute.xlu0 %9057
        %9059 = vrot.lane.b32.xlu0 %v9032, 16
        %v9060 = vpop.permute.xlu0 %9059
        %9061 = vrot.lane.b32.xlu0 %v9033, 16
        %v9062 = vpop.permute.xlu0 %9061
        %9063 = vrot.lane.b32.xlu0 %v9034, 16
        %v9064 = vpop.permute.xlu0 %9063
        %9065 = vrot.lane.b32.xlu0 %v9035, 16
        %v9066 = vpop.permute.xlu0 %9065
        %9067 = vrot.lane.b32.xlu0 %v9036, 16
        %v9068 = vpop.permute.xlu0 %9067
        %v9069 = vunpack.c.l.b16 %v7951
        %v9070 = vunpack.c.l.b16 %v7954
        %v9071 = vunpack.c.l.b16 %v7958
        %v9072 = vunpack.c.l.b16 %v7961
        %v9073 = vunpack.c.l.b16 %v7965
        %v9074 = vunpack.c.l.b16 %v7968
        %v9075 = vunpack.c.l.b16 %v7972
        %v9076 = vunpack.c.l.b16 %v7975
        %v9077 = vunpack.c.l.b16 %v7979
        %v9078 = vunpack.c.l.b16 %v7982
        %v9079 = vunpack.c.l.b16 %v7986
        %v9080 = vunpack.c.l.b16 %v7989
        %v9081 = vunpack.c.l.b16 %v7993
        %v9082 = vunpack.c.l.b16 %v7996
        %v9083 = vunpack.c.l.b16 %v8000
        %v9084 = vunpack.c.l.b16 %v8003
        %v9085 = vunpack.c.l.b16 %v8007
        %v9086 = vunpack.c.l.b16 %v8010
        %v9087 = vunpack.c.l.b16 %v8014
        %v9088 = vunpack.c.l.b16 %v8017
        %v9089 = vunpack.c.l.b16 %v8021
        %v9090 = vunpack.c.l.b16 %v8024
        %v9091 = vunpack.c.l.b16 %v8028
        %v9092 = vunpack.c.l.b16 %v8031
        %v9093 = vunpack.c.l.b16 %v8035
        %v9094 = vunpack.c.l.b16 %v8038
        %v9095 = vunpack.c.l.b16 %v8042
        %v9096 = vunpack.c.l.b16 %v8045
        %v9097 = vunpack.c.l.b16 %v8049
        %v9098 = vunpack.c.l.b16 %v8052
        %v9099 = vunpack.c.l.b16 %v8056
        %v9100 = vunpack.c.l.b16 %v8059
        %v9101 = vpack.c.b16 %v9070, %v9069
        %v9102 = vpack.c.b16 %v9072, %v9071
        %v9103 = vpack.c.b16 %v9074, %v9073
        %v9104 = vpack.c.b16 %v9076, %v9075
        %v9105 = vpack.c.b16 %v9078, %v9077
        %v9106 = vpack.c.b16 %v9080, %v9079
        %v9107 = vpack.c.b16 %v9082, %v9081
        %v9108 = vpack.c.b16 %v9084, %v9083
        %v9109 = vpack.c.b16 %v9086, %v9085
        %v9110 = vpack.c.b16 %v9088, %v9087
        %v9111 = vpack.c.b16 %v9090, %v9089
        %v9112 = vpack.c.b16 %v9092, %v9091
        %v9113 = vpack.c.b16 %v9094, %v9093
        %v9114 = vpack.c.b16 %v9096, %v9095
        %v9115 = vpack.c.b16 %v9098, %v9097
        %v9116 = vpack.c.b16 %v9100, %v9099
        %9117 = vrot.lane.b32.xlu0 %v9101, 20
        %v9118 = vpop.permute.xlu0 %9117
        %9119 = vrot.lane.b32.xlu0 %v9102, 20
        %v9120 = vpop.permute.xlu0 %9119
        %9121 = vrot.lane.b32.xlu0 %v9103, 20
        %v9122 = vpop.permute.xlu0 %9121
        %9123 = vrot.lane.b32.xlu0 %v9104, 20
        %v9124 = vpop.permute.xlu0 %9123
        %9125 = vrot.lane.b32.xlu0 %v9105, 20
        %v9126 = vpop.permute.xlu0 %9125
        %9127 = vrot.lane.b32.xlu0 %v9106, 20
        %v9128 = vpop.permute.xlu0 %9127
        %9129 = vrot.lane.b32.xlu0 %v9107, 20
        %v9130 = vpop.permute.xlu0 %9129
        %9131 = vrot.lane.b32.xlu0 %v9108, 20
        %v9132 = vpop.permute.xlu0 %9131
        %9133 = vrot.lane.b32.xlu0 %v9109, 20
        %v9134 = vpop.permute.xlu0 %9133
        %9135 = vrot.lane.b32.xlu0 %v9110, 20
        %v9136 = vpop.permute.xlu0 %9135
        %9137 = vrot.lane.b32.xlu0 %v9111, 20
        %v9138 = vpop.permute.xlu0 %9137
        %9139 = vrot.lane.b32.xlu0 %v9112, 20
        %v9140 = vpop.permute.xlu0 %9139
        %9141 = vrot.lane.b32.xlu0 %v9113, 20
        %v9142 = vpop.permute.xlu0 %9141
        %9143 = vrot.lane.b32.xlu0 %v9114, 20
        %v9144 = vpop.permute.xlu0 %9143
        %9145 = vrot.lane.b32.xlu0 %v9115, 20
        %v9146 = vpop.permute.xlu0 %9145
        %9147 = vrot.lane.b32.xlu0 %v9116, 20
        %v9148 = vpop.permute.xlu0 %9147
        %v9165 = vunpack.c.l.b16 %v8061
        %v9166 = vunpack.c.l.b16 %v8062
        %v9167 = vunpack.c.l.b16 %v8063
        %v9168 = vunpack.c.l.b16 %v8064
        %v9169 = vunpack.c.l.b16 %v8065
        %v9170 = vunpack.c.l.b16 %v8066
        %v9171 = vunpack.c.l.b16 %v8067
        %v9172 = vunpack.c.l.b16 %v8068
        %v9173 = vunpack.c.l.b16 %v8069
        %v9174 = vunpack.c.l.b16 %v8070
        %v9175 = vunpack.c.l.b16 %v8071
        %v9176 = vunpack.c.l.b16 %v8072
        %v9177 = vunpack.c.l.b16 %v8073
        %v9178 = vunpack.c.l.b16 %v8074
        %v9179 = vunpack.c.l.b16 %v8075
        %v9180 = vunpack.c.l.b16 %v8076
        %v9181 = vunpack.c.l.b16 %v8077
        %v9182 = vunpack.c.l.b16 %v8078
        %v9183 = vunpack.c.l.b16 %v8079
        %v9184 = vunpack.c.l.b16 %v8080
        %v9185 = vunpack.c.l.b16 %v8081
        %v9186 = vunpack.c.l.b16 %v8082
        %v9187 = vunpack.c.l.b16 %v8083
        %v9188 = vunpack.c.l.b16 %v8084
        %v9189 = vunpack.c.l.b16 %v8085
        %v9190 = vunpack.c.l.b16 %v8086
        %v9191 = vunpack.c.l.b16 %v8087
        %v9192 = vunpack.c.l.b16 %v8088
        %v9193 = vunpack.c.l.b16 %v8089
        %v9194 = vunpack.c.l.b16 %v8090
        %v9195 = vunpack.c.l.b16 %v8091
        %v9196 = vunpack.c.l.b16 %v8092
        %v9197 = vpack.c.b16 %v9166, %v9165
        %v9198 = vpack.c.b16 %v9168, %v9167
        %v9199 = vpack.c.b16 %v9170, %v9169
        %v9200 = vpack.c.b16 %v9172, %v9171
        %v9201 = vpack.c.b16 %v9174, %v9173
        %v9202 = vpack.c.b16 %v9176, %v9175
        %v9203 = vpack.c.b16 %v9178, %v9177
        %v9204 = vpack.c.b16 %v9180, %v9179
        %v9205 = vpack.c.b16 %v9182, %v9181
        %v9206 = vpack.c.b16 %v9184, %v9183
        %v9207 = vpack.c.b16 %v9186, %v9185
        %v9208 = vpack.c.b16 %v9188, %v9187
        %v9209 = vpack.c.b16 %v9190, %v9189
        %v9210 = vpack.c.b16 %v9192, %v9191
        %v9211 = vpack.c.b16 %v9194, %v9193
        %v9212 = vpack.c.b16 %v9196, %v9195
        %9213 = vrot.lane.b32.xlu0 %v9197, 24
        %v9214 = vpop.permute.xlu0 %9213
        %9215 = vrot.lane.b32.xlu0 %v9198, 24
        %v9216 = vpop.permute.xlu0 %9215
        %9217 = vrot.lane.b32.xlu0 %v9199, 24
        %v9218 = vpop.permute.xlu0 %9217
        %9219 = vrot.lane.b32.xlu0 %v9200, 24
        %v9220 = vpop.permute.xlu0 %9219
        %9221 = vrot.lane.b32.xlu0 %v9201, 24
        %v9222 = vpop.permute.xlu0 %9221
        %9223 = vrot.lane.b32.xlu0 %v9202, 24
        %v9224 = vpop.permute.xlu0 %9223
        %9225 = vrot.lane.b32.xlu0 %v9203, 24
        %v9226 = vpop.permute.xlu0 %9225
        %9227 = vrot.lane.b32.xlu0 %v9204, 24
        %v9228 = vpop.permute.xlu0 %9227
        %9229 = vrot.lane.b32.xlu0 %v9205, 24
        %v9230 = vpop.permute.xlu0 %9229
        %9231 = vrot.lane.b32.xlu0 %v9206, 24
        %v9232 = vpop.permute.xlu0 %9231
        %9233 = vrot.lane.b32.xlu0 %v9207, 24
        %v9234 = vpop.permute.xlu0 %9233
        %9235 = vrot.lane.b32.xlu0 %v9208, 24
        %v9236 = vpop.permute.xlu0 %9235
        %9237 = vrot.lane.b32.xlu0 %v9209, 24
        %v9238 = vpop.permute.xlu0 %9237
        %9239 = vrot.lane.b32.xlu0 %v9210, 24
        %v9240 = vpop.permute.xlu0 %9239
        %9241 = vrot.lane.b32.xlu0 %v9211, 24
        %v9242 = vpop.permute.xlu0 %9241
        %9243 = vrot.lane.b32.xlu0 %v9212, 24
        %v9244 = vpop.permute.xlu0 %9243
        %v9245 = vunpack.c.l.b16 %v8122
        %v9246 = vunpack.c.l.b16 %v8132
        %v9247 = vunpack.c.l.b16 %v8146
        %v9248 = vunpack.c.l.b16 %v8156
        %v9249 = vunpack.c.l.b16 %v8170
        %v9250 = vunpack.c.l.b16 %v8180
        %v9251 = vunpack.c.l.b16 %v8194
        %v9252 = vunpack.c.l.b16 %v8204
        %v9253 = vunpack.c.l.b16 %v8218
        %v9254 = vunpack.c.l.b16 %v8228
        %v9255 = vunpack.c.l.b16 %v8242
        %v9256 = vunpack.c.l.b16 %v8252
        %v9257 = vunpack.c.l.b16 %v8266
        %v9258 = vunpack.c.l.b16 %v8276
        %v9259 = vunpack.c.l.b16 %v8290
        %v9260 = vunpack.c.l.b16 %v8300
        %v9261 = vunpack.c.l.b16 %v8314
        %v9262 = vunpack.c.l.b16 %v8324
        %v9263 = vunpack.c.l.b16 %v8338
        %v9264 = vunpack.c.l.b16 %v8348
        %v9265 = vunpack.c.l.b16 %v8362
        %v9266 = vunpack.c.l.b16 %v8372
        %v9267 = vunpack.c.l.b16 %v8386
        %v9268 = vunpack.c.l.b16 %v8396
        %v9269 = vunpack.c.l.b16 %v8410
        %v9270 = vunpack.c.l.b16 %v8420
        %v9271 = vunpack.c.l.b16 %v8434
        %v9272 = vunpack.c.l.b16 %v8444
        %v9273 = vunpack.c.l.b16 %v8458
        %v9274 = vunpack.c.l.b16 %v8468
        %v9275 = vunpack.c.l.b16 %v8482
        %v9276 = vunpack.c.l.b16 %v8492
        %v9277 = vpack.c.b16 %v9246, %v9245
        %v9278 = vpack.c.b16 %v9248, %v9247
        %v9279 = vpack.c.b16 %v9250, %v9249
        %v9280 = vpack.c.b16 %v9252, %v9251
        %v9281 = vpack.c.b16 %v9254, %v9253
        %v9282 = vpack.c.b16 %v9256, %v9255
        %v9283 = vpack.c.b16 %v9258, %v9257
        %v9284 = vpack.c.b16 %v9260, %v9259
        %v9285 = vpack.c.b16 %v9262, %v9261
        %v9286 = vpack.c.b16 %v9264, %v9263
        %v9287 = vpack.c.b16 %v9266, %v9265
        %v9288 = vpack.c.b16 %v9268, %v9267
        %v9289 = vpack.c.b16 %v9270, %v9269
        %v9290 = vpack.c.b16 %v9272, %v9271
        %v9291 = vpack.c.b16 %v9274, %v9273
        %v9292 = vpack.c.b16 %v9276, %v9275
        %9293 = vrot.lane.b32.xlu0 %v9277, 28
        %v9294 = vpop.permute.xlu0 %9293
        %9295 = vrot.lane.b32.xlu0 %v9278, 28
        %v9296 = vpop.permute.xlu0 %9295
        %9297 = vrot.lane.b32.xlu0 %v9279, 28
        %v9298 = vpop.permute.xlu0 %9297
        %9299 = vrot.lane.b32.xlu0 %v9280, 28
        %v9300 = vpop.permute.xlu0 %9299
        %9301 = vrot.lane.b32.xlu0 %v9281, 28
        %v9302 = vpop.permute.xlu0 %9301
        %9303 = vrot.lane.b32.xlu0 %v9282, 28
        %v9304 = vpop.permute.xlu0 %9303
        %9305 = vrot.lane.b32.xlu0 %v9283, 28
        %v9306 = vpop.permute.xlu0 %9305
        %9307 = vrot.lane.b32.xlu0 %v9284, 28
        %v9308 = vpop.permute.xlu0 %9307
        %9309 = vrot.lane.b32.xlu0 %v9285, 28
        %v9310 = vpop.permute.xlu0 %9309
        %9311 = vrot.lane.b32.xlu0 %v9286, 28
        %v9312 = vpop.permute.xlu0 %9311
        %9313 = vrot.lane.b32.xlu0 %v9287, 28
        %v9314 = vpop.permute.xlu0 %9313
        %9315 = vrot.lane.b32.xlu0 %v9288, 28
        %v9316 = vpop.permute.xlu0 %9315
        %9317 = vrot.lane.b32.xlu0 %v9289, 28
        %v9318 = vpop.permute.xlu0 %9317
        %9319 = vrot.lane.b32.xlu0 %v9290, 28
        %v9320 = vpop.permute.xlu0 %9319
        %9321 = vrot.lane.b32.xlu0 %v9291, 28
        %v9322 = vpop.permute.xlu0 %9321
        %9323 = vrot.lane.b32.xlu0 %v9292, 28
        %v9324 = vpop.permute.xlu0 %9323
        %v9325 = vunpack.c.l.b16 %v8560
        %v9326 = vunpack.c.l.b16 %v8563
        %v9327 = vunpack.c.l.b16 %v8567
        %v9328 = vunpack.c.l.b16 %v8570
        %v9329 = vunpack.c.l.b16 %v8574
        %v9330 = vunpack.c.l.b16 %v8577
        %v9331 = vunpack.c.l.b16 %v8581
        %v9332 = vunpack.c.l.b16 %v8584
        %v9333 = vunpack.c.l.b16 %v8588
        %v9334 = vunpack.c.l.b16 %v8591
        %v9335 = vunpack.c.l.b16 %v8595
        %v9336 = vunpack.c.l.b16 %v8598
        %v9337 = vunpack.c.l.b16 %v8602
        %v9338 = vunpack.c.l.b16 %v8605
        %v9339 = vunpack.c.l.b16 %v8609
        %v9340 = vunpack.c.l.b16 %v8612
        %v9341 = vunpack.c.l.b16 %v8616
        %v9342 = vunpack.c.l.b16 %v8619
        %v9343 = vunpack.c.l.b16 %v8623
        %v9344 = vunpack.c.l.b16 %v8626
        %v9345 = vunpack.c.l.b16 %v8630
        %v9346 = vunpack.c.l.b16 %v8633
        %v9347 = vunpack.c.l.b16 %v8637
        %v9348 = vunpack.c.l.b16 %v8640
        %v9349 = vunpack.c.l.b16 %v8644
        %v9350 = vunpack.c.l.b16 %v8647
        %v9351 = vunpack.c.l.b16 %v8651
        %v9352 = vunpack.c.l.b16 %v8654
        %v9353 = vunpack.c.l.b16 %v8658
        %v9354 = vunpack.c.l.b16 %v8661
        %v9355 = vunpack.c.l.b16 %v8665
        %v9356 = vunpack.c.l.b16 %v8668
        %v9357 = vpack.c.b16 %v9326, %v9325
        %v9358 = vpack.c.b16 %v9328, %v9327
        %v9359 = vpack.c.b16 %v9330, %v9329
        %v9360 = vpack.c.b16 %v9332, %v9331
        %v9361 = vpack.c.b16 %v9334, %v9333
        %v9362 = vpack.c.b16 %v9336, %v9335
        %v9363 = vpack.c.b16 %v9338, %v9337
        %v9364 = vpack.c.b16 %v9340, %v9339
        %v9365 = vpack.c.b16 %v9342, %v9341
        %v9366 = vpack.c.b16 %v9344, %v9343
        %v9367 = vpack.c.b16 %v9346, %v9345
        %v9368 = vpack.c.b16 %v9348, %v9347
        %v9369 = vpack.c.b16 %v9350, %v9349
        %v9370 = vpack.c.b16 %v9352, %v9351
        %v9371 = vpack.c.b16 %v9354, %v9353
        %v9372 = vpack.c.b16 %v9356, %v9355
        %9373 = vrot.lane.b32.xlu0 %v9357, 32
        %v9374 = vpop.permute.xlu0 %9373
        %9375 = vrot.lane.b32.xlu0 %v9358, 32
        %v9376 = vpop.permute.xlu0 %9375
        %9377 = vrot.lane.b32.xlu0 %v9359, 32
        %v9378 = vpop.permute.xlu0 %9377
        %9379 = vrot.lane.b32.xlu0 %v9360, 32
        %v9380 = vpop.permute.xlu0 %9379
        %9381 = vrot.lane.b32.xlu0 %v9361, 32
        %v9382 = vpop.permute.xlu0 %9381
        %9383 = vrot.lane.b32.xlu0 %v9362, 32
        %v9384 = vpop.permute.xlu0 %9383
        %9385 = vrot.lane.b32.xlu0 %v9363, 32
        %v9386 = vpop.permute.xlu0 %9385
        %9387 = vrot.lane.b32.xlu0 %v9364, 32
        %v9388 = vpop.permute.xlu0 %9387
        %9389 = vrot.lane.b32.xlu0 %v9365, 32
        %v9390 = vpop.permute.xlu0 %9389
        %9391 = vrot.lane.b32.xlu0 %v9366, 32
        %v9392 = vpop.permute.xlu0 %9391
        %9393 = vrot.lane.b32.xlu0 %v9367, 32
        %v9394 = vpop.permute.xlu0 %9393
        %9395 = vrot.lane.b32.xlu0 %v9368, 32
        %v9396 = vpop.permute.xlu0 %9395
        %9397 = vrot.lane.b32.xlu0 %v9369, 32
        %v9398 = vpop.permute.xlu0 %9397
        %9399 = vrot.lane.b32.xlu0 %v9370, 32
        %v9400 = vpop.permute.xlu0 %9399
        %9401 = vrot.lane.b32.xlu0 %v9371, 32
        %v9402 = vpop.permute.xlu0 %9401
        %9403 = vrot.lane.b32.xlu0 %v9372, 32
        %v9404 = vpop.permute.xlu0 %9403
        %vm9405 = vcmask 31744
        %v9408 = vsel %vm9405, %v8717, %v8782
        %v9411 = vsel %vm9405, %v8718, %v8784
        %v9414 = vsel %vm9405, %v8719, %v8786
        %v9417 = vsel %vm9405, %v8720, %v8788
        %v9420 = vsel %vm9405, %v8721, %v8790
        %v9423 = vsel %vm9405, %v8722, %v8792
        %v9426 = vsel %vm9405, %v8723, %v8794
        %v9429 = vsel %vm9405, %v8724, %v8796
        %v9432 = vsel %vm9405, %v8725, %v8798
        %v9435 = vsel %vm9405, %v8726, %v8800
        %v9438 = vsel %vm9405, %v8727, %v8802
        %v9441 = vsel %vm9405, %v8728, %v8804
        %v9444 = vsel %vm9405, %v8729, %v8806
        %v9447 = vsel %vm9405, %v8730, %v8808
        %v9450 = vsel %vm9405, %v8731, %v8810
        %v9453 = vsel %vm9405, %v8732, %v8812
        %v9455 = vsel %vm700, %v9408, %v8862
        %v9457 = vsel %vm700, %v9411, %v8864
        %v9459 = vsel %vm700, %v9414, %v8866
        %v9461 = vsel %vm700, %v9417, %v8868
        %v9463 = vsel %vm700, %v9420, %v8870
        %v9465 = vsel %vm700, %v9423, %v8872
        %v9467 = vsel %vm700, %v9426, %v8874
        %v9469 = vsel %vm700, %v9429, %v8876
        %v9471 = vsel %vm700, %v9432, %v8878
        %v9473 = vsel %vm700, %v9435, %v8880
        %v9475 = vsel %vm700, %v9438, %v8882
        %v9477 = vsel %vm700, %v9441, %v8884
        %v9479 = vsel %vm700, %v9444, %v8886
        %v9481 = vsel %vm700, %v9447, %v8888
        %v9483 = vsel %vm700, %v9450, %v8890
        %v9485 = vsel %vm700, %v9453, %v8892
        %vm9486 = vcmask 97280
        %v9488 = vsel %vm9486, %v9455, %v8958
        %v9490 = vsel %vm9486, %v9457, %v8960
        %v9492 = vsel %vm9486, %v9459, %v8962
        %v9494 = vsel %vm9486, %v9461, %v8964
        %v9496 = vsel %vm9486, %v9463, %v8966
        %v9498 = vsel %vm9486, %v9465, %v8968
        %v9500 = vsel %vm9486, %v9467, %v8970
        %v9502 = vsel %vm9486, %v9469, %v8972
        %v9504 = vsel %vm9486, %v9471, %v8974
        %v9506 = vsel %vm9486, %v9473, %v8976
        %v9508 = vsel %vm9486, %v9475, %v8978
        %v9510 = vsel %vm9486, %v9477, %v8980
        %v9512 = vsel %vm9486, %v9479, %v8982
        %v9514 = vsel %vm9486, %v9481, %v8984
        %v9516 = vsel %vm9486, %v9483, %v8986
        %v9518 = vsel %vm9486, %v9485, %v8988
        %v9520 = vsel %vm713, %v9488, %v9038
        %v9522 = vsel %vm713, %v9490, %v9040
        %v9524 = vsel %vm713, %v9492, %v9042
        %v9526 = vsel %vm713, %v9494, %v9044
        %v9528 = vsel %vm713, %v9496, %v9046
        %v9530 = vsel %vm713, %v9498, %v9048
        %v9532 = vsel %vm713, %v9500, %v9050
        %v9534 = vsel %vm713, %v9502, %v9052
        %v9536 = vsel %vm713, %v9504, %v9054
        %v9538 = vsel %vm713, %v9506, %v9056
        %v9540 = vsel %vm713, %v9508, %v9058
        %v9542 = vsel %vm713, %v9510, %v9060
        %v9544 = vsel %vm713, %v9512, %v9062
        %v9546 = vsel %vm713, %v9514, %v9064
        %v9548 = vsel %vm713, %v9516, %v9066
        %v9550 = vsel %vm713, %v9518, %v9068
        %vm9551 = vcmask 162816
        %v9553 = vsel %vm9551, %v9520, %v9118
        %v9555 = vsel %vm9551, %v9522, %v9120
        %v9557 = vsel %vm9551, %v9524, %v9122
        %v9559 = vsel %vm9551, %v9526, %v9124
        %v9561 = vsel %vm9551, %v9528, %v9126
        %v9563 = vsel %vm9551, %v9530, %v9128
        %v9565 = vsel %vm9551, %v9532, %v9130
        %v9567 = vsel %vm9551, %v9534, %v9132
        %v9569 = vsel %vm9551, %v9536, %v9134
        %v9571 = vsel %vm9551, %v9538, %v9136
        %v9573 = vsel %vm9551, %v9540, %v9138
        %v9575 = vsel %vm9551, %v9542, %v9140
        %v9577 = vsel %vm9551, %v9544, %v9142
        %v9579 = vsel %vm9551, %v9546, %v9144
        %v9581 = vsel %vm9551, %v9548, %v9146
        %v9583 = vsel %vm9551, %v9550, %v9148
        %v9585 = vsel %vm722, %v9553, %v9214
        %v9587 = vsel %vm722, %v9555, %v9216
        %v9589 = vsel %vm722, %v9557, %v9218
        %v9591 = vsel %vm722, %v9559, %v9220
        %v9593 = vsel %vm722, %v9561, %v9222
        %v9595 = vsel %vm722, %v9563, %v9224
        %v9597 = vsel %vm722, %v9565, %v9226
        %v9599 = vsel %vm722, %v9567, %v9228
        %v9601 = vsel %vm722, %v9569, %v9230
        %v9603 = vsel %vm722, %v9571, %v9232
        %v9605 = vsel %vm722, %v9573, %v9234
        %v9607 = vsel %vm722, %v9575, %v9236
        %v9609 = vsel %vm722, %v9577, %v9238
        %v9611 = vsel %vm722, %v9579, %v9240
        %v9613 = vsel %vm722, %v9581, %v9242
        %v9615 = vsel %vm722, %v9583, %v9244
        %vm9616 = vcmask 228352
        %v9618 = vsel %vm9616, %v9585, %v9294
        %v9620 = vsel %vm9616, %v9587, %v9296
        %v9622 = vsel %vm9616, %v9589, %v9298
        %v9624 = vsel %vm9616, %v9591, %v9300
        %v9626 = vsel %vm9616, %v9593, %v9302
        %v9628 = vsel %vm9616, %v9595, %v9304
        %v9630 = vsel %vm9616, %v9597, %v9306
        %v9632 = vsel %vm9616, %v9599, %v9308
        %v9634 = vsel %vm9616, %v9601, %v9310
        %v9636 = vsel %vm9616, %v9603, %v9312
        %v9638 = vsel %vm9616, %v9605, %v9314
        %v9640 = vsel %vm9616, %v9607, %v9316
        %v9642 = vsel %vm9616, %v9609, %v9318
        %v9644 = vsel %vm9616, %v9611, %v9320
        %v9646 = vsel %vm9616, %v9613, %v9322
        %v9648 = vsel %vm9616, %v9615, %v9324
        %v9650 = vsel %vm754, %v9618, %v9374
        %v9652 = vsel %vm754, %v9620, %v9376
        %v9654 = vsel %vm754, %v9622, %v9378
        %v9656 = vsel %vm754, %v9624, %v9380
        %v9658 = vsel %vm754, %v9626, %v9382
        %v9660 = vsel %vm754, %v9628, %v9384
        %v9662 = vsel %vm754, %v9630, %v9386
        %v9664 = vsel %vm754, %v9632, %v9388
        %v9666 = vsel %vm754, %v9634, %v9390
        %v9668 = vsel %vm754, %v9636, %v9392
        %v9670 = vsel %vm754, %v9638, %v9394
        %v9672 = vsel %vm754, %v9640, %v9396
        %v9674 = vsel %vm754, %v9642, %v9398
        %v9676 = vsel %vm754, %v9644, %v9400
        %v9678 = vsel %vm754, %v9646, %v9402
        %v9680 = vsel %vm754, %v9648, %v9404
        %v9681 = vld [vmem:[%s7] sm:$0xf]
        %v9682 = vld [vmem:[%s7 + $0x4] sm:$0xf]
        %v9683 = vld [vmem:[%s7 + $0x8] sm:$0xf]
        %v9684 = vld [vmem:[%s7 + $0xc] sm:$0xf]
        %v9685 = vld [vmem:[%s7 + $0x10] sm:$0x3]
        %v9686 = vld [vmem:[%s8] sm:$0x1]
        %v9688 = vlaneseq
        %v9689 = vshrl.u32 %v9688, 7
        %v9690 = vsub.s32 0, %v9689
        %v9691 = vrot.slane %v9686, %v9690
        %v9698 = vunpack.c.l.b16 %v9681
        %v9699 = vunpack.c.l.b16 %v9682
        %v9700 = vunpack.c.l.b16 %v9683
        %v9701 = vunpack.c.l.b16 %v9684
        %v9702 = vunpack.c.l.b16 %v9685
        %v9703 = vpack.c.b16 %v9699, %v9698
        %v9704 = vpack.c.b16 %v9701, %v9700
        %v9705 = vpack.c.b16 %v9702, %v9702
        %vm9708 = vcmask 293888
        %v9709 = vsel %vm9708, %v9650, 0
        %v9711 = vsel %vm9708, %v9652, 0
        %v9713 = vsel %vm9708, %v9654, 0
        %v9715 = vsel %vm9708, %v9656, 0
        %v9717 = vsel %vm9708, %v9658, 0
        %v9719 = vsel %vm9708, %v9660, 0
        %v9721 = vsel %vm9708, %v9662, 0
        %v9723 = vsel %vm9708, %v9664, 0
        %v9725 = vsel %vm9708, %v9666, 0
        %v9727 = vsel %vm9708, %v9668, 0
        %v9729 = vsel %vm9708, %v9670, 0
        %v9731 = vsel %vm9708, %v9672, 0
        %v9733 = vsel %vm9708, %v9674, 0
        %v9735 = vsel %vm9708, %v9676, 0
        %v9737 = vsel %vm9708, %v9678, 0
        %v9739 = vsel %vm9708, %v9680, 0
        %vm9741 = vcmask 1041408
        %v9743 = vsel %vm9741, %v9705, 0
        %9745 = vmatprep.subr.bf16.mxu0 0
        %9746 = vmatpush1.bf16.msra.mxu0 %v9703
        %9747 = vmatprep.subr.bf16.mxu0 0
        %9748 = vmatpush1.bf16.msra.mxu0 %v9704
        %9749 = vmatprep.subr.bf16.mxu0 0
        %9750 = vmatpush1.bf16.msra.mxu0 %v9743
        %9751 = vmatprep.subr.bf16.mxu0 0
        %9752 = vmatpush1.bf16.msra.mxu0 0
        %9753 = vmatprep.subr.bf16.mxu0 0
        %9754 = vmatpush1.bf16.msra.mxu0 0
        %9755 = vmatprep.subr.bf16.mxu0 0
        %9756 = vmatpush1.bf16.msra.mxu0 0
        %9757 = vmatprep.subr.bf16.mxu0 0
        %9758 = vmatpush1.bf16.msra.mxu0 0
        %9759 = vmatprep.subr.bf16.mxu0 0
        %9760 = vmatpush1.bf16.msra.mxu0 0
        %9761 = vmatprep.subr.bf16.mxu0 0
        %9762 = vmatpush1.bf16.msra.mxu0 0
        %9763 = vmatprep.subr.bf16.mxu0 0
        %9764 = vmatpush1.bf16.msra.mxu0 0
        %9765 = vmatprep.subr.bf16.mxu0 0
        %9766 = vmatpush1.bf16.msra.mxu0 0
        %9767 = vmatprep.subr.bf16.mxu0 0
        %9768 = vmatpush1.bf16.msra.mxu0 0
        %9769 = vmatprep.subr.bf16.mxu0 0
        %9770 = vmatpush1.bf16.msra.mxu0 0
        %9771 = vmatprep.subr.bf16.mxu0 0
        %9772 = vmatpush1.bf16.msra.mxu0 0
        %9773 = vmatprep.subr.bf16.mxu0 0
        %9774 = vmatpush1.bf16.msra.mxu0 0
        %9775 = vmatprep.subr.bf16.mxu0 0
        %9776 = vmatpush1.bf16.msra.mxu0 0
        %9777 = vmatprep.mubr.bf16.mxu0 0
        %9778 = vmatmul.mubr.bf16.gmra.mrb[0].mxu0 %v9709
        %v9779 = vpop.f32.mrb[0].mxu0
        %v9780 = vadd.f32 %v9691, %v9779
        %v9781 = vpop.f32.mrb[0].mxu0
        %v9782 = vpop.f32.mrb[0].mxu0
        %v9783 = vadd.f32 %v9691, %v9782
        %v9784 = vpop.f32.mrb[0].mxu0
        %9785 = vmatprep.mubr.bf16.mxu0 0
        %9786 = vmatmul.mubr.bf16.gmra.mrb[0].mxu0 %v9711
        %v9787 = vpop.f32.mrb[0].mxu0
        %v9788 = vadd.f32 %v9691, %v9787
        %v9789 = vpop.f32.mrb[0].mxu0
        %v9790 = vpop.f32.mrb[0].mxu0
        %v9791 = vadd.f32 %v9691, %v9790
        %v9792 = vpop.f32.mrb[0].mxu0
        %9793 = vmatprep.mubr.bf16.mxu0 0
        %9794 = vmatmul.mubr.bf16.gmra.mrb[0].mxu0 %v9713
        %v9795 = vpop.f32.mrb[0].mxu0
        %v9796 = vadd.f32 %v9691, %v9795
        %v9797 = vpop.f32.mrb[0].mxu0
        %v9798 = vpop.f32.mrb[0].mxu0
        %v9799 = vadd.f32 %v9691, %v9798
        %v9800 = vpop.f32.mrb[0].mxu0
        %9801 = vmatprep.mubr.bf16.mxu0 0
        %9802 = vmatmul.mubr.bf16.gmra.mrb[0].mxu0 %v9715
        %v9803 = vpop.f32.mrb[0].mxu0
        %v9804 = vadd.f32 %v9691, %v9803
        %v9805 = vpop.f32.mrb[0].mxu0
        %v9806 = vpop.f32.mrb[0].mxu0
        %v9807 = vadd.f32 %v9691, %v9806
        %v9808 = vpop.f32.mrb[0].mxu0
        %9809 = vmatprep.mubr.bf16.mxu0 0
        %9810 = vmatmul.mubr.bf16.gmra.mrb[0].mxu0 %v9717
        %v9811 = vpop.f32.mrb[0].mxu0
        %v9812 = vadd.f32 %v9691, %v9811
        %v9813 = vpop.f32.mrb[0].mxu0
        %v9814 = vpop.f32.mrb[0].mxu0
        %v9815 = vadd.f32 %v9691, %v9814
        %v9816 = vpop.f32.mrb[0].mxu0
        %9817 = vmatprep.mubr.bf16.mxu0 0
        %9818 = vmatmul.mubr.bf16.gmra.mrb[0].mxu0 %v9719
        %v9819 = vpop.f32.mrb[0].mxu0
        %v9820 = vadd.f32 %v9691, %v9819
        %v9821 = vpop.f32.mrb[0].mxu0
        %v9822 = vpop.f32.mrb[0].mxu0
        %v9823 = vadd.f32 %v9691, %v9822
        %v9824 = vpop.f32.mrb[0].mxu0
        %9825 = vmatprep.mubr.bf16.mxu0 0
        %9826 = vmatmul.mubr.bf16.gmra.mrb[0].mxu0 %v9721
        %v9827 = vpop.f32.mrb[0].mxu0
        %v9828 = vadd.f32 %v9691, %v9827
        %v9829 = vpop.f32.mrb[0].mxu0
        %v9830 = vpop.f32.mrb[0].mxu0
        %v9831 = vadd.f32 %v9691, %v9830
        %v9832 = vpop.f32.mrb[0].mxu0
        %9833 = vmatprep.mubr.bf16.mxu0 0
        %9834 = vmatmul.mubr.bf16.gmra.mrb[0].mxu0 %v9723
        %v9835 = vpop.f32.mrb[0].mxu0
        %v9836 = vadd.f32 %v9691, %v9835
        %v9837 = vpop.f32.mrb[0].mxu0
        %v9838 = vpop.f32.mrb[0].mxu0
        %v9839 = vadd.f32 %v9691, %v9838
        %v9840 = vpop.f32.mrb[0].mxu0
        %9841 = vmatprep.mubr.bf16.mxu0 0
        %9842 = vmatmul.mubr.bf16.gmra.mrb[0].mxu0 %v9725
        %v9843 = vpop.f32.mrb[0].mxu0
        %v9844 = vadd.f32 %v9691, %v9843
        %v9845 = vpop.f32.mrb[0].mxu0
        %v9846 = vpop.f32.mrb[0].mxu0
        %v9847 = vadd.f32 %v9691, %v9846
        %v9848 = vpop.f32.mrb[0].mxu0
        %9849 = vmatprep.mubr.bf16.mxu0 0
        %9850 = vmatmul.mubr.bf16.gmra.mrb[0].mxu0 %v9727
        %v9851 = vpop.f32.mrb[0].mxu0
        %v9852 = vadd.f32 %v9691, %v9851
        %v9853 = vpop.f32.mrb[0].mxu0
        %v9854 = vpop.f32.mrb[0].mxu0
        %v9855 = vadd.f32 %v9691, %v9854
        %v9856 = vpop.f32.mrb[0].mxu0
        %9857 = vmatprep.mubr.bf16.mxu0 0
        %9858 = vmatmul.mubr.bf16.gmra.mrb[0].mxu0 %v9729
        %v9859 = vpop.f32.mrb[0].mxu0
        %v9860 = vadd.f32 %v9691, %v9859
        %v9861 = vpop.f32.mrb[0].mxu0
        %v9862 = vpop.f32.mrb[0].mxu0
        %v9863 = vadd.f32 %v9691, %v9862
        %v9864 = vpop.f32.mrb[0].mxu0
        %9865 = vmatprep.mubr.bf16.mxu0 0
        %9866 = vmatmul.mubr.bf16.gmra.mrb[0].mxu0 %v9731
        %v9867 = vpop.f32.mrb[0].mxu0
        %v9868 = vadd.f32 %v9691, %v9867
        %v9869 = vpop.f32.mrb[0].mxu0
        %v9870 = vpop.f32.mrb[0].mxu0
        %v9871 = vadd.f32 %v9691, %v9870
        %v9872 = vpop.f32.mrb[0].mxu0
        %9873 = vmatprep.mubr.bf16.mxu0 0
        %9874 = vmatmul.mubr.bf16.gmra.mrb[0].mxu0 %v9733
        %v9875 = vpop.f32.mrb[0].mxu0
        %v9876 = vadd.f32 %v9691, %v9875
        %v9877 = vpop.f32.mrb[0].mxu0
        %v9878 = vpop.f32.mrb[0].mxu0
        %v9879 = vadd.f32 %v9691, %v9878
        %v9880 = vpop.f32.mrb[0].mxu0
        %9881 = vmatprep.mubr.bf16.mxu0 0
        %9882 = vmatmul.mubr.bf16.gmra.mrb[0].mxu0 %v9735
        %v9883 = vpop.f32.mrb[0].mxu0
        %v9884 = vadd.f32 %v9691, %v9883
        %v9885 = vpop.f32.mrb[0].mxu0
        %v9886 = vpop.f32.mrb[0].mxu0
        %v9887 = vadd.f32 %v9691, %v9886
        %v9888 = vpop.f32.mrb[0].mxu0
        %9889 = vmatprep.mubr.bf16.mxu0 0
        %9890 = vmatmul.mubr.bf16.gmra.mrb[0].mxu0 %v9737
        %v9891 = vpop.f32.mrb[0].mxu0
        %v9892 = vadd.f32 %v9691, %v9891
        %v9893 = vpop.f32.mrb[0].mxu0
        %v9894 = vpop.f32.mrb[0].mxu0
        %v9895 = vadd.f32 %v9691, %v9894
        %v9896 = vpop.f32.mrb[0].mxu0
        %9897 = vmatprep.mubr.bf16.mxu0 0
        %9898 = vmatmul.mubr.bf16.gmra.mrb[0].mxu0 %v9739
        %v9899 = vpop.f32.mrb[0].mxu0
        %v9900 = vadd.f32 %v9691, %v9899
        %v9901 = vpop.f32.mrb[0].mxu0
        %v9902 = vpop.f32.mrb[0].mxu0
        %v9903 = vadd.f32 %v9691, %v9902
        %v9904 = vpop.f32.mrb[0].mxu0
        %9905 = vdwg.mxu0
        %v9906 = vmax.f32 %v9780, 0.0
        %v9907 = vmax.f32 %v9783, 0.0
        %v9908 = vmax.f32 %v9788, 0.0
        %v9909 = vmax.f32 %v9791, 0.0
        %v9910 = vmax.f32 %v9796, 0.0
        %v9911 = vmax.f32 %v9799, 0.0
        %v9912 = vmax.f32 %v9804, 0.0
        %v9913 = vmax.f32 %v9807, 0.0
        %v9914 = vmax.f32 %v9812, 0.0
        %v9915 = vmax.f32 %v9815, 0.0
        %v9916 = vmax.f32 %v9820, 0.0
        %v9917 = vmax.f32 %v9823, 0.0
        %v9918 = vmax.f32 %v9828, 0.0
        %v9919 = vmax.f32 %v9831, 0.0
        %v9920 = vmax.f32 %v9836, 0.0
        %v9921 = vmax.f32 %v9839, 0.0
        %v9922 = vmax.f32 %v9844, 0.0
        %v9923 = vmax.f32 %v9847, 0.0
        %v9924 = vmax.f32 %v9852, 0.0
        %v9925 = vmax.f32 %v9855, 0.0
        %v9926 = vmax.f32 %v9860, 0.0
        %v9927 = vmax.f32 %v9863, 0.0
        %v9928 = vmax.f32 %v9868, 0.0
        %v9929 = vmax.f32 %v9871, 0.0
        %v9930 = vmax.f32 %v9876, 0.0
        %v9931 = vmax.f32 %v9879, 0.0
        %v9932 = vmax.f32 %v9884, 0.0
        %v9933 = vmax.f32 %v9887, 0.0
        %v9934 = vmax.f32 %v9892, 0.0
        %v9935 = vmax.f32 %v9895, 0.0
        %v9936 = vmax.f32 %v9900, 0.0
        %v9937 = vmax.f32 %v9903, 0.0
        %9938 = vxpose.xlu0.b32.start [1/16] %v9906, 128
        %9939 = vxpose.xlu0.b32.cont [2/16] %v9907, 128
        %9940 = vxpose.xlu0.b32.cont [3/16] %v9908, 128
        %9941 = vxpose.xlu0.b32.cont [4/16] %v9909, 128
        %9942 = vxpose.xlu0.b32.cont [5/16] %v9910, 128
        %9943 = vxpose.xlu0.b32.cont [6/16] %v9911, 128
        %9944 = vxpose.xlu0.b32.cont [7/16] %v9912, 128
        %9945 = vxpose.xlu0.b32.cont [8/16] %v9913, 128
        %9946 = vxpose.xlu0.b32.cont [9/16] %v9914, 128
        %9947 = vxpose.xlu0.b32.cont [10/16] %v9915, 128
        %9948 = vxpose.xlu0.b32.cont [11/16] %v9916, 128
        %9949 = vxpose.xlu0.b32.cont [12/16] %v9917, 128
        %9950 = vxpose.xlu0.b32.cont [13/16] %v9918, 128
        %9951 = vxpose.xlu0.b32.cont [14/16] %v9919, 128
        %9952 = vxpose.xlu0.b32.cont [15/16] %v9920, 128
        %9953 = vxpose.xlu0.b32.end [16/16] %v9921, 128
        %v9954 = vpop.trf.xlu0
        %v9955 = vpop.trf.xlu0
        %v9956 = vpop.trf.xlu0
        %v9957 = vpop.trf.xlu0
        %v9958 = vpop.trf.xlu0
        %v9959 = vpop.trf.xlu0
        %v9960 = vpop.trf.xlu0
        %v9961 = vpop.trf.xlu0
        %v9962 = vpop.trf.xlu0
        %v9963 = vpop.trf.xlu0
        %v9964 = vpop.trf.xlu0
        %v9965 = vpop.trf.xlu0
        %v9966 = vpop.trf.xlu0
        %v9967 = vpop.trf.xlu0
        %v9968 = vpop.trf.xlu0
        %v9969 = vpop.trf.xlu0
        %9970 = vxpose.xlu0.b32.start [1/16] %v9922, 128
        %9971 = vxpose.xlu0.b32.cont [2/16] %v9923, 128
        %9972 = vxpose.xlu0.b32.cont [3/16] %v9924, 128
        %9973 = vxpose.xlu0.b32.cont [4/16] %v9925, 128
        %9974 = vxpose.xlu0.b32.cont [5/16] %v9926, 128
        %9975 = vxpose.xlu0.b32.cont [6/16] %v9927, 128
        %9976 = vxpose.xlu0.b32.cont [7/16] %v9928, 128
        %9977 = vxpose.xlu0.b32.cont [8/16] %v9929, 128
        %9978 = vxpose.xlu0.b32.cont [9/16] %v9930, 128
        %9979 = vxpose.xlu0.b32.cont [10/16] %v9931, 128
        %9980 = vxpose.xlu0.b32.cont [11/16] %v9932, 128
        %9981 = vxpose.xlu0.b32.cont [12/16] %v9933, 128
        %9982 = vxpose.xlu0.b32.cont [13/16] %v9934, 128
        %9983 = vxpose.xlu0.b32.cont [14/16] %v9935, 128
        %9984 = vxpose.xlu0.b32.cont [15/16] %v9936, 128
        %9985 = vxpose.xlu0.b32.end [16/16] %v9937, 128
        %v9986 = vpop.trf.xlu0
        %v9987 = vpop.trf.xlu0
        %v9988 = vpop.trf.xlu0
        %v9989 = vpop.trf.xlu0
        %v9990 = vpop.trf.xlu0
        %v9991 = vpop.trf.xlu0
        %v9992 = vpop.trf.xlu0
        %v9993 = vpop.trf.xlu0
        %v9994 = vpop.trf.xlu0
        %v9995 = vpop.trf.xlu0
        %v9996 = vpop.trf.xlu0
        %v9997 = vpop.trf.xlu0
        %v9998 = vpop.trf.xlu0
        %v9999 = vpop.trf.xlu0
        %v10000 = vpop.trf.xlu0
        %v10001 = vpop.trf.xlu0
        %v10004 = vcombine.low %v9954, %v9986
        %10006 = vst [vmem:[%s340] sm:$0xff] %v10004
        %s10007 = sand.u32 %s230, 1
        %s10008 = scalar_lea.sflag [#allocation5], %s10007
        %s10009 = sand.u32 %s230, 1
        %s10010 = smul.addr %s10009, 8
        %s10011 = scalar_lea.vmem [#allocation4], %s10010
        // Predicated region
        $region57: #{tpu_custom_call.1} parent=55 // pred_check
          %p10012 = pneg %p240
        $region58: #{tpu_custom_call.1} parent=55 // pred_check_branch
          %10014 = sbr.rel (%p10012) target = $region60
        $region59: #{tpu_custom_call.1} parent=55 // pred_region
          %s10016 = ssub.s32 128, 128
          %10017 = vsyncadd %s10008, %s10016
          %s10018 = smul.addr %s23, 2
          %s10019 = smul.addr %s10018, 64
          %s10020 = scalar_lea.hbm %s9, %s10019
          %s10022 = sshll.u32 %s10011, 4
          %s10023 = int_to_ptr.vmem [resolvable:$true] %s10022
          %10025 = dma.vmem_to_hbm [thread:$0]  %s10023, 128, %s10020, %s10008
        $region60: #{tpu_custom_call.1} parent=55 // pred_fallthru
          _
      $region56: #{tpu_custom_call.1} parent=5 // pred_fallthru
        _
      %p10026 = scmp.le.s32.totalorder 2, %s18
      // Predicated region
      $region61: #{tpu_custom_call.1} parent=5 // pred_check
        %p10027 = pneg %p10026
      $region62: #{tpu_custom_call.1} parent=5 // pred_check_branch
        %10029 = sbr.rel (%p10027) target = $region64
      $region63: #{tpu_custom_call.1} parent=5 // pred_region
        %s10030 = ssub.s32 %s18, 2
        // Predicated region
        $region65: #{tpu_custom_call.1} parent=63 // pred_check
          %p10031 = pneg %p246
        $region66: #{tpu_custom_call.1} parent=63 // pred_check_branch
          %10033 = sbr.rel (%p10031) target = $region68
        $region67: #{tpu_custom_call.1} parent=63 // pred_region
          %s10034 = sand.u32 %s231, 1
          %s10035 = scalar_lea.sflag [#allocation5], %s10034
          %s10036 = sand.u32 %s231, 1
          %s10037 = smul.addr %s10036, 8
          %s10038 = scalar_lea.vmem [#allocation4], %s10037
          %10039 = dma.done %s10035, 128
        $region68: #{tpu_custom_call.1} parent=63 // pred_fallthru
          _
      $region64: #{tpu_custom_call.1} parent=5 // pred_fallthru
        _
    $region6: #{tpu_custom_call.1} parent=1 // loop_footer
      %s22 = sadd.s32 1, %s18
    $region7: #{tpu_custom_call.1} parent=1 // loop_footer_branch
      %17 = sbr.rel target = $region3
    $region8: #{tpu_custom_call.1} parent=1 // loop_exit
      _
    %10040 = vsyncpa [#allocation5], 1
    %s10041 = scalar_lea.sflag [#allocation5], 1
    %10042 = vsyncpa %s10041, 1

</llo_original>
